<compile_context>
chip_gen: v7x
topology: tpu7x:2x2x1
jax: 0.10.0
libtpu: 0.0.40
codegen_flags: <defaults>
</compile_context>

<pallas_src>
import jax
import jax.numpy as jnp
import numpy as np
from jax.experimental import pallas as pl
from jax.experimental.pallas import tpu as pltpu

_BLOCK = 8      # bag instances per grid step (keeps B*12 rows 8-aligned)


# ----------------------------------------------------------------------------
# wrapper-side weight plumbing (tiny XLA / numpy ops)
# ----------------------------------------------------------------------------
def _full_spec(shape):
    """BlockSpec covering the whole array, for a 1-D grid."""
    zeros = (0,) * len(shape)
    return pl.BlockSpec(shape, lambda i, _z=zeros: _z)


def _band_matrices(w, in_w, half_out_w, parity):
    """Banded conv-along-W matrices for a torch-layout conv weight.

    w: (Cout, Cin, K, K).  Returns B of shape (K, Cin*in_w, Cout*half_out_w):
      B[ki, ci*in_w + win, co*half_out_w + j] = w[co, ci, ki, win - (2j+parity)]
    (zero outside kernel support).  A row-vector v with v[ci*in_w + win] =
    x[ci, h, win] then gives (v @ B[ki])[co*half + j] = contribution of input
    row h at kernel row ki to conv output (oh = h - ki, ow = 2j+parity, co).
    """
    cout, cin, K, _ = w.shape
    win = jnp.arange(in_w)[:, None]
    j = jnp.arange(half_out_w)[None, :]
    kj = win - (2 * j + parity)                     # (in_w, half_out_w)
    valid = (kj >= 0) & (kj < K)
    kj_c = jnp.clip(kj, 0, K - 1)
    wg = w[:, :, :, kj_c]                           # (cout, cin, K, in_w, half)
    wg = jnp.where(valid[None, None, None], wg, 0.0)
    wg = jnp.transpose(wg, (2, 1, 3, 0, 4))         # (K, cin, in_w, cout, half)
    return wg.reshape(K, cin * in_w, cout * half_out_w)


def _merged_band(w, in_w, half_out_w):
    """Merge even/odd column-parity bands along the lane axis, padded to 512:
    even-parity outputs in lanes [0, 256), odd-parity in [256, 512)."""
    be = _band_matrices(w, in_w, half_out_w, 0)
    bo = _band_matrices(w, in_w, half_out_w, 1)
    pad = ((0, 0), (0, 0), (0, 256 - be.shape[-1]))
    return jnp.concatenate([jnp.pad(be, pad), jnp.pad(bo, pad)], axis=-1)


def _stage2_select(b_inst):
    """Exact 0/1 select matrix: sel[s*B*4 + b*4 + i, b*12 + 2*i + s] = 1.
    One (6*B*4, B*12) @ (B*12, 256) dot then yields all 6 shifted row sets."""
    s = np.arange(6)[:, None, None]
    b = np.arange(b_inst)[None, :, None]
    i = np.arange(4)[None, None, :]
    col = b * 12 + 2 * i + s                                  # (6, B, 4)
    m = np.zeros((6, b_inst, 4, b_inst * 12), np.float32)
    m[np.broadcast_to(s, col.shape),
      np.broadcast_to(b, col.shape),
      np.broadcast_to(i, col.shape), col] = 1.0
    return jnp.asarray(m.reshape(6 * b_inst * 4, b_inst * 12), jnp.bfloat16)


# ----------------------------------------------------------------------------
# Kernel 1: fused conv1+ReLU+pool+conv2+ReLU+pool for a block of B instances
# ----------------------------------------------------------------------------
def _feature_kernel(xs_ref, band1_ref, bias1_ref, sel2_ref, band2_ref, bias2_ref,
                    out_ref, acc_e, acc_o, acc2, sh_buf):
    f32 = jnp.float32
    bf16 = jnp.bfloat16
    nb4 = out_ref.shape[0]                               # B*4 (=32)

    # ---- conv1 + ReLU + 2x2 maxpool, M-stacked over the B instances ---------
    # xs_ref[s] holds rows x[b, 2i+s, :] stacked as (B*12, 28) bf16.
    # band1_ref[ki]: merged-parity band (28, 512) bf16.
    # acc_e collects conv rows 2i, acc_o rows 2i+1 (f32 VMEM accumulators).
    for ki in range(5):
        band = band1_ref[ki]
        de = jnp.dot(xs_ref[ki], band, preferred_element_type=f32)
        do = jnp.dot(xs_ref[ki + 1], band, preferred_element_type=f32)
        if ki == 0:
            acc_e[...] = de
            acc_o[...] = do
        else:
            acc_e[...] += de
            acc_o[...] += do
    rm = jnp.maximum(acc_e[...], acc_o[...])                  # row-parity max
    p1 = jnp.maximum(rm[:, :256], rm[:, 256:])                # col-parity max
    p1 = jnp.maximum(p1 + bias1_ref[...], 0.0).astype(bf16)   # (B*12, 256)
    # (per-channel bias is constant over the 2x2 window and ReLU is monotone,
    #  so bias/ReLU after the max is exact)

    # ---- gather all 6 shifted row sets for conv2 with one exact select dot --
    sh_buf[...] = jnp.dot(sel2_ref[...], p1,
                          preferred_element_type=f32).astype(bf16)

    # ---- conv2 + ReLU + 2x2 maxpool ------------------------------------------
    # rows [ki*B*4, (ki+2)*B*4) of sh_buf are exactly the even/odd row-parity
    # LHS pair for kernel row ki, so each ki is ONE (2*B*4,256)x(256,512) dot
    # and the 256-row weight load is shared by both parities.
    for ki in range(5):
        chunk = sh_buf[pl.ds(ki * nb4, 2 * nb4), :]
        d = jnp.dot(chunk, band2_ref[ki], preferred_element_type=f32)
        if ki == 0:
            acc2[...] = d
        else:
            acc2[...] += d
    rm2 = jnp.maximum(acc2[pl.ds(0, nb4), :], acc2[pl.ds(nb4, nb4), :])
    p2 = jnp.maximum(rm2[:, :256], rm2[:, 256:])
    p2 = jnp.maximum(p2 + bias2_ref[...], 0.0)
    out_ref[...] = p2.astype(bf16)                            # lane-dense bf16


def extract_features(x_imgs, params, block=_BLOCK):
    """x_imgs: (N, 28, 28) f32 -> pooled conv features (Npad*4, 256) bf16.
    Instance n lives in rows [4n, 4n+4); lane layout c2*4 + w (lanes >=200 = 0)."""
    n = x_imgs.shape[0]
    npad = ((n + block - 1) // block) * block
    if npad != n:
        x_imgs = jnp.pad(x_imgs, ((0, npad - n), (0, 0), (0, 0)))

    # 6 strided row slabs, stacked along M across instances:
    #   xs[s, n*12 + i, :] = x[n, 2*i + s, :]
    xs = jnp.stack([x_imgs[:, s:s + 24:2, :] for s in range(6)], axis=0)
    xs = xs.reshape(6, npad * 12, 28).astype(jnp.bfloat16)

    band1 = _merged_band(params["conv1_w"], 28, 12).astype(jnp.bfloat16)    # (5,28,512)
    band2 = _merged_band(params["conv2_w"], 12, 4)                          # (5,240,512)
    band2 = jnp.pad(band2, ((0, 0), (0, 16), (0, 0))).astype(jnp.bfloat16)  # (5,256,512)
    bias1 = jnp.pad(jnp.repeat(params["conv1_b"], 12), (0, 16)).reshape(1, 256)
    bias2 = jnp.pad(jnp.repeat(params["conv2_b"], 4), (0, 56)).reshape(1, 256)
    sel2 = _stage2_select(block)                                            # (6*B*4, B*12)

    b12, b4 = block * 12, block * 4
    feats = pl.pallas_call(
        _feature_kernel,
        grid=(npad // block,),
        in_specs=[
            pl.BlockSpec((6, b12, 28), lambda i: (0, i, 0)),   # B images / step
            _full_spec(band1.shape),
            _full_spec(bias1.shape),
            _full_spec(sel2.shape),
            _full_spec(band2.shape),
            _full_spec(bias2.shape),
        ],
        out_specs=pl.BlockSpec((b4, 256), lambda i: (i, 0)),
        out_shape=jax.ShapeDtypeStruct((npad * 4, 256), jnp.bfloat16),
        scratch_shapes=[
            pltpu.VMEM((b12, 512), jnp.float32),       # acc_e (conv1 even rows)
            pltpu.VMEM((b12, 512), jnp.float32),       # acc_o (conv1 odd rows)
            pltpu.VMEM((2 * b4, 512), jnp.float32),    # acc2  (conv2 even+odd)
            pltpu.VMEM((6 * b4, 256), jnp.bfloat16),   # shifted-row buffer
        ],
        compiler_params=pltpu.CompilerParams(
            dimension_semantics=("parallel",),         # shard blocks across TCs on v7x
            vmem_limit_bytes=32 * 1024 * 1024,
        ),
    )(xs, band1, bias1, sel2, band2, bias2)
    return feats


# ----------------------------------------------------------------------------
# Kernel 2: fused fc1 -> attention -> softmax -> A.H -> classifier
# ----------------------------------------------------------------------------
def _head_kernel(f_ref, w1_ref, b1_ref, wa1_ref, ba1_ref, wa2_ref, ba2_ref,
                 wc_ref, bc_ref, prob_ref, a_ref):
    f = f_ref[...]                                           # (N, 1024) bf16
    h = jnp.dot(f, w1_ref[...], preferred_element_type=jnp.float32) + b1_ref[...]
    h = jnp.maximum(h, 0.0)                                  # H: (N, 500) f32, resident
    a = jnp.dot(h.astype(jnp.bfloat16), wa1_ref[...],
                preferred_element_type=jnp.float32) + ba1_ref[...]
    a = jnp.tanh(a)                                          # (N, 128) f32
    # attention logits as a VPU lane-reduction (avoids a 1-wide matmul output)
    logit = jnp.sum(a * wa2_ref[...], axis=1, keepdims=True) + ba2_ref[...]  # (N, 1)
    # softmax over the bag dimension (exact divide so A sums to 1)
    m = jnp.max(logit, axis=0, keepdims=True)
    e = jnp.exp(logit - m)
    attn = e / jnp.sum(e, axis=0, keepdims=True)             # (N, 1)
    # weighted pooling M = A @ H without transposing A
    mvec = jnp.sum(attn * h, axis=0, keepdims=True)          # (1, 500)
    y = jnp.sum(mvec * wc_ref[...], axis=1, keepdims=True) + bc_ref[...]     # (1, 1)
    prob_ref[...] = 1.0 / (1.0 + jnp.exp(-y))
    a_ref[...] = attn


def attention_head(feats, params):
    """feats: (N, 1024) bf16 in the kernel layout h*256 + c2*4 + w."""
    n = feats.shape[0]
    # permute fc1 rows from torch flatten order (c2*16 + h*4 + w) to the kernel
    # feature layout (h*256 + c2*4 + w), zero-padding the unused lanes.
    w1 = params["fc1_w"].reshape(50, 4, 4, 500).transpose(1, 0, 2, 3).reshape(4, 200, 500)
    w1 = jnp.pad(w1, ((0, 0), (0, 56), (0, 0))).reshape(1024, 500).astype(jnp.bfloat16)
    wa1 = params["attn1_w"].astype(jnp.bfloat16)
    wa2 = params["attn2_w"].reshape(1, 128)
    wc = params["clf_w"].reshape(1, 500)

    args = (feats, w1, params["fc1_b"], wa1, params["attn1_b"],
            wa2, params["attn2_b"], wc, params["clf_b"])
    y_prob, a_col = pl.pallas_call(
        _head_kernel,
        grid=(1,),
        in_specs=[_full_spec(a.shape) for a in args],
        out_specs=(_full_spec((1, 1)), _full_spec((n, 1))),
        out_shape=(jax.ShapeDtypeStruct((1, 1), jnp.float32),
                   jax.ShapeDtypeStruct((n, 1), jnp.float32)),
        compiler_params=pltpu.CompilerParams(
            dimension_semantics=("arbitrary",),
            vmem_limit_bytes=32 * 1024 * 1024,
        ),
    )(*args)
    return y_prob, a_col


# ----------------------------------------------------------------------------
# full forward pass (matches Attention.forward)
# ----------------------------------------------------------------------------
def attention_forward(x, params):
    x = jnp.squeeze(x, axis=0)                               # (N, 1, 28, 28)
    n = x.shape[0]
    feats = extract_features(x[:, 0, :, :], params)          # (Npad*4, 256) bf16
    feats = feats.reshape(-1, 1024)[:n]                      # (N, 1024) bf16
    y_prob, a_col = attention_head(feats, params)            # (1,1), (N,1)
    A = a_col.reshape(1, n)
    y_hat = (y_prob >= 0.5).astype(jnp.float32)
    return y_prob, y_hat, A


# ----------------------------------------------------------------------------
# pure-JAX reference (loose correctness check only)
# ----------------------------------------------------------------------------
def attention_forward_ref(x, params):
    x = jnp.squeeze(x, axis=0)
    h = jax.lax.conv_general_dilated(x, params["conv1_w"], (1, 1), "VALID",
                                     dimension_numbers=("NCHW", "OIHW", "NCHW"))
    h = jax.nn.relu(h + params["conv1_b"][None, :, None, None])
    h = jax.lax.reduce_window(h, -jnp.inf, jax.lax.max, (1, 1, 2, 2), (1, 1, 2, 2), "VALID")
    h = jax.lax.conv_general_dilated(h, params["conv2_w"], (1, 1), "VALID",
                                     dimension_numbers=("NCHW", "OIHW", "NCHW"))
    h = jax.nn.relu(h + params["conv2_b"][None, :, None, None])
    h = jax.lax.reduce_window(h, -jnp.inf, jax.lax.max, (1, 1, 2, 2), (1, 1, 2, 2), "VALID")
    h = h.reshape(-1, 800)
    H = jax.nn.relu(h @ params["fc1_w"] + params["fc1_b"])
    a = jnp.tanh(H @ params["attn1_w"] + params["attn1_b"])
    a = a @ params["attn2_w"] + params["attn2_b"]
    A = jax.nn.softmax(a.T, axis=1)
    M = A @ H
    y_prob = jax.nn.sigmoid(M @ params["clf_w"] + params["clf_b"])
    y_hat = (y_prob >= 0.5).astype(jnp.float32)
    return y_prob, y_hat, A


# ----------------------------------------------------------------------------
# deterministic parameter init (PyTorch-style uniform(-1/sqrt(fan_in), ...))
# Linear weights stored as (in, out); conv weights in torch (Cout, Cin, k, k).
# ----------------------------------------------------------------------------
def init_params(key):
    ks = jax.random.split(key, 12)

    def u(k, shape, fan_in):
        bound = 1.0 / (fan_in ** 0.5)
        return jax.random.uniform(k, shape, jnp.float32, -bound, bound)

    return {
        "conv1_w": u(ks[0], (20, 1, 5, 5), 1 * 25),
        "conv1_b": u(ks[1], (20,), 1 * 25),
        "conv2_w": u(ks[2], (50, 20, 5, 5), 20 * 25),
        "conv2_b": u(ks[3], (50,), 20 * 25),
        "fc1_w": u(ks[4], (800, 500), 800),
        "fc1_b": u(ks[5], (1, 500), 800),
        "attn1_w": u(ks[6], (500, 128), 500),
        "attn1_b": u(ks[7], (1, 128), 500),
        "attn2_w": u(ks[8], (128, 1), 128),
        "attn2_b": u(ks[9], (1, 1), 128),
        "clf_w": u(ks[10], (500, 1), 500),
        "clf_b": u(ks[11], (1, 1), 500),
    }


if __name__ == "__main__":
    # bag of 16 instances, each a 1x28x28 image (28x28 required by the 50*4*4
    # flatten); 16 instances = 2 grid steps of 8 => both TCs busy on v7x.
    x = jax.random.normal(jax.random.PRNGKey(0), (1, 16, 1, 28, 28), jnp.float32)
    params = init_params(jax.random.PRNGKey(1))

    fwd = jax.jit(attention_forward)
    Y_prob, Y_hat, A = fwd(x, params)
    jax.block_until_ready((Y_prob, Y_hat, A))
    assert Y_prob.shape == (1, 1) and Y_hat.shape == (1, 1) and A.shape == (1, 16)

    # loose numerical check vs pure-JAX f32 reference (bf16 MXU operands)
    Yr, _, Ar = jax.jit(attention_forward_ref)(x, params)
    jax.block_until_ready((Yr, Ar))
    assert jnp.allclose(Y_prob, Yr, atol=5e-2), (Y_prob, Yr)
    assert jnp.allclose(A, Ar, atol=5e-2), (A, Ar)

    print("KERNEL_OK")
</pallas_src>

<mosaic_0001>
module attributes {stable_mosaic.version = 11 : i64} {
  func.func @_feature_kernel(%arg0: i32, %arg1: memref<6x96x28xbf16, #tpu.memory_space<vmem>>, %arg2: memref<5x28x512xbf16, #tpu.memory_space<vmem>>, %arg3: memref<1x256xf32, #tpu.memory_space<vmem>>, %arg4: memref<192x96xbf16, #tpu.memory_space<vmem>>, %arg5: memref<5x256x512xbf16, #tpu.memory_space<vmem>>, %arg6: memref<1x256xf32, #tpu.memory_space<vmem>>, %arg7: memref<32x256xbf16, #tpu.memory_space<vmem>>, %arg8: memref<96x512xf32, #tpu.memory_space<vmem>>, %arg9: memref<96x512xf32, #tpu.memory_space<vmem>>, %arg10: memref<64x512xf32, #tpu.memory_space<vmem>>, %arg11: memref<192x256xbf16, #tpu.memory_space<vmem>>) attributes {dimension_semantics = [#tpu.dimension_semantics<parallel>], iteration_bounds = array<i64: 2>, scalar_prefetch = 0 : i64, scratch_operands = 4 : i64, tpu.core_type = #tpu.core_type<tc>, window_params = [{transform_indices = @transform_0, window_bounds = array<i64: 6, 96, 28>}, {pipeline_mode = #tpu.pipeline_mode<synchronous>, transform_indices = @transform_1, window_bounds = array<i64: 5, 28, 512>}, {pipeline_mode = #tpu.pipeline_mode<synchronous>, transform_indices = @transform_2, window_bounds = array<i64: 1, 256>}, {pipeline_mode = #tpu.pipeline_mode<synchronous>, transform_indices = @transform_3, window_bounds = array<i64: 192, 96>}, {pipeline_mode = #tpu.pipeline_mode<synchronous>, transform_indices = @transform_4, window_bounds = array<i64: 5, 256, 512>}, {pipeline_mode = #tpu.pipeline_mode<synchronous>, transform_indices = @transform_5, window_bounds = array<i64: 1, 256>}, {transform_indices = @transform_6, window_bounds = array<i64: 32, 256>}]} {
    %c0 = arith.constant 0 : index
    %c0_0 = arith.constant 0 : index
    %c0_1 = arith.constant 0 : index
    %0 = vector.load %arg2[%c0, %c0_0, %c0_1] : memref<5x28x512xbf16, #tpu.memory_space<vmem>>, vector<1x28x512xbf16>
    %1 = vector.shape_cast %0 : vector<1x28x512xbf16> to vector<28x512xbf16>
    %c0_2 = arith.constant 0 : index
    %c0_3 = arith.constant 0 : index
    %c0_4 = arith.constant 0 : index
    %2 = vector.load %arg1[%c0_2, %c0_3, %c0_4] : memref<6x96x28xbf16, #tpu.memory_space<vmem>>, vector<1x96x28xbf16>
    %3 = vector.shape_cast %2 : vector<1x96x28xbf16> to vector<96x28xbf16>
    %cst = arith.constant dense<0.000000e+00> : vector<96x512xf32>
    %4 = tpu.matmul %3, %1, %cst {dimension_numbers = #tpu.dot_dimension_numbers<[1], [0], [0], [1], [0, 0, 1, 1], [], []>} : vector<96x28xbf16>, vector<28x512xbf16>, vector<96x512xf32> -> vector<96x512xf32>
    %c1 = arith.constant 1 : index
    %c0_5 = arith.constant 0 : index
    %c0_6 = arith.constant 0 : index
    %5 = vector.load %arg1[%c1, %c0_5, %c0_6] : memref<6x96x28xbf16, #tpu.memory_space<vmem>>, vector<1x96x28xbf16>
    %6 = vector.shape_cast %5 : vector<1x96x28xbf16> to vector<96x28xbf16>
    %cst_7 = arith.constant dense<0.000000e+00> : vector<96x512xf32>
    %7 = tpu.matmul %6, %1, %cst_7 {dimension_numbers = #tpu.dot_dimension_numbers<[1], [0], [0], [1], [0, 0, 1, 1], [], []>} : vector<96x28xbf16>, vector<28x512xbf16>, vector<96x512xf32> -> vector<96x512xf32>
    %c0_8 = arith.constant 0 : index
    %c0_9 = arith.constant 0 : index
    %8 = vector.load %arg8[%c0_8, %c0_9] : memref<96x512xf32, #tpu.memory_space<vmem>>, vector<96x512xf32>
    tpu.vector_store %arg8[%c0_8, %c0_9], %4 {strides = array<i32>} : memref<96x512xf32, #tpu.memory_space<vmem>>, vector<96x512xf32>,
    %c0_10 = arith.constant 0 : index
    %c0_11 = arith.constant 0 : index
    %9 = vector.load %arg9[%c0_10, %c0_11] : memref<96x512xf32, #tpu.memory_space<vmem>>, vector<96x512xf32>
    tpu.vector_store %arg9[%c0_10, %c0_11], %7 {strides = array<i32>} : memref<96x512xf32, #tpu.memory_space<vmem>>, vector<96x512xf32>,
    %c1_12 = arith.constant 1 : index
    %c0_13 = arith.constant 0 : index
    %c0_14 = arith.constant 0 : index
    %10 = vector.load %arg2[%c1_12, %c0_13, %c0_14] : memref<5x28x512xbf16, #tpu.memory_space<vmem>>, vector<1x28x512xbf16>
    %11 = vector.shape_cast %10 : vector<1x28x512xbf16> to vector<28x512xbf16>
    %c1_15 = arith.constant 1 : index
    %c0_16 = arith.constant 0 : index
    %c0_17 = arith.constant 0 : index
    %12 = vector.load %arg1[%c1_15, %c0_16, %c0_17] : memref<6x96x28xbf16, #tpu.memory_space<vmem>>, vector<1x96x28xbf16>
    %13 = vector.shape_cast %12 : vector<1x96x28xbf16> to vector<96x28xbf16>
    %cst_18 = arith.constant dense<0.000000e+00> : vector<96x512xf32>
    %14 = tpu.matmul %13, %11, %cst_18 {dimension_numbers = #tpu.dot_dimension_numbers<[1], [0], [0], [1], [0, 0, 1, 1], [], []>} : vector<96x28xbf16>, vector<28x512xbf16>, vector<96x512xf32> -> vector<96x512xf32>
    %c2 = arith.constant 2 : index
    %c0_19 = arith.constant 0 : index
    %c0_20 = arith.constant 0 : index
    %15 = vector.load %arg1[%c2, %c0_19, %c0_20] : memref<6x96x28xbf16, #tpu.memory_space<vmem>>, vector<1x96x28xbf16>
    %16 = vector.shape_cast %15 : vector<1x96x28xbf16> to vector<96x28xbf16>
    %cst_21 = arith.constant dense<0.000000e+00> : vector<96x512xf32>
    %17 = tpu.matmul %16, %11, %cst_21 {dimension_numbers = #tpu.dot_dimension_numbers<[1], [0], [0], [1], [0, 0, 1, 1], [], []>} : vector<96x28xbf16>, vector<28x512xbf16>, vector<96x512xf32> -> vector<96x512xf32>
    %c0_22 = arith.constant 0 : index
    %c0_23 = arith.constant 0 : index
    %18 = vector.load %arg8[%c0_22, %c0_23] : memref<96x512xf32, #tpu.memory_space<vmem>>, vector<96x512xf32>
    %19 = arith.addf %18, %14 : vector<96x512xf32>
    %c0_24 = arith.constant 0 : index
    %c0_25 = arith.constant 0 : index
    %20 = vector.load %arg8[%c0_24, %c0_25] : memref<96x512xf32, #tpu.memory_space<vmem>>, vector<96x512xf32>
    tpu.vector_store %arg8[%c0_24, %c0_25], %19 {strides = array<i32>} : memref<96x512xf32, #tpu.memory_space<vmem>>, vector<96x512xf32>,
    %c0_26 = arith.constant 0 : index
    %c0_27 = arith.constant 0 : index
    %21 = vector.load %arg9[%c0_26, %c0_27] : memref<96x512xf32, #tpu.memory_space<vmem>>, vector<96x512xf32>
    %22 = arith.addf %21, %17 : vector<96x512xf32>
    %c0_28 = arith.constant 0 : index
    %c0_29 = arith.constant 0 : index
    %23 = vector.load %arg9[%c0_28, %c0_29] : memref<96x512xf32, #tpu.memory_space<vmem>>, vector<96x512xf32>
    tpu.vector_store %arg9[%c0_28, %c0_29], %22 {strides = array<i32>} : memref<96x512xf32, #tpu.memory_space<vmem>>, vector<96x512xf32>,
    %c2_30 = arith.constant 2 : index
    %c0_31 = arith.constant 0 : index
    %c0_32 = arith.constant 0 : index
    %24 = vector.load %arg2[%c2_30, %c0_31, %c0_32] : memref<5x28x512xbf16, #tpu.memory_space<vmem>>, vector<1x28x512xbf16>
    %25 = vector.shape_cast %24 : vector<1x28x512xbf16> to vector<28x512xbf16>
    %c2_33 = arith.constant 2 : index
    %c0_34 = arith.constant 0 : index
    %c0_35 = arith.constant 0 : index
    %26 = vector.load %arg1[%c2_33, %c0_34, %c0_35] : memref<6x96x28xbf16, #tpu.memory_space<vmem>>, vector<1x96x28xbf16>
    %27 = vector.shape_cast %26 : vector<1x96x28xbf16> to vector<96x28xbf16>
    %cst_36 = arith.constant dense<0.000000e+00> : vector<96x512xf32>
    %28 = tpu.matmul %27, %25, %cst_36 {dimension_numbers = #tpu.dot_dimension_numbers<[1], [0], [0], [1], [0, 0, 1, 1], [], []>} : vector<96x28xbf16>, vector<28x512xbf16>, vector<96x512xf32> -> vector<96x512xf32>
    %c3 = arith.constant 3 : index
    %c0_37 = arith.constant 0 : index
    %c0_38 = arith.constant 0 : index
    %29 = vector.load %arg1[%c3, %c0_37, %c0_38] : memref<6x96x28xbf16, #tpu.memory_space<vmem>>, vector<1x96x28xbf16>
    %30 = vector.shape_cast %29 : vector<1x96x28xbf16> to vector<96x28xbf16>
    %cst_39 = arith.constant dense<0.000000e+00> : vector<96x512xf32>
    %31 = tpu.matmul %30, %25, %cst_39 {dimension_numbers = #tpu.dot_dimension_numbers<[1], [0], [0], [1], [0, 0, 1, 1], [], []>} : vector<96x28xbf16>, vector<28x512xbf16>, vector<96x512xf32> -> vector<96x512xf32>
    %c0_40 = arith.constant 0 : index
    %c0_41 = arith.constant 0 : index
    %32 = vector.load %arg8[%c0_40, %c0_41] : memref<96x512xf32, #tpu.memory_space<vmem>>, vector<96x512xf32>
    %33 = arith.addf %32, %28 : vector<96x512xf32>
    %c0_42 = arith.constant 0 : index
    %c0_43 = arith.constant 0 : index
    %34 = vector.load %arg8[%c0_42, %c0_43] : memref<96x512xf32, #tpu.memory_space<vmem>>, vector<96x512xf32>
    tpu.vector_store %arg8[%c0_42, %c0_43], %33 {strides = array<i32>} : memref<96x512xf32, #tpu.memory_space<vmem>>, vector<96x512xf32>,
    %c0_44 = arith.constant 0 : index
    %c0_45 = arith.constant 0 : index
    %35 = vector.load %arg9[%c0_44, %c0_45] : memref<96x512xf32, #tpu.memory_space<vmem>>, vector<96x512xf32>
    %36 = arith.addf %35, %31 : vector<96x512xf32>
    %c0_46 = arith.constant 0 : index
    %c0_47 = arith.constant 0 : index
    %37 = vector.load %arg9[%c0_46, %c0_47] : memref<96x512xf32, #tpu.memory_space<vmem>>, vector<96x512xf32>
    tpu.vector_store %arg9[%c0_46, %c0_47], %36 {strides = array<i32>} : memref<96x512xf32, #tpu.memory_space<vmem>>, vector<96x512xf32>,
    %c3_48 = arith.constant 3 : index
    %c0_49 = arith.constant 0 : index
    %c0_50 = arith.constant 0 : index
    %38 = vector.load %arg2[%c3_48, %c0_49, %c0_50] : memref<5x28x512xbf16, #tpu.memory_space<vmem>>, vector<1x28x512xbf16>
    %39 = vector.shape_cast %38 : vector<1x28x512xbf16> to vector<28x512xbf16>
    %c3_51 = arith.constant 3 : index
    %c0_52 = arith.constant 0 : index
    %c0_53 = arith.constant 0 : index
    %40 = vector.load %arg1[%c3_51, %c0_52, %c0_53] : memref<6x96x28xbf16, #tpu.memory_space<vmem>>, vector<1x96x28xbf16>
    %41 = vector.shape_cast %40 : vector<1x96x28xbf16> to vector<96x28xbf16>
    %cst_54 = arith.constant dense<0.000000e+00> : vector<96x512xf32>
    %42 = tpu.matmul %41, %39, %cst_54 {dimension_numbers = #tpu.dot_dimension_numbers<[1], [0], [0], [1], [0, 0, 1, 1], [], []>} : vector<96x28xbf16>, vector<28x512xbf16>, vector<96x512xf32> -> vector<96x512xf32>
    %c4 = arith.constant 4 : index
    %c0_55 = arith.constant 0 : index
    %c0_56 = arith.constant 0 : index
    %43 = vector.load %arg1[%c4, %c0_55, %c0_56] : memref<6x96x28xbf16, #tpu.memory_space<vmem>>, vector<1x96x28xbf16>
    %44 = vector.shape_cast %43 : vector<1x96x28xbf16> to vector<96x28xbf16>
    %cst_57 = arith.constant dense<0.000000e+00> : vector<96x512xf32>
    %45 = tpu.matmul %44, %39, %cst_57 {dimension_numbers = #tpu.dot_dimension_numbers<[1], [0], [0], [1], [0, 0, 1, 1], [], []>} : vector<96x28xbf16>, vector<28x512xbf16>, vector<96x512xf32> -> vector<96x512xf32>
    %c0_58 = arith.constant 0 : index
    %c0_59 = arith.constant 0 : index
    %46 = vector.load %arg8[%c0_58, %c0_59] : memref<96x512xf32, #tpu.memory_space<vmem>>, vector<96x512xf32>
    %47 = arith.addf %46, %42 : vector<96x512xf32>
    %c0_60 = arith.constant 0 : index
    %c0_61 = arith.constant 0 : index
    %48 = vector.load %arg8[%c0_60, %c0_61] : memref<96x512xf32, #tpu.memory_space<vmem>>, vector<96x512xf32>
    tpu.vector_store %arg8[%c0_60, %c0_61], %47 {strides = array<i32>} : memref<96x512xf32, #tpu.memory_space<vmem>>, vector<96x512xf32>,
    %c0_62 = arith.constant 0 : index
    %c0_63 = arith.constant 0 : index
    %49 = vector.load %arg9[%c0_62, %c0_63] : memref<96x512xf32, #tpu.memory_space<vmem>>, vector<96x512xf32>
    %50 = arith.addf %49, %45 : vector<96x512xf32>
    %c0_64 = arith.constant 0 : index
    %c0_65 = arith.constant 0 : index
    %51 = vector.load %arg9[%c0_64, %c0_65] : memref<96x512xf32, #tpu.memory_space<vmem>>, vector<96x512xf32>
    tpu.vector_store %arg9[%c0_64, %c0_65], %50 {strides = array<i32>} : memref<96x512xf32, #tpu.memory_space<vmem>>, vector<96x512xf32>,
    %c4_66 = arith.constant 4 : index
    %c0_67 = arith.constant 0 : index
    %c0_68 = arith.constant 0 : index
    %52 = vector.load %arg2[%c4_66, %c0_67, %c0_68] : memref<5x28x512xbf16, #tpu.memory_space<vmem>>, vector<1x28x512xbf16>
    %53 = vector.shape_cast %52 : vector<1x28x512xbf16> to vector<28x512xbf16>
    %c4_69 = arith.constant 4 : index
    %c0_70 = arith.constant 0 : index
    %c0_71 = arith.constant 0 : index
    %54 = vector.load %arg1[%c4_69, %c0_70, %c0_71] : memref<6x96x28xbf16, #tpu.memory_space<vmem>>, vector<1x96x28xbf16>
    %55 = vector.shape_cast %54 : vector<1x96x28xbf16> to vector<96x28xbf16>
    %cst_72 = arith.constant dense<0.000000e+00> : vector<96x512xf32>
    %56 = tpu.matmul %55, %53, %cst_72 {dimension_numbers = #tpu.dot_dimension_numbers<[1], [0], [0], [1], [0, 0, 1, 1], [], []>} : vector<96x28xbf16>, vector<28x512xbf16>, vector<96x512xf32> -> vector<96x512xf32>
    %c5 = arith.constant 5 : index
    %c0_73 = arith.constant 0 : index
    %c0_74 = arith.constant 0 : index
    %57 = vector.load %arg1[%c5, %c0_73, %c0_74] : memref<6x96x28xbf16, #tpu.memory_space<vmem>>, vector<1x96x28xbf16>
    %58 = vector.shape_cast %57 : vector<1x96x28xbf16> to vector<96x28xbf16>
    %cst_75 = arith.constant dense<0.000000e+00> : vector<96x512xf32>
    %59 = tpu.matmul %58, %53, %cst_75 {dimension_numbers = #tpu.dot_dimension_numbers<[1], [0], [0], [1], [0, 0, 1, 1], [], []>} : vector<96x28xbf16>, vector<28x512xbf16>, vector<96x512xf32> -> vector<96x512xf32>
    %c0_76 = arith.constant 0 : index
    %c0_77 = arith.constant 0 : index
    %60 = vector.load %arg8[%c0_76, %c0_77] : memref<96x512xf32, #tpu.memory_space<vmem>>, vector<96x512xf32>
    %61 = arith.addf %60, %56 : vector<96x512xf32>
    %c0_78 = arith.constant 0 : index
    %c0_79 = arith.constant 0 : index
    %62 = vector.load %arg8[%c0_78, %c0_79] : memref<96x512xf32, #tpu.memory_space<vmem>>, vector<96x512xf32>
    tpu.vector_store %arg8[%c0_78, %c0_79], %61 {strides = array<i32>} : memref<96x512xf32, #tpu.memory_space<vmem>>, vector<96x512xf32>,
    %c0_80 = arith.constant 0 : index
    %c0_81 = arith.constant 0 : index
    %63 = vector.load %arg9[%c0_80, %c0_81] : memref<96x512xf32, #tpu.memory_space<vmem>>, vector<96x512xf32>
    %64 = arith.addf %63, %59 : vector<96x512xf32>
    %c0_82 = arith.constant 0 : index
    %c0_83 = arith.constant 0 : index
    %65 = vector.load %arg9[%c0_82, %c0_83] : memref<96x512xf32, #tpu.memory_space<vmem>>, vector<96x512xf32>
    tpu.vector_store %arg9[%c0_82, %c0_83], %64 {strides = array<i32>} : memref<96x512xf32, #tpu.memory_space<vmem>>, vector<96x512xf32>,
    %c0_84 = arith.constant 0 : index
    %c0_85 = arith.constant 0 : index
    %66 = vector.load %arg8[%c0_84, %c0_85] : memref<96x512xf32, #tpu.memory_space<vmem>>, vector<96x512xf32>
    %c0_86 = arith.constant 0 : index
    %c0_87 = arith.constant 0 : index
    %67 = vector.load %arg9[%c0_86, %c0_87] : memref<96x512xf32, #tpu.memory_space<vmem>>, vector<96x512xf32>
    %68 = arith.maximumf %66, %67 : vector<96x512xf32>
    %69 = vector.extract_strided_slice %68 {offsets = [0, 0], sizes = [96, 256], strides = [1, 1]} : vector<96x512xf32> to vector<96x256xf32>
    %70 = vector.extract_strided_slice %68 {offsets = [0, 256], sizes = [96, 256], strides = [1, 1]} : vector<96x512xf32> to vector<96x256xf32>
    %71 = arith.maximumf %69, %70 : vector<96x256xf32>
    %c0_88 = arith.constant 0 : index
    %c0_89 = arith.constant 0 : index
    %72 = vector.load %arg3[%c0_88, %c0_89] : memref<1x256xf32, #tpu.memory_space<vmem>>, vector<1x256xf32>
    %73 = vector.broadcast %72 : vector<1x256xf32> to vector<96x256xf32>
    %74 = arith.addf %71, %73 : vector<96x256xf32>
    %cst_90 = arith.constant 0.000000e+00 : f32
    %75 = vector.broadcast %cst_90 : f32 to vector<96x256xf32>
    %76 = arith.maximumf %74, %75 : vector<96x256xf32>
    %77 = arith.truncf %76 : vector<96x256xf32> to vector<96x256xbf16>
    %c0_91 = arith.constant 0 : index
    %c0_92 = arith.constant 0 : index
    %78 = vector.load %arg4[%c0_91, %c0_92] : memref<192x96xbf16, #tpu.memory_space<vmem>>, vector<192x96xbf16>
    %cst_93 = arith.constant dense<0.000000e+00> : vector<192x256xf32>
    %79 = tpu.matmul %78, %77, %cst_93 {dimension_numbers = #tpu.dot_dimension_numbers<[1], [0], [0], [1], [0, 0, 1, 1], [], []>} : vector<192x96xbf16>, vector<96x256xbf16>, vector<192x256xf32> -> vector<192x256xf32>
    %80 = arith.truncf %79 : vector<192x256xf32> to vector<192x256xbf16>
    %c0_94 = arith.constant 0 : index
    %c0_95 = arith.constant 0 : index
    %81 = vector.load %arg11[%c0_94, %c0_95] : memref<192x256xbf16, #tpu.memory_space<vmem>>, vector<192x256xbf16>
    tpu.vector_store %arg11[%c0_94, %c0_95], %80 {strides = array<i32>} : memref<192x256xbf16, #tpu.memory_space<vmem>>, vector<192x256xbf16>,
    %c0_96 = arith.constant 0 : index
    %c0_97 = arith.constant 0 : index
    %82 = vector.load %arg11[%c0_96, %c0_97] : memref<192x256xbf16, #tpu.memory_space<vmem>>, vector<64x256xbf16>
    %c0_98 = arith.constant 0 : index
    %c0_99 = arith.constant 0 : index
    %c0_100 = arith.constant 0 : index
    %83 = vector.load %arg5[%c0_98, %c0_99, %c0_100] : memref<5x256x512xbf16, #tpu.memory_space<vmem>>, vector<1x256x512xbf16>
    %84 = vector.shape_cast %83 : vector<1x256x512xbf16> to vector<256x512xbf16>
    %cst_101 = arith.constant dense<0.000000e+00> : vector<64x512xf32>
    %85 = tpu.matmul %82, %84, %cst_101 {dimension_numbers = #tpu.dot_dimension_numbers<[1], [0], [0], [1], [0, 0, 1, 1], [], []>} : vector<64x256xbf16>, vector<256x512xbf16>, vector<64x512xf32> -> vector<64x512xf32>
    %c0_102 = arith.constant 0 : index
    %c0_103 = arith.constant 0 : index
    %86 = vector.load %arg10[%c0_102, %c0_103] : memref<64x512xf32, #tpu.memory_space<vmem>>, vector<64x512xf32>
    tpu.vector_store %arg10[%c0_102, %c0_103], %85 {strides = array<i32>} : memref<64x512xf32, #tpu.memory_space<vmem>>, vector<64x512xf32>,
    %c32 = arith.constant 32 : index
    %c0_104 = arith.constant 0 : index
    %87 = vector.load %arg11[%c32, %c0_104] : memref<192x256xbf16, #tpu.memory_space<vmem>>, vector<64x256xbf16>
    %c1_105 = arith.constant 1 : index
    %c0_106 = arith.constant 0 : index
    %c0_107 = arith.constant 0 : index
    %88 = vector.load %arg5[%c1_105, %c0_106, %c0_107] : memref<5x256x512xbf16, #tpu.memory_space<vmem>>, vector<1x256x512xbf16>
    %89 = vector.shape_cast %88 : vector<1x256x512xbf16> to vector<256x512xbf16>
    %cst_108 = arith.constant dense<0.000000e+00> : vector<64x512xf32>
    %90 = tpu.matmul %87, %89, %cst_108 {dimension_numbers = #tpu.dot_dimension_numbers<[1], [0], [0], [1], [0, 0, 1, 1], [], []>} : vector<64x256xbf16>, vector<256x512xbf16>, vector<64x512xf32> -> vector<64x512xf32>
    %c0_109 = arith.constant 0 : index
    %c0_110 = arith.constant 0 : index
    %91 = vector.load %arg10[%c0_109, %c0_110] : memref<64x512xf32, #tpu.memory_space<vmem>>, vector<64x512xf32>
    %92 = arith.addf %91, %90 : vector<64x512xf32>
    %c0_111 = arith.constant 0 : index
    %c0_112 = arith.constant 0 : index
    %93 = vector.load %arg10[%c0_111, %c0_112] : memref<64x512xf32, #tpu.memory_space<vmem>>, vector<64x512xf32>
    tpu.vector_store %arg10[%c0_111, %c0_112], %92 {strides = array<i32>} : memref<64x512xf32, #tpu.memory_space<vmem>>, vector<64x512xf32>,
    %c64 = arith.constant 64 : index
    %c0_113 = arith.constant 0 : index
    %94 = vector.load %arg11[%c64, %c0_113] : memref<192x256xbf16, #tpu.memory_space<vmem>>, vector<64x256xbf16>
    %c2_114 = arith.constant 2 : index
    %c0_115 = arith.constant 0 : index
    %c0_116 = arith.constant 0 : index
    %95 = vector.load %arg5[%c2_114, %c0_115, %c0_116] : memref<5x256x512xbf16, #tpu.memory_space<vmem>>, vector<1x256x512xbf16>
    %96 = vector.shape_cast %95 : vector<1x256x512xbf16> to vector<256x512xbf16>
    %cst_117 = arith.constant dense<0.000000e+00> : vector<64x512xf32>
    %97 = tpu.matmul %94, %96, %cst_117 {dimension_numbers = #tpu.dot_dimension_numbers<[1], [0], [0], [1], [0, 0, 1, 1], [], []>} : vector<64x256xbf16>, vector<256x512xbf16>, vector<64x512xf32> -> vector<64x512xf32>
    %c0_118 = arith.constant 0 : index
    %c0_119 = arith.constant 0 : index
    %98 = vector.load %arg10[%c0_118, %c0_119] : memref<64x512xf32, #tpu.memory_space<vmem>>, vector<64x512xf32>
    %99 = arith.addf %98, %97 : vector<64x512xf32>
    %c0_120 = arith.constant 0 : index
    %c0_121 = arith.constant 0 : index
    %100 = vector.load %arg10[%c0_120, %c0_121] : memref<64x512xf32, #tpu.memory_space<vmem>>, vector<64x512xf32>
    tpu.vector_store %arg10[%c0_120, %c0_121], %99 {strides = array<i32>} : memref<64x512xf32, #tpu.memory_space<vmem>>, vector<64x512xf32>,
    %c96 = arith.constant 96 : index
    %c0_122 = arith.constant 0 : index
    %101 = vector.load %arg11[%c96, %c0_122] : memref<192x256xbf16, #tpu.memory_space<vmem>>, vector<64x256xbf16>
    %c3_123 = arith.constant 3 : index
    %c0_124 = arith.constant 0 : index
    %c0_125 = arith.constant 0 : index
    %102 = vector.load %arg5[%c3_123, %c0_124, %c0_125] : memref<5x256x512xbf16, #tpu.memory_space<vmem>>, vector<1x256x512xbf16>
    %103 = vector.shape_cast %102 : vector<1x256x512xbf16> to vector<256x512xbf16>
    %cst_126 = arith.constant dense<0.000000e+00> : vector<64x512xf32>
    %104 = tpu.matmul %101, %103, %cst_126 {dimension_numbers = #tpu.dot_dimension_numbers<[1], [0], [0], [1], [0, 0, 1, 1], [], []>} : vector<64x256xbf16>, vector<256x512xbf16>, vector<64x512xf32> -> vector<64x512xf32>
    %c0_127 = arith.constant 0 : index
    %c0_128 = arith.constant 0 : index
    %105 = vector.load %arg10[%c0_127, %c0_128] : memref<64x512xf32, #tpu.memory_space<vmem>>, vector<64x512xf32>
    %106 = arith.addf %105, %104 : vector<64x512xf32>
    %c0_129 = arith.constant 0 : index
    %c0_130 = arith.constant 0 : index
    %107 = vector.load %arg10[%c0_129, %c0_130] : memref<64x512xf32, #tpu.memory_space<vmem>>, vector<64x512xf32>
    tpu.vector_store %arg10[%c0_129, %c0_130], %106 {strides = array<i32>} : memref<64x512xf32, #tpu.memory_space<vmem>>, vector<64x512xf32>,
    %c128 = arith.constant 128 : index
    %c0_131 = arith.constant 0 : index
    %108 = vector.load %arg11[%c128, %c0_131] : memref<192x256xbf16, #tpu.memory_space<vmem>>, vector<64x256xbf16>
    %c4_132 = arith.constant 4 : index
    %c0_133 = arith.constant 0 : index
    %c0_134 = arith.constant 0 : index
    %109 = vector.load %arg5[%c4_132, %c0_133, %c0_134] : memref<5x256x512xbf16, #tpu.memory_space<vmem>>, vector<1x256x512xbf16>
    %110 = vector.shape_cast %109 : vector<1x256x512xbf16> to vector<256x512xbf16>
    %cst_135 = arith.constant dense<0.000000e+00> : vector<64x512xf32>
    %111 = tpu.matmul %108, %110, %cst_135 {dimension_numbers = #tpu.dot_dimension_numbers<[1], [0], [0], [1], [0, 0, 1, 1], [], []>} : vector<64x256xbf16>, vector<256x512xbf16>, vector<64x512xf32> -> vector<64x512xf32>
    %c0_136 = arith.constant 0 : index
    %c0_137 = arith.constant 0 : index
    %112 = vector.load %arg10[%c0_136, %c0_137] : memref<64x512xf32, #tpu.memory_space<vmem>>, vector<64x512xf32>
    %113 = arith.addf %112, %111 : vector<64x512xf32>
    %c0_138 = arith.constant 0 : index
    %c0_139 = arith.constant 0 : index
    %114 = vector.load %arg10[%c0_138, %c0_139] : memref<64x512xf32, #tpu.memory_space<vmem>>, vector<64x512xf32>
    tpu.vector_store %arg10[%c0_138, %c0_139], %113 {strides = array<i32>} : memref<64x512xf32, #tpu.memory_space<vmem>>, vector<64x512xf32>,
    %c0_140 = arith.constant 0 : index
    %c0_141 = arith.constant 0 : index
    %115 = vector.load %arg10[%c0_140, %c0_141] : memref<64x512xf32, #tpu.memory_space<vmem>>, vector<32x512xf32>
    %c32_142 = arith.constant 32 : index
    %c0_143 = arith.constant 0 : index
    %116 = vector.load %arg10[%c32_142, %c0_143] : memref<64x512xf32, #tpu.memory_space<vmem>>, vector<32x512xf32>
    %117 = arith.maximumf %115, %116 : vector<32x512xf32>
    %118 = vector.extract_strided_slice %117 {offsets = [0, 0], sizes = [32, 256], strides = [1, 1]} : vector<32x512xf32> to vector<32x256xf32>
    %119 = vector.extract_strided_slice %117 {offsets = [0, 256], sizes = [32, 256], strides = [1, 1]} : vector<32x512xf32> to vector<32x256xf32>
    %120 = arith.maximumf %118, %119 : vector<32x256xf32>
    %c0_144 = arith.constant 0 : index
    %c0_145 = arith.constant 0 : index
    %121 = vector.load %arg6[%c0_144, %c0_145] : memref<1x256xf32, #tpu.memory_space<vmem>>, vector<1x256xf32>
    %122 = vector.broadcast %121 : vector<1x256xf32> to vector<32x256xf32>
    %123 = arith.addf %120, %122 : vector<32x256xf32>
    %cst_146 = arith.constant 0.000000e+00 : f32
    %124 = vector.broadcast %cst_146 : f32 to vector<32x256xf32>
    %125 = arith.maximumf %123, %124 : vector<32x256xf32>
    %126 = arith.truncf %125 : vector<32x256xf32> to vector<32x256xbf16>
    %c0_147 = arith.constant 0 : index
    %c0_148 = arith.constant 0 : index
    %127 = vector.load %arg7[%c0_147, %c0_148] : memref<32x256xbf16, #tpu.memory_space<vmem>>, vector<32x256xbf16>
    tpu.vector_store %arg7[%c0_147, %c0_148], %126 {strides = array<i32>} : memref<32x256xbf16, #tpu.memory_space<vmem>>, vector<32x256xbf16>,
    return
  }
  func.func @transform_0(%arg0: i32) -> (i32, i32, i32) {
    %c0_i32 = arith.constant 0 : i32
    %c0_i32_0 = arith.constant 0 : i32
    %c0_i32_1 = arith.constant 0 : i32
    return %c0_i32, %arg0, %c0_i32_0 : i32, i32, i32
  }
  func.func @transform_1(%arg0: i32) -> (i32, i32, i32) {
    %c0_i32 = arith.constant 0 : i32
    %c0_i32_0 = arith.constant 0 : i32
    %c0_i32_1 = arith.constant 0 : i32
    %c0_i32_2 = arith.constant 0 : i32
    return %c0_i32, %c0_i32_0, %c0_i32_1 : i32, i32, i32
  }
  func.func @transform_2(%arg0: i32) -> (i32, i32) {
    %c0_i32 = arith.constant 0 : i32
    %c0_i32_0 = arith.constant 0 : i32
    %c0_i32_1 = arith.constant 0 : i32
    return %c0_i32, %c0_i32_0 : i32, i32
  }
  func.func @transform_3(%arg0: i32) -> (i32, i32) {
    %c0_i32 = arith.constant 0 : i32
    %c0_i32_0 = arith.constant 0 : i32
    %c0_i32_1 = arith.constant 0 : i32
    return %c0_i32, %c0_i32_0 : i32, i32
  }
  func.func @transform_4(%arg0: i32) -> (i32, i32, i32) {
    %c0_i32 = arith.constant 0 : i32
    %c0_i32_0 = arith.constant 0 : i32
    %c0_i32_1 = arith.constant 0 : i32
    %c0_i32_2 = arith.constant 0 : i32
    return %c0_i32, %c0_i32_0, %c0_i32_1 : i32, i32, i32
  }
  func.func @transform_5(%arg0: i32) -> (i32, i32) {
    %c0_i32 = arith.constant 0 : i32
    %c0_i32_0 = arith.constant 0 : i32
    %c0_i32_1 = arith.constant 0 : i32
    return %c0_i32, %c0_i32_0 : i32, i32
  }
  func.func @transform_6(%arg0: i32) -> (i32, i32) {
    %c0_i32 = arith.constant 0 : i32
    %c0_i32_0 = arith.constant 0 : i32
    return %arg0, %c0_i32 : i32, i32
  }
}

module attributes {stable_mosaic.version = 11 : i64} {
  func.func @_head_kernel(%arg0: i32, %arg1: memref<16x1024xbf16, #tpu.memory_space<vmem>>, %arg2: memref<1024x500xbf16, #tpu.memory_space<vmem>>, %arg3: memref<1x500xf32, #tpu.memory_space<vmem>>, %arg4: memref<500x128xbf16, #tpu.memory_space<vmem>>, %arg5: memref<1x128xf32, #tpu.memory_space<vmem>>, %arg6: memref<1x128xf32, #tpu.memory_space<vmem>>, %arg7: memref<1x1xf32, #tpu.memory_space<vmem>>, %arg8: memref<1x500xf32, #tpu.memory_space<vmem>>, %arg9: memref<1x1xf32, #tpu.memory_space<vmem>>, %arg10: memref<1x1xf32, #tpu.memory_space<vmem>>, %arg11: memref<16x1xf32, #tpu.memory_space<vmem>>) attributes {dimension_semantics = [#tpu.dimension_semantics<arbitrary>], iteration_bounds = array<i64: 1>, scalar_prefetch = 0 : i64, scratch_operands = 0 : i64, tpu.core_type = #tpu.core_type<tc>, window_params = [{pipeline_mode = #tpu.pipeline_mode<synchronous>, transform_indices = @transform_0, window_bounds = array<i64: 16, 1024>}, {pipeline_mode = #tpu.pipeline_mode<synchronous>, transform_indices = @transform_1, window_bounds = array<i64: 1024, 500>}, {pipeline_mode = #tpu.pipeline_mode<synchronous>, transform_indices = @transform_2, window_bounds = array<i64: 1, 500>}, {pipeline_mode = #tpu.pipeline_mode<synchronous>, transform_indices = @transform_3, window_bounds = array<i64: 500, 128>}, {pipeline_mode = #tpu.pipeline_mode<synchronous>, transform_indices = @transform_4, window_bounds = array<i64: 1, 128>}, {pipeline_mode = #tpu.pipeline_mode<synchronous>, transform_indices = @transform_5, window_bounds = array<i64: 1, 128>}, {pipeline_mode = #tpu.pipeline_mode<synchronous>, transform_indices = @transform_6, window_bounds = array<i64: 1, 1>}, {pipeline_mode = #tpu.pipeline_mode<synchronous>, transform_indices = @transform_7, window_bounds = array<i64: 1, 500>}, {pipeline_mode = #tpu.pipeline_mode<synchronous>, transform_indices = @transform_8, window_bounds = array<i64: 1, 1>}, {pipeline_mode = #tpu.pipeline_mode<synchronous>, transform_indices = @transform_9, window_bounds = array<i64: 1, 1>}, {pipeline_mode = #tpu.pipeline_mode<synchronous>, transform_indices = @transform_10, window_bounds = array<i64: 16, 1>}]} {
    %c0 = arith.constant 0 : index
    %c0_0 = arith.constant 0 : index
    %0 = vector.load %arg1[%c0, %c0_0] : memref<16x1024xbf16, #tpu.memory_space<vmem>>, vector<16x1024xbf16>
    %c0_1 = arith.constant 0 : index
    %c0_2 = arith.constant 0 : index
    %1 = vector.load %arg2[%c0_1, %c0_2] : memref<1024x500xbf16, #tpu.memory_space<vmem>>, vector<1024x500xbf16>
    %cst = arith.constant dense<0.000000e+00> : vector<16x500xf32>
    %2 = tpu.matmul %0, %1, %cst {dimension_numbers = #tpu.dot_dimension_numbers<[1], [0], [0], [1], [0, 0, 1, 1], [], []>} : vector<16x1024xbf16>, vector<1024x500xbf16>, vector<16x500xf32> -> vector<16x500xf32>
    %c0_3 = arith.constant 0 : index
    %c0_4 = arith.constant 0 : index
    %3 = vector.load %arg3[%c0_3, %c0_4] : memref<1x500xf32, #tpu.memory_space<vmem>>, vector<1x500xf32>
    %4 = vector.broadcast %3 : vector<1x500xf32> to vector<16x500xf32>
    %5 = arith.addf %2, %4 : vector<16x500xf32>
    %cst_5 = arith.constant 0.000000e+00 : f32
    %6 = vector.broadcast %cst_5 : f32 to vector<16x500xf32>
    %7 = arith.maximumf %5, %6 : vector<16x500xf32>
    %8 = arith.truncf %7 : vector<16x500xf32> to vector<16x500xbf16>
    %c0_6 = arith.constant 0 : index
    %c0_7 = arith.constant 0 : index
    %9 = vector.load %arg4[%c0_6, %c0_7] : memref<500x128xbf16, #tpu.memory_space<vmem>>, vector<500x128xbf16>
    %cst_8 = arith.constant dense<0.000000e+00> : vector<16x128xf32>
    %10 = tpu.matmul %8, %9, %cst_8 {dimension_numbers = #tpu.dot_dimension_numbers<[1], [0], [0], [1], [0, 0, 1, 1], [], []>} : vector<16x500xbf16>, vector<500x128xbf16>, vector<16x128xf32> -> vector<16x128xf32>
    %c0_9 = arith.constant 0 : index
    %c0_10 = arith.constant 0 : index
    %11 = vector.load %arg5[%c0_9, %c0_10] : memref<1x128xf32, #tpu.memory_space<vmem>>, vector<1x128xf32>
    %12 = vector.broadcast %11 : vector<1x128xf32> to vector<16x128xf32>
    %13 = arith.addf %10, %12 : vector<16x128xf32>
    %14 = math.tanh %13 : vector<16x128xf32>
    %c0_11 = arith.constant 0 : index
    %c0_12 = arith.constant 0 : index
    %15 = vector.load %arg6[%c0_11, %c0_12] : memref<1x128xf32, #tpu.memory_space<vmem>>, vector<1x128xf32>
    %16 = vector.broadcast %15 : vector<1x128xf32> to vector<16x128xf32>
    %17 = arith.mulf %14, %16 : vector<16x128xf32>
    %cst_13 = arith.constant dense<0.000000e+00> : vector<16xf32>
    %18 = vector.multi_reduction <add>, %17, %cst_13 [1] : vector<16x128xf32> to vector<16xf32>
    %19 = vector.shape_cast %18 : vector<16xf32> to vector<16x1xf32>
    %c0_14 = arith.constant 0 : index
    %c0_15 = arith.constant 0 : index
    %20 = vector.load %arg7[%c0_14, %c0_15] : memref<1x1xf32, #tpu.memory_space<vmem>>, vector<1x1xf32>
    %21 = vector.broadcast %20 : vector<1x1xf32> to vector<16x1xf32>
    %22 = arith.addf %19, %21 : vector<16x1xf32>
    %cst_16 = arith.constant dense<0xFF800000> : vector<1xf32>
    %23 = vector.multi_reduction <maximumf>, %22, %cst_16 [0] : vector<16x1xf32> to vector<1xf32>
    %24 = vector.shape_cast %23 : vector<1xf32> to vector<1x1xf32>
    %25 = vector.broadcast %24 : vector<1x1xf32> to vector<16x1xf32>
    %26 = arith.subf %22, %25 : vector<16x1xf32>
    %27 = math.exp %26 : vector<16x1xf32>
    %cst_17 = arith.constant dense<0.000000e+00> : vector<1xf32>
    %28 = vector.multi_reduction <add>, %27, %cst_17 [0] : vector<16x1xf32> to vector<1xf32>
    %29 = vector.shape_cast %28 : vector<1xf32> to vector<1x1xf32>
    %30 = vector.broadcast %29 : vector<1x1xf32> to vector<16x1xf32>
    %31 = arith.divf %27, %30 : vector<16x1xf32>
    %32 = vector.broadcast %31 : vector<16x1xf32> to vector<16x500xf32>
    %33 = arith.mulf %32, %7 : vector<16x500xf32>
    %cst_18 = arith.constant dense<0.000000e+00> : vector<500xf32>
    %34 = vector.multi_reduction <add>, %33, %cst_18 [0] : vector<16x500xf32> to vector<500xf32>
    %35 = vector.shape_cast %34 : vector<500xf32> to vector<1x500xf32>
    %c0_19 = arith.constant 0 : index
    %c0_20 = arith.constant 0 : index
    %36 = vector.load %arg8[%c0_19, %c0_20] : memref<1x500xf32, #tpu.memory_space<vmem>>, vector<1x500xf32>
    %37 = arith.mulf %35, %36 : vector<1x500xf32>
    %cst_21 = arith.constant dense<0.000000e+00> : vector<1xf32>
    %38 = vector.multi_reduction <add>, %37, %cst_21 [1] : vector<1x500xf32> to vector<1xf32>
    %39 = vector.shape_cast %38 : vector<1xf32> to vector<1x1xf32>
    %c0_22 = arith.constant 0 : index
    %c0_23 = arith.constant 0 : index
    %40 = vector.load %arg9[%c0_22, %c0_23] : memref<1x1xf32, #tpu.memory_space<vmem>>, vector<1x1xf32>
    %41 = arith.addf %39, %40 : vector<1x1xf32>
    %cst_24 = arith.constant 0.000000e+00 : f32
    %42 = vector.broadcast %cst_24 : f32 to vector<1x1xf32>
    %43 = arith.subf %42, %41 : vector<1x1xf32>
    %44 = math.exp %43 : vector<1x1xf32>
    %cst_25 = arith.constant 1.000000e+00 : f32
    %45 = vector.broadcast %cst_25 : f32 to vector<1x1xf32>
    %46 = arith.addf %45, %44 : vector<1x1xf32>
    %cst_26 = arith.constant 1.000000e+00 : f32
    %47 = vector.broadcast %cst_26 : f32 to vector<1x1xf32>
    %48 = arith.divf %47, %46 : vector<1x1xf32>
    %c0_27 = arith.constant 0 : index
    %c0_28 = arith.constant 0 : index
    %49 = vector.load %arg10[%c0_27, %c0_28] : memref<1x1xf32, #tpu.memory_space<vmem>>, vector<1x1xf32>
    tpu.vector_store %arg10[%c0_27, %c0_28], %48 {strides = array<i32>} : memref<1x1xf32, #tpu.memory_space<vmem>>, vector<1x1xf32>,
    %c0_29 = arith.constant 0 : index
    %c0_30 = arith.constant 0 : index
    %50 = vector.load %arg11[%c0_29, %c0_30] : memref<16x1xf32, #tpu.memory_space<vmem>>, vector<16x1xf32>
    tpu.vector_store %arg11[%c0_29, %c0_30], %31 {strides = array<i32>} : memref<16x1xf32, #tpu.memory_space<vmem>>, vector<16x1xf32>,
    return
  }
  func.func @transform_0(%arg0: i32) -> (i32, i32) {
    %c0_i32 = arith.constant 0 : i32
    %c0_i32_0 = arith.constant 0 : i32
    %c0_i32_1 = arith.constant 0 : i32
    return %c0_i32, %c0_i32_0 : i32, i32
  }
  func.func @transform_1(%arg0: i32) -> (i32, i32) {
    %c0_i32 = arith.constant 0 : i32
    %c0_i32_0 = arith.constant 0 : i32
    %c0_i32_1 = arith.constant 0 : i32
    return %c0_i32, %c0_i32_0 : i32, i32
  }
  func.func @transform_2(%arg0: i32) -> (i32, i32) {
    %c0_i32 = arith.constant 0 : i32
    %c0_i32_0 = arith.constant 0 : i32
    %c0_i32_1 = arith.constant 0 : i32
    return %c0_i32, %c0_i32_0 : i32, i32
  }
  func.func @transform_3(%arg0: i32) -> (i32, i32) {
    %c0_i32 = arith.constant 0 : i32
    %c0_i32_0 = arith.constant 0 : i32
    %c0_i32_1 = arith.constant 0 : i32
    return %c0_i32, %c0_i32_0 : i32, i32
  }
  func.func @transform_4(%arg0: i32) -> (i32, i32) {
    %c0_i32 = arith.constant 0 : i32
    %c0_i32_0 = arith.constant 0 : i32
    %c0_i32_1 = arith.constant 0 : i32
    return %c0_i32, %c0_i32_0 : i32, i32
  }
  func.func @transform_5(%arg0: i32) -> (i32, i32) {
    %c0_i32 = arith.constant 0 : i32
    %c0_i32_0 = arith.constant 0 : i32
    %c0_i32_1 = arith.constant 0 : i32
    return %c0_i32, %c0_i32_0 : i32, i32
  }
  func.func @transform_6(%arg0: i32) -> (i32, i32) {
    %c0_i32 = arith.constant 0 : i32
    %c0_i32_0 = arith.constant 0 : i32
    %c0_i32_1 = arith.constant 0 : i32
    return %c0_i32, %c0_i32_0 : i32, i32
  }
  func.func @transform_7(%arg0: i32) -> (i32, i32) {
    %c0_i32 = arith.constant 0 : i32
    %c0_i32_0 = arith.constant 0 : i32
    %c0_i32_1 = arith.constant 0 : i32
    return %c0_i32, %c0_i32_0 : i32, i32
  }
  func.func @transform_8(%arg0: i32) -> (i32, i32) {
    %c0_i32 = arith.constant 0 : i32
    %c0_i32_0 = arith.constant 0 : i32
    %c0_i32_1 = arith.constant 0 : i32
    return %c0_i32, %c0_i32_0 : i32, i32
  }
  func.func @transform_9(%arg0: i32) -> (i32, i32) {
    %c0_i32 = arith.constant 0 : i32
    %c0_i32_0 = arith.constant 0 : i32
    %c0_i32_1 = arith.constant 0 : i32
    return %c0_i32, %c0_i32_0 : i32, i32
  }
  func.func @transform_10(%arg0: i32) -> (i32, i32) {
    %c0_i32 = arith.constant 0 : i32
    %c0_i32_0 = arith.constant 0 : i32
    %c0_i32_1 = arith.constant 0 : i32
    return %c0_i32, %c0_i32_0 : i32, i32
  }
}

</mosaic_0001>

<llo_original>
// kernel: attention_forward.2
$region0: #{attention_forward.2}
  #allocation0 [shape = 'u32[]', space=smem, size = 0x4, offset = 0x4, fixed_abs, tag = 'smem constant byte address 0x4 - core index']
  #allocation1 [shape = 'u32[144,128]{1,0:T(1,128)}', space=vmem, size = 0x12000, scoped, tag = 'internal scratch']
  #allocation2 [shape = 'f32[96,512]{1,0:T(8,128)}', space=vmem, size = 0x30000, scoped, tag = 'scratch operand']
  #allocation3 [shape = 'f32[96,512]{1,0:T(8,128)}', space=vmem, size = 0x30000, scoped, tag = 'scratch operand']
  #allocation4 [shape = 'f32[64,512]{1,0:T(8,128)}', space=vmem, size = 0x20000, scoped, tag = 'scratch operand']
  #allocation5 [shape = 'bf16[192,256]{1,0:T(16,128)(2,1)}', space=vmem, size = 0x18000, scoped, tag = 'scratch operand']
  %s0 = inlined_call_operand.vmem [shape: bf16[6,192,28], index: 0, kind: input, shape index: {}]
  %s1 = inlined_call_operand.vmem [shape: bf16[5,28,512], index: 1, kind: input, shape index: {}]
  %s2 = inlined_call_operand.vmem [shape: f32[1,256], index: 2, kind: input, shape index: {}]
  %s3 = inlined_call_operand.vmem [shape: bf16[192,96], index: 3, kind: input, shape index: {}]
  %s4 = inlined_call_operand.vmem [shape: bf16[5,256,512], index: 4, kind: input, shape index: {}]
  %s5 = inlined_call_operand.vmem [shape: f32[1,256], index: 5, kind: input, shape index: {}]
  %s6 = inlined_call_operand.vmem [shape: bf16[64,256], index: 6, kind: output, shape index: {}]
  %s7 = sld [smem:[#allocation0]]
  $region98: #{attention_forward.2} parent=0
    _
  %s9 = ssub.s32 1, %s7
  %s10 = scalar_select 0, %s9, %s7
  $region1: #{attention_forward.2} parent=0
    #allocation6 [shape = 'u8[294912]{0}', space=vmem, size = 0x48000, scoped, tag = 'input window, operand 0']
    loop: start=0, step=1, limit=4
    $region2: #{attention_forward.2} parent=1 // loop_pre_header
      _
    $region3: #{attention_forward.2} parent=1 // loop_header
      %s12 = sphi 0, %s16
      %p13 = scmp.ge.s32.totalorder %s12, 4
      %s22 = sphi 0, %s24
      %s25 = sphi 0, %s22
      %s26 = sphi 0, %s25
      %s42 = sphi 0, %s26
      %s46 = sphi 0, %s46
      %s48 = sphi 0, %s46
      %s49 = sphi 0, %s48
      %s63 = sphi 0, %s49
      %s67 = sphi 0, %s67
      %s69 = sphi 0, %s67
      %s70 = sphi 0, %s69
      %s84 = sphi 0, %s70
      %s88 = sphi 0, %s88
      %s90 = sphi 0, %s88
      %s91 = sphi 0, %s90
      %s105 = sphi 0, %s91
      %s109 = sphi 0, %s109
      %s111 = sphi 0, %s109
      %s112 = sphi 0, %s111
      %s126 = sphi 0, %s112
      %s130 = sphi 0, %s130
      %s132 = sphi 0, %s130
      %s133 = sphi 0, %s132
      %s147 = sphi 0, %s133
      %s153 = sphi 0, %s155
      %s156 = sphi 0, %s153
      %s157 = sphi 0, %s156
      %s173 = sphi 0, %s157
    $region4: #{attention_forward.2} parent=1 // loop_header_branch
      %15 = sbr.rel (%p13) target = $region8
    $region5: #{attention_forward.2} parent=1 // loop_body
      %s17 = ssub.s32 %s12, 1
      %s18 = ssub.s32 %s12, 2
      %s19 = sadd.s32 %s12, 1
      %s20 = ssub.s32 %s12, %s19
      %p21 = scmp.eq.s32.totalorder %s20, 0
      %s23 = sadd.s32 %s22, 1
      %s24 = scalar_select %p21, %s22, %s23
      %p27 = pneg %p21
      %p28 = scmp.eq.s32.totalorder %s12, 1
      %p29 = por %p27, %p28
      %p30 = scmp.ne.s32.totalorder %s22, %s25
      %p31 = scmp.eq.s32.totalorder %s12, 0
      %p32 = por %p30, %p31
      %p33 = scmp.ne.s32.totalorder %s22, %s25
      %p34 = scmp.eq.s32.totalorder %s17, 1
      %p35 = por %p33, %p34
      %p36 = scmp.ne.s32.totalorder %s25, %s26
      %p37 = scmp.eq.s32.totalorder %s17, 0
      %p38 = por %p36, %p37
      %p39 = scmp.ne.s32.totalorder %s25, %s26
      %p40 = scmp.eq.s32.totalorder %s18, 1
      %p41 = por %p39, %p40
      %p43 = scmp.ne.s32.totalorder %s26, %s42
      %p44 = scmp.eq.s32.totalorder %s18, 0
      %p45 = por %p43, %p44
      %s47 = sadd.s32 %s46, 1
      %p50 = scmp.eq.s32.totalorder %s12, 1
      %p51 = scmp.ne.s32.totalorder %s46, %s48
      %p52 = scmp.eq.s32.totalorder %s12, 0
      %p53 = por %p51, %p52
      %p54 = scmp.ne.s32.totalorder %s46, %s48
      %p55 = scmp.eq.s32.totalorder %s17, 1
      %p56 = por %p54, %p55
      %p57 = scmp.ne.s32.totalorder %s48, %s49
      %p58 = scmp.eq.s32.totalorder %s17, 0
      %p59 = por %p57, %p58
      %p60 = scmp.ne.s32.totalorder %s48, %s49
      %p61 = scmp.eq.s32.totalorder %s18, 1
      %p62 = por %p60, %p61
      %p64 = scmp.ne.s32.totalorder %s49, %s63
      %p65 = scmp.eq.s32.totalorder %s18, 0
      %p66 = por %p64, %p65
      %s68 = sadd.s32 %s67, 1
      %p71 = scmp.eq.s32.totalorder %s12, 1
      %p72 = scmp.ne.s32.totalorder %s67, %s69
      %p73 = scmp.eq.s32.totalorder %s12, 0
      %p74 = por %p72, %p73
      %p75 = scmp.ne.s32.totalorder %s67, %s69
      %p76 = scmp.eq.s32.totalorder %s17, 1
      %p77 = por %p75, %p76
      %p78 = scmp.ne.s32.totalorder %s69, %s70
      %p79 = scmp.eq.s32.totalorder %s17, 0
      %p80 = por %p78, %p79
      %p81 = scmp.ne.s32.totalorder %s69, %s70
      %p82 = scmp.eq.s32.totalorder %s18, 1
      %p83 = por %p81, %p82
      %p85 = scmp.ne.s32.totalorder %s70, %s84
      %p86 = scmp.eq.s32.totalorder %s18, 0
      %p87 = por %p85, %p86
      %s89 = sadd.s32 %s88, 1
      %p92 = scmp.eq.s32.totalorder %s12, 1
      %p93 = scmp.ne.s32.totalorder %s88, %s90
      %p94 = scmp.eq.s32.totalorder %s12, 0
      %p95 = por %p93, %p94
      %p96 = scmp.ne.s32.totalorder %s88, %s90
      %p97 = scmp.eq.s32.totalorder %s17, 1
      %p98 = por %p96, %p97
      %p99 = scmp.ne.s32.totalorder %s90, %s91
      %p100 = scmp.eq.s32.totalorder %s17, 0
      %p101 = por %p99, %p100
      %p102 = scmp.ne.s32.totalorder %s90, %s91
      %p103 = scmp.eq.s32.totalorder %s18, 1
      %p104 = por %p102, %p103
      %p106 = scmp.ne.s32.totalorder %s91, %s105
      %p107 = scmp.eq.s32.totalorder %s18, 0
      %p108 = por %p106, %p107
      %s110 = sadd.s32 %s109, 1
      %p113 = scmp.eq.s32.totalorder %s12, 1
      %p114 = scmp.ne.s32.totalorder %s109, %s111
      %p115 = scmp.eq.s32.totalorder %s12, 0
      %p116 = por %p114, %p115
      %p117 = scmp.ne.s32.totalorder %s109, %s111
      %p118 = scmp.eq.s32.totalorder %s17, 1
      %p119 = por %p117, %p118
      %p120 = scmp.ne.s32.totalorder %s111, %s112
      %p121 = scmp.eq.s32.totalorder %s17, 0
      %p122 = por %p120, %p121
      %p123 = scmp.ne.s32.totalorder %s111, %s112
      %p124 = scmp.eq.s32.totalorder %s18, 1
      %p125 = por %p123, %p124
      %p127 = scmp.ne.s32.totalorder %s112, %s126
      %p128 = scmp.eq.s32.totalorder %s18, 0
      %p129 = por %p127, %p128
      %s131 = sadd.s32 %s130, 1
      %p134 = scmp.eq.s32.totalorder %s12, 1
      %p135 = scmp.ne.s32.totalorder %s130, %s132
      %p136 = scmp.eq.s32.totalorder %s12, 0
      %p137 = por %p135, %p136
      %p138 = scmp.ne.s32.totalorder %s130, %s132
      %p139 = scmp.eq.s32.totalorder %s17, 1
      %p140 = por %p138, %p139
      %p141 = scmp.ne.s32.totalorder %s132, %s133
      %p142 = scmp.eq.s32.totalorder %s17, 0
      %p143 = por %p141, %p142
      %p144 = scmp.ne.s32.totalorder %s132, %s133
      %p145 = scmp.eq.s32.totalorder %s18, 1
      %p146 = por %p144, %p145
      %p148 = scmp.ne.s32.totalorder %s133, %s147
      %p149 = scmp.eq.s32.totalorder %s18, 0
      %p150 = por %p148, %p149
      %s151 = ssub.s32 %s12, %s19
      %p152 = scmp.eq.s32.totalorder %s151, 0
      %s154 = sadd.s32 %s153, 1
      %s155 = scalar_select %p152, %s153, %s154
      %p158 = pneg %p152
      %p159 = scmp.eq.s32.totalorder %s12, 1
      %p160 = por %p158, %p159
      %p161 = scmp.ne.s32.totalorder %s153, %s156
      %p162 = scmp.eq.s32.totalorder %s12, 0
      %p163 = por %p161, %p162
      %p164 = scmp.ne.s32.totalorder %s153, %s156
      %p165 = scmp.eq.s32.totalorder %s17, 1
      %p166 = por %p164, %p165
      %p167 = scmp.ne.s32.totalorder %s156, %s157
      %p168 = scmp.eq.s32.totalorder %s17, 0
      %p169 = por %p167, %p168
      %p170 = scmp.ne.s32.totalorder %s156, %s157
      %p171 = scmp.eq.s32.totalorder %s18, 1
      %p172 = por %p170, %p171
      %p174 = scmp.ne.s32.totalorder %s157, %s173
      %p175 = scmp.eq.s32.totalorder %s18, 0
      %p176 = por %p174, %p175
      %p177 = scmp.le.s32.totalorder 1, %s12
      %p178 = scmp.lt.s32.totalorder %s12, 3
      %p179 = pnand %p177, %p178
      %p180 = pneg %p179
      // Predicated region
      $region9: #{attention_forward.2} parent=5 // pred_check
        _
      $region10: #{attention_forward.2} parent=5 // pred_check_branch
        %182 = sbr.rel (%p179) target = $region12
      $region11: #{attention_forward.2} parent=5 // pred_region
        %s183 = ssub.s32 %s12, 1
        // Predicated region
        $region13: #{attention_forward.2} parent=11 // pred_check
          %p184 = pneg %p59
        $region14: #{attention_forward.2} parent=11 // pred_check_branch
          %186 = sbr.rel (%p184) target = $region16
        $region15: #{attention_forward.2} parent=11 // pred_region
          _
        $region16: #{attention_forward.2} parent=11 // pred_fallthru
          _
        // Predicated region
        $region17: #{attention_forward.2} parent=11 // pred_check
          %p187 = pneg %p80
        $region18: #{attention_forward.2} parent=11 // pred_check_branch
          %189 = sbr.rel (%p187) target = $region20
        $region19: #{attention_forward.2} parent=11 // pred_region
          _
        $region20: #{attention_forward.2} parent=11 // pred_fallthru
          _
        // Predicated region
        $region21: #{attention_forward.2} parent=11 // pred_check
          %p190 = pneg %p101
        $region22: #{attention_forward.2} parent=11 // pred_check_branch
          %192 = sbr.rel (%p190) target = $region24
        $region23: #{attention_forward.2} parent=11 // pred_region
          _
        $region24: #{attention_forward.2} parent=11 // pred_fallthru
          _
        // Predicated region
        $region25: #{attention_forward.2} parent=11 // pred_check
          %p193 = pneg %p122
        $region26: #{attention_forward.2} parent=11 // pred_check_branch
          %195 = sbr.rel (%p193) target = $region28
        $region27: #{attention_forward.2} parent=11 // pred_region
          _
        $region28: #{attention_forward.2} parent=11 // pred_fallthru
          _
        // Predicated region
        $region29: #{attention_forward.2} parent=11 // pred_check
          %p196 = pneg %p143
        $region30: #{attention_forward.2} parent=11 // pred_check_branch
          %198 = sbr.rel (%p196) target = $region32
        $region31: #{attention_forward.2} parent=11 // pred_region
          _
        $region32: #{attention_forward.2} parent=11 // pred_fallthru
          _
      $region12: #{attention_forward.2} parent=5 // pred_fallthru
        _
      %p199 = scmp.lt.s32.totalorder %s12, 2
      // Predicated region
      $region33: #{attention_forward.2} parent=5 // pred_check
        %p200 = pneg %p199
      $region34: #{attention_forward.2} parent=5 // pred_check_branch
        %202 = sbr.rel (%p200) target = $region36
      $region35: #{attention_forward.2} parent=5 // pred_region
        // Predicated region
        $region37: #{attention_forward.2} parent=35 // pred_check
          %p203 = pneg %p32
        $region38: #{attention_forward.2} parent=35 // pred_check_branch
          %205 = sbr.rel (%p203) target = $region40
        $region39: #{attention_forward.2} parent=35 // pred_region
          %s206 = sand.u32 %s22, 1
          %s207 = sand.u32 %s22, 1
          %s208 = smul.addr %s207, 288
          %s209 = scalar_lea.vmem [#allocation6], %s208
          %s210 = smul.u32 12, %s12
          %s211 = smul.addr %s210, 4
          %s212 = scalar_lea.vmem %s0, %s211
          // Predicated region
          $region41: #{attention_forward.2} parent=39 // pred_check
            _
          $region42: #{attention_forward.2} parent=39 // pred_check_branch
            %214 = sbr.rel (0) target = $region44
          $region43: #{attention_forward.2} parent=39 // pred_region
            // Predicated region
            $region45: #{attention_forward.2} parent=43 // pred_check
              _
            $region46: #{attention_forward.2} parent=43 // pred_check_branch
              %216 = sbr.rel target = $region48
            $region47: #{attention_forward.2} parent=43 // pred_region
              // Predicated region
              $region60: #{attention_forward.2} parent=47 // pred_check
                _
              $region61: #{attention_forward.2} parent=47 // pred_check_branch
                %373 = sbr.rel (0) target = $region63
              $region62: #{attention_forward.2} parent=47 // pred_region
                loop: start=0, step=1, limit=1
                $region64: #{attention_forward.2} parent=62 // loop_pre_header
                  _
                $region65: #{attention_forward.2} parent=62 // loop_header
                  %s375 = sphi 0, %s379
                  %p376 = scmp.ge.s32.totalorder %s375, 1
                  %s380 = sphi %s212, %s212
                  %s381 = sphi %s209, %s209
                $region66: #{attention_forward.2} parent=62 // loop_header_branch
                  %378 = sbr.rel (%p376) target = $region70
                $region67: #{attention_forward.2} parent=62 // loop_body
                  _
                $region68: #{attention_forward.2} parent=62 // loop_footer
                  %s379 = sadd.s32 1, %s375
                $region69: #{attention_forward.2} parent=62 // loop_footer_branch
                  %374 = sbr.rel target = $region65
                $region70: #{attention_forward.2} parent=62 // loop_exit
                  _
                loop: start=0, step=1, limit=1
                $region71: #{attention_forward.2} parent=62 // loop_pre_header
                  _
                $region72: #{attention_forward.2} parent=62 // loop_header
                  %s384 = sphi 0, %s388
                  %p385 = scmp.ge.s32.totalorder %s384, 1
                  %s389 = sphi %s212, %s212
                  %s390 = sphi %s209, %s209
                $region73: #{attention_forward.2} parent=62 // loop_header_branch
                  %387 = sbr.rel (%p385) target = $region77
                $region74: #{attention_forward.2} parent=62 // loop_body
                  %v391 = vld [vmem:[%s389] sm:$0xf]
                  %392 = vst [vmem:[%s390] sm:$0xf] %v391
                  %v393 = vld [vmem:[%s389 + $0x4] sm:$0xf]
                  %394 = vst [vmem:[%s390 + $0x4] sm:$0xf] %v393
                  %v395 = vld [vmem:[%s389 + $0x8] sm:$0xf]
                  %396 = vst [vmem:[%s390 + $0x8] sm:$0xf] %v395
                  %v397 = vld [vmem:[%s389 + $0xc] sm:$0xf]
                  %398 = vst [vmem:[%s390 + $0xc] sm:$0xf] %v397
                  %v399 = vld [vmem:[%s389 + $0x10] sm:$0xf]
                  %400 = vst [vmem:[%s390 + $0x10] sm:$0xf] %v399
                  %v401 = vld [vmem:[%s389 + $0x14] sm:$0xf]
                  %402 = vst [vmem:[%s390 + $0x14] sm:$0xf] %v401
                  %v403 = vld [vmem:[%s389 + $0x18] sm:$0xf]
                  %404 = vst [vmem:[%s390 + $0x18] sm:$0xf] %v403
                  %v405 = vld [vmem:[%s389 + $0x1c] sm:$0xf]
                  %406 = vst [vmem:[%s390 + $0x1c] sm:$0xf] %v405
                  %v407 = vld [vmem:[%s389 + $0x20] sm:$0xf]
                  %408 = vst [vmem:[%s390 + $0x20] sm:$0xf] %v407
                  %v409 = vld [vmem:[%s389 + $0x24] sm:$0xf]
                  %410 = vst [vmem:[%s390 + $0x24] sm:$0xf] %v409
                  %v411 = vld [vmem:[%s389 + $0x28] sm:$0xf]
                  %412 = vst [vmem:[%s390 + $0x28] sm:$0xf] %v411
                  %v413 = vld [vmem:[%s389 + $0x2c] sm:$0xf]
                  %414 = vst [vmem:[%s390 + $0x2c] sm:$0xf] %v413
                  %v415 = vld [vmem:[%s389 + $0x60] sm:$0xf]
                  %416 = vst [vmem:[%s390 + $0x30] sm:$0xf] %v415
                  %v417 = vld [vmem:[%s389 + $0x64] sm:$0xf]
                  %418 = vst [vmem:[%s390 + $0x34] sm:$0xf] %v417
                  %v419 = vld [vmem:[%s389 + $0x68] sm:$0xf]
                  %420 = vst [vmem:[%s390 + $0x38] sm:$0xf] %v419
                  %v421 = vld [vmem:[%s389 + $0x6c] sm:$0xf]
                  %422 = vst [vmem:[%s390 + $0x3c] sm:$0xf] %v421
                  %v423 = vld [vmem:[%s389 + $0x70] sm:$0xf]
                  %424 = vst [vmem:[%s390 + $0x40] sm:$0xf] %v423
                  %v425 = vld [vmem:[%s389 + $0x74] sm:$0xf]
                  %426 = vst [vmem:[%s390 + $0x44] sm:$0xf] %v425
                  %v427 = vld [vmem:[%s389 + $0x78] sm:$0xf]
                  %428 = vst [vmem:[%s390 + $0x48] sm:$0xf] %v427
                  %v429 = vld [vmem:[%s389 + $0x7c] sm:$0xf]
                  %430 = vst [vmem:[%s390 + $0x4c] sm:$0xf] %v429
                  %v431 = vld [vmem:[%s389 + $0x80] sm:$0xf]
                  %432 = vst [vmem:[%s390 + $0x50] sm:$0xf] %v431
                  %v433 = vld [vmem:[%s389 + $0x84] sm:$0xf]
                  %434 = vst [vmem:[%s390 + $0x54] sm:$0xf] %v433
                  %v435 = vld [vmem:[%s389 + $0x88] sm:$0xf]
                  %436 = vst [vmem:[%s390 + $0x58] sm:$0xf] %v435
                  %v437 = vld [vmem:[%s389 + $0x8c] sm:$0xf]
                  %438 = vst [vmem:[%s390 + $0x5c] sm:$0xf] %v437
                  %v439 = vld [vmem:[%s389 + $0xc0] sm:$0xf]
                  %440 = vst [vmem:[%s390 + $0x60] sm:$0xf] %v439
                  %v441 = vld [vmem:[%s389 + $0xc4] sm:$0xf]
                  %442 = vst [vmem:[%s390 + $0x64] sm:$0xf] %v441
                  %v443 = vld [vmem:[%s389 + $0xc8] sm:$0xf]
                  %444 = vst [vmem:[%s390 + $0x68] sm:$0xf] %v443
                  %v445 = vld [vmem:[%s389 + $0xcc] sm:$0xf]
                  %446 = vst [vmem:[%s390 + $0x6c] sm:$0xf] %v445
                  %v447 = vld [vmem:[%s389 + $0xd0] sm:$0xf]
                  %448 = vst [vmem:[%s390 + $0x70] sm:$0xf] %v447
                  %v449 = vld [vmem:[%s389 + $0xd4] sm:$0xf]
                  %450 = vst [vmem:[%s390 + $0x74] sm:$0xf] %v449
                  %v451 = vld [vmem:[%s389 + $0xd8] sm:$0xf]
                  %452 = vst [vmem:[%s390 + $0x78] sm:$0xf] %v451
                  %v453 = vld [vmem:[%s389 + $0xdc] sm:$0xf]
                  %454 = vst [vmem:[%s390 + $0x7c] sm:$0xf] %v453
                  %v455 = vld [vmem:[%s389 + $0xe0] sm:$0xf]
                  %456 = vst [vmem:[%s390 + $0x80] sm:$0xf] %v455
                  %v457 = vld [vmem:[%s389 + $0xe4] sm:$0xf]
                  %458 = vst [vmem:[%s390 + $0x84] sm:$0xf] %v457
                  %v459 = vld [vmem:[%s389 + $0xe8] sm:$0xf]
                  %460 = vst [vmem:[%s390 + $0x88] sm:$0xf] %v459
                  %v461 = vld [vmem:[%s389 + $0xec] sm:$0xf]
                  %462 = vst [vmem:[%s390 + $0x8c] sm:$0xf] %v461
                  %v463 = vld [vmem:[%s389 + $0x120] sm:$0xf]
                  %464 = vst [vmem:[%s390 + $0x90] sm:$0xf] %v463
                  %v465 = vld [vmem:[%s389 + $0x124] sm:$0xf]
                  %466 = vst [vmem:[%s390 + $0x94] sm:$0xf] %v465
                  %v467 = vld [vmem:[%s389 + $0x128] sm:$0xf]
                  %468 = vst [vmem:[%s390 + $0x98] sm:$0xf] %v467
                  %v469 = vld [vmem:[%s389 + $0x12c] sm:$0xf]
                  %470 = vst [vmem:[%s390 + $0x9c] sm:$0xf] %v469
                  %v471 = vld [vmem:[%s389 + $0x130] sm:$0xf]
                  %472 = vst [vmem:[%s390 + $0xa0] sm:$0xf] %v471
                  %v473 = vld [vmem:[%s389 + $0x134] sm:$0xf]
                  %474 = vst [vmem:[%s390 + $0xa4] sm:$0xf] %v473
                  %v475 = vld [vmem:[%s389 + $0x138] sm:$0xf]
                  %476 = vst [vmem:[%s390 + $0xa8] sm:$0xf] %v475
                  %v477 = vld [vmem:[%s389 + $0x13c] sm:$0xf]
                  %478 = vst [vmem:[%s390 + $0xac] sm:$0xf] %v477
                  %v479 = vld [vmem:[%s389 + $0x140] sm:$0xf]
                  %480 = vst [vmem:[%s390 + $0xb0] sm:$0xf] %v479
                  %v481 = vld [vmem:[%s389 + $0x144] sm:$0xf]
                  %482 = vst [vmem:[%s390 + $0xb4] sm:$0xf] %v481
                  %v483 = vld [vmem:[%s389 + $0x148] sm:$0xf]
                  %484 = vst [vmem:[%s390 + $0xb8] sm:$0xf] %v483
                  %v485 = vld [vmem:[%s389 + $0x14c] sm:$0xf]
                  %486 = vst [vmem:[%s390 + $0xbc] sm:$0xf] %v485
                  %v487 = vld [vmem:[%s389 + $0x180] sm:$0xf]
                  %488 = vst [vmem:[%s390 + $0xc0] sm:$0xf] %v487
                  %v489 = vld [vmem:[%s389 + $0x184] sm:$0xf]
                  %490 = vst [vmem:[%s390 + $0xc4] sm:$0xf] %v489
                  %v491 = vld [vmem:[%s389 + $0x188] sm:$0xf]
                  %492 = vst [vmem:[%s390 + $0xc8] sm:$0xf] %v491
                  %v493 = vld [vmem:[%s389 + $0x18c] sm:$0xf]
                  %494 = vst [vmem:[%s390 + $0xcc] sm:$0xf] %v493
                  %v495 = vld [vmem:[%s389 + $0x190] sm:$0xf]
                  %496 = vst [vmem:[%s390 + $0xd0] sm:$0xf] %v495
                  %v497 = vld [vmem:[%s389 + $0x194] sm:$0xf]
                  %498 = vst [vmem:[%s390 + $0xd4] sm:$0xf] %v497
                  %v499 = vld [vmem:[%s389 + $0x198] sm:$0xf]
                  %500 = vst [vmem:[%s390 + $0xd8] sm:$0xf] %v499
                  %v501 = vld [vmem:[%s389 + $0x19c] sm:$0xf]
                  %502 = vst [vmem:[%s390 + $0xdc] sm:$0xf] %v501
                  %v503 = vld [vmem:[%s389 + $0x1a0] sm:$0xf]
                  %504 = vst [vmem:[%s390 + $0xe0] sm:$0xf] %v503
                  %v505 = vld [vmem:[%s389 + $0x1a4] sm:$0xf]
                  %506 = vst [vmem:[%s390 + $0xe4] sm:$0xf] %v505
                  %v507 = vld [vmem:[%s389 + $0x1a8] sm:$0xf]
                  %508 = vst [vmem:[%s390 + $0xe8] sm:$0xf] %v507
                  %v509 = vld [vmem:[%s389 + $0x1ac] sm:$0xf]
                  %510 = vst [vmem:[%s390 + $0xec] sm:$0xf] %v509
                  %v511 = vld [vmem:[%s389 + $0x1e0] sm:$0xf]
                  %512 = vst [vmem:[%s390 + $0xf0] sm:$0xf] %v511
                  %v513 = vld [vmem:[%s389 + $0x1e4] sm:$0xf]
                  %514 = vst [vmem:[%s390 + $0xf4] sm:$0xf] %v513
                  %v515 = vld [vmem:[%s389 + $0x1e8] sm:$0xf]
                  %516 = vst [vmem:[%s390 + $0xf8] sm:$0xf] %v515
                  %v517 = vld [vmem:[%s389 + $0x1ec] sm:$0xf]
                  %518 = vst [vmem:[%s390 + $0xfc] sm:$0xf] %v517
                  %v519 = vld [vmem:[%s389 + $0x1f0] sm:$0xf]
                  %520 = vst [vmem:[%s390 + $0x100] sm:$0xf] %v519
                  %v521 = vld [vmem:[%s389 + $0x1f4] sm:$0xf]
                  %522 = vst [vmem:[%s390 + $0x104] sm:$0xf] %v521
                  %v523 = vld [vmem:[%s389 + $0x1f8] sm:$0xf]
                  %524 = vst [vmem:[%s390 + $0x108] sm:$0xf] %v523
                  %v525 = vld [vmem:[%s389 + $0x1fc] sm:$0xf]
                  %526 = vst [vmem:[%s390 + $0x10c] sm:$0xf] %v525
                  %v527 = vld [vmem:[%s389 + $0x200] sm:$0xf]
                  %528 = vst [vmem:[%s390 + $0x110] sm:$0xf] %v527
                  %v529 = vld [vmem:[%s389 + $0x204] sm:$0xf]
                  %530 = vst [vmem:[%s390 + $0x114] sm:$0xf] %v529
                  %v531 = vld [vmem:[%s389 + $0x208] sm:$0xf]
                  %532 = vst [vmem:[%s390 + $0x118] sm:$0xf] %v531
                  %v533 = vld [vmem:[%s389 + $0x20c] sm:$0xf]
                  %534 = vst [vmem:[%s390 + $0x11c] sm:$0xf] %v533
                $region75: #{attention_forward.2} parent=62 // loop_footer
                  %s388 = sadd.s32 1, %s384
                $region76: #{attention_forward.2} parent=62 // loop_footer_branch
                  %383 = sbr.rel target = $region72
                $region77: #{attention_forward.2} parent=62 // loop_exit
                  _
              $region63: #{attention_forward.2} parent=47 // pred_fallthru
                _
            $region48: #{attention_forward.2} parent=43 // pred_fallthru
              _
            // Predicated region
            $region49: #{attention_forward.2} parent=43 // pred_check
              _
            $region50: #{attention_forward.2} parent=43 // pred_check_branch
              %218 = sbr.rel (0) target = $region52
            $region51: #{attention_forward.2} parent=43 // pred_region
              loop: start=0, step=1, limit=1
              $region53: #{attention_forward.2} parent=51 // loop_pre_header
                _
              $region54: #{attention_forward.2} parent=51 // loop_header
                %s221 = sphi 0, %s225
                %p222 = scmp.ge.s32.totalorder %s221, 1
                %s226 = sphi %s212, %s212
                %s227 = sphi %s209, %s209
              $region55: #{attention_forward.2} parent=51 // loop_header_branch
                %224 = sbr.rel (%p222) target = $region59
              $region56: #{attention_forward.2} parent=51 // loop_body
                %v228 = vld [vmem:[%s226] sm:$0xf]
                %229 = vst [vmem:[%s227] sm:$0xf] %v228
                %v230 = vld [vmem:[%s226 + $0x4] sm:$0xf]
                %231 = vst [vmem:[%s227 + $0x4] sm:$0xf] %v230
                %v232 = vld [vmem:[%s226 + $0x8] sm:$0xf]
                %233 = vst [vmem:[%s227 + $0x8] sm:$0xf] %v232
                %v234 = vld [vmem:[%s226 + $0xc] sm:$0xf]
                %235 = vst [vmem:[%s227 + $0xc] sm:$0xf] %v234
                %v236 = vld [vmem:[%s226 + $0x10] sm:$0xf]
                %237 = vst [vmem:[%s227 + $0x10] sm:$0xf] %v236
                %v238 = vld [vmem:[%s226 + $0x14] sm:$0xf]
                %239 = vst [vmem:[%s227 + $0x14] sm:$0xf] %v238
                %v240 = vld [vmem:[%s226 + $0x18] sm:$0xf]
                %241 = vst [vmem:[%s227 + $0x18] sm:$0xf] %v240
                %v242 = vld [vmem:[%s226 + $0x1c] sm:$0xf]
                %243 = vst [vmem:[%s227 + $0x1c] sm:$0xf] %v242
                %v244 = vld [vmem:[%s226 + $0x20] sm:$0xf]
                %245 = vst [vmem:[%s227 + $0x20] sm:$0xf] %v244
                %v246 = vld [vmem:[%s226 + $0x24] sm:$0xf]
                %247 = vst [vmem:[%s227 + $0x24] sm:$0xf] %v246
                %v248 = vld [vmem:[%s226 + $0x28] sm:$0xf]
                %249 = vst [vmem:[%s227 + $0x28] sm:$0xf] %v248
                %v250 = vld [vmem:[%s226 + $0x2c] sm:$0xf]
                %251 = vst [vmem:[%s227 + $0x2c] sm:$0xf] %v250
                %v252 = vld [vmem:[%s226 + $0x60] sm:$0xf]
                %253 = vst [vmem:[%s227 + $0x30] sm:$0xf] %v252
                %v254 = vld [vmem:[%s226 + $0x64] sm:$0xf]
                %255 = vst [vmem:[%s227 + $0x34] sm:$0xf] %v254
                %v256 = vld [vmem:[%s226 + $0x68] sm:$0xf]
                %257 = vst [vmem:[%s227 + $0x38] sm:$0xf] %v256
                %v258 = vld [vmem:[%s226 + $0x6c] sm:$0xf]
                %259 = vst [vmem:[%s227 + $0x3c] sm:$0xf] %v258
                %v260 = vld [vmem:[%s226 + $0x70] sm:$0xf]
                %261 = vst [vmem:[%s227 + $0x40] sm:$0xf] %v260
                %v262 = vld [vmem:[%s226 + $0x74] sm:$0xf]
                %263 = vst [vmem:[%s227 + $0x44] sm:$0xf] %v262
                %v264 = vld [vmem:[%s226 + $0x78] sm:$0xf]
                %265 = vst [vmem:[%s227 + $0x48] sm:$0xf] %v264
                %v266 = vld [vmem:[%s226 + $0x7c] sm:$0xf]
                %267 = vst [vmem:[%s227 + $0x4c] sm:$0xf] %v266
                %v268 = vld [vmem:[%s226 + $0x80] sm:$0xf]
                %269 = vst [vmem:[%s227 + $0x50] sm:$0xf] %v268
                %v270 = vld [vmem:[%s226 + $0x84] sm:$0xf]
                %271 = vst [vmem:[%s227 + $0x54] sm:$0xf] %v270
                %v272 = vld [vmem:[%s226 + $0x88] sm:$0xf]
                %273 = vst [vmem:[%s227 + $0x58] sm:$0xf] %v272
                %v274 = vld [vmem:[%s226 + $0x8c] sm:$0xf]
                %275 = vst [vmem:[%s227 + $0x5c] sm:$0xf] %v274
                %v276 = vld [vmem:[%s226 + $0xc0] sm:$0xf]
                %277 = vst [vmem:[%s227 + $0x60] sm:$0xf] %v276
                %v278 = vld [vmem:[%s226 + $0xc4] sm:$0xf]
                %279 = vst [vmem:[%s227 + $0x64] sm:$0xf] %v278
                %v280 = vld [vmem:[%s226 + $0xc8] sm:$0xf]
                %281 = vst [vmem:[%s227 + $0x68] sm:$0xf] %v280
                %v282 = vld [vmem:[%s226 + $0xcc] sm:$0xf]
                %283 = vst [vmem:[%s227 + $0x6c] sm:$0xf] %v282
                %v284 = vld [vmem:[%s226 + $0xd0] sm:$0xf]
                %285 = vst [vmem:[%s227 + $0x70] sm:$0xf] %v284
                %v286 = vld [vmem:[%s226 + $0xd4] sm:$0xf]
                %287 = vst [vmem:[%s227 + $0x74] sm:$0xf] %v286
                %v288 = vld [vmem:[%s226 + $0xd8] sm:$0xf]
                %289 = vst [vmem:[%s227 + $0x78] sm:$0xf] %v288
                %v290 = vld [vmem:[%s226 + $0xdc] sm:$0xf]
                %291 = vst [vmem:[%s227 + $0x7c] sm:$0xf] %v290
                %v292 = vld [vmem:[%s226 + $0xe0] sm:$0xf]
                %293 = vst [vmem:[%s227 + $0x80] sm:$0xf] %v292
                %v294 = vld [vmem:[%s226 + $0xe4] sm:$0xf]
                %295 = vst [vmem:[%s227 + $0x84] sm:$0xf] %v294
                %v296 = vld [vmem:[%s226 + $0xe8] sm:$0xf]
                %297 = vst [vmem:[%s227 + $0x88] sm:$0xf] %v296
                %v298 = vld [vmem:[%s226 + $0xec] sm:$0xf]
                %299 = vst [vmem:[%s227 + $0x8c] sm:$0xf] %v298
                %v300 = vld [vmem:[%s226 + $0x120] sm:$0xf]
                %301 = vst [vmem:[%s227 + $0x90] sm:$0xf] %v300
                %v302 = vld [vmem:[%s226 + $0x124] sm:$0xf]
                %303 = vst [vmem:[%s227 + $0x94] sm:$0xf] %v302
                %v304 = vld [vmem:[%s226 + $0x128] sm:$0xf]
                %305 = vst [vmem:[%s227 + $0x98] sm:$0xf] %v304
                %v306 = vld [vmem:[%s226 + $0x12c] sm:$0xf]
                %307 = vst [vmem:[%s227 + $0x9c] sm:$0xf] %v306
                %v308 = vld [vmem:[%s226 + $0x130] sm:$0xf]
                %309 = vst [vmem:[%s227 + $0xa0] sm:$0xf] %v308
                %v310 = vld [vmem:[%s226 + $0x134] sm:$0xf]
                %311 = vst [vmem:[%s227 + $0xa4] sm:$0xf] %v310
                %v312 = vld [vmem:[%s226 + $0x138] sm:$0xf]
                %313 = vst [vmem:[%s227 + $0xa8] sm:$0xf] %v312
                %v314 = vld [vmem:[%s226 + $0x13c] sm:$0xf]
                %315 = vst [vmem:[%s227 + $0xac] sm:$0xf] %v314
                %v316 = vld [vmem:[%s226 + $0x140] sm:$0xf]
                %317 = vst [vmem:[%s227 + $0xb0] sm:$0xf] %v316
                %v318 = vld [vmem:[%s226 + $0x144] sm:$0xf]
                %319 = vst [vmem:[%s227 + $0xb4] sm:$0xf] %v318
                %v320 = vld [vmem:[%s226 + $0x148] sm:$0xf]
                %321 = vst [vmem:[%s227 + $0xb8] sm:$0xf] %v320
                %v322 = vld [vmem:[%s226 + $0x14c] sm:$0xf]
                %323 = vst [vmem:[%s227 + $0xbc] sm:$0xf] %v322
                %v324 = vld [vmem:[%s226 + $0x180] sm:$0xf]
                %325 = vst [vmem:[%s227 + $0xc0] sm:$0xf] %v324
                %v326 = vld [vmem:[%s226 + $0x184] sm:$0xf]
                %327 = vst [vmem:[%s227 + $0xc4] sm:$0xf] %v326
                %v328 = vld [vmem:[%s226 + $0x188] sm:$0xf]
                %329 = vst [vmem:[%s227 + $0xc8] sm:$0xf] %v328
                %v330 = vld [vmem:[%s226 + $0x18c] sm:$0xf]
                %331 = vst [vmem:[%s227 + $0xcc] sm:$0xf] %v330
                %v332 = vld [vmem:[%s226 + $0x190] sm:$0xf]
                %333 = vst [vmem:[%s227 + $0xd0] sm:$0xf] %v332
                %v334 = vld [vmem:[%s226 + $0x194] sm:$0xf]
                %335 = vst [vmem:[%s227 + $0xd4] sm:$0xf] %v334
                %v336 = vld [vmem:[%s226 + $0x198] sm:$0xf]
                %337 = vst [vmem:[%s227 + $0xd8] sm:$0xf] %v336
                %v338 = vld [vmem:[%s226 + $0x19c] sm:$0xf]
                %339 = vst [vmem:[%s227 + $0xdc] sm:$0xf] %v338
                %v340 = vld [vmem:[%s226 + $0x1a0] sm:$0xf]
                %341 = vst [vmem:[%s227 + $0xe0] sm:$0xf] %v340
                %v342 = vld [vmem:[%s226 + $0x1a4] sm:$0xf]
                %343 = vst [vmem:[%s227 + $0xe4] sm:$0xf] %v342
                %v344 = vld [vmem:[%s226 + $0x1a8] sm:$0xf]
                %345 = vst [vmem:[%s227 + $0xe8] sm:$0xf] %v344
                %v346 = vld [vmem:[%s226 + $0x1ac] sm:$0xf]
                %347 = vst [vmem:[%s227 + $0xec] sm:$0xf] %v346
                %v348 = vld [vmem:[%s226 + $0x1e0] sm:$0xf]
                %349 = vst [vmem:[%s227 + $0xf0] sm:$0xf] %v348
                %v350 = vld [vmem:[%s226 + $0x1e4] sm:$0xf]
                %351 = vst [vmem:[%s227 + $0xf4] sm:$0xf] %v350
                %v352 = vld [vmem:[%s226 + $0x1e8] sm:$0xf]
                %353 = vst [vmem:[%s227 + $0xf8] sm:$0xf] %v352
                %v354 = vld [vmem:[%s226 + $0x1ec] sm:$0xf]
                %355 = vst [vmem:[%s227 + $0xfc] sm:$0xf] %v354
                %v356 = vld [vmem:[%s226 + $0x1f0] sm:$0xf]
                %357 = vst [vmem:[%s227 + $0x100] sm:$0xf] %v356
                %v358 = vld [vmem:[%s226 + $0x1f4] sm:$0xf]
                %359 = vst [vmem:[%s227 + $0x104] sm:$0xf] %v358
                %v360 = vld [vmem:[%s226 + $0x1f8] sm:$0xf]
                %361 = vst [vmem:[%s227 + $0x108] sm:$0xf] %v360
                %v362 = vld [vmem:[%s226 + $0x1fc] sm:$0xf]
                %363 = vst [vmem:[%s227 + $0x10c] sm:$0xf] %v362
                %v364 = vld [vmem:[%s226 + $0x200] sm:$0xf]
                %365 = vst [vmem:[%s227 + $0x110] sm:$0xf] %v364
                %v366 = vld [vmem:[%s226 + $0x204] sm:$0xf]
                %367 = vst [vmem:[%s227 + $0x114] sm:$0xf] %v366
                %v368 = vld [vmem:[%s226 + $0x208] sm:$0xf]
                %369 = vst [vmem:[%s227 + $0x118] sm:$0xf] %v368
                %v370 = vld [vmem:[%s226 + $0x20c] sm:$0xf]
                %371 = vst [vmem:[%s227 + $0x11c] sm:$0xf] %v370
              $region57: #{attention_forward.2} parent=51 // loop_footer
                %s225 = sadd.s32 1, %s221
              $region58: #{attention_forward.2} parent=51 // loop_footer_branch
                %220 = sbr.rel target = $region54
              $region59: #{attention_forward.2} parent=51 // loop_exit
                _
            $region52: #{attention_forward.2} parent=43 // pred_fallthru
              _
          $region44: #{attention_forward.2} parent=39 // pred_fallthru
            _
          %535 = vnop
        $region40: #{attention_forward.2} parent=35 // pred_fallthru
          _
      $region36: #{attention_forward.2} parent=5 // pred_fallthru
        _
      %p536 = scmp.le.s32.totalorder 1, %s12
      %p537 = scmp.lt.s32.totalorder %s12, 3
      %p538 = pnand %p536, %p537
      %p539 = pneg %p538
      // Predicated region
      $region78: #{attention_forward.2} parent=5 // pred_check
        _
      $region79: #{attention_forward.2} parent=5 // pred_check_branch
        %541 = sbr.rel (%p538) target = $region81
      $region80: #{attention_forward.2} parent=5 // pred_region
        %s542 = ssub.s32 %s12, 1
        %s543 = sand.u32 %s25, 1
        %s544 = sand.u32 %s25, 1
        %s545 = smul.addr %s544, 288
        %s546 = scalar_lea.vmem [#allocation6], %s545
        // Predicated region
        $region82: #{attention_forward.2} parent=80 // pred_check
          %p547 = pneg %p38
        $region83: #{attention_forward.2} parent=80 // pred_check_branch
          %549 = sbr.rel (%p547) target = $region85
        $region84: #{attention_forward.2} parent=80 // pred_region
          _
        $region85: #{attention_forward.2} parent=80 // pred_fallthru
          _
        %s550 = sand.u32 %s25, 1
        %s551 = sand.u32 %s25, 1
        %s552 = smul.addr %s551, 288
        %s553 = scalar_lea.vmem [#allocation6], %s552
        %p554 = pneg %p38
        %p555 = pneg %p35
        %p556 = pneg %p59
        %p557 = pneg %p56
        %p558 = pneg %p80
        %p559 = pneg %p77
        %p560 = pneg %p101
        %p561 = pneg %p98
        %p562 = pneg %p122
        %p563 = pneg %p119
        %p564 = pneg %p143
        %p565 = pneg %p140
        %p566 = pneg %p169
        %p567 = pneg %p166
        %s568 = smul.u32 4, %s17
        %p569 = scmp.lt.s32.totalorder %s568, 7
        %s570 = scalar_select %p569, %s568, 7
        %s571 = smul.addr %s570, 2
        %s572 = smul.addr %s571, 4
        %s573 = scalar_lea.vmem %s6, %s572
        %s574 = smul.u32 12, %s17
        %s575 = smul.u32 4, %s17
        %p576 = scmp.lt.s32.totalorder %s575, 7
        %s577 = scalar_select %p576, %s575, 7
        %s578 = smul.addr %s577, 2
        %s579 = smul.addr %s578, 4
        %s580 = scalar_lea.vmem %s6, %s579
        %s581 = smul.u32 4, %s17
        %v583 = vld [vmem:[%s1] sm:$0xff]
        %v584 = vld [vmem:[%s1 + $0x8] sm:$0xff]
        %v585 = vld [vmem:[%s1 + $0x10] sm:$0xff]
        %v586 = vld [vmem:[%s1 + $0x18] sm:$0xff]
        %v587 = vld [vmem:[%s1 + $0x20] sm:$0xff]
        %v588 = vld [vmem:[%s1 + $0x28] sm:$0xff]
        %v589 = vld [vmem:[%s1 + $0x30] sm:$0x33]
        %v590 = vld [vmem:[%s1 + $0x38] sm:$0x33]
        %v591 = vld [vmem:[%s546] sm:$0xf]
        %v592 = vld [vmem:[%s546 + $0x4] sm:$0xf]
        %v593 = vld [vmem:[%s546 + $0x8] sm:$0xf]
        %v594 = vld [vmem:[%s546 + $0xc] sm:$0xf]
        %v595 = vld [vmem:[%s546 + $0x10] sm:$0xf]
        %v596 = vld [vmem:[%s546 + $0x14] sm:$0xf]
        %v597 = vld [vmem:[%s546 + $0x18] sm:$0xf]
        %v598 = vld [vmem:[%s546 + $0x1c] sm:$0xf]
        %v599 = vld [vmem:[%s546 + $0x20] sm:$0xf]
        %v600 = vld [vmem:[%s546 + $0x24] sm:$0xf]
        %v601 = vld [vmem:[%s546 + $0x28] sm:$0xf]
        %v602 = vld [vmem:[%s546 + $0x2c] sm:$0xf]
        %v615 = vunpack.c.l.b16 %v591
        %v616 = vunpack.c.l.b16 %v592
        %v617 = vunpack.c.l.b16 %v593
        %v618 = vunpack.c.l.b16 %v594
        %v619 = vunpack.c.l.b16 %v595
        %v620 = vunpack.c.l.b16 %v596
        %v621 = vunpack.c.l.b16 %v597
        %v622 = vunpack.c.l.b16 %v598
        %v623 = vunpack.c.l.b16 %v599
        %v624 = vunpack.c.l.b16 %v600
        %v625 = vunpack.c.l.b16 %v601
        %v626 = vunpack.c.l.b16 %v602
        %v627 = vpack.c.b16 %v616, %v615
        %v628 = vpack.c.b16 %v618, %v617
        %v629 = vpack.c.b16 %v620, %v619
        %v630 = vpack.c.b16 %v622, %v621
        %v631 = vpack.c.b16 %v624, %v623
        %v632 = vpack.c.b16 %v626, %v625
        %v641 = vunpack.c.l.b16 %v583
        %v642 = vunpack.c.h.b16 %v583
        %v643 = vunpack.c.l.b16 %v584
        %v644 = vunpack.c.h.b16 %v584
        %v645 = vunpack.c.l.b16 %v585
        %v646 = vunpack.c.h.b16 %v585
        %v647 = vunpack.c.l.b16 %v586
        %v648 = vunpack.c.h.b16 %v586
        %v649 = vunpack.c.l.b16 %v587
        %v650 = vunpack.c.h.b16 %v587
        %v651 = vunpack.c.l.b16 %v588
        %v652 = vunpack.c.h.b16 %v588
        %v653 = vunpack.c.l.b16 %v589
        %v654 = vunpack.c.h.b16 %v589
        %v655 = vunpack.c.l.b16 %v590
        %v656 = vunpack.c.h.b16 %v590
        %v657 = vpack.c.b16 %v645, %v641
        %v658 = vpack.c.b16 %v646, %v642
        %v659 = vpack.c.b16 %v647, %v643
        %v660 = vpack.c.b16 %v648, %v644
        %v661 = vpack.c.b16 %v653, %v649
        %v662 = vpack.c.b16 %v654, %v650
        %v663 = vpack.c.b16 %v655, %v651
        %v664 = vpack.c.b16 %v656, %v652
        %vm669 = vcmask 228352
        %v671 = vsel %vm669, %v627, 0
        %v674 = vsel %vm669, %v628, 0
        %v677 = vsel %vm669, %v629, 0
        %v680 = vsel %vm669, %v630, 0
        %v683 = vsel %vm669, %v631, 0
        %v686 = vsel %vm669, %v632, 0
        %vm688 = vcmask 1045504
        %v690 = vsel %vm688, %v661, 0
        %v693 = vsel %vm688, %v662, 0
        %v696 = vsel %vm688, %v663, 0
        %v699 = vsel %vm688, %v664, 0
        %701 = vmatprep.subr.bf16.mxu0 %v658
        %702 = vmatpush1.bf16.msra.mxu0 %v657
        %703 = vmatprep.subr.bf16.mxu0 %v693
        %704 = vmatpush1.bf16.msra.mxu0 %v690
        %705 = vmatprep.subr.bf16.mxu0 0
        %706 = vmatpush1.bf16.msra.mxu0 0
        %707 = vmatprep.subr.bf16.mxu0 0
        %708 = vmatpush1.bf16.msra.mxu0 0
        %709 = vmatprep.subr.bf16.mxu0 0
        %710 = vmatpush1.bf16.msra.mxu0 0
        %711 = vmatprep.subr.bf16.mxu0 0
        %712 = vmatpush1.bf16.msra.mxu0 0
        %713 = vmatprep.subr.bf16.mxu0 0
        %714 = vmatpush1.bf16.msra.mxu0 0
        %715 = vmatprep.subr.bf16.mxu0 0
        %716 = vmatpush1.bf16.msra.mxu0 0
        %717 = vmatprep.subr.bf16.mxu0 0
        %718 = vmatpush1.bf16.msra.mxu0 0
        %719 = vmatprep.subr.bf16.mxu0 0
        %720 = vmatpush1.bf16.msra.mxu0 0
        %721 = vmatprep.subr.bf16.mxu0 0
        %722 = vmatpush1.bf16.msra.mxu0 0
        %723 = vmatprep.subr.bf16.mxu0 0
        %724 = vmatpush1.bf16.msra.mxu0 0
        %725 = vmatprep.subr.bf16.mxu0 0
        %726 = vmatpush1.bf16.msra.mxu0 0
        %727 = vmatprep.subr.bf16.mxu0 0
        %728 = vmatpush1.bf16.msra.mxu0 0
        %729 = vmatprep.subr.bf16.mxu0 0
        %730 = vmatpush1.bf16.msra.mxu0 0
        %731 = vmatprep.subr.bf16.mxu0 0
        %732 = vmatpush1.bf16.msra.mxu0 0
        %733 = vmatprep.mubr.bf16.mxu0 0
        %734 = vmatmul.mubr.bf16.gmra.mrb[0].mxu0 %v671
        %v735 = vpop.f32.mrb[0].mxu0
        %v736 = vadd.f32 0.0, %v735
        %v737 = vpop.f32.mrb[0].mxu0
        %v738 = vadd.f32 0.0, %v737
        %v739 = vpop.f32.mrb[0].mxu0
        %v740 = vadd.f32 0.0, %v739
        %v741 = vpop.f32.mrb[0].mxu0
        %v742 = vadd.f32 0.0, %v741
        %743 = vmatprep.mubr.bf16.mxu0 0
        %744 = vmatmul.mubr.bf16.gmra.mrb[0].mxu0 %v674
        %v745 = vpop.f32.mrb[0].mxu0
        %v746 = vadd.f32 0.0, %v745
        %v747 = vpop.f32.mrb[0].mxu0
        %v748 = vadd.f32 0.0, %v747
        %v749 = vpop.f32.mrb[0].mxu0
        %v750 = vadd.f32 0.0, %v749
        %v751 = vpop.f32.mrb[0].mxu0
        %v752 = vadd.f32 0.0, %v751
        %753 = vmatprep.mubr.bf16.mxu0 0
        %754 = vmatmul.mubr.bf16.gmra.mrb[0].mxu0 %v677
        %v755 = vpop.f32.mrb[0].mxu0
        %v756 = vadd.f32 0.0, %v755
        %v757 = vpop.f32.mrb[0].mxu0
        %v758 = vadd.f32 0.0, %v757
        %v759 = vpop.f32.mrb[0].mxu0
        %v760 = vadd.f32 0.0, %v759
        %v761 = vpop.f32.mrb[0].mxu0
        %v762 = vadd.f32 0.0, %v761
        %763 = vmatprep.mubr.bf16.mxu0 0
        %764 = vmatmul.mubr.bf16.gmra.mrb[0].mxu0 %v680
        %v765 = vpop.f32.mrb[0].mxu0
        %v766 = vadd.f32 0.0, %v765
        %v767 = vpop.f32.mrb[0].mxu0
        %v768 = vadd.f32 0.0, %v767
        %v769 = vpop.f32.mrb[0].mxu0
        %v770 = vadd.f32 0.0, %v769
        %v771 = vpop.f32.mrb[0].mxu0
        %v772 = vadd.f32 0.0, %v771
        %773 = vmatprep.mubr.bf16.mxu0 0
        %774 = vmatmul.mubr.bf16.gmra.mrb[0].mxu0 %v683
        %v775 = vpop.f32.mrb[0].mxu0
        %v776 = vadd.f32 0.0, %v775
        %v777 = vpop.f32.mrb[0].mxu0
        %v778 = vadd.f32 0.0, %v777
        %v779 = vpop.f32.mrb[0].mxu0
        %v780 = vadd.f32 0.0, %v779
        %v781 = vpop.f32.mrb[0].mxu0
        %v782 = vadd.f32 0.0, %v781
        %783 = vmatprep.mubr.bf16.mxu0 0
        %784 = vmatmul.mubr.bf16.gmra.mrb[0].mxu0 %v686
        %v785 = vpop.f32.mrb[0].mxu0
        %v786 = vadd.f32 0.0, %v785
        %v787 = vpop.f32.mrb[0].mxu0
        %v788 = vadd.f32 0.0, %v787
        %v789 = vpop.f32.mrb[0].mxu0
        %v790 = vadd.f32 0.0, %v789
        %v791 = vpop.f32.mrb[0].mxu0
        %v792 = vadd.f32 0.0, %v791
        %793 = vdwg.mxu0
        %794 = vmatprep.subr.bf16.mxu0 %v660
        %795 = vmatpush1.bf16.msra.mxu0 %v659
        %796 = vmatprep.subr.bf16.mxu0 %v699
        %797 = vmatpush1.bf16.msra.mxu0 %v696
        %798 = vmatprep.subr.bf16.mxu0 0
        %799 = vmatpush1.bf16.msra.mxu0 0
        %800 = vmatprep.subr.bf16.mxu0 0
        %801 = vmatpush1.bf16.msra.mxu0 0
        %802 = vmatprep.subr.bf16.mxu0 0
        %803 = vmatpush1.bf16.msra.mxu0 0
        %804 = vmatprep.subr.bf16.mxu0 0
        %805 = vmatpush1.bf16.msra.mxu0 0
        %806 = vmatprep.subr.bf16.mxu0 0
        %807 = vmatpush1.bf16.msra.mxu0 0
        %808 = vmatprep.subr.bf16.mxu0 0
        %809 = vmatpush1.bf16.msra.mxu0 0
        %810 = vmatprep.subr.bf16.mxu0 0
        %811 = vmatpush1.bf16.msra.mxu0 0
        %812 = vmatprep.subr.bf16.mxu0 0
        %813 = vmatpush1.bf16.msra.mxu0 0
        %814 = vmatprep.subr.bf16.mxu0 0
        %815 = vmatpush1.bf16.msra.mxu0 0
        %816 = vmatprep.subr.bf16.mxu0 0
        %817 = vmatpush1.bf16.msra.mxu0 0
        %818 = vmatprep.subr.bf16.mxu0 0
        %819 = vmatpush1.bf16.msra.mxu0 0
        %820 = vmatprep.subr.bf16.mxu0 0
        %821 = vmatpush1.bf16.msra.mxu0 0
        %822 = vmatprep.subr.bf16.mxu0 0
        %823 = vmatpush1.bf16.msra.mxu0 0
        %824 = vmatprep.subr.bf16.mxu0 0
        %825 = vmatpush1.bf16.msra.mxu0 0
        %826 = vmatprep.mubr.bf16.mxu0 0
        %827 = vmatmul.mubr.bf16.gmra.mrb[0].mxu0 %v671
        %v828 = vpop.f32.mrb[0].mxu0
        %v829 = vadd.f32 0.0, %v828
        %v830 = vpop.f32.mrb[0].mxu0
        %v831 = vadd.f32 0.0, %v830
        %v832 = vpop.f32.mrb[0].mxu0
        %v833 = vadd.f32 0.0, %v832
        %v834 = vpop.f32.mrb[0].mxu0
        %v835 = vadd.f32 0.0, %v834
        %836 = vmatprep.mubr.bf16.mxu0 0
        %837 = vmatmul.mubr.bf16.gmra.mrb[0].mxu0 %v674
        %v838 = vpop.f32.mrb[0].mxu0
        %v839 = vadd.f32 0.0, %v838
        %v840 = vpop.f32.mrb[0].mxu0
        %v841 = vadd.f32 0.0, %v840
        %v842 = vpop.f32.mrb[0].mxu0
        %v843 = vadd.f32 0.0, %v842
        %v844 = vpop.f32.mrb[0].mxu0
        %v845 = vadd.f32 0.0, %v844
        %846 = vmatprep.mubr.bf16.mxu0 0
        %847 = vmatmul.mubr.bf16.gmra.mrb[0].mxu0 %v677
        %v848 = vpop.f32.mrb[0].mxu0
        %v849 = vadd.f32 0.0, %v848
        %v850 = vpop.f32.mrb[0].mxu0
        %v851 = vadd.f32 0.0, %v850
        %v852 = vpop.f32.mrb[0].mxu0
        %v853 = vadd.f32 0.0, %v852
        %v854 = vpop.f32.mrb[0].mxu0
        %v855 = vadd.f32 0.0, %v854
        %856 = vmatprep.mubr.bf16.mxu0 0
        %857 = vmatmul.mubr.bf16.gmra.mrb[0].mxu0 %v680
        %v858 = vpop.f32.mrb[0].mxu0
        %v859 = vadd.f32 0.0, %v858
        %v860 = vpop.f32.mrb[0].mxu0
        %v861 = vadd.f32 0.0, %v860
        %v862 = vpop.f32.mrb[0].mxu0
        %v863 = vadd.f32 0.0, %v862
        %v864 = vpop.f32.mrb[0].mxu0
        %v865 = vadd.f32 0.0, %v864
        %866 = vmatprep.mubr.bf16.mxu0 0
        %867 = vmatmul.mubr.bf16.gmra.mrb[0].mxu0 %v683
        %v868 = vpop.f32.mrb[0].mxu0
        %v869 = vadd.f32 0.0, %v868
        %v870 = vpop.f32.mrb[0].mxu0
        %v871 = vadd.f32 0.0, %v870
        %v872 = vpop.f32.mrb[0].mxu0
        %v873 = vadd.f32 0.0, %v872
        %v874 = vpop.f32.mrb[0].mxu0
        %v875 = vadd.f32 0.0, %v874
        %876 = vmatprep.mubr.bf16.mxu0 0
        %877 = vmatmul.mubr.bf16.gmra.mrb[0].mxu0 %v686
        %v878 = vpop.f32.mrb[0].mxu0
        %v879 = vadd.f32 0.0, %v878
        %v880 = vpop.f32.mrb[0].mxu0
        %v881 = vadd.f32 0.0, %v880
        %v882 = vpop.f32.mrb[0].mxu0
        %v883 = vadd.f32 0.0, %v882
        %v884 = vpop.f32.mrb[0].mxu0
        %v885 = vadd.f32 0.0, %v884
        %886 = vdwg.mxu0
        %s887 = scalar_lea.vmem %s546, 48 [#allocation6]
        %v888 = vld [vmem:[%s887] sm:$0xf]
        %v889 = vld [vmem:[%s887 + $0x4] sm:$0xf]
        %v890 = vld [vmem:[%s887 + $0x8] sm:$0xf]
        %v891 = vld [vmem:[%s887 + $0xc] sm:$0xf]
        %v892 = vld [vmem:[%s887 + $0x10] sm:$0xf]
        %v893 = vld [vmem:[%s887 + $0x14] sm:$0xf]
        %v894 = vld [vmem:[%s887 + $0x18] sm:$0xf]
        %v895 = vld [vmem:[%s887 + $0x1c] sm:$0xf]
        %v896 = vld [vmem:[%s887 + $0x20] sm:$0xf]
        %v897 = vld [vmem:[%s887 + $0x24] sm:$0xf]
        %v898 = vld [vmem:[%s887 + $0x28] sm:$0xf]
        %v899 = vld [vmem:[%s887 + $0x2c] sm:$0xf]
        %v912 = vunpack.c.l.b16 %v888
        %v913 = vunpack.c.l.b16 %v889
        %v914 = vunpack.c.l.b16 %v890
        %v915 = vunpack.c.l.b16 %v891
        %v916 = vunpack.c.l.b16 %v892
        %v917 = vunpack.c.l.b16 %v893
        %v918 = vunpack.c.l.b16 %v894
        %v919 = vunpack.c.l.b16 %v895
        %v920 = vunpack.c.l.b16 %v896
        %v921 = vunpack.c.l.b16 %v897
        %v922 = vunpack.c.l.b16 %v898
        %v923 = vunpack.c.l.b16 %v899
        %v924 = vpack.c.b16 %v913, %v912
        %v925 = vpack.c.b16 %v915, %v914
        %v926 = vpack.c.b16 %v917, %v916
        %v927 = vpack.c.b16 %v919, %v918
        %v928 = vpack.c.b16 %v921, %v920
        %v929 = vpack.c.b16 %v923, %v922
        %v931 = vsel %vm669, %v924, 0
        %v934 = vsel %vm669, %v925, 0
        %v937 = vsel %vm669, %v926, 0
        %v940 = vsel %vm669, %v927, 0
        %v943 = vsel %vm669, %v928, 0
        %v946 = vsel %vm669, %v929, 0
        %948 = vmatprep.subr.bf16.mxu0 %v658
        %949 = vmatpush1.bf16.msra.mxu0 %v657
        %950 = vmatprep.subr.bf16.mxu0 %v693
        %951 = vmatpush1.bf16.msra.mxu0 %v690
        %952 = vmatprep.subr.bf16.mxu0 0
        %953 = vmatpush1.bf16.msra.mxu0 0
        %954 = vmatprep.subr.bf16.mxu0 0
        %955 = vmatpush1.bf16.msra.mxu0 0
        %956 = vmatprep.subr.bf16.mxu0 0
        %957 = vmatpush1.bf16.msra.mxu0 0
        %958 = vmatprep.subr.bf16.mxu0 0
        %959 = vmatpush1.bf16.msra.mxu0 0
        %960 = vmatprep.subr.bf16.mxu0 0
        %961 = vmatpush1.bf16.msra.mxu0 0
        %962 = vmatprep.subr.bf16.mxu0 0
        %963 = vmatpush1.bf16.msra.mxu0 0
        %964 = vmatprep.subr.bf16.mxu0 0
        %965 = vmatpush1.bf16.msra.mxu0 0
        %966 = vmatprep.subr.bf16.mxu0 0
        %967 = vmatpush1.bf16.msra.mxu0 0
        %968 = vmatprep.subr.bf16.mxu0 0
        %969 = vmatpush1.bf16.msra.mxu0 0
        %970 = vmatprep.subr.bf16.mxu0 0
        %971 = vmatpush1.bf16.msra.mxu0 0
        %972 = vmatprep.subr.bf16.mxu0 0
        %973 = vmatpush1.bf16.msra.mxu0 0
        %974 = vmatprep.subr.bf16.mxu0 0
        %975 = vmatpush1.bf16.msra.mxu0 0
        %976 = vmatprep.subr.bf16.mxu0 0
        %977 = vmatpush1.bf16.msra.mxu0 0
        %978 = vmatprep.subr.bf16.mxu0 0
        %979 = vmatpush1.bf16.msra.mxu0 0
        %980 = vmatprep.mubr.bf16.mxu0 0
        %981 = vmatmul.mubr.bf16.gmra.mrb[0].mxu0 %v931
        %v982 = vpop.f32.mrb[0].mxu0
        %v983 = vadd.f32 0.0, %v982
        %v984 = vpop.f32.mrb[0].mxu0
        %v985 = vadd.f32 0.0, %v984
        %v986 = vpop.f32.mrb[0].mxu0
        %v987 = vadd.f32 0.0, %v986
        %v988 = vpop.f32.mrb[0].mxu0
        %v989 = vadd.f32 0.0, %v988
        %990 = vmatprep.mubr.bf16.mxu0 0
        %991 = vmatmul.mubr.bf16.gmra.mrb[0].mxu0 %v934
        %v992 = vpop.f32.mrb[0].mxu0
        %v993 = vadd.f32 0.0, %v992
        %v994 = vpop.f32.mrb[0].mxu0
        %v995 = vadd.f32 0.0, %v994
        %v996 = vpop.f32.mrb[0].mxu0
        %v997 = vadd.f32 0.0, %v996
        %v998 = vpop.f32.mrb[0].mxu0
        %v999 = vadd.f32 0.0, %v998
        %1000 = vmatprep.mubr.bf16.mxu0 0
        %1001 = vmatmul.mubr.bf16.gmra.mrb[0].mxu0 %v937
        %v1002 = vpop.f32.mrb[0].mxu0
        %v1003 = vadd.f32 0.0, %v1002
        %v1004 = vpop.f32.mrb[0].mxu0
        %v1005 = vadd.f32 0.0, %v1004
        %v1006 = vpop.f32.mrb[0].mxu0
        %v1007 = vadd.f32 0.0, %v1006
        %v1008 = vpop.f32.mrb[0].mxu0
        %v1009 = vadd.f32 0.0, %v1008
        %1010 = vmatprep.mubr.bf16.mxu0 0
        %1011 = vmatmul.mubr.bf16.gmra.mrb[0].mxu0 %v940
        %v1012 = vpop.f32.mrb[0].mxu0
        %v1013 = vadd.f32 0.0, %v1012
        %v1014 = vpop.f32.mrb[0].mxu0
        %v1015 = vadd.f32 0.0, %v1014
        %v1016 = vpop.f32.mrb[0].mxu0
        %v1017 = vadd.f32 0.0, %v1016
        %v1018 = vpop.f32.mrb[0].mxu0
        %v1019 = vadd.f32 0.0, %v1018
        %1020 = vmatprep.mubr.bf16.mxu0 0
        %1021 = vmatmul.mubr.bf16.gmra.mrb[0].mxu0 %v943
        %v1022 = vpop.f32.mrb[0].mxu0
        %v1023 = vadd.f32 0.0, %v1022
        %v1024 = vpop.f32.mrb[0].mxu0
        %v1025 = vadd.f32 0.0, %v1024
        %v1026 = vpop.f32.mrb[0].mxu0
        %v1027 = vadd.f32 0.0, %v1026
        %v1028 = vpop.f32.mrb[0].mxu0
        %v1029 = vadd.f32 0.0, %v1028
        %1030 = vmatprep.mubr.bf16.mxu0 0
        %1031 = vmatmul.mubr.bf16.gmra.mrb[0].mxu0 %v946
        %v1032 = vpop.f32.mrb[0].mxu0
        %v1033 = vadd.f32 0.0, %v1032
        %v1034 = vpop.f32.mrb[0].mxu0
        %v1035 = vadd.f32 0.0, %v1034
        %v1036 = vpop.f32.mrb[0].mxu0
        %v1037 = vadd.f32 0.0, %v1036
        %v1038 = vpop.f32.mrb[0].mxu0
        %v1039 = vadd.f32 0.0, %v1038
        %1040 = vdwg.mxu0
        %1041 = vmatprep.subr.bf16.mxu0 %v660
        %1042 = vmatpush1.bf16.msra.mxu0 %v659
        %1043 = vmatprep.subr.bf16.mxu0 %v699
        %1044 = vmatpush1.bf16.msra.mxu0 %v696
        %1045 = vmatprep.subr.bf16.mxu0 0
        %1046 = vmatpush1.bf16.msra.mxu0 0
        %1047 = vmatprep.subr.bf16.mxu0 0
        %1048 = vmatpush1.bf16.msra.mxu0 0
        %1049 = vmatprep.subr.bf16.mxu0 0
        %1050 = vmatpush1.bf16.msra.mxu0 0
        %1051 = vmatprep.subr.bf16.mxu0 0
        %1052 = vmatpush1.bf16.msra.mxu0 0
        %1053 = vmatprep.subr.bf16.mxu0 0
        %1054 = vmatpush1.bf16.msra.mxu0 0
        %1055 = vmatprep.subr.bf16.mxu0 0
        %1056 = vmatpush1.bf16.msra.mxu0 0
        %1057 = vmatprep.subr.bf16.mxu0 0
        %1058 = vmatpush1.bf16.msra.mxu0 0
        %1059 = vmatprep.subr.bf16.mxu0 0
        %1060 = vmatpush1.bf16.msra.mxu0 0
        %1061 = vmatprep.subr.bf16.mxu0 0
        %1062 = vmatpush1.bf16.msra.mxu0 0
        %1063 = vmatprep.subr.bf16.mxu0 0
        %1064 = vmatpush1.bf16.msra.mxu0 0
        %1065 = vmatprep.subr.bf16.mxu0 0
        %1066 = vmatpush1.bf16.msra.mxu0 0
        %1067 = vmatprep.subr.bf16.mxu0 0
        %1068 = vmatpush1.bf16.msra.mxu0 0
        %1069 = vmatprep.subr.bf16.mxu0 0
        %1070 = vmatpush1.bf16.msra.mxu0 0
        %1071 = vmatprep.subr.bf16.mxu0 0
        %1072 = vmatpush1.bf16.msra.mxu0 0
        %1073 = vmatprep.mubr.bf16.mxu0 0
        %1074 = vmatmul.mubr.bf16.gmra.mrb[0].mxu0 %v931
        %v1075 = vpop.f32.mrb[0].mxu0
        %v1076 = vadd.f32 0.0, %v1075
        %v1077 = vpop.f32.mrb[0].mxu0
        %v1078 = vadd.f32 0.0, %v1077
        %v1079 = vpop.f32.mrb[0].mxu0
        %v1080 = vadd.f32 0.0, %v1079
        %v1081 = vpop.f32.mrb[0].mxu0
        %v1082 = vadd.f32 0.0, %v1081
        %1083 = vmatprep.mubr.bf16.mxu0 0
        %1084 = vmatmul.mubr.bf16.gmra.mrb[0].mxu0 %v934
        %v1085 = vpop.f32.mrb[0].mxu0
        %v1086 = vadd.f32 0.0, %v1085
        %v1087 = vpop.f32.mrb[0].mxu0
        %v1088 = vadd.f32 0.0, %v1087
        %v1089 = vpop.f32.mrb[0].mxu0
        %v1090 = vadd.f32 0.0, %v1089
        %v1091 = vpop.f32.mrb[0].mxu0
        %v1092 = vadd.f32 0.0, %v1091
        %1093 = vmatprep.mubr.bf16.mxu0 0
        %1094 = vmatmul.mubr.bf16.gmra.mrb[0].mxu0 %v937
        %v1095 = vpop.f32.mrb[0].mxu0
        %v1096 = vadd.f32 0.0, %v1095
        %v1097 = vpop.f32.mrb[0].mxu0
        %v1098 = vadd.f32 0.0, %v1097
        %v1099 = vpop.f32.mrb[0].mxu0
        %v1100 = vadd.f32 0.0, %v1099
        %v1101 = vpop.f32.mrb[0].mxu0
        %v1102 = vadd.f32 0.0, %v1101
        %1103 = vmatprep.mubr.bf16.mxu0 0
        %1104 = vmatmul.mubr.bf16.gmra.mrb[0].mxu0 %v940
        %v1105 = vpop.f32.mrb[0].mxu0
        %v1106 = vadd.f32 0.0, %v1105
        %v1107 = vpop.f32.mrb[0].mxu0
        %v1108 = vadd.f32 0.0, %v1107
        %v1109 = vpop.f32.mrb[0].mxu0
        %v1110 = vadd.f32 0.0, %v1109
        %v1111 = vpop.f32.mrb[0].mxu0
        %v1112 = vadd.f32 0.0, %v1111
        %1113 = vmatprep.mubr.bf16.mxu0 0
        %1114 = vmatmul.mubr.bf16.gmra.mrb[0].mxu0 %v943
        %v1115 = vpop.f32.mrb[0].mxu0
        %v1116 = vadd.f32 0.0, %v1115
        %v1117 = vpop.f32.mrb[0].mxu0
        %v1118 = vadd.f32 0.0, %v1117
        %v1119 = vpop.f32.mrb[0].mxu0
        %v1120 = vadd.f32 0.0, %v1119
        %v1121 = vpop.f32.mrb[0].mxu0
        %v1122 = vadd.f32 0.0, %v1121
        %1123 = vmatprep.mubr.bf16.mxu0 0
        %1124 = vmatmul.mubr.bf16.gmra.mrb[0].mxu0 %v946
        %v1125 = vpop.f32.mrb[0].mxu0
        %v1126 = vadd.f32 0.0, %v1125
        %v1127 = vpop.f32.mrb[0].mxu0
        %v1128 = vadd.f32 0.0, %v1127
        %v1129 = vpop.f32.mrb[0].mxu0
        %v1130 = vadd.f32 0.0, %v1129
        %v1131 = vpop.f32.mrb[0].mxu0
        %v1132 = vadd.f32 0.0, %v1131
        %1133 = vdwg.mxu0
        %1134 = vst [vmem:[#allocation2] sm:$0xff] %v736
        %1135 = vst [vmem:[#allocation2 + $0x8] sm:$0xff] %v738
        %1136 = vst [vmem:[#allocation2 + $0x10] sm:$0xff] %v829
        %1137 = vst [vmem:[#allocation2 + $0x18] sm:$0xff] %v831
        %1138 = vst [vmem:[#allocation2 + $0x20] sm:$0xff] %v740
        %1139 = vst [vmem:[#allocation2 + $0x28] sm:$0xff] %v742
        %1140 = vst [vmem:[#allocation2 + $0x30] sm:$0xff] %v833
        %1141 = vst [vmem:[#allocation2 + $0x38] sm:$0xff] %v835
        %1142 = vst [vmem:[#allocation2 + $0x40] sm:$0xff] %v746
        %1143 = vst [vmem:[#allocation2 + $0x48] sm:$0xff] %v748
        %1144 = vst [vmem:[#allocation2 + $0x50] sm:$0xff] %v839
        %1145 = vst [vmem:[#allocation2 + $0x58] sm:$0xff] %v841
        %1146 = vst [vmem:[#allocation2 + $0x60] sm:$0xff] %v750
        %1147 = vst [vmem:[#allocation2 + $0x68] sm:$0xff] %v752
        %1148 = vst [vmem:[#allocation2 + $0x70] sm:$0xff] %v843
        %1149 = vst [vmem:[#allocation2 + $0x78] sm:$0xff] %v845
        %1150 = vst [vmem:[#allocation2 + $0x80] sm:$0xff] %v756
        %1151 = vst [vmem:[#allocation2 + $0x88] sm:$0xff] %v758
        %1152 = vst [vmem:[#allocation2 + $0x90] sm:$0xff] %v849
        %1153 = vst [vmem:[#allocation2 + $0x98] sm:$0xff] %v851
        %1154 = vst [vmem:[#allocation2 + $0xa0] sm:$0xff] %v760
        %1155 = vst [vmem:[#allocation2 + $0xa8] sm:$0xff] %v762
        %1156 = vst [vmem:[#allocation2 + $0xb0] sm:$0xff] %v853
        %1157 = vst [vmem:[#allocation2 + $0xb8] sm:$0xff] %v855
        %1158 = vst [vmem:[#allocation2 + $0xc0] sm:$0xff] %v766
        %1159 = vst [vmem:[#allocation2 + $0xc8] sm:$0xff] %v768
        %1160 = vst [vmem:[#allocation2 + $0xd0] sm:$0xff] %v859
        %1161 = vst [vmem:[#allocation2 + $0xd8] sm:$0xff] %v861
        %1162 = vst [vmem:[#allocation2 + $0xe0] sm:$0xff] %v770
        %1163 = vst [vmem:[#allocation2 + $0xe8] sm:$0xff] %v772
        %1164 = vst [vmem:[#allocation2 + $0xf0] sm:$0xff] %v863
        %1165 = vst [vmem:[#allocation2 + $0xf8] sm:$0xff] %v865
        %1166 = vst [vmem:[#allocation2 + $0x100] sm:$0xff] %v776
        %1167 = vst [vmem:[#allocation2 + $0x108] sm:$0xff] %v778
        %1168 = vst [vmem:[#allocation2 + $0x110] sm:$0xff] %v869
        %1169 = vst [vmem:[#allocation2 + $0x118] sm:$0xff] %v871
        %1170 = vst [vmem:[#allocation2 + $0x120] sm:$0xff] %v780
        %1171 = vst [vmem:[#allocation2 + $0x128] sm:$0xff] %v782
        %1172 = vst [vmem:[#allocation2 + $0x130] sm:$0xff] %v873
        %1173 = vst [vmem:[#allocation2 + $0x138] sm:$0xff] %v875
        %1174 = vst [vmem:[#allocation2 + $0x140] sm:$0xff] %v786
        %1175 = vst [vmem:[#allocation2 + $0x148] sm:$0xff] %v788
        %1176 = vst [vmem:[#allocation2 + $0x150] sm:$0xff] %v879
        %1177 = vst [vmem:[#allocation2 + $0x158] sm:$0xff] %v881
        %1178 = vst [vmem:[#allocation2 + $0x160] sm:$0xff] %v790
        %1179 = vst [vmem:[#allocation2 + $0x168] sm:$0xff] %v792
        %1180 = vst [vmem:[#allocation2 + $0x170] sm:$0xff] %v883
        %1181 = vst [vmem:[#allocation2 + $0x178] sm:$0xff] %v885
        %1182 = vst [vmem:[#allocation3] sm:$0xff] %v983
        %1183 = vst [vmem:[#allocation3 + $0x8] sm:$0xff] %v985
        %1184 = vst [vmem:[#allocation3 + $0x10] sm:$0xff] %v1076
        %1185 = vst [vmem:[#allocation3 + $0x18] sm:$0xff] %v1078
        %1186 = vst [vmem:[#allocation3 + $0x20] sm:$0xff] %v987
        %1187 = vst [vmem:[#allocation3 + $0x28] sm:$0xff] %v989
        %1188 = vst [vmem:[#allocation3 + $0x30] sm:$0xff] %v1080
        %1189 = vst [vmem:[#allocation3 + $0x38] sm:$0xff] %v1082
        %1190 = vst [vmem:[#allocation3 + $0x40] sm:$0xff] %v993
        %1191 = vst [vmem:[#allocation3 + $0x48] sm:$0xff] %v995
        %1192 = vst [vmem:[#allocation3 + $0x50] sm:$0xff] %v1086
        %1193 = vst [vmem:[#allocation3 + $0x58] sm:$0xff] %v1088
        %1194 = vst [vmem:[#allocation3 + $0x60] sm:$0xff] %v997
        %1195 = vst [vmem:[#allocation3 + $0x68] sm:$0xff] %v999
        %1196 = vst [vmem:[#allocation3 + $0x70] sm:$0xff] %v1090
        %1197 = vst [vmem:[#allocation3 + $0x78] sm:$0xff] %v1092
        %1198 = vst [vmem:[#allocation3 + $0x80] sm:$0xff] %v1003
        %1199 = vst [vmem:[#allocation3 + $0x88] sm:$0xff] %v1005
        %1200 = vst [vmem:[#allocation3 + $0x90] sm:$0xff] %v1096
        %1201 = vst [vmem:[#allocation3 + $0x98] sm:$0xff] %v1098
        %1202 = vst [vmem:[#allocation3 + $0xa0] sm:$0xff] %v1007
        %1203 = vst [vmem:[#allocation3 + $0xa8] sm:$0xff] %v1009
        %1204 = vst [vmem:[#allocation3 + $0xb0] sm:$0xff] %v1100
        %1205 = vst [vmem:[#allocation3 + $0xb8] sm:$0xff] %v1102
        %1206 = vst [vmem:[#allocation3 + $0xc0] sm:$0xff] %v1013
        %1207 = vst [vmem:[#allocation3 + $0xc8] sm:$0xff] %v1015
        %1208 = vst [vmem:[#allocation3 + $0xd0] sm:$0xff] %v1106
        %1209 = vst [vmem:[#allocation3 + $0xd8] sm:$0xff] %v1108
        %1210 = vst [vmem:[#allocation3 + $0xe0] sm:$0xff] %v1017
        %1211 = vst [vmem:[#allocation3 + $0xe8] sm:$0xff] %v1019
        %1212 = vst [vmem:[#allocation3 + $0xf0] sm:$0xff] %v1110
        %1213 = vst [vmem:[#allocation3 + $0xf8] sm:$0xff] %v1112
        %1214 = vst [vmem:[#allocation3 + $0x100] sm:$0xff] %v1023
        %1215 = vst [vmem:[#allocation3 + $0x108] sm:$0xff] %v1025
        %1216 = vst [vmem:[#allocation3 + $0x110] sm:$0xff] %v1116
        %1217 = vst [vmem:[#allocation3 + $0x118] sm:$0xff] %v1118
        %1218 = vst [vmem:[#allocation3 + $0x120] sm:$0xff] %v1027
        %1219 = vst [vmem:[#allocation3 + $0x128] sm:$0xff] %v1029
        %1220 = vst [vmem:[#allocation3 + $0x130] sm:$0xff] %v1120
        %1221 = vst [vmem:[#allocation3 + $0x138] sm:$0xff] %v1122
        %1222 = vst [vmem:[#allocation3 + $0x140] sm:$0xff] %v1033
        %1223 = vst [vmem:[#allocation3 + $0x148] sm:$0xff] %v1035
        %1224 = vst [vmem:[#allocation3 + $0x150] sm:$0xff] %v1126
        %1225 = vst [vmem:[#allocation3 + $0x158] sm:$0xff] %v1128
        %1226 = vst [vmem:[#allocation3 + $0x160] sm:$0xff] %v1037
        %1227 = vst [vmem:[#allocation3 + $0x168] sm:$0xff] %v1039
        %1228 = vst [vmem:[#allocation3 + $0x170] sm:$0xff] %v1130
        %1229 = vst [vmem:[#allocation3 + $0x178] sm:$0xff] %v1132
        %s1230 = scalar_lea.vmem %s1, 64
        %v1231 = vld [vmem:[%s1230] sm:$0xff]
        %v1232 = vld [vmem:[%s1230 + $0x8] sm:$0xff]
        %v1233 = vld [vmem:[%s1230 + $0x10] sm:$0xff]
        %v1234 = vld [vmem:[%s1230 + $0x18] sm:$0xff]
        %v1235 = vld [vmem:[%s1230 + $0x20] sm:$0xff]
        %v1236 = vld [vmem:[%s1230 + $0x28] sm:$0xff]
        %v1237 = vld [vmem:[%s1230 + $0x30] sm:$0x33]
        %v1238 = vld [vmem:[%s1230 + $0x38] sm:$0x33]
        %v1239 = vld [vmem:[%s887] sm:$0xf]
        %v1240 = vld [vmem:[%s887 + $0x4] sm:$0xf]
        %v1241 = vld [vmem:[%s887 + $0x8] sm:$0xf]
        %v1242 = vld [vmem:[%s887 + $0xc] sm:$0xf]
        %v1243 = vld [vmem:[%s887 + $0x10] sm:$0xf]
        %v1244 = vld [vmem:[%s887 + $0x14] sm:$0xf]
        %v1245 = vld [vmem:[%s887 + $0x18] sm:$0xf]
        %v1246 = vld [vmem:[%s887 + $0x1c] sm:$0xf]
        %v1247 = vld [vmem:[%s887 + $0x20] sm:$0xf]
        %v1248 = vld [vmem:[%s887 + $0x24] sm:$0xf]
        %v1249 = vld [vmem:[%s887 + $0x28] sm:$0xf]
        %v1250 = vld [vmem:[%s887 + $0x2c] sm:$0xf]
        %v1263 = vunpack.c.l.b16 %v1239
        %v1264 = vunpack.c.l.b16 %v1240
        %v1265 = vunpack.c.l.b16 %v1241
        %v1266 = vunpack.c.l.b16 %v1242
        %v1267 = vunpack.c.l.b16 %v1243
        %v1268 = vunpack.c.l.b16 %v1244
        %v1269 = vunpack.c.l.b16 %v1245
        %v1270 = vunpack.c.l.b16 %v1246
        %v1271 = vunpack.c.l.b16 %v1247
        %v1272 = vunpack.c.l.b16 %v1248
        %v1273 = vunpack.c.l.b16 %v1249
        %v1274 = vunpack.c.l.b16 %v1250
        %v1275 = vpack.c.b16 %v1264, %v1263
        %v1276 = vpack.c.b16 %v1266, %v1265
        %v1277 = vpack.c.b16 %v1268, %v1267
        %v1278 = vpack.c.b16 %v1270, %v1269
        %v1279 = vpack.c.b16 %v1272, %v1271
        %v1280 = vpack.c.b16 %v1274, %v1273
        %v1289 = vunpack.c.l.b16 %v1231
        %v1290 = vunpack.c.h.b16 %v1231
        %v1291 = vunpack.c.l.b16 %v1232
        %v1292 = vunpack.c.h.b16 %v1232
        %v1293 = vunpack.c.l.b16 %v1233
        %v1294 = vunpack.c.h.b16 %v1233
        %v1295 = vunpack.c.l.b16 %v1234
        %v1296 = vunpack.c.h.b16 %v1234
        %v1297 = vunpack.c.l.b16 %v1235
        %v1298 = vunpack.c.h.b16 %v1235
        %v1299 = vunpack.c.l.b16 %v1236
        %v1300 = vunpack.c.h.b16 %v1236
        %v1301 = vunpack.c.l.b16 %v1237
        %v1302 = vunpack.c.h.b16 %v1237
        %v1303 = vunpack.c.l.b16 %v1238
        %v1304 = vunpack.c.h.b16 %v1238
        %v1305 = vpack.c.b16 %v1293, %v1289
        %v1306 = vpack.c.b16 %v1294, %v1290
        %v1307 = vpack.c.b16 %v1295, %v1291
        %v1308 = vpack.c.b16 %v1296, %v1292
        %v1309 = vpack.c.b16 %v1301, %v1297
        %v1310 = vpack.c.b16 %v1302, %v1298
        %v1311 = vpack.c.b16 %v1303, %v1299
        %v1312 = vpack.c.b16 %v1304, %v1300
        %v1318 = vsel %vm669, %v1275, 0
        %v1321 = vsel %vm669, %v1276, 0
        %v1324 = vsel %vm669, %v1277, 0
        %v1327 = vsel %vm669, %v1278, 0
        %v1330 = vsel %vm669, %v1279, 0
        %v1333 = vsel %vm669, %v1280, 0
        %v1336 = vsel %vm688, %v1309, 0
        %v1339 = vsel %vm688, %v1310, 0
        %v1342 = vsel %vm688, %v1311, 0
        %v1345 = vsel %vm688, %v1312, 0
        %1347 = vmatprep.subr.bf16.mxu0 %v1306
        %1348 = vmatpush1.bf16.msra.mxu0 %v1305
        %1349 = vmatprep.subr.bf16.mxu0 %v1339
        %1350 = vmatpush1.bf16.msra.mxu0 %v1336
        %1351 = vmatprep.subr.bf16.mxu0 0
        %1352 = vmatpush1.bf16.msra.mxu0 0
        %1353 = vmatprep.subr.bf16.mxu0 0
        %1354 = vmatpush1.bf16.msra.mxu0 0
        %1355 = vmatprep.subr.bf16.mxu0 0
        %1356 = vmatpush1.bf16.msra.mxu0 0
        %1357 = vmatprep.subr.bf16.mxu0 0
        %1358 = vmatpush1.bf16.msra.mxu0 0
        %1359 = vmatprep.subr.bf16.mxu0 0
        %1360 = vmatpush1.bf16.msra.mxu0 0
        %1361 = vmatprep.subr.bf16.mxu0 0
        %1362 = vmatpush1.bf16.msra.mxu0 0
        %1363 = vmatprep.subr.bf16.mxu0 0
        %1364 = vmatpush1.bf16.msra.mxu0 0
        %1365 = vmatprep.subr.bf16.mxu0 0
        %1366 = vmatpush1.bf16.msra.mxu0 0
        %1367 = vmatprep.subr.bf16.mxu0 0
        %1368 = vmatpush1.bf16.msra.mxu0 0
        %1369 = vmatprep.subr.bf16.mxu0 0
        %1370 = vmatpush1.bf16.msra.mxu0 0
        %1371 = vmatprep.subr.bf16.mxu0 0
        %1372 = vmatpush1.bf16.msra.mxu0 0
        %1373 = vmatprep.subr.bf16.mxu0 0
        %1374 = vmatpush1.bf16.msra.mxu0 0
        %1375 = vmatprep.subr.bf16.mxu0 0
        %1376 = vmatpush1.bf16.msra.mxu0 0
        %1377 = vmatprep.subr.bf16.mxu0 0
        %1378 = vmatpush1.bf16.msra.mxu0 0
        %1379 = vmatprep.mubr.bf16.mxu0 0
        %1380 = vmatmul.mubr.bf16.gmra.mrb[0].mxu0 %v1318
        %v1381 = vpop.f32.mrb[0].mxu0
        %v1382 = vadd.f32 0.0, %v1381
        %v1383 = vpop.f32.mrb[0].mxu0
        %v1384 = vadd.f32 0.0, %v1383
        %v1385 = vpop.f32.mrb[0].mxu0
        %v1386 = vadd.f32 0.0, %v1385
        %v1387 = vpop.f32.mrb[0].mxu0
        %v1388 = vadd.f32 0.0, %v1387
        %1389 = vmatprep.mubr.bf16.mxu0 0
        %1390 = vmatmul.mubr.bf16.gmra.mrb[0].mxu0 %v1321
        %v1391 = vpop.f32.mrb[0].mxu0
        %v1392 = vadd.f32 0.0, %v1391
        %v1393 = vpop.f32.mrb[0].mxu0
        %v1394 = vadd.f32 0.0, %v1393
        %v1395 = vpop.f32.mrb[0].mxu0
        %v1396 = vadd.f32 0.0, %v1395
        %v1397 = vpop.f32.mrb[0].mxu0
        %v1398 = vadd.f32 0.0, %v1397
        %1399 = vmatprep.mubr.bf16.mxu0 0
        %1400 = vmatmul.mubr.bf16.gmra.mrb[0].mxu0 %v1324
        %v1401 = vpop.f32.mrb[0].mxu0
        %v1402 = vadd.f32 0.0, %v1401
        %v1403 = vpop.f32.mrb[0].mxu0
        %v1404 = vadd.f32 0.0, %v1403
        %v1405 = vpop.f32.mrb[0].mxu0
        %v1406 = vadd.f32 0.0, %v1405
        %v1407 = vpop.f32.mrb[0].mxu0
        %v1408 = vadd.f32 0.0, %v1407
        %1409 = vmatprep.mubr.bf16.mxu0 0
        %1410 = vmatmul.mubr.bf16.gmra.mrb[0].mxu0 %v1327
        %v1411 = vpop.f32.mrb[0].mxu0
        %v1412 = vadd.f32 0.0, %v1411
        %v1413 = vpop.f32.mrb[0].mxu0
        %v1414 = vadd.f32 0.0, %v1413
        %v1415 = vpop.f32.mrb[0].mxu0
        %v1416 = vadd.f32 0.0, %v1415
        %v1417 = vpop.f32.mrb[0].mxu0
        %v1418 = vadd.f32 0.0, %v1417
        %1419 = vmatprep.mubr.bf16.mxu0 0
        %1420 = vmatmul.mubr.bf16.gmra.mrb[0].mxu0 %v1330
        %v1421 = vpop.f32.mrb[0].mxu0
        %v1422 = vadd.f32 0.0, %v1421
        %v1423 = vpop.f32.mrb[0].mxu0
        %v1424 = vadd.f32 0.0, %v1423
        %v1425 = vpop.f32.mrb[0].mxu0
        %v1426 = vadd.f32 0.0, %v1425
        %v1427 = vpop.f32.mrb[0].mxu0
        %v1428 = vadd.f32 0.0, %v1427
        %1429 = vmatprep.mubr.bf16.mxu0 0
        %1430 = vmatmul.mubr.bf16.gmra.mrb[0].mxu0 %v1333
        %v1431 = vpop.f32.mrb[0].mxu0
        %v1432 = vadd.f32 0.0, %v1431
        %v1433 = vpop.f32.mrb[0].mxu0
        %v1434 = vadd.f32 0.0, %v1433
        %v1435 = vpop.f32.mrb[0].mxu0
        %v1436 = vadd.f32 0.0, %v1435
        %v1437 = vpop.f32.mrb[0].mxu0
        %v1438 = vadd.f32 0.0, %v1437
        %1439 = vdwg.mxu0
        %1440 = vmatprep.subr.bf16.mxu0 %v1308
        %1441 = vmatpush1.bf16.msra.mxu0 %v1307
        %1442 = vmatprep.subr.bf16.mxu0 %v1345
        %1443 = vmatpush1.bf16.msra.mxu0 %v1342
        %1444 = vmatprep.subr.bf16.mxu0 0
        %1445 = vmatpush1.bf16.msra.mxu0 0
        %1446 = vmatprep.subr.bf16.mxu0 0
        %1447 = vmatpush1.bf16.msra.mxu0 0
        %1448 = vmatprep.subr.bf16.mxu0 0
        %1449 = vmatpush1.bf16.msra.mxu0 0
        %1450 = vmatprep.subr.bf16.mxu0 0
        %1451 = vmatpush1.bf16.msra.mxu0 0
        %1452 = vmatprep.subr.bf16.mxu0 0
        %1453 = vmatpush1.bf16.msra.mxu0 0
        %1454 = vmatprep.subr.bf16.mxu0 0
        %1455 = vmatpush1.bf16.msra.mxu0 0
        %1456 = vmatprep.subr.bf16.mxu0 0
        %1457 = vmatpush1.bf16.msra.mxu0 0
        %1458 = vmatprep.subr.bf16.mxu0 0
        %1459 = vmatpush1.bf16.msra.mxu0 0
        %1460 = vmatprep.subr.bf16.mxu0 0
        %1461 = vmatpush1.bf16.msra.mxu0 0
        %1462 = vmatprep.subr.bf16.mxu0 0
        %1463 = vmatpush1.bf16.msra.mxu0 0
        %1464 = vmatprep.subr.bf16.mxu0 0
        %1465 = vmatpush1.bf16.msra.mxu0 0
        %1466 = vmatprep.subr.bf16.mxu0 0
        %1467 = vmatpush1.bf16.msra.mxu0 0
        %1468 = vmatprep.subr.bf16.mxu0 0
        %1469 = vmatpush1.bf16.msra.mxu0 0
        %1470 = vmatprep.subr.bf16.mxu0 0
        %1471 = vmatpush1.bf16.msra.mxu0 0
        %1472 = vmatprep.mubr.bf16.mxu0 0
        %1473 = vmatmul.mubr.bf16.gmra.mrb[0].mxu0 %v1318
        %v1474 = vpop.f32.mrb[0].mxu0
        %v1475 = vadd.f32 0.0, %v1474
        %v1476 = vpop.f32.mrb[0].mxu0
        %v1477 = vadd.f32 0.0, %v1476
        %v1478 = vpop.f32.mrb[0].mxu0
        %v1479 = vadd.f32 0.0, %v1478
        %v1480 = vpop.f32.mrb[0].mxu0
        %v1481 = vadd.f32 0.0, %v1480
        %1482 = vmatprep.mubr.bf16.mxu0 0
        %1483 = vmatmul.mubr.bf16.gmra.mrb[0].mxu0 %v1321
        %v1484 = vpop.f32.mrb[0].mxu0
        %v1485 = vadd.f32 0.0, %v1484
        %v1486 = vpop.f32.mrb[0].mxu0
        %v1487 = vadd.f32 0.0, %v1486
        %v1488 = vpop.f32.mrb[0].mxu0
        %v1489 = vadd.f32 0.0, %v1488
        %v1490 = vpop.f32.mrb[0].mxu0
        %v1491 = vadd.f32 0.0, %v1490
        %1492 = vmatprep.mubr.bf16.mxu0 0
        %1493 = vmatmul.mubr.bf16.gmra.mrb[0].mxu0 %v1324
        %v1494 = vpop.f32.mrb[0].mxu0
        %v1495 = vadd.f32 0.0, %v1494
        %v1496 = vpop.f32.mrb[0].mxu0
        %v1497 = vadd.f32 0.0, %v1496
        %v1498 = vpop.f32.mrb[0].mxu0
        %v1499 = vadd.f32 0.0, %v1498
        %v1500 = vpop.f32.mrb[0].mxu0
        %v1501 = vadd.f32 0.0, %v1500
        %1502 = vmatprep.mubr.bf16.mxu0 0
        %1503 = vmatmul.mubr.bf16.gmra.mrb[0].mxu0 %v1327
        %v1504 = vpop.f32.mrb[0].mxu0
        %v1505 = vadd.f32 0.0, %v1504
        %v1506 = vpop.f32.mrb[0].mxu0
        %v1507 = vadd.f32 0.0, %v1506
        %v1508 = vpop.f32.mrb[0].mxu0
        %v1509 = vadd.f32 0.0, %v1508
        %v1510 = vpop.f32.mrb[0].mxu0
        %v1511 = vadd.f32 0.0, %v1510
        %1512 = vmatprep.mubr.bf16.mxu0 0
        %1513 = vmatmul.mubr.bf16.gmra.mrb[0].mxu0 %v1330
        %v1514 = vpop.f32.mrb[0].mxu0
        %v1515 = vadd.f32 0.0, %v1514
        %v1516 = vpop.f32.mrb[0].mxu0
        %v1517 = vadd.f32 0.0, %v1516
        %v1518 = vpop.f32.mrb[0].mxu0
        %v1519 = vadd.f32 0.0, %v1518
        %v1520 = vpop.f32.mrb[0].mxu0
        %v1521 = vadd.f32 0.0, %v1520
        %1522 = vmatprep.mubr.bf16.mxu0 0
        %1523 = vmatmul.mubr.bf16.gmra.mrb[0].mxu0 %v1333
        %v1524 = vpop.f32.mrb[0].mxu0
        %v1525 = vadd.f32 0.0, %v1524
        %v1526 = vpop.f32.mrb[0].mxu0
        %v1527 = vadd.f32 0.0, %v1526
        %v1528 = vpop.f32.mrb[0].mxu0
        %v1529 = vadd.f32 0.0, %v1528
        %v1530 = vpop.f32.mrb[0].mxu0
        %v1531 = vadd.f32 0.0, %v1530
        %1532 = vdwg.mxu0
        %s1533 = scalar_lea.vmem %s546, 96 [#allocation6]
        %v1534 = vld [vmem:[%s1533] sm:$0xf]
        %v1535 = vld [vmem:[%s1533 + $0x4] sm:$0xf]
        %v1536 = vld [vmem:[%s1533 + $0x8] sm:$0xf]
        %v1537 = vld [vmem:[%s1533 + $0xc] sm:$0xf]
        %v1538 = vld [vmem:[%s1533 + $0x10] sm:$0xf]
        %v1539 = vld [vmem:[%s1533 + $0x14] sm:$0xf]
        %v1540 = vld [vmem:[%s1533 + $0x18] sm:$0xf]
        %v1541 = vld [vmem:[%s1533 + $0x1c] sm:$0xf]
        %v1542 = vld [vmem:[%s1533 + $0x20] sm:$0xf]
        %v1543 = vld [vmem:[%s1533 + $0x24] sm:$0xf]
        %v1544 = vld [vmem:[%s1533 + $0x28] sm:$0xf]
        %v1545 = vld [vmem:[%s1533 + $0x2c] sm:$0xf]
        %v1558 = vunpack.c.l.b16 %v1534
        %v1559 = vunpack.c.l.b16 %v1535
        %v1560 = vunpack.c.l.b16 %v1536
        %v1561 = vunpack.c.l.b16 %v1537
        %v1562 = vunpack.c.l.b16 %v1538
        %v1563 = vunpack.c.l.b16 %v1539
        %v1564 = vunpack.c.l.b16 %v1540
        %v1565 = vunpack.c.l.b16 %v1541
        %v1566 = vunpack.c.l.b16 %v1542
        %v1567 = vunpack.c.l.b16 %v1543
        %v1568 = vunpack.c.l.b16 %v1544
        %v1569 = vunpack.c.l.b16 %v1545
        %v1570 = vpack.c.b16 %v1559, %v1558
        %v1571 = vpack.c.b16 %v1561, %v1560
        %v1572 = vpack.c.b16 %v1563, %v1562
        %v1573 = vpack.c.b16 %v1565, %v1564
        %v1574 = vpack.c.b16 %v1567, %v1566
        %v1575 = vpack.c.b16 %v1569, %v1568
        %v1577 = vsel %vm669, %v1570, 0
        %v1580 = vsel %vm669, %v1571, 0
        %v1583 = vsel %vm669, %v1572, 0
        %v1586 = vsel %vm669, %v1573, 0
        %v1589 = vsel %vm669, %v1574, 0
        %v1592 = vsel %vm669, %v1575, 0
        %1594 = vmatprep.subr.bf16.mxu0 %v1306
        %1595 = vmatpush1.bf16.msra.mxu0 %v1305
        %1596 = vmatprep.subr.bf16.mxu0 %v1339
        %1597 = vmatpush1.bf16.msra.mxu0 %v1336
        %1598 = vmatprep.subr.bf16.mxu0 0
        %1599 = vmatpush1.bf16.msra.mxu0 0
        %1600 = vmatprep.subr.bf16.mxu0 0
        %1601 = vmatpush1.bf16.msra.mxu0 0
        %1602 = vmatprep.subr.bf16.mxu0 0
        %1603 = vmatpush1.bf16.msra.mxu0 0
        %1604 = vmatprep.subr.bf16.mxu0 0
        %1605 = vmatpush1.bf16.msra.mxu0 0
        %1606 = vmatprep.subr.bf16.mxu0 0
        %1607 = vmatpush1.bf16.msra.mxu0 0
        %1608 = vmatprep.subr.bf16.mxu0 0
        %1609 = vmatpush1.bf16.msra.mxu0 0
        %1610 = vmatprep.subr.bf16.mxu0 0
        %1611 = vmatpush1.bf16.msra.mxu0 0
        %1612 = vmatprep.subr.bf16.mxu0 0
        %1613 = vmatpush1.bf16.msra.mxu0 0
        %1614 = vmatprep.subr.bf16.mxu0 0
        %1615 = vmatpush1.bf16.msra.mxu0 0
        %1616 = vmatprep.subr.bf16.mxu0 0
        %1617 = vmatpush1.bf16.msra.mxu0 0
        %1618 = vmatprep.subr.bf16.mxu0 0
        %1619 = vmatpush1.bf16.msra.mxu0 0
        %1620 = vmatprep.subr.bf16.mxu0 0
        %1621 = vmatpush1.bf16.msra.mxu0 0
        %1622 = vmatprep.subr.bf16.mxu0 0
        %1623 = vmatpush1.bf16.msra.mxu0 0
        %1624 = vmatprep.subr.bf16.mxu0 0
        %1625 = vmatpush1.bf16.msra.mxu0 0
        %1626 = vmatprep.mubr.bf16.mxu0 0
        %1627 = vmatmul.mubr.bf16.gmra.mrb[0].mxu0 %v1577
        %v1628 = vpop.f32.mrb[0].mxu0
        %v1629 = vadd.f32 0.0, %v1628
        %v1630 = vpop.f32.mrb[0].mxu0
        %v1631 = vadd.f32 0.0, %v1630
        %v1632 = vpop.f32.mrb[0].mxu0
        %v1633 = vadd.f32 0.0, %v1632
        %v1634 = vpop.f32.mrb[0].mxu0
        %v1635 = vadd.f32 0.0, %v1634
        %1636 = vmatprep.mubr.bf16.mxu0 0
        %1637 = vmatmul.mubr.bf16.gmra.mrb[0].mxu0 %v1580
        %v1638 = vpop.f32.mrb[0].mxu0
        %v1639 = vadd.f32 0.0, %v1638
        %v1640 = vpop.f32.mrb[0].mxu0
        %v1641 = vadd.f32 0.0, %v1640
        %v1642 = vpop.f32.mrb[0].mxu0
        %v1643 = vadd.f32 0.0, %v1642
        %v1644 = vpop.f32.mrb[0].mxu0
        %v1645 = vadd.f32 0.0, %v1644
        %1646 = vmatprep.mubr.bf16.mxu0 0
        %1647 = vmatmul.mubr.bf16.gmra.mrb[0].mxu0 %v1583
        %v1648 = vpop.f32.mrb[0].mxu0
        %v1649 = vadd.f32 0.0, %v1648
        %v1650 = vpop.f32.mrb[0].mxu0
        %v1651 = vadd.f32 0.0, %v1650
        %v1652 = vpop.f32.mrb[0].mxu0
        %v1653 = vadd.f32 0.0, %v1652
        %v1654 = vpop.f32.mrb[0].mxu0
        %v1655 = vadd.f32 0.0, %v1654
        %1656 = vmatprep.mubr.bf16.mxu0 0
        %1657 = vmatmul.mubr.bf16.gmra.mrb[0].mxu0 %v1586
        %v1658 = vpop.f32.mrb[0].mxu0
        %v1659 = vadd.f32 0.0, %v1658
        %v1660 = vpop.f32.mrb[0].mxu0
        %v1661 = vadd.f32 0.0, %v1660
        %v1662 = vpop.f32.mrb[0].mxu0
        %v1663 = vadd.f32 0.0, %v1662
        %v1664 = vpop.f32.mrb[0].mxu0
        %v1665 = vadd.f32 0.0, %v1664
        %1666 = vmatprep.mubr.bf16.mxu0 0
        %1667 = vmatmul.mubr.bf16.gmra.mrb[0].mxu0 %v1589
        %v1668 = vpop.f32.mrb[0].mxu0
        %v1669 = vadd.f32 0.0, %v1668
        %v1670 = vpop.f32.mrb[0].mxu0
        %v1671 = vadd.f32 0.0, %v1670
        %v1672 = vpop.f32.mrb[0].mxu0
        %v1673 = vadd.f32 0.0, %v1672
        %v1674 = vpop.f32.mrb[0].mxu0
        %v1675 = vadd.f32 0.0, %v1674
        %1676 = vmatprep.mubr.bf16.mxu0 0
        %1677 = vmatmul.mubr.bf16.gmra.mrb[0].mxu0 %v1592
        %v1678 = vpop.f32.mrb[0].mxu0
        %v1679 = vadd.f32 0.0, %v1678
        %v1680 = vpop.f32.mrb[0].mxu0
        %v1681 = vadd.f32 0.0, %v1680
        %v1682 = vpop.f32.mrb[0].mxu0
        %v1683 = vadd.f32 0.0, %v1682
        %v1684 = vpop.f32.mrb[0].mxu0
        %v1685 = vadd.f32 0.0, %v1684
        %1686 = vdwg.mxu0
        %1687 = vmatprep.subr.bf16.mxu0 %v1308
        %1688 = vmatpush1.bf16.msra.mxu0 %v1307
        %1689 = vmatprep.subr.bf16.mxu0 %v1345
        %1690 = vmatpush1.bf16.msra.mxu0 %v1342
        %1691 = vmatprep.subr.bf16.mxu0 0
        %1692 = vmatpush1.bf16.msra.mxu0 0
        %1693 = vmatprep.subr.bf16.mxu0 0
        %1694 = vmatpush1.bf16.msra.mxu0 0
        %1695 = vmatprep.subr.bf16.mxu0 0
        %1696 = vmatpush1.bf16.msra.mxu0 0
        %1697 = vmatprep.subr.bf16.mxu0 0
        %1698 = vmatpush1.bf16.msra.mxu0 0
        %1699 = vmatprep.subr.bf16.mxu0 0
        %1700 = vmatpush1.bf16.msra.mxu0 0
        %1701 = vmatprep.subr.bf16.mxu0 0
        %1702 = vmatpush1.bf16.msra.mxu0 0
        %1703 = vmatprep.subr.bf16.mxu0 0
        %1704 = vmatpush1.bf16.msra.mxu0 0
        %1705 = vmatprep.subr.bf16.mxu0 0
        %1706 = vmatpush1.bf16.msra.mxu0 0
        %1707 = vmatprep.subr.bf16.mxu0 0
        %1708 = vmatpush1.bf16.msra.mxu0 0
        %1709 = vmatprep.subr.bf16.mxu0 0
        %1710 = vmatpush1.bf16.msra.mxu0 0
        %1711 = vmatprep.subr.bf16.mxu0 0
        %1712 = vmatpush1.bf16.msra.mxu0 0
        %1713 = vmatprep.subr.bf16.mxu0 0
        %1714 = vmatpush1.bf16.msra.mxu0 0
        %1715 = vmatprep.subr.bf16.mxu0 0
        %1716 = vmatpush1.bf16.msra.mxu0 0
        %1717 = vmatprep.subr.bf16.mxu0 0
        %1718 = vmatpush1.bf16.msra.mxu0 0
        %1719 = vmatprep.mubr.bf16.mxu0 0
        %1720 = vmatmul.mubr.bf16.gmra.mrb[0].mxu0 %v1577
        %v1721 = vpop.f32.mrb[0].mxu0
        %v1722 = vadd.f32 0.0, %v1721
        %v1723 = vpop.f32.mrb[0].mxu0
        %v1724 = vadd.f32 0.0, %v1723
        %v1725 = vpop.f32.mrb[0].mxu0
        %v1726 = vadd.f32 0.0, %v1725
        %v1727 = vpop.f32.mrb[0].mxu0
        %v1728 = vadd.f32 0.0, %v1727
        %1729 = vmatprep.mubr.bf16.mxu0 0
        %1730 = vmatmul.mubr.bf16.gmra.mrb[0].mxu0 %v1580
        %v1731 = vpop.f32.mrb[0].mxu0
        %v1732 = vadd.f32 0.0, %v1731
        %v1733 = vpop.f32.mrb[0].mxu0
        %v1734 = vadd.f32 0.0, %v1733
        %v1735 = vpop.f32.mrb[0].mxu0
        %v1736 = vadd.f32 0.0, %v1735
        %v1737 = vpop.f32.mrb[0].mxu0
        %v1738 = vadd.f32 0.0, %v1737
        %1739 = vmatprep.mubr.bf16.mxu0 0
        %1740 = vmatmul.mubr.bf16.gmra.mrb[0].mxu0 %v1583
        %v1741 = vpop.f32.mrb[0].mxu0
        %v1742 = vadd.f32 0.0, %v1741
        %v1743 = vpop.f32.mrb[0].mxu0
        %v1744 = vadd.f32 0.0, %v1743
        %v1745 = vpop.f32.mrb[0].mxu0
        %v1746 = vadd.f32 0.0, %v1745
        %v1747 = vpop.f32.mrb[0].mxu0
        %v1748 = vadd.f32 0.0, %v1747
        %1749 = vmatprep.mubr.bf16.mxu0 0
        %1750 = vmatmul.mubr.bf16.gmra.mrb[0].mxu0 %v1586
        %v1751 = vpop.f32.mrb[0].mxu0
        %v1752 = vadd.f32 0.0, %v1751
        %v1753 = vpop.f32.mrb[0].mxu0
        %v1754 = vadd.f32 0.0, %v1753
        %v1755 = vpop.f32.mrb[0].mxu0
        %v1756 = vadd.f32 0.0, %v1755
        %v1757 = vpop.f32.mrb[0].mxu0
        %v1758 = vadd.f32 0.0, %v1757
        %1759 = vmatprep.mubr.bf16.mxu0 0
        %1760 = vmatmul.mubr.bf16.gmra.mrb[0].mxu0 %v1589
        %v1761 = vpop.f32.mrb[0].mxu0
        %v1762 = vadd.f32 0.0, %v1761
        %v1763 = vpop.f32.mrb[0].mxu0
        %v1764 = vadd.f32 0.0, %v1763
        %v1765 = vpop.f32.mrb[0].mxu0
        %v1766 = vadd.f32 0.0, %v1765
        %v1767 = vpop.f32.mrb[0].mxu0
        %v1768 = vadd.f32 0.0, %v1767
        %1769 = vmatprep.mubr.bf16.mxu0 0
        %1770 = vmatmul.mubr.bf16.gmra.mrb[0].mxu0 %v1592
        %v1771 = vpop.f32.mrb[0].mxu0
        %v1772 = vadd.f32 0.0, %v1771
        %v1773 = vpop.f32.mrb[0].mxu0
        %v1774 = vadd.f32 0.0, %v1773
        %v1775 = vpop.f32.mrb[0].mxu0
        %v1776 = vadd.f32 0.0, %v1775
        %v1777 = vpop.f32.mrb[0].mxu0
        %v1778 = vadd.f32 0.0, %v1777
        %1779 = vdwg.mxu0
        %v1780 = vld [vmem:[#allocation2] sm:$0xff]
        %v1781 = vld [vmem:[#allocation2 + $0x8] sm:$0xff]
        %v1782 = vld [vmem:[#allocation2 + $0x10] sm:$0xff]
        %v1783 = vld [vmem:[#allocation2 + $0x18] sm:$0xff]
        %v1784 = vld [vmem:[#allocation2 + $0x20] sm:$0xff]
        %v1785 = vld [vmem:[#allocation2 + $0x28] sm:$0xff]
        %v1786 = vld [vmem:[#allocation2 + $0x30] sm:$0xff]
        %v1787 = vld [vmem:[#allocation2 + $0x38] sm:$0xff]
        %v1788 = vld [vmem:[#allocation2 + $0x40] sm:$0xff]
        %v1789 = vld [vmem:[#allocation2 + $0x48] sm:$0xff]
        %v1790 = vld [vmem:[#allocation2 + $0x50] sm:$0xff]
        %v1791 = vld [vmem:[#allocation2 + $0x58] sm:$0xff]
        %v1792 = vld [vmem:[#allocation2 + $0x60] sm:$0xff]
        %v1793 = vld [vmem:[#allocation2 + $0x68] sm:$0xff]
        %v1794 = vld [vmem:[#allocation2 + $0x70] sm:$0xff]
        %v1795 = vld [vmem:[#allocation2 + $0x78] sm:$0xff]
        %v1796 = vld [vmem:[#allocation2 + $0x80] sm:$0xff]
        %v1797 = vld [vmem:[#allocation2 + $0x88] sm:$0xff]
        %v1798 = vld [vmem:[#allocation2 + $0x90] sm:$0xff]
        %v1799 = vld [vmem:[#allocation2 + $0x98] sm:$0xff]
        %v1800 = vld [vmem:[#allocation2 + $0xa0] sm:$0xff]
        %v1801 = vld [vmem:[#allocation2 + $0xa8] sm:$0xff]
        %v1802 = vld [vmem:[#allocation2 + $0xb0] sm:$0xff]
        %v1803 = vld [vmem:[#allocation2 + $0xb8] sm:$0xff]
        %v1804 = vld [vmem:[#allocation2 + $0xc0] sm:$0xff]
        %v1805 = vld [vmem:[#allocation2 + $0xc8] sm:$0xff]
        %v1806 = vld [vmem:[#allocation2 + $0xd0] sm:$0xff]
        %v1807 = vld [vmem:[#allocation2 + $0xd8] sm:$0xff]
        %v1808 = vld [vmem:[#allocation2 + $0xe0] sm:$0xff]
        %v1809 = vld [vmem:[#allocation2 + $0xe8] sm:$0xff]
        %v1810 = vld [vmem:[#allocation2 + $0xf0] sm:$0xff]
        %v1811 = vld [vmem:[#allocation2 + $0xf8] sm:$0xff]
        %v1812 = vld [vmem:[#allocation2 + $0x100] sm:$0xff]
        %v1813 = vld [vmem:[#allocation2 + $0x108] sm:$0xff]
        %v1814 = vld [vmem:[#allocation2 + $0x110] sm:$0xff]
        %v1815 = vld [vmem:[#allocation2 + $0x118] sm:$0xff]
        %v1816 = vld [vmem:[#allocation2 + $0x120] sm:$0xff]
        %v1817 = vld [vmem:[#allocation2 + $0x128] sm:$0xff]
        %v1818 = vld [vmem:[#allocation2 + $0x130] sm:$0xff]
        %v1819 = vld [vmem:[#allocation2 + $0x138] sm:$0xff]
        %v1820 = vld [vmem:[#allocation2 + $0x140] sm:$0xff]
        %v1821 = vld [vmem:[#allocation2 + $0x148] sm:$0xff]
        %v1822 = vld [vmem:[#allocation2 + $0x150] sm:$0xff]
        %v1823 = vld [vmem:[#allocation2 + $0x158] sm:$0xff]
        %v1824 = vld [vmem:[#allocation2 + $0x160] sm:$0xff]
        %v1825 = vld [vmem:[#allocation2 + $0x168] sm:$0xff]
        %v1826 = vld [vmem:[#allocation2 + $0x170] sm:$0xff]
        %v1827 = vld [vmem:[#allocation2 + $0x178] sm:$0xff]
        %v1828 = vadd.f32 %v1780, %v1382
        %v1829 = vadd.f32 %v1781, %v1384
        %v1830 = vadd.f32 %v1782, %v1475
        %v1831 = vadd.f32 %v1783, %v1477
        %v1832 = vadd.f32 %v1784, %v1386
        %v1833 = vadd.f32 %v1785, %v1388
        %v1834 = vadd.f32 %v1786, %v1479
        %v1835 = vadd.f32 %v1787, %v1481
        %v1836 = vadd.f32 %v1788, %v1392
        %v1837 = vadd.f32 %v1789, %v1394
        %v1838 = vadd.f32 %v1790, %v1485
        %v1839 = vadd.f32 %v1791, %v1487
        %v1840 = vadd.f32 %v1792, %v1396
        %v1841 = vadd.f32 %v1793, %v1398
        %v1842 = vadd.f32 %v1794, %v1489
        %v1843 = vadd.f32 %v1795, %v1491
        %v1844 = vadd.f32 %v1796, %v1402
        %v1845 = vadd.f32 %v1797, %v1404
        %v1846 = vadd.f32 %v1798, %v1495
        %v1847 = vadd.f32 %v1799, %v1497
        %v1848 = vadd.f32 %v1800, %v1406
        %v1849 = vadd.f32 %v1801, %v1408
        %v1850 = vadd.f32 %v1802, %v1499
        %v1851 = vadd.f32 %v1803, %v1501
        %v1852 = vadd.f32 %v1804, %v1412
        %v1853 = vadd.f32 %v1805, %v1414
        %v1854 = vadd.f32 %v1806, %v1505
        %v1855 = vadd.f32 %v1807, %v1507
        %v1856 = vadd.f32 %v1808, %v1416
        %v1857 = vadd.f32 %v1809, %v1418
        %v1858 = vadd.f32 %v1810, %v1509
        %v1859 = vadd.f32 %v1811, %v1511
        %v1860 = vadd.f32 %v1812, %v1422
        %v1861 = vadd.f32 %v1813, %v1424
        %v1862 = vadd.f32 %v1814, %v1515
        %v1863 = vadd.f32 %v1815, %v1517
        %v1864 = vadd.f32 %v1816, %v1426
        %v1865 = vadd.f32 %v1817, %v1428
        %v1866 = vadd.f32 %v1818, %v1519
        %v1867 = vadd.f32 %v1819, %v1521
        %v1868 = vadd.f32 %v1820, %v1432
        %v1869 = vadd.f32 %v1821, %v1434
        %v1870 = vadd.f32 %v1822, %v1525
        %v1871 = vadd.f32 %v1823, %v1527
        %v1872 = vadd.f32 %v1824, %v1436
        %v1873 = vadd.f32 %v1825, %v1438
        %v1874 = vadd.f32 %v1826, %v1529
        %v1875 = vadd.f32 %v1827, %v1531
        %1876 = vst [vmem:[#allocation2] sm:$0xff] %v1828
        %1877 = vst [vmem:[#allocation2 + $0x8] sm:$0xff] %v1829
        %1878 = vst [vmem:[#allocation2 + $0x10] sm:$0xff] %v1830
        %1879 = vst [vmem:[#allocation2 + $0x18] sm:$0xff] %v1831
        %1880 = vst [vmem:[#allocation2 + $0x20] sm:$0xff] %v1832
        %1881 = vst [vmem:[#allocation2 + $0x28] sm:$0xff] %v1833
        %1882 = vst [vmem:[#allocation2 + $0x30] sm:$0xff] %v1834
        %1883 = vst [vmem:[#allocation2 + $0x38] sm:$0xff] %v1835
        %1884 = vst [vmem:[#allocation2 + $0x40] sm:$0xff] %v1836
        %1885 = vst [vmem:[#allocation2 + $0x48] sm:$0xff] %v1837
        %1886 = vst [vmem:[#allocation2 + $0x50] sm:$0xff] %v1838
        %1887 = vst [vmem:[#allocation2 + $0x58] sm:$0xff] %v1839
        %1888 = vst [vmem:[#allocation2 + $0x60] sm:$0xff] %v1840
        %1889 = vst [vmem:[#allocation2 + $0x68] sm:$0xff] %v1841
        %1890 = vst [vmem:[#allocation2 + $0x70] sm:$0xff] %v1842
        %1891 = vst [vmem:[#allocation2 + $0x78] sm:$0xff] %v1843
        %1892 = vst [vmem:[#allocation2 + $0x80] sm:$0xff] %v1844
        %1893 = vst [vmem:[#allocation2 + $0x88] sm:$0xff] %v1845
        %1894 = vst [vmem:[#allocation2 + $0x90] sm:$0xff] %v1846
        %1895 = vst [vmem:[#allocation2 + $0x98] sm:$0xff] %v1847
        %1896 = vst [vmem:[#allocation2 + $0xa0] sm:$0xff] %v1848
        %1897 = vst [vmem:[#allocation2 + $0xa8] sm:$0xff] %v1849
        %1898 = vst [vmem:[#allocation2 + $0xb0] sm:$0xff] %v1850
        %1899 = vst [vmem:[#allocation2 + $0xb8] sm:$0xff] %v1851
        %1900 = vst [vmem:[#allocation2 + $0xc0] sm:$0xff] %v1852
        %1901 = vst [vmem:[#allocation2 + $0xc8] sm:$0xff] %v1853
        %1902 = vst [vmem:[#allocation2 + $0xd0] sm:$0xff] %v1854
        %1903 = vst [vmem:[#allocation2 + $0xd8] sm:$0xff] %v1855
        %1904 = vst [vmem:[#allocation2 + $0xe0] sm:$0xff] %v1856
        %1905 = vst [vmem:[#allocation2 + $0xe8] sm:$0xff] %v1857
        %1906 = vst [vmem:[#allocation2 + $0xf0] sm:$0xff] %v1858
        %1907 = vst [vmem:[#allocation2 + $0xf8] sm:$0xff] %v1859
        %1908 = vst [vmem:[#allocation2 + $0x100] sm:$0xff] %v1860
        %1909 = vst [vmem:[#allocation2 + $0x108] sm:$0xff] %v1861
        %1910 = vst [vmem:[#allocation2 + $0x110] sm:$0xff] %v1862
        %1911 = vst [vmem:[#allocation2 + $0x118] sm:$0xff] %v1863
        %1912 = vst [vmem:[#allocation2 + $0x120] sm:$0xff] %v1864
        %1913 = vst [vmem:[#allocation2 + $0x128] sm:$0xff] %v1865
        %1914 = vst [vmem:[#allocation2 + $0x130] sm:$0xff] %v1866
        %1915 = vst [vmem:[#allocation2 + $0x138] sm:$0xff] %v1867
        %1916 = vst [vmem:[#allocation2 + $0x140] sm:$0xff] %v1868
        %1917 = vst [vmem:[#allocation2 + $0x148] sm:$0xff] %v1869
        %1918 = vst [vmem:[#allocation2 + $0x150] sm:$0xff] %v1870
        %1919 = vst [vmem:[#allocation2 + $0x158] sm:$0xff] %v1871
        %1920 = vst [vmem:[#allocation2 + $0x160] sm:$0xff] %v1872
        %1921 = vst [vmem:[#allocation2 + $0x168] sm:$0xff] %v1873
        %1922 = vst [vmem:[#allocation2 + $0x170] sm:$0xff] %v1874
        %1923 = vst [vmem:[#allocation2 + $0x178] sm:$0xff] %v1875
        %v1924 = vld [vmem:[#allocation3] sm:$0xff]
        %v1925 = vld [vmem:[#allocation3 + $0x8] sm:$0xff]
        %v1926 = vld [vmem:[#allocation3 + $0x10] sm:$0xff]
        %v1927 = vld [vmem:[#allocation3 + $0x18] sm:$0xff]
        %v1928 = vld [vmem:[#allocation3 + $0x20] sm:$0xff]
        %v1929 = vld [vmem:[#allocation3 + $0x28] sm:$0xff]
        %v1930 = vld [vmem:[#allocation3 + $0x30] sm:$0xff]
        %v1931 = vld [vmem:[#allocation3 + $0x38] sm:$0xff]
        %v1932 = vld [vmem:[#allocation3 + $0x40] sm:$0xff]
        %v1933 = vld [vmem:[#allocation3 + $0x48] sm:$0xff]
        %v1934 = vld [vmem:[#allocation3 + $0x50] sm:$0xff]
        %v1935 = vld [vmem:[#allocation3 + $0x58] sm:$0xff]
        %v1936 = vld [vmem:[#allocation3 + $0x60] sm:$0xff]
        %v1937 = vld [vmem:[#allocation3 + $0x68] sm:$0xff]
        %v1938 = vld [vmem:[#allocation3 + $0x70] sm:$0xff]
        %v1939 = vld [vmem:[#allocation3 + $0x78] sm:$0xff]
        %v1940 = vld [vmem:[#allocation3 + $0x80] sm:$0xff]
        %v1941 = vld [vmem:[#allocation3 + $0x88] sm:$0xff]
        %v1942 = vld [vmem:[#allocation3 + $0x90] sm:$0xff]
        %v1943 = vld [vmem:[#allocation3 + $0x98] sm:$0xff]
        %v1944 = vld [vmem:[#allocation3 + $0xa0] sm:$0xff]
        %v1945 = vld [vmem:[#allocation3 + $0xa8] sm:$0xff]
        %v1946 = vld [vmem:[#allocation3 + $0xb0] sm:$0xff]
        %v1947 = vld [vmem:[#allocation3 + $0xb8] sm:$0xff]
        %v1948 = vld [vmem:[#allocation3 + $0xc0] sm:$0xff]
        %v1949 = vld [vmem:[#allocation3 + $0xc8] sm:$0xff]
        %v1950 = vld [vmem:[#allocation3 + $0xd0] sm:$0xff]
        %v1951 = vld [vmem:[#allocation3 + $0xd8] sm:$0xff]
        %v1952 = vld [vmem:[#allocation3 + $0xe0] sm:$0xff]
        %v1953 = vld [vmem:[#allocation3 + $0xe8] sm:$0xff]
        %v1954 = vld [vmem:[#allocation3 + $0xf0] sm:$0xff]
        %v1955 = vld [vmem:[#allocation3 + $0xf8] sm:$0xff]
        %v1956 = vld [vmem:[#allocation3 + $0x100] sm:$0xff]
        %v1957 = vld [vmem:[#allocation3 + $0x108] sm:$0xff]
        %v1958 = vld [vmem:[#allocation3 + $0x110] sm:$0xff]
        %v1959 = vld [vmem:[#allocation3 + $0x118] sm:$0xff]
        %v1960 = vld [vmem:[#allocation3 + $0x120] sm:$0xff]
        %v1961 = vld [vmem:[#allocation3 + $0x128] sm:$0xff]
        %v1962 = vld [vmem:[#allocation3 + $0x130] sm:$0xff]
        %v1963 = vld [vmem:[#allocation3 + $0x138] sm:$0xff]
        %v1964 = vld [vmem:[#allocation3 + $0x140] sm:$0xff]
        %v1965 = vld [vmem:[#allocation3 + $0x148] sm:$0xff]
        %v1966 = vld [vmem:[#allocation3 + $0x150] sm:$0xff]
        %v1967 = vld [vmem:[#allocation3 + $0x158] sm:$0xff]
        %v1968 = vld [vmem:[#allocation3 + $0x160] sm:$0xff]
        %v1969 = vld [vmem:[#allocation3 + $0x168] sm:$0xff]
        %v1970 = vld [vmem:[#allocation3 + $0x170] sm:$0xff]
        %v1971 = vld [vmem:[#allocation3 + $0x178] sm:$0xff]
        %v1972 = vadd.f32 %v1924, %v1629
        %v1973 = vadd.f32 %v1925, %v1631
        %v1974 = vadd.f32 %v1926, %v1722
        %v1975 = vadd.f32 %v1927, %v1724
        %v1976 = vadd.f32 %v1928, %v1633
        %v1977 = vadd.f32 %v1929, %v1635
        %v1978 = vadd.f32 %v1930, %v1726
        %v1979 = vadd.f32 %v1931, %v1728
        %v1980 = vadd.f32 %v1932, %v1639
        %v1981 = vadd.f32 %v1933, %v1641
        %v1982 = vadd.f32 %v1934, %v1732
        %v1983 = vadd.f32 %v1935, %v1734
        %v1984 = vadd.f32 %v1936, %v1643
        %v1985 = vadd.f32 %v1937, %v1645
        %v1986 = vadd.f32 %v1938, %v1736
        %v1987 = vadd.f32 %v1939, %v1738
        %v1988 = vadd.f32 %v1940, %v1649
        %v1989 = vadd.f32 %v1941, %v1651
        %v1990 = vadd.f32 %v1942, %v1742
        %v1991 = vadd.f32 %v1943, %v1744
        %v1992 = vadd.f32 %v1944, %v1653
        %v1993 = vadd.f32 %v1945, %v1655
        %v1994 = vadd.f32 %v1946, %v1746
        %v1995 = vadd.f32 %v1947, %v1748
        %v1996 = vadd.f32 %v1948, %v1659
        %v1997 = vadd.f32 %v1949, %v1661
        %v1998 = vadd.f32 %v1950, %v1752
        %v1999 = vadd.f32 %v1951, %v1754
        %v2000 = vadd.f32 %v1952, %v1663
        %v2001 = vadd.f32 %v1953, %v1665
        %v2002 = vadd.f32 %v1954, %v1756
        %v2003 = vadd.f32 %v1955, %v1758
        %v2004 = vadd.f32 %v1956, %v1669
        %v2005 = vadd.f32 %v1957, %v1671
        %v2006 = vadd.f32 %v1958, %v1762
        %v2007 = vadd.f32 %v1959, %v1764
        %v2008 = vadd.f32 %v1960, %v1673
        %v2009 = vadd.f32 %v1961, %v1675
        %v2010 = vadd.f32 %v1962, %v1766
        %v2011 = vadd.f32 %v1963, %v1768
        %v2012 = vadd.f32 %v1964, %v1679
        %v2013 = vadd.f32 %v1965, %v1681
        %v2014 = vadd.f32 %v1966, %v1772
        %v2015 = vadd.f32 %v1967, %v1774
        %v2016 = vadd.f32 %v1968, %v1683
        %v2017 = vadd.f32 %v1969, %v1685
        %v2018 = vadd.f32 %v1970, %v1776
        %v2019 = vadd.f32 %v1971, %v1778
        %2020 = vst [vmem:[#allocation3] sm:$0xff] %v1972
        %2021 = vst [vmem:[#allocation3 + $0x8] sm:$0xff] %v1973
        %2022 = vst [vmem:[#allocation3 + $0x10] sm:$0xff] %v1974
        %2023 = vst [vmem:[#allocation3 + $0x18] sm:$0xff] %v1975
        %2024 = vst [vmem:[#allocation3 + $0x20] sm:$0xff] %v1976
        %2025 = vst [vmem:[#allocation3 + $0x28] sm:$0xff] %v1977
        %2026 = vst [vmem:[#allocation3 + $0x30] sm:$0xff] %v1978
        %2027 = vst [vmem:[#allocation3 + $0x38] sm:$0xff] %v1979
        %2028 = vst [vmem:[#allocation3 + $0x40] sm:$0xff] %v1980
        %2029 = vst [vmem:[#allocation3 + $0x48] sm:$0xff] %v1981
        %2030 = vst [vmem:[#allocation3 + $0x50] sm:$0xff] %v1982
        %2031 = vst [vmem:[#allocation3 + $0x58] sm:$0xff] %v1983
        %2032 = vst [vmem:[#allocation3 + $0x60] sm:$0xff] %v1984
        %2033 = vst [vmem:[#allocation3 + $0x68] sm:$0xff] %v1985
        %2034 = vst [vmem:[#allocation3 + $0x70] sm:$0xff] %v1986
        %2035 = vst [vmem:[#allocation3 + $0x78] sm:$0xff] %v1987
        %2036 = vst [vmem:[#allocation3 + $0x80] sm:$0xff] %v1988
        %2037 = vst [vmem:[#allocation3 + $0x88] sm:$0xff] %v1989
        %2038 = vst [vmem:[#allocation3 + $0x90] sm:$0xff] %v1990
        %2039 = vst [vmem:[#allocation3 + $0x98] sm:$0xff] %v1991
        %2040 = vst [vmem:[#allocation3 + $0xa0] sm:$0xff] %v1992
        %2041 = vst [vmem:[#allocation3 + $0xa8] sm:$0xff] %v1993
        %2042 = vst [vmem:[#allocation3 + $0xb0] sm:$0xff] %v1994
        %2043 = vst [vmem:[#allocation3 + $0xb8] sm:$0xff] %v1995
        %2044 = vst [vmem:[#allocation3 + $0xc0] sm:$0xff] %v1996
        %2045 = vst [vmem:[#allocation3 + $0xc8] sm:$0xff] %v1997
        %2046 = vst [vmem:[#allocation3 + $0xd0] sm:$0xff] %v1998
        %2047 = vst [vmem:[#allocation3 + $0xd8] sm:$0xff] %v1999
        %2048 = vst [vmem:[#allocation3 + $0xe0] sm:$0xff] %v2000
        %2049 = vst [vmem:[#allocation3 + $0xe8] sm:$0xff] %v2001
        %2050 = vst [vmem:[#allocation3 + $0xf0] sm:$0xff] %v2002
        %2051 = vst [vmem:[#allocation3 + $0xf8] sm:$0xff] %v2003
        %2052 = vst [vmem:[#allocation3 + $0x100] sm:$0xff] %v2004
        %2053 = vst [vmem:[#allocation3 + $0x108] sm:$0xff] %v2005
        %2054 = vst [vmem:[#allocation3 + $0x110] sm:$0xff] %v2006
        %2055 = vst [vmem:[#allocation3 + $0x118] sm:$0xff] %v2007
        %2056 = vst [vmem:[#allocation3 + $0x120] sm:$0xff] %v2008
        %2057 = vst [vmem:[#allocation3 + $0x128] sm:$0xff] %v2009
        %2058 = vst [vmem:[#allocation3 + $0x130] sm:$0xff] %v2010
        %2059 = vst [vmem:[#allocation3 + $0x138] sm:$0xff] %v2011
        %2060 = vst [vmem:[#allocation3 + $0x140] sm:$0xff] %v2012
        %2061 = vst [vmem:[#allocation3 + $0x148] sm:$0xff] %v2013
        %2062 = vst [vmem:[#allocation3 + $0x150] sm:$0xff] %v2014
        %2063 = vst [vmem:[#allocation3 + $0x158] sm:$0xff] %v2015
        %2064 = vst [vmem:[#allocation3 + $0x160] sm:$0xff] %v2016
        %2065 = vst [vmem:[#allocation3 + $0x168] sm:$0xff] %v2017
        %2066 = vst [vmem:[#allocation3 + $0x170] sm:$0xff] %v2018
        %2067 = vst [vmem:[#allocation3 + $0x178] sm:$0xff] %v2019
        %s2068 = scalar_lea.vmem %s1, 128
        %v2069 = vld [vmem:[%s2068] sm:$0xff]
        %v2070 = vld [vmem:[%s2068 + $0x8] sm:$0xff]
        %v2071 = vld [vmem:[%s2068 + $0x10] sm:$0xff]
        %v2072 = vld [vmem:[%s2068 + $0x18] sm:$0xff]
        %v2073 = vld [vmem:[%s2068 + $0x20] sm:$0xff]
        %v2074 = vld [vmem:[%s2068 + $0x28] sm:$0xff]
        %v2075 = vld [vmem:[%s2068 + $0x30] sm:$0x33]
        %v2076 = vld [vmem:[%s2068 + $0x38] sm:$0x33]
        %v2077 = vld [vmem:[%s1533] sm:$0xf]
        %v2078 = vld [vmem:[%s1533 + $0x4] sm:$0xf]
        %v2079 = vld [vmem:[%s1533 + $0x8] sm:$0xf]
        %v2080 = vld [vmem:[%s1533 + $0xc] sm:$0xf]
        %v2081 = vld [vmem:[%s1533 + $0x10] sm:$0xf]
        %v2082 = vld [vmem:[%s1533 + $0x14] sm:$0xf]
        %v2083 = vld [vmem:[%s1533 + $0x18] sm:$0xf]
        %v2084 = vld [vmem:[%s1533 + $0x1c] sm:$0xf]
        %v2085 = vld [vmem:[%s1533 + $0x20] sm:$0xf]
        %v2086 = vld [vmem:[%s1533 + $0x24] sm:$0xf]
        %v2087 = vld [vmem:[%s1533 + $0x28] sm:$0xf]
        %v2088 = vld [vmem:[%s1533 + $0x2c] sm:$0xf]
        %v2101 = vunpack.c.l.b16 %v2077
        %v2102 = vunpack.c.l.b16 %v2078
        %v2103 = vunpack.c.l.b16 %v2079
        %v2104 = vunpack.c.l.b16 %v2080
        %v2105 = vunpack.c.l.b16 %v2081
        %v2106 = vunpack.c.l.b16 %v2082
        %v2107 = vunpack.c.l.b16 %v2083
        %v2108 = vunpack.c.l.b16 %v2084
        %v2109 = vunpack.c.l.b16 %v2085
        %v2110 = vunpack.c.l.b16 %v2086
        %v2111 = vunpack.c.l.b16 %v2087
        %v2112 = vunpack.c.l.b16 %v2088
        %v2113 = vpack.c.b16 %v2102, %v2101
        %v2114 = vpack.c.b16 %v2104, %v2103
        %v2115 = vpack.c.b16 %v2106, %v2105
        %v2116 = vpack.c.b16 %v2108, %v2107
        %v2117 = vpack.c.b16 %v2110, %v2109
        %v2118 = vpack.c.b16 %v2112, %v2111
        %v2127 = vunpack.c.l.b16 %v2069
        %v2128 = vunpack.c.h.b16 %v2069
        %v2129 = vunpack.c.l.b16 %v2070
        %v2130 = vunpack.c.h.b16 %v2070
        %v2131 = vunpack.c.l.b16 %v2071
        %v2132 = vunpack.c.h.b16 %v2071
        %v2133 = vunpack.c.l.b16 %v2072
        %v2134 = vunpack.c.h.b16 %v2072
        %v2135 = vunpack.c.l.b16 %v2073
        %v2136 = vunpack.c.h.b16 %v2073
        %v2137 = vunpack.c.l.b16 %v2074
        %v2138 = vunpack.c.h.b16 %v2074
        %v2139 = vunpack.c.l.b16 %v2075
        %v2140 = vunpack.c.h.b16 %v2075
        %v2141 = vunpack.c.l.b16 %v2076
        %v2142 = vunpack.c.h.b16 %v2076
        %v2143 = vpack.c.b16 %v2131, %v2127
        %v2144 = vpack.c.b16 %v2132, %v2128
        %v2145 = vpack.c.b16 %v2133, %v2129
        %v2146 = vpack.c.b16 %v2134, %v2130
        %v2147 = vpack.c.b16 %v2139, %v2135
        %v2148 = vpack.c.b16 %v2140, %v2136
        %v2149 = vpack.c.b16 %v2141, %v2137
        %v2150 = vpack.c.b16 %v2142, %v2138
        %v2156 = vsel %vm669, %v2113, 0
        %v2159 = vsel %vm669, %v2114, 0
        %v2162 = vsel %vm669, %v2115, 0
        %v2165 = vsel %vm669, %v2116, 0
        %v2168 = vsel %vm669, %v2117, 0
        %v2171 = vsel %vm669, %v2118, 0
        %v2174 = vsel %vm688, %v2147, 0
        %v2177 = vsel %vm688, %v2148, 0
        %v2180 = vsel %vm688, %v2149, 0
        %v2183 = vsel %vm688, %v2150, 0
        %2185 = vmatprep.subr.bf16.mxu0 %v2144
        %2186 = vmatpush1.bf16.msra.mxu0 %v2143
        %2187 = vmatprep.subr.bf16.mxu0 %v2177
        %2188 = vmatpush1.bf16.msra.mxu0 %v2174
        %2189 = vmatprep.subr.bf16.mxu0 0
        %2190 = vmatpush1.bf16.msra.mxu0 0
        %2191 = vmatprep.subr.bf16.mxu0 0
        %2192 = vmatpush1.bf16.msra.mxu0 0
        %2193 = vmatprep.subr.bf16.mxu0 0
        %2194 = vmatpush1.bf16.msra.mxu0 0
        %2195 = vmatprep.subr.bf16.mxu0 0
        %2196 = vmatpush1.bf16.msra.mxu0 0
        %2197 = vmatprep.subr.bf16.mxu0 0
        %2198 = vmatpush1.bf16.msra.mxu0 0
        %2199 = vmatprep.subr.bf16.mxu0 0
        %2200 = vmatpush1.bf16.msra.mxu0 0
        %2201 = vmatprep.subr.bf16.mxu0 0
        %2202 = vmatpush1.bf16.msra.mxu0 0
        %2203 = vmatprep.subr.bf16.mxu0 0
        %2204 = vmatpush1.bf16.msra.mxu0 0
        %2205 = vmatprep.subr.bf16.mxu0 0
        %2206 = vmatpush1.bf16.msra.mxu0 0
        %2207 = vmatprep.subr.bf16.mxu0 0
        %2208 = vmatpush1.bf16.msra.mxu0 0
        %2209 = vmatprep.subr.bf16.mxu0 0
        %2210 = vmatpush1.bf16.msra.mxu0 0
        %2211 = vmatprep.subr.bf16.mxu0 0
        %2212 = vmatpush1.bf16.msra.mxu0 0
        %2213 = vmatprep.subr.bf16.mxu0 0
        %2214 = vmatpush1.bf16.msra.mxu0 0
        %2215 = vmatprep.subr.bf16.mxu0 0
        %2216 = vmatpush1.bf16.msra.mxu0 0
        %2217 = vmatprep.mubr.bf16.mxu0 0
        %2218 = vmatmul.mubr.bf16.gmra.mrb[0].mxu0 %v2156
        %v2219 = vpop.f32.mrb[0].mxu0
        %v2220 = vadd.f32 0.0, %v2219
        %v2221 = vpop.f32.mrb[0].mxu0
        %v2222 = vadd.f32 0.0, %v2221
        %v2223 = vpop.f32.mrb[0].mxu0
        %v2224 = vadd.f32 0.0, %v2223
        %v2225 = vpop.f32.mrb[0].mxu0
        %v2226 = vadd.f32 0.0, %v2225
        %2227 = vmatprep.mubr.bf16.mxu0 0
        %2228 = vmatmul.mubr.bf16.gmra.mrb[0].mxu0 %v2159
        %v2229 = vpop.f32.mrb[0].mxu0
        %v2230 = vadd.f32 0.0, %v2229
        %v2231 = vpop.f32.mrb[0].mxu0
        %v2232 = vadd.f32 0.0, %v2231
        %v2233 = vpop.f32.mrb[0].mxu0
        %v2234 = vadd.f32 0.0, %v2233
        %v2235 = vpop.f32.mrb[0].mxu0
        %v2236 = vadd.f32 0.0, %v2235
        %2237 = vmatprep.mubr.bf16.mxu0 0
        %2238 = vmatmul.mubr.bf16.gmra.mrb[0].mxu0 %v2162
        %v2239 = vpop.f32.mrb[0].mxu0
        %v2240 = vadd.f32 0.0, %v2239
        %v2241 = vpop.f32.mrb[0].mxu0
        %v2242 = vadd.f32 0.0, %v2241
        %v2243 = vpop.f32.mrb[0].mxu0
        %v2244 = vadd.f32 0.0, %v2243
        %v2245 = vpop.f32.mrb[0].mxu0
        %v2246 = vadd.f32 0.0, %v2245
        %2247 = vmatprep.mubr.bf16.mxu0 0
        %2248 = vmatmul.mubr.bf16.gmra.mrb[0].mxu0 %v2165
        %v2249 = vpop.f32.mrb[0].mxu0
        %v2250 = vadd.f32 0.0, %v2249
        %v2251 = vpop.f32.mrb[0].mxu0
        %v2252 = vadd.f32 0.0, %v2251
        %v2253 = vpop.f32.mrb[0].mxu0
        %v2254 = vadd.f32 0.0, %v2253
        %v2255 = vpop.f32.mrb[0].mxu0
        %v2256 = vadd.f32 0.0, %v2255
        %2257 = vmatprep.mubr.bf16.mxu0 0
        %2258 = vmatmul.mubr.bf16.gmra.mrb[0].mxu0 %v2168
        %v2259 = vpop.f32.mrb[0].mxu0
        %v2260 = vadd.f32 0.0, %v2259
        %v2261 = vpop.f32.mrb[0].mxu0
        %v2262 = vadd.f32 0.0, %v2261
        %v2263 = vpop.f32.mrb[0].mxu0
        %v2264 = vadd.f32 0.0, %v2263
        %v2265 = vpop.f32.mrb[0].mxu0
        %v2266 = vadd.f32 0.0, %v2265
        %2267 = vmatprep.mubr.bf16.mxu0 0
        %2268 = vmatmul.mubr.bf16.gmra.mrb[0].mxu0 %v2171
        %v2269 = vpop.f32.mrb[0].mxu0
        %v2270 = vadd.f32 0.0, %v2269
        %v2271 = vpop.f32.mrb[0].mxu0
        %v2272 = vadd.f32 0.0, %v2271
        %v2273 = vpop.f32.mrb[0].mxu0
        %v2274 = vadd.f32 0.0, %v2273
        %v2275 = vpop.f32.mrb[0].mxu0
        %v2276 = vadd.f32 0.0, %v2275
        %2277 = vdwg.mxu0
        %2278 = vmatprep.subr.bf16.mxu0 %v2146
        %2279 = vmatpush1.bf16.msra.mxu0 %v2145
        %2280 = vmatprep.subr.bf16.mxu0 %v2183
        %2281 = vmatpush1.bf16.msra.mxu0 %v2180
        %2282 = vmatprep.subr.bf16.mxu0 0
        %2283 = vmatpush1.bf16.msra.mxu0 0
        %2284 = vmatprep.subr.bf16.mxu0 0
        %2285 = vmatpush1.bf16.msra.mxu0 0
        %2286 = vmatprep.subr.bf16.mxu0 0
        %2287 = vmatpush1.bf16.msra.mxu0 0
        %2288 = vmatprep.subr.bf16.mxu0 0
        %2289 = vmatpush1.bf16.msra.mxu0 0
        %2290 = vmatprep.subr.bf16.mxu0 0
        %2291 = vmatpush1.bf16.msra.mxu0 0
        %2292 = vmatprep.subr.bf16.mxu0 0
        %2293 = vmatpush1.bf16.msra.mxu0 0
        %2294 = vmatprep.subr.bf16.mxu0 0
        %2295 = vmatpush1.bf16.msra.mxu0 0
        %2296 = vmatprep.subr.bf16.mxu0 0
        %2297 = vmatpush1.bf16.msra.mxu0 0
        %2298 = vmatprep.subr.bf16.mxu0 0
        %2299 = vmatpush1.bf16.msra.mxu0 0
        %2300 = vmatprep.subr.bf16.mxu0 0
        %2301 = vmatpush1.bf16.msra.mxu0 0
        %2302 = vmatprep.subr.bf16.mxu0 0
        %2303 = vmatpush1.bf16.msra.mxu0 0
        %2304 = vmatprep.subr.bf16.mxu0 0
        %2305 = vmatpush1.bf16.msra.mxu0 0
        %2306 = vmatprep.subr.bf16.mxu0 0
        %2307 = vmatpush1.bf16.msra.mxu0 0
        %2308 = vmatprep.subr.bf16.mxu0 0
        %2309 = vmatpush1.bf16.msra.mxu0 0
        %2310 = vmatprep.mubr.bf16.mxu0 0
        %2311 = vmatmul.mubr.bf16.gmra.mrb[0].mxu0 %v2156
        %v2312 = vpop.f32.mrb[0].mxu0
        %v2313 = vadd.f32 0.0, %v2312
        %v2314 = vpop.f32.mrb[0].mxu0
        %v2315 = vadd.f32 0.0, %v2314
        %v2316 = vpop.f32.mrb[0].mxu0
        %v2317 = vadd.f32 0.0, %v2316
        %v2318 = vpop.f32.mrb[0].mxu0
        %v2319 = vadd.f32 0.0, %v2318
        %2320 = vmatprep.mubr.bf16.mxu0 0
        %2321 = vmatmul.mubr.bf16.gmra.mrb[0].mxu0 %v2159
        %v2322 = vpop.f32.mrb[0].mxu0
        %v2323 = vadd.f32 0.0, %v2322
        %v2324 = vpop.f32.mrb[0].mxu0
        %v2325 = vadd.f32 0.0, %v2324
        %v2326 = vpop.f32.mrb[0].mxu0
        %v2327 = vadd.f32 0.0, %v2326
        %v2328 = vpop.f32.mrb[0].mxu0
        %v2329 = vadd.f32 0.0, %v2328
        %2330 = vmatprep.mubr.bf16.mxu0 0
        %2331 = vmatmul.mubr.bf16.gmra.mrb[0].mxu0 %v2162
        %v2332 = vpop.f32.mrb[0].mxu0
        %v2333 = vadd.f32 0.0, %v2332
        %v2334 = vpop.f32.mrb[0].mxu0
        %v2335 = vadd.f32 0.0, %v2334
        %v2336 = vpop.f32.mrb[0].mxu0
        %v2337 = vadd.f32 0.0, %v2336
        %v2338 = vpop.f32.mrb[0].mxu0
        %v2339 = vadd.f32 0.0, %v2338
        %2340 = vmatprep.mubr.bf16.mxu0 0
        %2341 = vmatmul.mubr.bf16.gmra.mrb[0].mxu0 %v2165
        %v2342 = vpop.f32.mrb[0].mxu0
        %v2343 = vadd.f32 0.0, %v2342
        %v2344 = vpop.f32.mrb[0].mxu0
        %v2345 = vadd.f32 0.0, %v2344
        %v2346 = vpop.f32.mrb[0].mxu0
        %v2347 = vadd.f32 0.0, %v2346
        %v2348 = vpop.f32.mrb[0].mxu0
        %v2349 = vadd.f32 0.0, %v2348
        %2350 = vmatprep.mubr.bf16.mxu0 0
        %2351 = vmatmul.mubr.bf16.gmra.mrb[0].mxu0 %v2168
        %v2352 = vpop.f32.mrb[0].mxu0
        %v2353 = vadd.f32 0.0, %v2352
        %v2354 = vpop.f32.mrb[0].mxu0
        %v2355 = vadd.f32 0.0, %v2354
        %v2356 = vpop.f32.mrb[0].mxu0
        %v2357 = vadd.f32 0.0, %v2356
        %v2358 = vpop.f32.mrb[0].mxu0
        %v2359 = vadd.f32 0.0, %v2358
        %2360 = vmatprep.mubr.bf16.mxu0 0
        %2361 = vmatmul.mubr.bf16.gmra.mrb[0].mxu0 %v2171
        %v2362 = vpop.f32.mrb[0].mxu0
        %v2363 = vadd.f32 0.0, %v2362
        %v2364 = vpop.f32.mrb[0].mxu0
        %v2365 = vadd.f32 0.0, %v2364
        %v2366 = vpop.f32.mrb[0].mxu0
        %v2367 = vadd.f32 0.0, %v2366
        %v2368 = vpop.f32.mrb[0].mxu0
        %v2369 = vadd.f32 0.0, %v2368
        %2370 = vdwg.mxu0
        %s2371 = scalar_lea.vmem %s546, 144 [#allocation6]
        %v2372 = vld [vmem:[%s2371] sm:$0xf]
        %v2373 = vld [vmem:[%s2371 + $0x4] sm:$0xf]
        %v2374 = vld [vmem:[%s2371 + $0x8] sm:$0xf]
        %v2375 = vld [vmem:[%s2371 + $0xc] sm:$0xf]
        %v2376 = vld [vmem:[%s2371 + $0x10] sm:$0xf]
        %v2377 = vld [vmem:[%s2371 + $0x14] sm:$0xf]
        %v2378 = vld [vmem:[%s2371 + $0x18] sm:$0xf]
        %v2379 = vld [vmem:[%s2371 + $0x1c] sm:$0xf]
        %v2380 = vld [vmem:[%s2371 + $0x20] sm:$0xf]
        %v2381 = vld [vmem:[%s2371 + $0x24] sm:$0xf]
        %v2382 = vld [vmem:[%s2371 + $0x28] sm:$0xf]
        %v2383 = vld [vmem:[%s2371 + $0x2c] sm:$0xf]
        %v2396 = vunpack.c.l.b16 %v2372
        %v2397 = vunpack.c.l.b16 %v2373
        %v2398 = vunpack.c.l.b16 %v2374
        %v2399 = vunpack.c.l.b16 %v2375
        %v2400 = vunpack.c.l.b16 %v2376
        %v2401 = vunpack.c.l.b16 %v2377
        %v2402 = vunpack.c.l.b16 %v2378
        %v2403 = vunpack.c.l.b16 %v2379
        %v2404 = vunpack.c.l.b16 %v2380
        %v2405 = vunpack.c.l.b16 %v2381
        %v2406 = vunpack.c.l.b16 %v2382
        %v2407 = vunpack.c.l.b16 %v2383
        %v2408 = vpack.c.b16 %v2397, %v2396
        %v2409 = vpack.c.b16 %v2399, %v2398
        %v2410 = vpack.c.b16 %v2401, %v2400
        %v2411 = vpack.c.b16 %v2403, %v2402
        %v2412 = vpack.c.b16 %v2405, %v2404
        %v2413 = vpack.c.b16 %v2407, %v2406
        %v2415 = vsel %vm669, %v2408, 0
        %v2418 = vsel %vm669, %v2409, 0
        %v2421 = vsel %vm669, %v2410, 0
        %v2424 = vsel %vm669, %v2411, 0
        %v2427 = vsel %vm669, %v2412, 0
        %v2430 = vsel %vm669, %v2413, 0
        %2432 = vmatprep.subr.bf16.mxu0 %v2144
        %2433 = vmatpush1.bf16.msra.mxu0 %v2143
        %2434 = vmatprep.subr.bf16.mxu0 %v2177
        %2435 = vmatpush1.bf16.msra.mxu0 %v2174
        %2436 = vmatprep.subr.bf16.mxu0 0
        %2437 = vmatpush1.bf16.msra.mxu0 0
        %2438 = vmatprep.subr.bf16.mxu0 0
        %2439 = vmatpush1.bf16.msra.mxu0 0
        %2440 = vmatprep.subr.bf16.mxu0 0
        %2441 = vmatpush1.bf16.msra.mxu0 0
        %2442 = vmatprep.subr.bf16.mxu0 0
        %2443 = vmatpush1.bf16.msra.mxu0 0
        %2444 = vmatprep.subr.bf16.mxu0 0
        %2445 = vmatpush1.bf16.msra.mxu0 0
        %2446 = vmatprep.subr.bf16.mxu0 0
        %2447 = vmatpush1.bf16.msra.mxu0 0
        %2448 = vmatprep.subr.bf16.mxu0 0
        %2449 = vmatpush1.bf16.msra.mxu0 0
        %2450 = vmatprep.subr.bf16.mxu0 0
        %2451 = vmatpush1.bf16.msra.mxu0 0
        %2452 = vmatprep.subr.bf16.mxu0 0
        %2453 = vmatpush1.bf16.msra.mxu0 0
        %2454 = vmatprep.subr.bf16.mxu0 0
        %2455 = vmatpush1.bf16.msra.mxu0 0
        %2456 = vmatprep.subr.bf16.mxu0 0
        %2457 = vmatpush1.bf16.msra.mxu0 0
        %2458 = vmatprep.subr.bf16.mxu0 0
        %2459 = vmatpush1.bf16.msra.mxu0 0
        %2460 = vmatprep.subr.bf16.mxu0 0
        %2461 = vmatpush1.bf16.msra.mxu0 0
        %2462 = vmatprep.subr.bf16.mxu0 0
        %2463 = vmatpush1.bf16.msra.mxu0 0
        %2464 = vmatprep.mubr.bf16.mxu0 0
        %2465 = vmatmul.mubr.bf16.gmra.mrb[0].mxu0 %v2415
        %v2466 = vpop.f32.mrb[0].mxu0
        %v2467 = vadd.f32 0.0, %v2466
        %v2468 = vpop.f32.mrb[0].mxu0
        %v2469 = vadd.f32 0.0, %v2468
        %v2470 = vpop.f32.mrb[0].mxu0
        %v2471 = vadd.f32 0.0, %v2470
        %v2472 = vpop.f32.mrb[0].mxu0
        %v2473 = vadd.f32 0.0, %v2472
        %2474 = vmatprep.mubr.bf16.mxu0 0
        %2475 = vmatmul.mubr.bf16.gmra.mrb[0].mxu0 %v2418
        %v2476 = vpop.f32.mrb[0].mxu0
        %v2477 = vadd.f32 0.0, %v2476
        %v2478 = vpop.f32.mrb[0].mxu0
        %v2479 = vadd.f32 0.0, %v2478
        %v2480 = vpop.f32.mrb[0].mxu0
        %v2481 = vadd.f32 0.0, %v2480
        %v2482 = vpop.f32.mrb[0].mxu0
        %v2483 = vadd.f32 0.0, %v2482
        %2484 = vmatprep.mubr.bf16.mxu0 0
        %2485 = vmatmul.mubr.bf16.gmra.mrb[0].mxu0 %v2421
        %v2486 = vpop.f32.mrb[0].mxu0
        %v2487 = vadd.f32 0.0, %v2486
        %v2488 = vpop.f32.mrb[0].mxu0
        %v2489 = vadd.f32 0.0, %v2488
        %v2490 = vpop.f32.mrb[0].mxu0
        %v2491 = vadd.f32 0.0, %v2490
        %v2492 = vpop.f32.mrb[0].mxu0
        %v2493 = vadd.f32 0.0, %v2492
        %2494 = vmatprep.mubr.bf16.mxu0 0
        %2495 = vmatmul.mubr.bf16.gmra.mrb[0].mxu0 %v2424
        %v2496 = vpop.f32.mrb[0].mxu0
        %v2497 = vadd.f32 0.0, %v2496
        %v2498 = vpop.f32.mrb[0].mxu0
        %v2499 = vadd.f32 0.0, %v2498
        %v2500 = vpop.f32.mrb[0].mxu0
        %v2501 = vadd.f32 0.0, %v2500
        %v2502 = vpop.f32.mrb[0].mxu0
        %v2503 = vadd.f32 0.0, %v2502
        %2504 = vmatprep.mubr.bf16.mxu0 0
        %2505 = vmatmul.mubr.bf16.gmra.mrb[0].mxu0 %v2427
        %v2506 = vpop.f32.mrb[0].mxu0
        %v2507 = vadd.f32 0.0, %v2506
        %v2508 = vpop.f32.mrb[0].mxu0
        %v2509 = vadd.f32 0.0, %v2508
        %v2510 = vpop.f32.mrb[0].mxu0
        %v2511 = vadd.f32 0.0, %v2510
        %v2512 = vpop.f32.mrb[0].mxu0
        %v2513 = vadd.f32 0.0, %v2512
        %2514 = vmatprep.mubr.bf16.mxu0 0
        %2515 = vmatmul.mubr.bf16.gmra.mrb[0].mxu0 %v2430
        %v2516 = vpop.f32.mrb[0].mxu0
        %v2517 = vadd.f32 0.0, %v2516
        %v2518 = vpop.f32.mrb[0].mxu0
        %v2519 = vadd.f32 0.0, %v2518
        %v2520 = vpop.f32.mrb[0].mxu0
        %v2521 = vadd.f32 0.0, %v2520
        %v2522 = vpop.f32.mrb[0].mxu0
        %v2523 = vadd.f32 0.0, %v2522
        %2524 = vdwg.mxu0
        %2525 = vmatprep.subr.bf16.mxu0 %v2146
        %2526 = vmatpush1.bf16.msra.mxu0 %v2145
        %2527 = vmatprep.subr.bf16.mxu0 %v2183
        %2528 = vmatpush1.bf16.msra.mxu0 %v2180
        %2529 = vmatprep.subr.bf16.mxu0 0
        %2530 = vmatpush1.bf16.msra.mxu0 0
        %2531 = vmatprep.subr.bf16.mxu0 0
        %2532 = vmatpush1.bf16.msra.mxu0 0
        %2533 = vmatprep.subr.bf16.mxu0 0
        %2534 = vmatpush1.bf16.msra.mxu0 0
        %2535 = vmatprep.subr.bf16.mxu0 0
        %2536 = vmatpush1.bf16.msra.mxu0 0
        %2537 = vmatprep.subr.bf16.mxu0 0
        %2538 = vmatpush1.bf16.msra.mxu0 0
        %2539 = vmatprep.subr.bf16.mxu0 0
        %2540 = vmatpush1.bf16.msra.mxu0 0
        %2541 = vmatprep.subr.bf16.mxu0 0
        %2542 = vmatpush1.bf16.msra.mxu0 0
        %2543 = vmatprep.subr.bf16.mxu0 0
        %2544 = vmatpush1.bf16.msra.mxu0 0
        %2545 = vmatprep.subr.bf16.mxu0 0
        %2546 = vmatpush1.bf16.msra.mxu0 0
        %2547 = vmatprep.subr.bf16.mxu0 0
        %2548 = vmatpush1.bf16.msra.mxu0 0
        %2549 = vmatprep.subr.bf16.mxu0 0
        %2550 = vmatpush1.bf16.msra.mxu0 0
        %2551 = vmatprep.subr.bf16.mxu0 0
        %2552 = vmatpush1.bf16.msra.mxu0 0
        %2553 = vmatprep.subr.bf16.mxu0 0
        %2554 = vmatpush1.bf16.msra.mxu0 0
        %2555 = vmatprep.subr.bf16.mxu0 0
        %2556 = vmatpush1.bf16.msra.mxu0 0
        %2557 = vmatprep.mubr.bf16.mxu0 0
        %2558 = vmatmul.mubr.bf16.gmra.mrb[0].mxu0 %v2415
        %v2559 = vpop.f32.mrb[0].mxu0
        %v2560 = vadd.f32 0.0, %v2559
        %v2561 = vpop.f32.mrb[0].mxu0
        %v2562 = vadd.f32 0.0, %v2561
        %v2563 = vpop.f32.mrb[0].mxu0
        %v2564 = vadd.f32 0.0, %v2563
        %v2565 = vpop.f32.mrb[0].mxu0
        %v2566 = vadd.f32 0.0, %v2565
        %2567 = vmatprep.mubr.bf16.mxu0 0
        %2568 = vmatmul.mubr.bf16.gmra.mrb[0].mxu0 %v2418
        %v2569 = vpop.f32.mrb[0].mxu0
        %v2570 = vadd.f32 0.0, %v2569
        %v2571 = vpop.f32.mrb[0].mxu0
        %v2572 = vadd.f32 0.0, %v2571
        %v2573 = vpop.f32.mrb[0].mxu0
        %v2574 = vadd.f32 0.0, %v2573
        %v2575 = vpop.f32.mrb[0].mxu0
        %v2576 = vadd.f32 0.0, %v2575
        %2577 = vmatprep.mubr.bf16.mxu0 0
        %2578 = vmatmul.mubr.bf16.gmra.mrb[0].mxu0 %v2421
        %v2579 = vpop.f32.mrb[0].mxu0
        %v2580 = vadd.f32 0.0, %v2579
        %v2581 = vpop.f32.mrb[0].mxu0
        %v2582 = vadd.f32 0.0, %v2581
        %v2583 = vpop.f32.mrb[0].mxu0
        %v2584 = vadd.f32 0.0, %v2583
        %v2585 = vpop.f32.mrb[0].mxu0
        %v2586 = vadd.f32 0.0, %v2585
        %2587 = vmatprep.mubr.bf16.mxu0 0
        %2588 = vmatmul.mubr.bf16.gmra.mrb[0].mxu0 %v2424
        %v2589 = vpop.f32.mrb[0].mxu0
        %v2590 = vadd.f32 0.0, %v2589
        %v2591 = vpop.f32.mrb[0].mxu0
        %v2592 = vadd.f32 0.0, %v2591
        %v2593 = vpop.f32.mrb[0].mxu0
        %v2594 = vadd.f32 0.0, %v2593
        %v2595 = vpop.f32.mrb[0].mxu0
        %v2596 = vadd.f32 0.0, %v2595
        %2597 = vmatprep.mubr.bf16.mxu0 0
        %2598 = vmatmul.mubr.bf16.gmra.mrb[0].mxu0 %v2427
        %v2599 = vpop.f32.mrb[0].mxu0
        %v2600 = vadd.f32 0.0, %v2599
        %v2601 = vpop.f32.mrb[0].mxu0
        %v2602 = vadd.f32 0.0, %v2601
        %v2603 = vpop.f32.mrb[0].mxu0
        %v2604 = vadd.f32 0.0, %v2603
        %v2605 = vpop.f32.mrb[0].mxu0
        %v2606 = vadd.f32 0.0, %v2605
        %2607 = vmatprep.mubr.bf16.mxu0 0
        %2608 = vmatmul.mubr.bf16.gmra.mrb[0].mxu0 %v2430
        %v2609 = vpop.f32.mrb[0].mxu0
        %v2610 = vadd.f32 0.0, %v2609
        %v2611 = vpop.f32.mrb[0].mxu0
        %v2612 = vadd.f32 0.0, %v2611
        %v2613 = vpop.f32.mrb[0].mxu0
        %v2614 = vadd.f32 0.0, %v2613
        %v2615 = vpop.f32.mrb[0].mxu0
        %v2616 = vadd.f32 0.0, %v2615
        %2617 = vdwg.mxu0
        %v2618 = vld [vmem:[#allocation2] sm:$0xff]
        %v2619 = vld [vmem:[#allocation2 + $0x8] sm:$0xff]
        %v2620 = vld [vmem:[#allocation2 + $0x10] sm:$0xff]
        %v2621 = vld [vmem:[#allocation2 + $0x18] sm:$0xff]
        %v2622 = vld [vmem:[#allocation2 + $0x20] sm:$0xff]
        %v2623 = vld [vmem:[#allocation2 + $0x28] sm:$0xff]
        %v2624 = vld [vmem:[#allocation2 + $0x30] sm:$0xff]
        %v2625 = vld [vmem:[#allocation2 + $0x38] sm:$0xff]
        %v2626 = vld [vmem:[#allocation2 + $0x40] sm:$0xff]
        %v2627 = vld [vmem:[#allocation2 + $0x48] sm:$0xff]
        %v2628 = vld [vmem:[#allocation2 + $0x50] sm:$0xff]
        %v2629 = vld [vmem:[#allocation2 + $0x58] sm:$0xff]
        %v2630 = vld [vmem:[#allocation2 + $0x60] sm:$0xff]
        %v2631 = vld [vmem:[#allocation2 + $0x68] sm:$0xff]
        %v2632 = vld [vmem:[#allocation2 + $0x70] sm:$0xff]
        %v2633 = vld [vmem:[#allocation2 + $0x78] sm:$0xff]
        %v2634 = vld [vmem:[#allocation2 + $0x80] sm:$0xff]
        %v2635 = vld [vmem:[#allocation2 + $0x88] sm:$0xff]
        %v2636 = vld [vmem:[#allocation2 + $0x90] sm:$0xff]
        %v2637 = vld [vmem:[#allocation2 + $0x98] sm:$0xff]
        %v2638 = vld [vmem:[#allocation2 + $0xa0] sm:$0xff]
        %v2639 = vld [vmem:[#allocation2 + $0xa8] sm:$0xff]
        %v2640 = vld [vmem:[#allocation2 + $0xb0] sm:$0xff]
        %v2641 = vld [vmem:[#allocation2 + $0xb8] sm:$0xff]
        %v2642 = vld [vmem:[#allocation2 + $0xc0] sm:$0xff]
        %v2643 = vld [vmem:[#allocation2 + $0xc8] sm:$0xff]
        %v2644 = vld [vmem:[#allocation2 + $0xd0] sm:$0xff]
        %v2645 = vld [vmem:[#allocation2 + $0xd8] sm:$0xff]
        %v2646 = vld [vmem:[#allocation2 + $0xe0] sm:$0xff]
        %v2647 = vld [vmem:[#allocation2 + $0xe8] sm:$0xff]
        %v2648 = vld [vmem:[#allocation2 + $0xf0] sm:$0xff]
        %v2649 = vld [vmem:[#allocation2 + $0xf8] sm:$0xff]
        %v2650 = vld [vmem:[#allocation2 + $0x100] sm:$0xff]
        %v2651 = vld [vmem:[#allocation2 + $0x108] sm:$0xff]
        %v2652 = vld [vmem:[#allocation2 + $0x110] sm:$0xff]
        %v2653 = vld [vmem:[#allocation2 + $0x118] sm:$0xff]
        %v2654 = vld [vmem:[#allocation2 + $0x120] sm:$0xff]
        %v2655 = vld [vmem:[#allocation2 + $0x128] sm:$0xff]
        %v2656 = vld [vmem:[#allocation2 + $0x130] sm:$0xff]
        %v2657 = vld [vmem:[#allocation2 + $0x138] sm:$0xff]
        %v2658 = vld [vmem:[#allocation2 + $0x140] sm:$0xff]
        %v2659 = vld [vmem:[#allocation2 + $0x148] sm:$0xff]
        %v2660 = vld [vmem:[#allocation2 + $0x150] sm:$0xff]
        %v2661 = vld [vmem:[#allocation2 + $0x158] sm:$0xff]
        %v2662 = vld [vmem:[#allocation2 + $0x160] sm:$0xff]
        %v2663 = vld [vmem:[#allocation2 + $0x168] sm:$0xff]
        %v2664 = vld [vmem:[#allocation2 + $0x170] sm:$0xff]
        %v2665 = vld [vmem:[#allocation2 + $0x178] sm:$0xff]
        %v2666 = vadd.f32 %v2618, %v2220
        %v2667 = vadd.f32 %v2619, %v2222
        %v2668 = vadd.f32 %v2620, %v2313
        %v2669 = vadd.f32 %v2621, %v2315
        %v2670 = vadd.f32 %v2622, %v2224
        %v2671 = vadd.f32 %v2623, %v2226
        %v2672 = vadd.f32 %v2624, %v2317
        %v2673 = vadd.f32 %v2625, %v2319
        %v2674 = vadd.f32 %v2626, %v2230
        %v2675 = vadd.f32 %v2627, %v2232
        %v2676 = vadd.f32 %v2628, %v2323
        %v2677 = vadd.f32 %v2629, %v2325
        %v2678 = vadd.f32 %v2630, %v2234
        %v2679 = vadd.f32 %v2631, %v2236
        %v2680 = vadd.f32 %v2632, %v2327
        %v2681 = vadd.f32 %v2633, %v2329
        %v2682 = vadd.f32 %v2634, %v2240
        %v2683 = vadd.f32 %v2635, %v2242
        %v2684 = vadd.f32 %v2636, %v2333
        %v2685 = vadd.f32 %v2637, %v2335
        %v2686 = vadd.f32 %v2638, %v2244
        %v2687 = vadd.f32 %v2639, %v2246
        %v2688 = vadd.f32 %v2640, %v2337
        %v2689 = vadd.f32 %v2641, %v2339
        %v2690 = vadd.f32 %v2642, %v2250
        %v2691 = vadd.f32 %v2643, %v2252
        %v2692 = vadd.f32 %v2644, %v2343
        %v2693 = vadd.f32 %v2645, %v2345
        %v2694 = vadd.f32 %v2646, %v2254
        %v2695 = vadd.f32 %v2647, %v2256
        %v2696 = vadd.f32 %v2648, %v2347
        %v2697 = vadd.f32 %v2649, %v2349
        %v2698 = vadd.f32 %v2650, %v2260
        %v2699 = vadd.f32 %v2651, %v2262
        %v2700 = vadd.f32 %v2652, %v2353
        %v2701 = vadd.f32 %v2653, %v2355
        %v2702 = vadd.f32 %v2654, %v2264
        %v2703 = vadd.f32 %v2655, %v2266
        %v2704 = vadd.f32 %v2656, %v2357
        %v2705 = vadd.f32 %v2657, %v2359
        %v2706 = vadd.f32 %v2658, %v2270
        %v2707 = vadd.f32 %v2659, %v2272
        %v2708 = vadd.f32 %v2660, %v2363
        %v2709 = vadd.f32 %v2661, %v2365
        %v2710 = vadd.f32 %v2662, %v2274
        %v2711 = vadd.f32 %v2663, %v2276
        %v2712 = vadd.f32 %v2664, %v2367
        %v2713 = vadd.f32 %v2665, %v2369
        %2714 = vst [vmem:[#allocation2] sm:$0xff] %v2666
        %2715 = vst [vmem:[#allocation2 + $0x8] sm:$0xff] %v2667
        %2716 = vst [vmem:[#allocation2 + $0x10] sm:$0xff] %v2668
        %2717 = vst [vmem:[#allocation2 + $0x18] sm:$0xff] %v2669
        %2718 = vst [vmem:[#allocation2 + $0x20] sm:$0xff] %v2670
        %2719 = vst [vmem:[#allocation2 + $0x28] sm:$0xff] %v2671
        %2720 = vst [vmem:[#allocation2 + $0x30] sm:$0xff] %v2672
        %2721 = vst [vmem:[#allocation2 + $0x38] sm:$0xff] %v2673
        %2722 = vst [vmem:[#allocation2 + $0x40] sm:$0xff] %v2674
        %2723 = vst [vmem:[#allocation2 + $0x48] sm:$0xff] %v2675
        %2724 = vst [vmem:[#allocation2 + $0x50] sm:$0xff] %v2676
        %2725 = vst [vmem:[#allocation2 + $0x58] sm:$0xff] %v2677
        %2726 = vst [vmem:[#allocation2 + $0x60] sm:$0xff] %v2678
        %2727 = vst [vmem:[#allocation2 + $0x68] sm:$0xff] %v2679
        %2728 = vst [vmem:[#allocation2 + $0x70] sm:$0xff] %v2680
        %2729 = vst [vmem:[#allocation2 + $0x78] sm:$0xff] %v2681
        %2730 = vst [vmem:[#allocation2 + $0x80] sm:$0xff] %v2682
        %2731 = vst [vmem:[#allocation2 + $0x88] sm:$0xff] %v2683
        %2732 = vst [vmem:[#allocation2 + $0x90] sm:$0xff] %v2684
        %2733 = vst [vmem:[#allocation2 + $0x98] sm:$0xff] %v2685
        %2734 = vst [vmem:[#allocation2 + $0xa0] sm:$0xff] %v2686
        %2735 = vst [vmem:[#allocation2 + $0xa8] sm:$0xff] %v2687
        %2736 = vst [vmem:[#allocation2 + $0xb0] sm:$0xff] %v2688
        %2737 = vst [vmem:[#allocation2 + $0xb8] sm:$0xff] %v2689
        %2738 = vst [vmem:[#allocation2 + $0xc0] sm:$0xff] %v2690
        %2739 = vst [vmem:[#allocation2 + $0xc8] sm:$0xff] %v2691
        %2740 = vst [vmem:[#allocation2 + $0xd0] sm:$0xff] %v2692
        %2741 = vst [vmem:[#allocation2 + $0xd8] sm:$0xff] %v2693
        %2742 = vst [vmem:[#allocation2 + $0xe0] sm:$0xff] %v2694
        %2743 = vst [vmem:[#allocation2 + $0xe8] sm:$0xff] %v2695
        %2744 = vst [vmem:[#allocation2 + $0xf0] sm:$0xff] %v2696
        %2745 = vst [vmem:[#allocation2 + $0xf8] sm:$0xff] %v2697
        %2746 = vst [vmem:[#allocation2 + $0x100] sm:$0xff] %v2698
        %2747 = vst [vmem:[#allocation2 + $0x108] sm:$0xff] %v2699
        %2748 = vst [vmem:[#allocation2 + $0x110] sm:$0xff] %v2700
        %2749 = vst [vmem:[#allocation2 + $0x118] sm:$0xff] %v2701
        %2750 = vst [vmem:[#allocation2 + $0x120] sm:$0xff] %v2702
        %2751 = vst [vmem:[#allocation2 + $0x128] sm:$0xff] %v2703
        %2752 = vst [vmem:[#allocation2 + $0x130] sm:$0xff] %v2704
        %2753 = vst [vmem:[#allocation2 + $0x138] sm:$0xff] %v2705
        %2754 = vst [vmem:[#allocation2 + $0x140] sm:$0xff] %v2706
        %2755 = vst [vmem:[#allocation2 + $0x148] sm:$0xff] %v2707
        %2756 = vst [vmem:[#allocation2 + $0x150] sm:$0xff] %v2708
        %2757 = vst [vmem:[#allocation2 + $0x158] sm:$0xff] %v2709
        %2758 = vst [vmem:[#allocation2 + $0x160] sm:$0xff] %v2710
        %2759 = vst [vmem:[#allocation2 + $0x168] sm:$0xff] %v2711
        %2760 = vst [vmem:[#allocation2 + $0x170] sm:$0xff] %v2712
        %2761 = vst [vmem:[#allocation2 + $0x178] sm:$0xff] %v2713
        %v2762 = vld [vmem:[#allocation3] sm:$0xff]
        %v2763 = vld [vmem:[#allocation3 + $0x8] sm:$0xff]
        %v2764 = vld [vmem:[#allocation3 + $0x10] sm:$0xff]
        %v2765 = vld [vmem:[#allocation3 + $0x18] sm:$0xff]
        %v2766 = vld [vmem:[#allocation3 + $0x20] sm:$0xff]
        %v2767 = vld [vmem:[#allocation3 + $0x28] sm:$0xff]
        %v2768 = vld [vmem:[#allocation3 + $0x30] sm:$0xff]
        %v2769 = vld [vmem:[#allocation3 + $0x38] sm:$0xff]
        %v2770 = vld [vmem:[#allocation3 + $0x40] sm:$0xff]
        %v2771 = vld [vmem:[#allocation3 + $0x48] sm:$0xff]
        %v2772 = vld [vmem:[#allocation3 + $0x50] sm:$0xff]
        %v2773 = vld [vmem:[#allocation3 + $0x58] sm:$0xff]
        %v2774 = vld [vmem:[#allocation3 + $0x60] sm:$0xff]
        %v2775 = vld [vmem:[#allocation3 + $0x68] sm:$0xff]
        %v2776 = vld [vmem:[#allocation3 + $0x70] sm:$0xff]
        %v2777 = vld [vmem:[#allocation3 + $0x78] sm:$0xff]
        %v2778 = vld [vmem:[#allocation3 + $0x80] sm:$0xff]
        %v2779 = vld [vmem:[#allocation3 + $0x88] sm:$0xff]
        %v2780 = vld [vmem:[#allocation3 + $0x90] sm:$0xff]
        %v2781 = vld [vmem:[#allocation3 + $0x98] sm:$0xff]
        %v2782 = vld [vmem:[#allocation3 + $0xa0] sm:$0xff]
        %v2783 = vld [vmem:[#allocation3 + $0xa8] sm:$0xff]
        %v2784 = vld [vmem:[#allocation3 + $0xb0] sm:$0xff]
        %v2785 = vld [vmem:[#allocation3 + $0xb8] sm:$0xff]
        %v2786 = vld [vmem:[#allocation3 + $0xc0] sm:$0xff]
        %v2787 = vld [vmem:[#allocation3 + $0xc8] sm:$0xff]
        %v2788 = vld [vmem:[#allocation3 + $0xd0] sm:$0xff]
        %v2789 = vld [vmem:[#allocation3 + $0xd8] sm:$0xff]
        %v2790 = vld [vmem:[#allocation3 + $0xe0] sm:$0xff]
        %v2791 = vld [vmem:[#allocation3 + $0xe8] sm:$0xff]
        %v2792 = vld [vmem:[#allocation3 + $0xf0] sm:$0xff]
        %v2793 = vld [vmem:[#allocation3 + $0xf8] sm:$0xff]
        %v2794 = vld [vmem:[#allocation3 + $0x100] sm:$0xff]
        %v2795 = vld [vmem:[#allocation3 + $0x108] sm:$0xff]
        %v2796 = vld [vmem:[#allocation3 + $0x110] sm:$0xff]
        %v2797 = vld [vmem:[#allocation3 + $0x118] sm:$0xff]
        %v2798 = vld [vmem:[#allocation3 + $0x120] sm:$0xff]
        %v2799 = vld [vmem:[#allocation3 + $0x128] sm:$0xff]
        %v2800 = vld [vmem:[#allocation3 + $0x130] sm:$0xff]
        %v2801 = vld [vmem:[#allocation3 + $0x138] sm:$0xff]
        %v2802 = vld [vmem:[#allocation3 + $0x140] sm:$0xff]
        %v2803 = vld [vmem:[#allocation3 + $0x148] sm:$0xff]
        %v2804 = vld [vmem:[#allocation3 + $0x150] sm:$0xff]
        %v2805 = vld [vmem:[#allocation3 + $0x158] sm:$0xff]
        %v2806 = vld [vmem:[#allocation3 + $0x160] sm:$0xff]
        %v2807 = vld [vmem:[#allocation3 + $0x168] sm:$0xff]
        %v2808 = vld [vmem:[#allocation3 + $0x170] sm:$0xff]
        %v2809 = vld [vmem:[#allocation3 + $0x178] sm:$0xff]
        %v2810 = vadd.f32 %v2762, %v2467
        %v2811 = vadd.f32 %v2763, %v2469
        %v2812 = vadd.f32 %v2764, %v2560
        %v2813 = vadd.f32 %v2765, %v2562
        %v2814 = vadd.f32 %v2766, %v2471
        %v2815 = vadd.f32 %v2767, %v2473
        %v2816 = vadd.f32 %v2768, %v2564
        %v2817 = vadd.f32 %v2769, %v2566
        %v2818 = vadd.f32 %v2770, %v2477
        %v2819 = vadd.f32 %v2771, %v2479
        %v2820 = vadd.f32 %v2772, %v2570
        %v2821 = vadd.f32 %v2773, %v2572
        %v2822 = vadd.f32 %v2774, %v2481
        %v2823 = vadd.f32 %v2775, %v2483
        %v2824 = vadd.f32 %v2776, %v2574
        %v2825 = vadd.f32 %v2777, %v2576
        %v2826 = vadd.f32 %v2778, %v2487
        %v2827 = vadd.f32 %v2779, %v2489
        %v2828 = vadd.f32 %v2780, %v2580
        %v2829 = vadd.f32 %v2781, %v2582
        %v2830 = vadd.f32 %v2782, %v2491
        %v2831 = vadd.f32 %v2783, %v2493
        %v2832 = vadd.f32 %v2784, %v2584
        %v2833 = vadd.f32 %v2785, %v2586
        %v2834 = vadd.f32 %v2786, %v2497
        %v2835 = vadd.f32 %v2787, %v2499
        %v2836 = vadd.f32 %v2788, %v2590
        %v2837 = vadd.f32 %v2789, %v2592
        %v2838 = vadd.f32 %v2790, %v2501
        %v2839 = vadd.f32 %v2791, %v2503
        %v2840 = vadd.f32 %v2792, %v2594
        %v2841 = vadd.f32 %v2793, %v2596
        %v2842 = vadd.f32 %v2794, %v2507
        %v2843 = vadd.f32 %v2795, %v2509
        %v2844 = vadd.f32 %v2796, %v2600
        %v2845 = vadd.f32 %v2797, %v2602
        %v2846 = vadd.f32 %v2798, %v2511
        %v2847 = vadd.f32 %v2799, %v2513
        %v2848 = vadd.f32 %v2800, %v2604
        %v2849 = vadd.f32 %v2801, %v2606
        %v2850 = vadd.f32 %v2802, %v2517
        %v2851 = vadd.f32 %v2803, %v2519
        %v2852 = vadd.f32 %v2804, %v2610
        %v2853 = vadd.f32 %v2805, %v2612
        %v2854 = vadd.f32 %v2806, %v2521
        %v2855 = vadd.f32 %v2807, %v2523
        %v2856 = vadd.f32 %v2808, %v2614
        %v2857 = vadd.f32 %v2809, %v2616
        %2858 = vst [vmem:[#allocation3] sm:$0xff] %v2810
        %2859 = vst [vmem:[#allocation3 + $0x8] sm:$0xff] %v2811
        %2860 = vst [vmem:[#allocation3 + $0x10] sm:$0xff] %v2812
        %2861 = vst [vmem:[#allocation3 + $0x18] sm:$0xff] %v2813
        %2862 = vst [vmem:[#allocation3 + $0x20] sm:$0xff] %v2814
        %2863 = vst [vmem:[#allocation3 + $0x28] sm:$0xff] %v2815
        %2864 = vst [vmem:[#allocation3 + $0x30] sm:$0xff] %v2816
        %2865 = vst [vmem:[#allocation3 + $0x38] sm:$0xff] %v2817
        %2866 = vst [vmem:[#allocation3 + $0x40] sm:$0xff] %v2818
        %2867 = vst [vmem:[#allocation3 + $0x48] sm:$0xff] %v2819
        %2868 = vst [vmem:[#allocation3 + $0x50] sm:$0xff] %v2820
        %2869 = vst [vmem:[#allocation3 + $0x58] sm:$0xff] %v2821
        %2870 = vst [vmem:[#allocation3 + $0x60] sm:$0xff] %v2822
        %2871 = vst [vmem:[#allocation3 + $0x68] sm:$0xff] %v2823
        %2872 = vst [vmem:[#allocation3 + $0x70] sm:$0xff] %v2824
        %2873 = vst [vmem:[#allocation3 + $0x78] sm:$0xff] %v2825
        %2874 = vst [vmem:[#allocation3 + $0x80] sm:$0xff] %v2826
        %2875 = vst [vmem:[#allocation3 + $0x88] sm:$0xff] %v2827
        %2876 = vst [vmem:[#allocation3 + $0x90] sm:$0xff] %v2828
        %2877 = vst [vmem:[#allocation3 + $0x98] sm:$0xff] %v2829
        %2878 = vst [vmem:[#allocation3 + $0xa0] sm:$0xff] %v2830
        %2879 = vst [vmem:[#allocation3 + $0xa8] sm:$0xff] %v2831
        %2880 = vst [vmem:[#allocation3 + $0xb0] sm:$0xff] %v2832
        %2881 = vst [vmem:[#allocation3 + $0xb8] sm:$0xff] %v2833
        %2882 = vst [vmem:[#allocation3 + $0xc0] sm:$0xff] %v2834
        %2883 = vst [vmem:[#allocation3 + $0xc8] sm:$0xff] %v2835
        %2884 = vst [vmem:[#allocation3 + $0xd0] sm:$0xff] %v2836
        %2885 = vst [vmem:[#allocation3 + $0xd8] sm:$0xff] %v2837
        %2886 = vst [vmem:[#allocation3 + $0xe0] sm:$0xff] %v2838
        %2887 = vst [vmem:[#allocation3 + $0xe8] sm:$0xff] %v2839
        %2888 = vst [vmem:[#allocation3 + $0xf0] sm:$0xff] %v2840
        %2889 = vst [vmem:[#allocation3 + $0xf8] sm:$0xff] %v2841
        %2890 = vst [vmem:[#allocation3 + $0x100] sm:$0xff] %v2842
        %2891 = vst [vmem:[#allocation3 + $0x108] sm:$0xff] %v2843
        %2892 = vst [vmem:[#allocation3 + $0x110] sm:$0xff] %v2844
        %2893 = vst [vmem:[#allocation3 + $0x118] sm:$0xff] %v2845
        %2894 = vst [vmem:[#allocation3 + $0x120] sm:$0xff] %v2846
        %2895 = vst [vmem:[#allocation3 + $0x128] sm:$0xff] %v2847
        %2896 = vst [vmem:[#allocation3 + $0x130] sm:$0xff] %v2848
        %2897 = vst [vmem:[#allocation3 + $0x138] sm:$0xff] %v2849
        %2898 = vst [vmem:[#allocation3 + $0x140] sm:$0xff] %v2850
        %2899 = vst [vmem:[#allocation3 + $0x148] sm:$0xff] %v2851
        %2900 = vst [vmem:[#allocation3 + $0x150] sm:$0xff] %v2852
        %2901 = vst [vmem:[#allocation3 + $0x158] sm:$0xff] %v2853
        %2902 = vst [vmem:[#allocation3 + $0x160] sm:$0xff] %v2854
        %2903 = vst [vmem:[#allocation3 + $0x168] sm:$0xff] %v2855
        %2904 = vst [vmem:[#allocation3 + $0x170] sm:$0xff] %v2856
        %2905 = vst [vmem:[#allocation3 + $0x178] sm:$0xff] %v2857
        %s2906 = scalar_lea.vmem %s1, 192
        %v2907 = vld [vmem:[%s2906] sm:$0xff]
        %v2908 = vld [vmem:[%s2906 + $0x8] sm:$0xff]
        %v2909 = vld [vmem:[%s2906 + $0x10] sm:$0xff]
        %v2910 = vld [vmem:[%s2906 + $0x18] sm:$0xff]
        %v2911 = vld [vmem:[%s2906 + $0x20] sm:$0xff]
        %v2912 = vld [vmem:[%s2906 + $0x28] sm:$0xff]
        %v2913 = vld [vmem:[%s2906 + $0x30] sm:$0x33]
        %v2914 = vld [vmem:[%s2906 + $0x38] sm:$0x33]
        %v2915 = vld [vmem:[%s2371] sm:$0xf]
        %v2916 = vld [vmem:[%s2371 + $0x4] sm:$0xf]
        %v2917 = vld [vmem:[%s2371 + $0x8] sm:$0xf]
        %v2918 = vld [vmem:[%s2371 + $0xc] sm:$0xf]
        %v2919 = vld [vmem:[%s2371 + $0x10] sm:$0xf]
        %v2920 = vld [vmem:[%s2371 + $0x14] sm:$0xf]
        %v2921 = vld [vmem:[%s2371 + $0x18] sm:$0xf]
        %v2922 = vld [vmem:[%s2371 + $0x1c] sm:$0xf]
        %v2923 = vld [vmem:[%s2371 + $0x20] sm:$0xf]
        %v2924 = vld [vmem:[%s2371 + $0x24] sm:$0xf]
        %v2925 = vld [vmem:[%s2371 + $0x28] sm:$0xf]
        %v2926 = vld [vmem:[%s2371 + $0x2c] sm:$0xf]
        %v2939 = vunpack.c.l.b16 %v2915
        %v2940 = vunpack.c.l.b16 %v2916
        %v2941 = vunpack.c.l.b16 %v2917
        %v2942 = vunpack.c.l.b16 %v2918
        %v2943 = vunpack.c.l.b16 %v2919
        %v2944 = vunpack.c.l.b16 %v2920
        %v2945 = vunpack.c.l.b16 %v2921
        %v2946 = vunpack.c.l.b16 %v2922
        %v2947 = vunpack.c.l.b16 %v2923
        %v2948 = vunpack.c.l.b16 %v2924
        %v2949 = vunpack.c.l.b16 %v2925
        %v2950 = vunpack.c.l.b16 %v2926
        %v2951 = vpack.c.b16 %v2940, %v2939
        %v2952 = vpack.c.b16 %v2942, %v2941
        %v2953 = vpack.c.b16 %v2944, %v2943
        %v2954 = vpack.c.b16 %v2946, %v2945
        %v2955 = vpack.c.b16 %v2948, %v2947
        %v2956 = vpack.c.b16 %v2950, %v2949
        %v2965 = vunpack.c.l.b16 %v2907
        %v2966 = vunpack.c.h.b16 %v2907
        %v2967 = vunpack.c.l.b16 %v2908
        %v2968 = vunpack.c.h.b16 %v2908
        %v2969 = vunpack.c.l.b16 %v2909
        %v2970 = vunpack.c.h.b16 %v2909
        %v2971 = vunpack.c.l.b16 %v2910
        %v2972 = vunpack.c.h.b16 %v2910
        %v2973 = vunpack.c.l.b16 %v2911
        %v2974 = vunpack.c.h.b16 %v2911
        %v2975 = vunpack.c.l.b16 %v2912
        %v2976 = vunpack.c.h.b16 %v2912
        %v2977 = vunpack.c.l.b16 %v2913
        %v2978 = vunpack.c.h.b16 %v2913
        %v2979 = vunpack.c.l.b16 %v2914
        %v2980 = vunpack.c.h.b16 %v2914
        %v2981 = vpack.c.b16 %v2969, %v2965
        %v2982 = vpack.c.b16 %v2970, %v2966
        %v2983 = vpack.c.b16 %v2971, %v2967
        %v2984 = vpack.c.b16 %v2972, %v2968
        %v2985 = vpack.c.b16 %v2977, %v2973
        %v2986 = vpack.c.b16 %v2978, %v2974
        %v2987 = vpack.c.b16 %v2979, %v2975
        %v2988 = vpack.c.b16 %v2980, %v2976
        %v2994 = vsel %vm669, %v2951, 0
        %v2997 = vsel %vm669, %v2952, 0
        %v3000 = vsel %vm669, %v2953, 0
        %v3003 = vsel %vm669, %v2954, 0
        %v3006 = vsel %vm669, %v2955, 0
        %v3009 = vsel %vm669, %v2956, 0
        %v3012 = vsel %vm688, %v2985, 0
        %v3015 = vsel %vm688, %v2986, 0
        %v3018 = vsel %vm688, %v2987, 0
        %v3021 = vsel %vm688, %v2988, 0
        %3023 = vmatprep.subr.bf16.mxu0 %v2982
        %3024 = vmatpush1.bf16.msra.mxu0 %v2981
        %3025 = vmatprep.subr.bf16.mxu0 %v3015
        %3026 = vmatpush1.bf16.msra.mxu0 %v3012
        %3027 = vmatprep.subr.bf16.mxu0 0
        %3028 = vmatpush1.bf16.msra.mxu0 0
        %3029 = vmatprep.subr.bf16.mxu0 0
        %3030 = vmatpush1.bf16.msra.mxu0 0
        %3031 = vmatprep.subr.bf16.mxu0 0
        %3032 = vmatpush1.bf16.msra.mxu0 0
        %3033 = vmatprep.subr.bf16.mxu0 0
        %3034 = vmatpush1.bf16.msra.mxu0 0
        %3035 = vmatprep.subr.bf16.mxu0 0
        %3036 = vmatpush1.bf16.msra.mxu0 0
        %3037 = vmatprep.subr.bf16.mxu0 0
        %3038 = vmatpush1.bf16.msra.mxu0 0
        %3039 = vmatprep.subr.bf16.mxu0 0
        %3040 = vmatpush1.bf16.msra.mxu0 0
        %3041 = vmatprep.subr.bf16.mxu0 0
        %3042 = vmatpush1.bf16.msra.mxu0 0
        %3043 = vmatprep.subr.bf16.mxu0 0
        %3044 = vmatpush1.bf16.msra.mxu0 0
        %3045 = vmatprep.subr.bf16.mxu0 0
        %3046 = vmatpush1.bf16.msra.mxu0 0
        %3047 = vmatprep.subr.bf16.mxu0 0
        %3048 = vmatpush1.bf16.msra.mxu0 0
        %3049 = vmatprep.subr.bf16.mxu0 0
        %3050 = vmatpush1.bf16.msra.mxu0 0
        %3051 = vmatprep.subr.bf16.mxu0 0
        %3052 = vmatpush1.bf16.msra.mxu0 0
        %3053 = vmatprep.subr.bf16.mxu0 0
        %3054 = vmatpush1.bf16.msra.mxu0 0
        %3055 = vmatprep.mubr.bf16.mxu0 0
        %3056 = vmatmul.mubr.bf16.gmra.mrb[0].mxu0 %v2994
        %v3057 = vpop.f32.mrb[0].mxu0
        %v3058 = vadd.f32 0.0, %v3057
        %v3059 = vpop.f32.mrb[0].mxu0
        %v3060 = vadd.f32 0.0, %v3059
        %v3061 = vpop.f32.mrb[0].mxu0
        %v3062 = vadd.f32 0.0, %v3061
        %v3063 = vpop.f32.mrb[0].mxu0
        %v3064 = vadd.f32 0.0, %v3063
        %3065 = vmatprep.mubr.bf16.mxu0 0
        %3066 = vmatmul.mubr.bf16.gmra.mrb[0].mxu0 %v2997
        %v3067 = vpop.f32.mrb[0].mxu0
        %v3068 = vadd.f32 0.0, %v3067
        %v3069 = vpop.f32.mrb[0].mxu0
        %v3070 = vadd.f32 0.0, %v3069
        %v3071 = vpop.f32.mrb[0].mxu0
        %v3072 = vadd.f32 0.0, %v3071
        %v3073 = vpop.f32.mrb[0].mxu0
        %v3074 = vadd.f32 0.0, %v3073
        %3075 = vmatprep.mubr.bf16.mxu0 0
        %3076 = vmatmul.mubr.bf16.gmra.mrb[0].mxu0 %v3000
        %v3077 = vpop.f32.mrb[0].mxu0
        %v3078 = vadd.f32 0.0, %v3077
        %v3079 = vpop.f32.mrb[0].mxu0
        %v3080 = vadd.f32 0.0, %v3079
        %v3081 = vpop.f32.mrb[0].mxu0
        %v3082 = vadd.f32 0.0, %v3081
        %v3083 = vpop.f32.mrb[0].mxu0
        %v3084 = vadd.f32 0.0, %v3083
        %3085 = vmatprep.mubr.bf16.mxu0 0
        %3086 = vmatmul.mubr.bf16.gmra.mrb[0].mxu0 %v3003
        %v3087 = vpop.f32.mrb[0].mxu0
        %v3088 = vadd.f32 0.0, %v3087
        %v3089 = vpop.f32.mrb[0].mxu0
        %v3090 = vadd.f32 0.0, %v3089
        %v3091 = vpop.f32.mrb[0].mxu0
        %v3092 = vadd.f32 0.0, %v3091
        %v3093 = vpop.f32.mrb[0].mxu0
        %v3094 = vadd.f32 0.0, %v3093
        %3095 = vmatprep.mubr.bf16.mxu0 0
        %3096 = vmatmul.mubr.bf16.gmra.mrb[0].mxu0 %v3006
        %v3097 = vpop.f32.mrb[0].mxu0
        %v3098 = vadd.f32 0.0, %v3097
        %v3099 = vpop.f32.mrb[0].mxu0
        %v3100 = vadd.f32 0.0, %v3099
        %v3101 = vpop.f32.mrb[0].mxu0
        %v3102 = vadd.f32 0.0, %v3101
        %v3103 = vpop.f32.mrb[0].mxu0
        %v3104 = vadd.f32 0.0, %v3103
        %3105 = vmatprep.mubr.bf16.mxu0 0
        %3106 = vmatmul.mubr.bf16.gmra.mrb[0].mxu0 %v3009
        %v3107 = vpop.f32.mrb[0].mxu0
        %v3108 = vadd.f32 0.0, %v3107
        %v3109 = vpop.f32.mrb[0].mxu0
        %v3110 = vadd.f32 0.0, %v3109
        %v3111 = vpop.f32.mrb[0].mxu0
        %v3112 = vadd.f32 0.0, %v3111
        %v3113 = vpop.f32.mrb[0].mxu0
        %v3114 = vadd.f32 0.0, %v3113
        %3115 = vdwg.mxu0
        %3116 = vmatprep.subr.bf16.mxu0 %v2984
        %3117 = vmatpush1.bf16.msra.mxu0 %v2983
        %3118 = vmatprep.subr.bf16.mxu0 %v3021
        %3119 = vmatpush1.bf16.msra.mxu0 %v3018
        %3120 = vmatprep.subr.bf16.mxu0 0
        %3121 = vmatpush1.bf16.msra.mxu0 0
        %3122 = vmatprep.subr.bf16.mxu0 0
        %3123 = vmatpush1.bf16.msra.mxu0 0
        %3124 = vmatprep.subr.bf16.mxu0 0
        %3125 = vmatpush1.bf16.msra.mxu0 0
        %3126 = vmatprep.subr.bf16.mxu0 0
        %3127 = vmatpush1.bf16.msra.mxu0 0
        %3128 = vmatprep.subr.bf16.mxu0 0
        %3129 = vmatpush1.bf16.msra.mxu0 0
        %3130 = vmatprep.subr.bf16.mxu0 0
        %3131 = vmatpush1.bf16.msra.mxu0 0
        %3132 = vmatprep.subr.bf16.mxu0 0
        %3133 = vmatpush1.bf16.msra.mxu0 0
        %3134 = vmatprep.subr.bf16.mxu0 0
        %3135 = vmatpush1.bf16.msra.mxu0 0
        %3136 = vmatprep.subr.bf16.mxu0 0
        %3137 = vmatpush1.bf16.msra.mxu0 0
        %3138 = vmatprep.subr.bf16.mxu0 0
        %3139 = vmatpush1.bf16.msra.mxu0 0
        %3140 = vmatprep.subr.bf16.mxu0 0
        %3141 = vmatpush1.bf16.msra.mxu0 0
        %3142 = vmatprep.subr.bf16.mxu0 0
        %3143 = vmatpush1.bf16.msra.mxu0 0
        %3144 = vmatprep.subr.bf16.mxu0 0
        %3145 = vmatpush1.bf16.msra.mxu0 0
        %3146 = vmatprep.subr.bf16.mxu0 0
        %3147 = vmatpush1.bf16.msra.mxu0 0
        %3148 = vmatprep.mubr.bf16.mxu0 0
        %3149 = vmatmul.mubr.bf16.gmra.mrb[0].mxu0 %v2994
        %v3150 = vpop.f32.mrb[0].mxu0
        %v3151 = vadd.f32 0.0, %v3150
        %v3152 = vpop.f32.mrb[0].mxu0
        %v3153 = vadd.f32 0.0, %v3152
        %v3154 = vpop.f32.mrb[0].mxu0
        %v3155 = vadd.f32 0.0, %v3154
        %v3156 = vpop.f32.mrb[0].mxu0
        %v3157 = vadd.f32 0.0, %v3156
        %3158 = vmatprep.mubr.bf16.mxu0 0
        %3159 = vmatmul.mubr.bf16.gmra.mrb[0].mxu0 %v2997
        %v3160 = vpop.f32.mrb[0].mxu0
        %v3161 = vadd.f32 0.0, %v3160
        %v3162 = vpop.f32.mrb[0].mxu0
        %v3163 = vadd.f32 0.0, %v3162
        %v3164 = vpop.f32.mrb[0].mxu0
        %v3165 = vadd.f32 0.0, %v3164
        %v3166 = vpop.f32.mrb[0].mxu0
        %v3167 = vadd.f32 0.0, %v3166
        %3168 = vmatprep.mubr.bf16.mxu0 0
        %3169 = vmatmul.mubr.bf16.gmra.mrb[0].mxu0 %v3000
        %v3170 = vpop.f32.mrb[0].mxu0
        %v3171 = vadd.f32 0.0, %v3170
        %v3172 = vpop.f32.mrb[0].mxu0
        %v3173 = vadd.f32 0.0, %v3172
        %v3174 = vpop.f32.mrb[0].mxu0
        %v3175 = vadd.f32 0.0, %v3174
        %v3176 = vpop.f32.mrb[0].mxu0
        %v3177 = vadd.f32 0.0, %v3176
        %3178 = vmatprep.mubr.bf16.mxu0 0
        %3179 = vmatmul.mubr.bf16.gmra.mrb[0].mxu0 %v3003
        %v3180 = vpop.f32.mrb[0].mxu0
        %v3181 = vadd.f32 0.0, %v3180
        %v3182 = vpop.f32.mrb[0].mxu0
        %v3183 = vadd.f32 0.0, %v3182
        %v3184 = vpop.f32.mrb[0].mxu0
        %v3185 = vadd.f32 0.0, %v3184
        %v3186 = vpop.f32.mrb[0].mxu0
        %v3187 = vadd.f32 0.0, %v3186
        %3188 = vmatprep.mubr.bf16.mxu0 0
        %3189 = vmatmul.mubr.bf16.gmra.mrb[0].mxu0 %v3006
        %v3190 = vpop.f32.mrb[0].mxu0
        %v3191 = vadd.f32 0.0, %v3190
        %v3192 = vpop.f32.mrb[0].mxu0
        %v3193 = vadd.f32 0.0, %v3192
        %v3194 = vpop.f32.mrb[0].mxu0
        %v3195 = vadd.f32 0.0, %v3194
        %v3196 = vpop.f32.mrb[0].mxu0
        %v3197 = vadd.f32 0.0, %v3196
        %3198 = vmatprep.mubr.bf16.mxu0 0
        %3199 = vmatmul.mubr.bf16.gmra.mrb[0].mxu0 %v3009
        %v3200 = vpop.f32.mrb[0].mxu0
        %v3201 = vadd.f32 0.0, %v3200
        %v3202 = vpop.f32.mrb[0].mxu0
        %v3203 = vadd.f32 0.0, %v3202
        %v3204 = vpop.f32.mrb[0].mxu0
        %v3205 = vadd.f32 0.0, %v3204
        %v3206 = vpop.f32.mrb[0].mxu0
        %v3207 = vadd.f32 0.0, %v3206
        %3208 = vdwg.mxu0
        %s3209 = scalar_lea.vmem %s546, 192 [#allocation6]
        %v3210 = vld [vmem:[%s3209] sm:$0xf]
        %v3211 = vld [vmem:[%s3209 + $0x4] sm:$0xf]
        %v3212 = vld [vmem:[%s3209 + $0x8] sm:$0xf]
        %v3213 = vld [vmem:[%s3209 + $0xc] sm:$0xf]
        %v3214 = vld [vmem:[%s3209 + $0x10] sm:$0xf]
        %v3215 = vld [vmem:[%s3209 + $0x14] sm:$0xf]
        %v3216 = vld [vmem:[%s3209 + $0x18] sm:$0xf]
        %v3217 = vld [vmem:[%s3209 + $0x1c] sm:$0xf]
        %v3218 = vld [vmem:[%s3209 + $0x20] sm:$0xf]
        %v3219 = vld [vmem:[%s3209 + $0x24] sm:$0xf]
        %v3220 = vld [vmem:[%s3209 + $0x28] sm:$0xf]
        %v3221 = vld [vmem:[%s3209 + $0x2c] sm:$0xf]
        %v3234 = vunpack.c.l.b16 %v3210
        %v3235 = vunpack.c.l.b16 %v3211
        %v3236 = vunpack.c.l.b16 %v3212
        %v3237 = vunpack.c.l.b16 %v3213
        %v3238 = vunpack.c.l.b16 %v3214
        %v3239 = vunpack.c.l.b16 %v3215
        %v3240 = vunpack.c.l.b16 %v3216
        %v3241 = vunpack.c.l.b16 %v3217
        %v3242 = vunpack.c.l.b16 %v3218
        %v3243 = vunpack.c.l.b16 %v3219
        %v3244 = vunpack.c.l.b16 %v3220
        %v3245 = vunpack.c.l.b16 %v3221
        %v3246 = vpack.c.b16 %v3235, %v3234
        %v3247 = vpack.c.b16 %v3237, %v3236
        %v3248 = vpack.c.b16 %v3239, %v3238
        %v3249 = vpack.c.b16 %v3241, %v3240
        %v3250 = vpack.c.b16 %v3243, %v3242
        %v3251 = vpack.c.b16 %v3245, %v3244
        %v3253 = vsel %vm669, %v3246, 0
        %v3256 = vsel %vm669, %v3247, 0
        %v3259 = vsel %vm669, %v3248, 0
        %v3262 = vsel %vm669, %v3249, 0
        %v3265 = vsel %vm669, %v3250, 0
        %v3268 = vsel %vm669, %v3251, 0
        %3270 = vmatprep.subr.bf16.mxu0 %v2982
        %3271 = vmatpush1.bf16.msra.mxu0 %v2981
        %3272 = vmatprep.subr.bf16.mxu0 %v3015
        %3273 = vmatpush1.bf16.msra.mxu0 %v3012
        %3274 = vmatprep.subr.bf16.mxu0 0
        %3275 = vmatpush1.bf16.msra.mxu0 0
        %3276 = vmatprep.subr.bf16.mxu0 0
        %3277 = vmatpush1.bf16.msra.mxu0 0
        %3278 = vmatprep.subr.bf16.mxu0 0
        %3279 = vmatpush1.bf16.msra.mxu0 0
        %3280 = vmatprep.subr.bf16.mxu0 0
        %3281 = vmatpush1.bf16.msra.mxu0 0
        %3282 = vmatprep.subr.bf16.mxu0 0
        %3283 = vmatpush1.bf16.msra.mxu0 0
        %3284 = vmatprep.subr.bf16.mxu0 0
        %3285 = vmatpush1.bf16.msra.mxu0 0
        %3286 = vmatprep.subr.bf16.mxu0 0
        %3287 = vmatpush1.bf16.msra.mxu0 0
        %3288 = vmatprep.subr.bf16.mxu0 0
        %3289 = vmatpush1.bf16.msra.mxu0 0
        %3290 = vmatprep.subr.bf16.mxu0 0
        %3291 = vmatpush1.bf16.msra.mxu0 0
        %3292 = vmatprep.subr.bf16.mxu0 0
        %3293 = vmatpush1.bf16.msra.mxu0 0
        %3294 = vmatprep.subr.bf16.mxu0 0
        %3295 = vmatpush1.bf16.msra.mxu0 0
        %3296 = vmatprep.subr.bf16.mxu0 0
        %3297 = vmatpush1.bf16.msra.mxu0 0
        %3298 = vmatprep.subr.bf16.mxu0 0
        %3299 = vmatpush1.bf16.msra.mxu0 0
        %3300 = vmatprep.subr.bf16.mxu0 0
        %3301 = vmatpush1.bf16.msra.mxu0 0
        %3302 = vmatprep.mubr.bf16.mxu0 0
        %3303 = vmatmul.mubr.bf16.gmra.mrb[0].mxu0 %v3253
        %v3304 = vpop.f32.mrb[0].mxu0
        %v3305 = vadd.f32 0.0, %v3304
        %v3306 = vpop.f32.mrb[0].mxu0
        %v3307 = vadd.f32 0.0, %v3306
        %v3308 = vpop.f32.mrb[0].mxu0
        %v3309 = vadd.f32 0.0, %v3308
        %v3310 = vpop.f32.mrb[0].mxu0
        %v3311 = vadd.f32 0.0, %v3310
        %3312 = vmatprep.mubr.bf16.mxu0 0
        %3313 = vmatmul.mubr.bf16.gmra.mrb[0].mxu0 %v3256
        %v3314 = vpop.f32.mrb[0].mxu0
        %v3315 = vadd.f32 0.0, %v3314
        %v3316 = vpop.f32.mrb[0].mxu0
        %v3317 = vadd.f32 0.0, %v3316
        %v3318 = vpop.f32.mrb[0].mxu0
        %v3319 = vadd.f32 0.0, %v3318
        %v3320 = vpop.f32.mrb[0].mxu0
        %v3321 = vadd.f32 0.0, %v3320
        %3322 = vmatprep.mubr.bf16.mxu0 0
        %3323 = vmatmul.mubr.bf16.gmra.mrb[0].mxu0 %v3259
        %v3324 = vpop.f32.mrb[0].mxu0
        %v3325 = vadd.f32 0.0, %v3324
        %v3326 = vpop.f32.mrb[0].mxu0
        %v3327 = vadd.f32 0.0, %v3326
        %v3328 = vpop.f32.mrb[0].mxu0
        %v3329 = vadd.f32 0.0, %v3328
        %v3330 = vpop.f32.mrb[0].mxu0
        %v3331 = vadd.f32 0.0, %v3330
        %3332 = vmatprep.mubr.bf16.mxu0 0
        %3333 = vmatmul.mubr.bf16.gmra.mrb[0].mxu0 %v3262
        %v3334 = vpop.f32.mrb[0].mxu0
        %v3335 = vadd.f32 0.0, %v3334
        %v3336 = vpop.f32.mrb[0].mxu0
        %v3337 = vadd.f32 0.0, %v3336
        %v3338 = vpop.f32.mrb[0].mxu0
        %v3339 = vadd.f32 0.0, %v3338
        %v3340 = vpop.f32.mrb[0].mxu0
        %v3341 = vadd.f32 0.0, %v3340
        %3342 = vmatprep.mubr.bf16.mxu0 0
        %3343 = vmatmul.mubr.bf16.gmra.mrb[0].mxu0 %v3265
        %v3344 = vpop.f32.mrb[0].mxu0
        %v3345 = vadd.f32 0.0, %v3344
        %v3346 = vpop.f32.mrb[0].mxu0
        %v3347 = vadd.f32 0.0, %v3346
        %v3348 = vpop.f32.mrb[0].mxu0
        %v3349 = vadd.f32 0.0, %v3348
        %v3350 = vpop.f32.mrb[0].mxu0
        %v3351 = vadd.f32 0.0, %v3350
        %3352 = vmatprep.mubr.bf16.mxu0 0
        %3353 = vmatmul.mubr.bf16.gmra.mrb[0].mxu0 %v3268
        %v3354 = vpop.f32.mrb[0].mxu0
        %v3355 = vadd.f32 0.0, %v3354
        %v3356 = vpop.f32.mrb[0].mxu0
        %v3357 = vadd.f32 0.0, %v3356
        %v3358 = vpop.f32.mrb[0].mxu0
        %v3359 = vadd.f32 0.0, %v3358
        %v3360 = vpop.f32.mrb[0].mxu0
        %v3361 = vadd.f32 0.0, %v3360
        %3362 = vdwg.mxu0
        %3363 = vmatprep.subr.bf16.mxu0 %v2984
        %3364 = vmatpush1.bf16.msra.mxu0 %v2983
        %3365 = vmatprep.subr.bf16.mxu0 %v3021
        %3366 = vmatpush1.bf16.msra.mxu0 %v3018
        %3367 = vmatprep.subr.bf16.mxu0 0
        %3368 = vmatpush1.bf16.msra.mxu0 0
        %3369 = vmatprep.subr.bf16.mxu0 0
        %3370 = vmatpush1.bf16.msra.mxu0 0
        %3371 = vmatprep.subr.bf16.mxu0 0
        %3372 = vmatpush1.bf16.msra.mxu0 0
        %3373 = vmatprep.subr.bf16.mxu0 0
        %3374 = vmatpush1.bf16.msra.mxu0 0
        %3375 = vmatprep.subr.bf16.mxu0 0
        %3376 = vmatpush1.bf16.msra.mxu0 0
        %3377 = vmatprep.subr.bf16.mxu0 0
        %3378 = vmatpush1.bf16.msra.mxu0 0
        %3379 = vmatprep.subr.bf16.mxu0 0
        %3380 = vmatpush1.bf16.msra.mxu0 0
        %3381 = vmatprep.subr.bf16.mxu0 0
        %3382 = vmatpush1.bf16.msra.mxu0 0
        %3383 = vmatprep.subr.bf16.mxu0 0
        %3384 = vmatpush1.bf16.msra.mxu0 0
        %3385 = vmatprep.subr.bf16.mxu0 0
        %3386 = vmatpush1.bf16.msra.mxu0 0
        %3387 = vmatprep.subr.bf16.mxu0 0
        %3388 = vmatpush1.bf16.msra.mxu0 0
        %3389 = vmatprep.subr.bf16.mxu0 0
        %3390 = vmatpush1.bf16.msra.mxu0 0
        %3391 = vmatprep.subr.bf16.mxu0 0
        %3392 = vmatpush1.bf16.msra.mxu0 0
        %3393 = vmatprep.subr.bf16.mxu0 0
        %3394 = vmatpush1.bf16.msra.mxu0 0
        %3395 = vmatprep.mubr.bf16.mxu0 0
        %3396 = vmatmul.mubr.bf16.gmra.mrb[0].mxu0 %v3253
        %v3397 = vpop.f32.mrb[0].mxu0
        %v3398 = vadd.f32 0.0, %v3397
        %v3399 = vpop.f32.mrb[0].mxu0
        %v3400 = vadd.f32 0.0, %v3399
        %v3401 = vpop.f32.mrb[0].mxu0
        %v3402 = vadd.f32 0.0, %v3401
        %v3403 = vpop.f32.mrb[0].mxu0
        %v3404 = vadd.f32 0.0, %v3403
        %3405 = vmatprep.mubr.bf16.mxu0 0
        %3406 = vmatmul.mubr.bf16.gmra.mrb[0].mxu0 %v3256
        %v3407 = vpop.f32.mrb[0].mxu0
        %v3408 = vadd.f32 0.0, %v3407
        %v3409 = vpop.f32.mrb[0].mxu0
        %v3410 = vadd.f32 0.0, %v3409
        %v3411 = vpop.f32.mrb[0].mxu0
        %v3412 = vadd.f32 0.0, %v3411
        %v3413 = vpop.f32.mrb[0].mxu0
        %v3414 = vadd.f32 0.0, %v3413
        %3415 = vmatprep.mubr.bf16.mxu0 0
        %3416 = vmatmul.mubr.bf16.gmra.mrb[0].mxu0 %v3259
        %v3417 = vpop.f32.mrb[0].mxu0
        %v3418 = vadd.f32 0.0, %v3417
        %v3419 = vpop.f32.mrb[0].mxu0
        %v3420 = vadd.f32 0.0, %v3419
        %v3421 = vpop.f32.mrb[0].mxu0
        %v3422 = vadd.f32 0.0, %v3421
        %v3423 = vpop.f32.mrb[0].mxu0
        %v3424 = vadd.f32 0.0, %v3423
        %3425 = vmatprep.mubr.bf16.mxu0 0
        %3426 = vmatmul.mubr.bf16.gmra.mrb[0].mxu0 %v3262
        %v3427 = vpop.f32.mrb[0].mxu0
        %v3428 = vadd.f32 0.0, %v3427
        %v3429 = vpop.f32.mrb[0].mxu0
        %v3430 = vadd.f32 0.0, %v3429
        %v3431 = vpop.f32.mrb[0].mxu0
        %v3432 = vadd.f32 0.0, %v3431
        %v3433 = vpop.f32.mrb[0].mxu0
        %v3434 = vadd.f32 0.0, %v3433
        %3435 = vmatprep.mubr.bf16.mxu0 0
        %3436 = vmatmul.mubr.bf16.gmra.mrb[0].mxu0 %v3265
        %v3437 = vpop.f32.mrb[0].mxu0
        %v3438 = vadd.f32 0.0, %v3437
        %v3439 = vpop.f32.mrb[0].mxu0
        %v3440 = vadd.f32 0.0, %v3439
        %v3441 = vpop.f32.mrb[0].mxu0
        %v3442 = vadd.f32 0.0, %v3441
        %v3443 = vpop.f32.mrb[0].mxu0
        %v3444 = vadd.f32 0.0, %v3443
        %3445 = vmatprep.mubr.bf16.mxu0 0
        %3446 = vmatmul.mubr.bf16.gmra.mrb[0].mxu0 %v3268
        %v3447 = vpop.f32.mrb[0].mxu0
        %v3448 = vadd.f32 0.0, %v3447
        %v3449 = vpop.f32.mrb[0].mxu0
        %v3450 = vadd.f32 0.0, %v3449
        %v3451 = vpop.f32.mrb[0].mxu0
        %v3452 = vadd.f32 0.0, %v3451
        %v3453 = vpop.f32.mrb[0].mxu0
        %v3454 = vadd.f32 0.0, %v3453
        %3455 = vdwg.mxu0
        %v3456 = vld [vmem:[#allocation2] sm:$0xff]
        %v3457 = vld [vmem:[#allocation2 + $0x8] sm:$0xff]
        %v3458 = vld [vmem:[#allocation2 + $0x10] sm:$0xff]
        %v3459 = vld [vmem:[#allocation2 + $0x18] sm:$0xff]
        %v3460 = vld [vmem:[#allocation2 + $0x20] sm:$0xff]
        %v3461 = vld [vmem:[#allocation2 + $0x28] sm:$0xff]
        %v3462 = vld [vmem:[#allocation2 + $0x30] sm:$0xff]
        %v3463 = vld [vmem:[#allocation2 + $0x38] sm:$0xff]
        %v3464 = vld [vmem:[#allocation2 + $0x40] sm:$0xff]
        %v3465 = vld [vmem:[#allocation2 + $0x48] sm:$0xff]
        %v3466 = vld [vmem:[#allocation2 + $0x50] sm:$0xff]
        %v3467 = vld [vmem:[#allocation2 + $0x58] sm:$0xff]
        %v3468 = vld [vmem:[#allocation2 + $0x60] sm:$0xff]
        %v3469 = vld [vmem:[#allocation2 + $0x68] sm:$0xff]
        %v3470 = vld [vmem:[#allocation2 + $0x70] sm:$0xff]
        %v3471 = vld [vmem:[#allocation2 + $0x78] sm:$0xff]
        %v3472 = vld [vmem:[#allocation2 + $0x80] sm:$0xff]
        %v3473 = vld [vmem:[#allocation2 + $0x88] sm:$0xff]
        %v3474 = vld [vmem:[#allocation2 + $0x90] sm:$0xff]
        %v3475 = vld [vmem:[#allocation2 + $0x98] sm:$0xff]
        %v3476 = vld [vmem:[#allocation2 + $0xa0] sm:$0xff]
        %v3477 = vld [vmem:[#allocation2 + $0xa8] sm:$0xff]
        %v3478 = vld [vmem:[#allocation2 + $0xb0] sm:$0xff]
        %v3479 = vld [vmem:[#allocation2 + $0xb8] sm:$0xff]
        %v3480 = vld [vmem:[#allocation2 + $0xc0] sm:$0xff]
        %v3481 = vld [vmem:[#allocation2 + $0xc8] sm:$0xff]
        %v3482 = vld [vmem:[#allocation2 + $0xd0] sm:$0xff]
        %v3483 = vld [vmem:[#allocation2 + $0xd8] sm:$0xff]
        %v3484 = vld [vmem:[#allocation2 + $0xe0] sm:$0xff]
        %v3485 = vld [vmem:[#allocation2 + $0xe8] sm:$0xff]
        %v3486 = vld [vmem:[#allocation2 + $0xf0] sm:$0xff]
        %v3487 = vld [vmem:[#allocation2 + $0xf8] sm:$0xff]
        %v3488 = vld [vmem:[#allocation2 + $0x100] sm:$0xff]
        %v3489 = vld [vmem:[#allocation2 + $0x108] sm:$0xff]
        %v3490 = vld [vmem:[#allocation2 + $0x110] sm:$0xff]
        %v3491 = vld [vmem:[#allocation2 + $0x118] sm:$0xff]
        %v3492 = vld [vmem:[#allocation2 + $0x120] sm:$0xff]
        %v3493 = vld [vmem:[#allocation2 + $0x128] sm:$0xff]
        %v3494 = vld [vmem:[#allocation2 + $0x130] sm:$0xff]
        %v3495 = vld [vmem:[#allocation2 + $0x138] sm:$0xff]
        %v3496 = vld [vmem:[#allocation2 + $0x140] sm:$0xff]
        %v3497 = vld [vmem:[#allocation2 + $0x148] sm:$0xff]
        %v3498 = vld [vmem:[#allocation2 + $0x150] sm:$0xff]
        %v3499 = vld [vmem:[#allocation2 + $0x158] sm:$0xff]
        %v3500 = vld [vmem:[#allocation2 + $0x160] sm:$0xff]
        %v3501 = vld [vmem:[#allocation2 + $0x168] sm:$0xff]
        %v3502 = vld [vmem:[#allocation2 + $0x170] sm:$0xff]
        %v3503 = vld [vmem:[#allocation2 + $0x178] sm:$0xff]
        %v3504 = vadd.f32 %v3456, %v3058
        %v3505 = vadd.f32 %v3457, %v3060
        %v3506 = vadd.f32 %v3458, %v3151
        %v3507 = vadd.f32 %v3459, %v3153
        %v3508 = vadd.f32 %v3460, %v3062
        %v3509 = vadd.f32 %v3461, %v3064
        %v3510 = vadd.f32 %v3462, %v3155
        %v3511 = vadd.f32 %v3463, %v3157
        %v3512 = vadd.f32 %v3464, %v3068
        %v3513 = vadd.f32 %v3465, %v3070
        %v3514 = vadd.f32 %v3466, %v3161
        %v3515 = vadd.f32 %v3467, %v3163
        %v3516 = vadd.f32 %v3468, %v3072
        %v3517 = vadd.f32 %v3469, %v3074
        %v3518 = vadd.f32 %v3470, %v3165
        %v3519 = vadd.f32 %v3471, %v3167
        %v3520 = vadd.f32 %v3472, %v3078
        %v3521 = vadd.f32 %v3473, %v3080
        %v3522 = vadd.f32 %v3474, %v3171
        %v3523 = vadd.f32 %v3475, %v3173
        %v3524 = vadd.f32 %v3476, %v3082
        %v3525 = vadd.f32 %v3477, %v3084
        %v3526 = vadd.f32 %v3478, %v3175
        %v3527 = vadd.f32 %v3479, %v3177
        %v3528 = vadd.f32 %v3480, %v3088
        %v3529 = vadd.f32 %v3481, %v3090
        %v3530 = vadd.f32 %v3482, %v3181
        %v3531 = vadd.f32 %v3483, %v3183
        %v3532 = vadd.f32 %v3484, %v3092
        %v3533 = vadd.f32 %v3485, %v3094
        %v3534 = vadd.f32 %v3486, %v3185
        %v3535 = vadd.f32 %v3487, %v3187
        %v3536 = vadd.f32 %v3488, %v3098
        %v3537 = vadd.f32 %v3489, %v3100
        %v3538 = vadd.f32 %v3490, %v3191
        %v3539 = vadd.f32 %v3491, %v3193
        %v3540 = vadd.f32 %v3492, %v3102
        %v3541 = vadd.f32 %v3493, %v3104
        %v3542 = vadd.f32 %v3494, %v3195
        %v3543 = vadd.f32 %v3495, %v3197
        %v3544 = vadd.f32 %v3496, %v3108
        %v3545 = vadd.f32 %v3497, %v3110
        %v3546 = vadd.f32 %v3498, %v3201
        %v3547 = vadd.f32 %v3499, %v3203
        %v3548 = vadd.f32 %v3500, %v3112
        %v3549 = vadd.f32 %v3501, %v3114
        %v3550 = vadd.f32 %v3502, %v3205
        %v3551 = vadd.f32 %v3503, %v3207
        %3552 = vst [vmem:[#allocation2] sm:$0xff] %v3504
        %3553 = vst [vmem:[#allocation2 + $0x8] sm:$0xff] %v3505
        %3554 = vst [vmem:[#allocation2 + $0x10] sm:$0xff] %v3506
        %3555 = vst [vmem:[#allocation2 + $0x18] sm:$0xff] %v3507
        %3556 = vst [vmem:[#allocation2 + $0x20] sm:$0xff] %v3508
        %3557 = vst [vmem:[#allocation2 + $0x28] sm:$0xff] %v3509
        %3558 = vst [vmem:[#allocation2 + $0x30] sm:$0xff] %v3510
        %3559 = vst [vmem:[#allocation2 + $0x38] sm:$0xff] %v3511
        %3560 = vst [vmem:[#allocation2 + $0x40] sm:$0xff] %v3512
        %3561 = vst [vmem:[#allocation2 + $0x48] sm:$0xff] %v3513
        %3562 = vst [vmem:[#allocation2 + $0x50] sm:$0xff] %v3514
        %3563 = vst [vmem:[#allocation2 + $0x58] sm:$0xff] %v3515
        %3564 = vst [vmem:[#allocation2 + $0x60] sm:$0xff] %v3516
        %3565 = vst [vmem:[#allocation2 + $0x68] sm:$0xff] %v3517
        %3566 = vst [vmem:[#allocation2 + $0x70] sm:$0xff] %v3518
        %3567 = vst [vmem:[#allocation2 + $0x78] sm:$0xff] %v3519
        %3568 = vst [vmem:[#allocation2 + $0x80] sm:$0xff] %v3520
        %3569 = vst [vmem:[#allocation2 + $0x88] sm:$0xff] %v3521
        %3570 = vst [vmem:[#allocation2 + $0x90] sm:$0xff] %v3522
        %3571 = vst [vmem:[#allocation2 + $0x98] sm:$0xff] %v3523
        %3572 = vst [vmem:[#allocation2 + $0xa0] sm:$0xff] %v3524
        %3573 = vst [vmem:[#allocation2 + $0xa8] sm:$0xff] %v3525
        %3574 = vst [vmem:[#allocation2 + $0xb0] sm:$0xff] %v3526
        %3575 = vst [vmem:[#allocation2 + $0xb8] sm:$0xff] %v3527
        %3576 = vst [vmem:[#allocation2 + $0xc0] sm:$0xff] %v3528
        %3577 = vst [vmem:[#allocation2 + $0xc8] sm:$0xff] %v3529
        %3578 = vst [vmem:[#allocation2 + $0xd0] sm:$0xff] %v3530
        %3579 = vst [vmem:[#allocation2 + $0xd8] sm:$0xff] %v3531
        %3580 = vst [vmem:[#allocation2 + $0xe0] sm:$0xff] %v3532
        %3581 = vst [vmem:[#allocation2 + $0xe8] sm:$0xff] %v3533
        %3582 = vst [vmem:[#allocation2 + $0xf0] sm:$0xff] %v3534
        %3583 = vst [vmem:[#allocation2 + $0xf8] sm:$0xff] %v3535
        %3584 = vst [vmem:[#allocation2 + $0x100] sm:$0xff] %v3536
        %3585 = vst [vmem:[#allocation2 + $0x108] sm:$0xff] %v3537
        %3586 = vst [vmem:[#allocation2 + $0x110] sm:$0xff] %v3538
        %3587 = vst [vmem:[#allocation2 + $0x118] sm:$0xff] %v3539
        %3588 = vst [vmem:[#allocation2 + $0x120] sm:$0xff] %v3540
        %3589 = vst [vmem:[#allocation2 + $0x128] sm:$0xff] %v3541
        %3590 = vst [vmem:[#allocation2 + $0x130] sm:$0xff] %v3542
        %3591 = vst [vmem:[#allocation2 + $0x138] sm:$0xff] %v3543
        %3592 = vst [vmem:[#allocation2 + $0x140] sm:$0xff] %v3544
        %3593 = vst [vmem:[#allocation2 + $0x148] sm:$0xff] %v3545
        %3594 = vst [vmem:[#allocation2 + $0x150] sm:$0xff] %v3546
        %3595 = vst [vmem:[#allocation2 + $0x158] sm:$0xff] %v3547
        %3596 = vst [vmem:[#allocation2 + $0x160] sm:$0xff] %v3548
        %3597 = vst [vmem:[#allocation2 + $0x168] sm:$0xff] %v3549
        %3598 = vst [vmem:[#allocation2 + $0x170] sm:$0xff] %v3550
        %3599 = vst [vmem:[#allocation2 + $0x178] sm:$0xff] %v3551
        %v3600 = vld [vmem:[#allocation3] sm:$0xff]
        %v3601 = vld [vmem:[#allocation3 + $0x8] sm:$0xff]
        %v3602 = vld [vmem:[#allocation3 + $0x10] sm:$0xff]
        %v3603 = vld [vmem:[#allocation3 + $0x18] sm:$0xff]
        %v3604 = vld [vmem:[#allocation3 + $0x20] sm:$0xff]
        %v3605 = vld [vmem:[#allocation3 + $0x28] sm:$0xff]
        %v3606 = vld [vmem:[#allocation3 + $0x30] sm:$0xff]
        %v3607 = vld [vmem:[#allocation3 + $0x38] sm:$0xff]
        %v3608 = vld [vmem:[#allocation3 + $0x40] sm:$0xff]
        %v3609 = vld [vmem:[#allocation3 + $0x48] sm:$0xff]
        %v3610 = vld [vmem:[#allocation3 + $0x50] sm:$0xff]
        %v3611 = vld [vmem:[#allocation3 + $0x58] sm:$0xff]
        %v3612 = vld [vmem:[#allocation3 + $0x60] sm:$0xff]
        %v3613 = vld [vmem:[#allocation3 + $0x68] sm:$0xff]
        %v3614 = vld [vmem:[#allocation3 + $0x70] sm:$0xff]
        %v3615 = vld [vmem:[#allocation3 + $0x78] sm:$0xff]
        %v3616 = vld [vmem:[#allocation3 + $0x80] sm:$0xff]
        %v3617 = vld [vmem:[#allocation3 + $0x88] sm:$0xff]
        %v3618 = vld [vmem:[#allocation3 + $0x90] sm:$0xff]
        %v3619 = vld [vmem:[#allocation3 + $0x98] sm:$0xff]
        %v3620 = vld [vmem:[#allocation3 + $0xa0] sm:$0xff]
        %v3621 = vld [vmem:[#allocation3 + $0xa8] sm:$0xff]
        %v3622 = vld [vmem:[#allocation3 + $0xb0] sm:$0xff]
        %v3623 = vld [vmem:[#allocation3 + $0xb8] sm:$0xff]
        %v3624 = vld [vmem:[#allocation3 + $0xc0] sm:$0xff]
        %v3625 = vld [vmem:[#allocation3 + $0xc8] sm:$0xff]
        %v3626 = vld [vmem:[#allocation3 + $0xd0] sm:$0xff]
        %v3627 = vld [vmem:[#allocation3 + $0xd8] sm:$0xff]
        %v3628 = vld [vmem:[#allocation3 + $0xe0] sm:$0xff]
        %v3629 = vld [vmem:[#allocation3 + $0xe8] sm:$0xff]
        %v3630 = vld [vmem:[#allocation3 + $0xf0] sm:$0xff]
        %v3631 = vld [vmem:[#allocation3 + $0xf8] sm:$0xff]
        %v3632 = vld [vmem:[#allocation3 + $0x100] sm:$0xff]
        %v3633 = vld [vmem:[#allocation3 + $0x108] sm:$0xff]
        %v3634 = vld [vmem:[#allocation3 + $0x110] sm:$0xff]
        %v3635 = vld [vmem:[#allocation3 + $0x118] sm:$0xff]
        %v3636 = vld [vmem:[#allocation3 + $0x120] sm:$0xff]
        %v3637 = vld [vmem:[#allocation3 + $0x128] sm:$0xff]
        %v3638 = vld [vmem:[#allocation3 + $0x130] sm:$0xff]
        %v3639 = vld [vmem:[#allocation3 + $0x138] sm:$0xff]
        %v3640 = vld [vmem:[#allocation3 + $0x140] sm:$0xff]
        %v3641 = vld [vmem:[#allocation3 + $0x148] sm:$0xff]
        %v3642 = vld [vmem:[#allocation3 + $0x150] sm:$0xff]
        %v3643 = vld [vmem:[#allocation3 + $0x158] sm:$0xff]
        %v3644 = vld [vmem:[#allocation3 + $0x160] sm:$0xff]
        %v3645 = vld [vmem:[#allocation3 + $0x168] sm:$0xff]
        %v3646 = vld [vmem:[#allocation3 + $0x170] sm:$0xff]
        %v3647 = vld [vmem:[#allocation3 + $0x178] sm:$0xff]
        %v3648 = vadd.f32 %v3600, %v3305
        %v3649 = vadd.f32 %v3601, %v3307
        %v3650 = vadd.f32 %v3602, %v3398
        %v3651 = vadd.f32 %v3603, %v3400
        %v3652 = vadd.f32 %v3604, %v3309
        %v3653 = vadd.f32 %v3605, %v3311
        %v3654 = vadd.f32 %v3606, %v3402
        %v3655 = vadd.f32 %v3607, %v3404
        %v3656 = vadd.f32 %v3608, %v3315
        %v3657 = vadd.f32 %v3609, %v3317
        %v3658 = vadd.f32 %v3610, %v3408
        %v3659 = vadd.f32 %v3611, %v3410
        %v3660 = vadd.f32 %v3612, %v3319
        %v3661 = vadd.f32 %v3613, %v3321
        %v3662 = vadd.f32 %v3614, %v3412
        %v3663 = vadd.f32 %v3615, %v3414
        %v3664 = vadd.f32 %v3616, %v3325
        %v3665 = vadd.f32 %v3617, %v3327
        %v3666 = vadd.f32 %v3618, %v3418
        %v3667 = vadd.f32 %v3619, %v3420
        %v3668 = vadd.f32 %v3620, %v3329
        %v3669 = vadd.f32 %v3621, %v3331
        %v3670 = vadd.f32 %v3622, %v3422
        %v3671 = vadd.f32 %v3623, %v3424
        %v3672 = vadd.f32 %v3624, %v3335
        %v3673 = vadd.f32 %v3625, %v3337
        %v3674 = vadd.f32 %v3626, %v3428
        %v3675 = vadd.f32 %v3627, %v3430
        %v3676 = vadd.f32 %v3628, %v3339
        %v3677 = vadd.f32 %v3629, %v3341
        %v3678 = vadd.f32 %v3630, %v3432
        %v3679 = vadd.f32 %v3631, %v3434
        %v3680 = vadd.f32 %v3632, %v3345
        %v3681 = vadd.f32 %v3633, %v3347
        %v3682 = vadd.f32 %v3634, %v3438
        %v3683 = vadd.f32 %v3635, %v3440
        %v3684 = vadd.f32 %v3636, %v3349
        %v3685 = vadd.f32 %v3637, %v3351
        %v3686 = vadd.f32 %v3638, %v3442
        %v3687 = vadd.f32 %v3639, %v3444
        %v3688 = vadd.f32 %v3640, %v3355
        %v3689 = vadd.f32 %v3641, %v3357
        %v3690 = vadd.f32 %v3642, %v3448
        %v3691 = vadd.f32 %v3643, %v3450
        %v3692 = vadd.f32 %v3644, %v3359
        %v3693 = vadd.f32 %v3645, %v3361
        %v3694 = vadd.f32 %v3646, %v3452
        %v3695 = vadd.f32 %v3647, %v3454
        %3696 = vst [vmem:[#allocation3] sm:$0xff] %v3648
        %3697 = vst [vmem:[#allocation3 + $0x8] sm:$0xff] %v3649
        %3698 = vst [vmem:[#allocation3 + $0x10] sm:$0xff] %v3650
        %3699 = vst [vmem:[#allocation3 + $0x18] sm:$0xff] %v3651
        %3700 = vst [vmem:[#allocation3 + $0x20] sm:$0xff] %v3652
        %3701 = vst [vmem:[#allocation3 + $0x28] sm:$0xff] %v3653
        %3702 = vst [vmem:[#allocation3 + $0x30] sm:$0xff] %v3654
        %3703 = vst [vmem:[#allocation3 + $0x38] sm:$0xff] %v3655
        %3704 = vst [vmem:[#allocation3 + $0x40] sm:$0xff] %v3656
        %3705 = vst [vmem:[#allocation3 + $0x48] sm:$0xff] %v3657
        %3706 = vst [vmem:[#allocation3 + $0x50] sm:$0xff] %v3658
        %3707 = vst [vmem:[#allocation3 + $0x58] sm:$0xff] %v3659
        %3708 = vst [vmem:[#allocation3 + $0x60] sm:$0xff] %v3660
        %3709 = vst [vmem:[#allocation3 + $0x68] sm:$0xff] %v3661
        %3710 = vst [vmem:[#allocation3 + $0x70] sm:$0xff] %v3662
        %3711 = vst [vmem:[#allocation3 + $0x78] sm:$0xff] %v3663
        %3712 = vst [vmem:[#allocation3 + $0x80] sm:$0xff] %v3664
        %3713 = vst [vmem:[#allocation3 + $0x88] sm:$0xff] %v3665
        %3714 = vst [vmem:[#allocation3 + $0x90] sm:$0xff] %v3666
        %3715 = vst [vmem:[#allocation3 + $0x98] sm:$0xff] %v3667
        %3716 = vst [vmem:[#allocation3 + $0xa0] sm:$0xff] %v3668
        %3717 = vst [vmem:[#allocation3 + $0xa8] sm:$0xff] %v3669
        %3718 = vst [vmem:[#allocation3 + $0xb0] sm:$0xff] %v3670
        %3719 = vst [vmem:[#allocation3 + $0xb8] sm:$0xff] %v3671
        %3720 = vst [vmem:[#allocation3 + $0xc0] sm:$0xff] %v3672
        %3721 = vst [vmem:[#allocation3 + $0xc8] sm:$0xff] %v3673
        %3722 = vst [vmem:[#allocation3 + $0xd0] sm:$0xff] %v3674
        %3723 = vst [vmem:[#allocation3 + $0xd8] sm:$0xff] %v3675
        %3724 = vst [vmem:[#allocation3 + $0xe0] sm:$0xff] %v3676
        %3725 = vst [vmem:[#allocation3 + $0xe8] sm:$0xff] %v3677
        %3726 = vst [vmem:[#allocation3 + $0xf0] sm:$0xff] %v3678
        %3727 = vst [vmem:[#allocation3 + $0xf8] sm:$0xff] %v3679
        %3728 = vst [vmem:[#allocation3 + $0x100] sm:$0xff] %v3680
        %3729 = vst [vmem:[#allocation3 + $0x108] sm:$0xff] %v3681
        %3730 = vst [vmem:[#allocation3 + $0x110] sm:$0xff] %v3682
        %3731 = vst [vmem:[#allocation3 + $0x118] sm:$0xff] %v3683
        %3732 = vst [vmem:[#allocation3 + $0x120] sm:$0xff] %v3684
        %3733 = vst [vmem:[#allocation3 + $0x128] sm:$0xff] %v3685
        %3734 = vst [vmem:[#allocation3 + $0x130] sm:$0xff] %v3686
        %3735 = vst [vmem:[#allocation3 + $0x138] sm:$0xff] %v3687
        %3736 = vst [vmem:[#allocation3 + $0x140] sm:$0xff] %v3688
        %3737 = vst [vmem:[#allocation3 + $0x148] sm:$0xff] %v3689
        %3738 = vst [vmem:[#allocation3 + $0x150] sm:$0xff] %v3690
        %3739 = vst [vmem:[#allocation3 + $0x158] sm:$0xff] %v3691
        %3740 = vst [vmem:[#allocation3 + $0x160] sm:$0xff] %v3692
        %3741 = vst [vmem:[#allocation3 + $0x168] sm:$0xff] %v3693
        %3742 = vst [vmem:[#allocation3 + $0x170] sm:$0xff] %v3694
        %3743 = vst [vmem:[#allocation3 + $0x178] sm:$0xff] %v3695
        %s3744 = scalar_lea.vmem %s1, 256
        %v3745 = vld [vmem:[%s3744] sm:$0xff]
        %v3746 = vld [vmem:[%s3744 + $0x8] sm:$0xff]
        %v3747 = vld [vmem:[%s3744 + $0x10] sm:$0xff]
        %v3748 = vld [vmem:[%s3744 + $0x18] sm:$0xff]
        %v3749 = vld [vmem:[%s3744 + $0x20] sm:$0xff]
        %v3750 = vld [vmem:[%s3744 + $0x28] sm:$0xff]
        %v3751 = vld [vmem:[%s3744 + $0x30] sm:$0x33]
        %v3752 = vld [vmem:[%s3744 + $0x38] sm:$0x33]
        %v3753 = vld [vmem:[%s3209] sm:$0xf]
        %v3754 = vld [vmem:[%s3209 + $0x4] sm:$0xf]
        %v3755 = vld [vmem:[%s3209 + $0x8] sm:$0xf]
        %v3756 = vld [vmem:[%s3209 + $0xc] sm:$0xf]
        %v3757 = vld [vmem:[%s3209 + $0x10] sm:$0xf]
        %v3758 = vld [vmem:[%s3209 + $0x14] sm:$0xf]
        %v3759 = vld [vmem:[%s3209 + $0x18] sm:$0xf]
        %v3760 = vld [vmem:[%s3209 + $0x1c] sm:$0xf]
        %v3761 = vld [vmem:[%s3209 + $0x20] sm:$0xf]
        %v3762 = vld [vmem:[%s3209 + $0x24] sm:$0xf]
        %v3763 = vld [vmem:[%s3209 + $0x28] sm:$0xf]
        %v3764 = vld [vmem:[%s3209 + $0x2c] sm:$0xf]
        %v3777 = vunpack.c.l.b16 %v3753
        %v3778 = vunpack.c.l.b16 %v3754
        %v3779 = vunpack.c.l.b16 %v3755
        %v3780 = vunpack.c.l.b16 %v3756
        %v3781 = vunpack.c.l.b16 %v3757
        %v3782 = vunpack.c.l.b16 %v3758
        %v3783 = vunpack.c.l.b16 %v3759
        %v3784 = vunpack.c.l.b16 %v3760
        %v3785 = vunpack.c.l.b16 %v3761
        %v3786 = vunpack.c.l.b16 %v3762
        %v3787 = vunpack.c.l.b16 %v3763
        %v3788 = vunpack.c.l.b16 %v3764
        %v3789 = vpack.c.b16 %v3778, %v3777
        %v3790 = vpack.c.b16 %v3780, %v3779
        %v3791 = vpack.c.b16 %v3782, %v3781
        %v3792 = vpack.c.b16 %v3784, %v3783
        %v3793 = vpack.c.b16 %v3786, %v3785
        %v3794 = vpack.c.b16 %v3788, %v3787
        %v3803 = vunpack.c.l.b16 %v3745
        %v3804 = vunpack.c.h.b16 %v3745
        %v3805 = vunpack.c.l.b16 %v3746
        %v3806 = vunpack.c.h.b16 %v3746
        %v3807 = vunpack.c.l.b16 %v3747
        %v3808 = vunpack.c.h.b16 %v3747
        %v3809 = vunpack.c.l.b16 %v3748
        %v3810 = vunpack.c.h.b16 %v3748
        %v3811 = vunpack.c.l.b16 %v3749
        %v3812 = vunpack.c.h.b16 %v3749
        %v3813 = vunpack.c.l.b16 %v3750
        %v3814 = vunpack.c.h.b16 %v3750
        %v3815 = vunpack.c.l.b16 %v3751
        %v3816 = vunpack.c.h.b16 %v3751
        %v3817 = vunpack.c.l.b16 %v3752
        %v3818 = vunpack.c.h.b16 %v3752
        %v3819 = vpack.c.b16 %v3807, %v3803
        %v3820 = vpack.c.b16 %v3808, %v3804
        %v3821 = vpack.c.b16 %v3809, %v3805
        %v3822 = vpack.c.b16 %v3810, %v3806
        %v3823 = vpack.c.b16 %v3815, %v3811
        %v3824 = vpack.c.b16 %v3816, %v3812
        %v3825 = vpack.c.b16 %v3817, %v3813
        %v3826 = vpack.c.b16 %v3818, %v3814
        %v3832 = vsel %vm669, %v3789, 0
        %v3835 = vsel %vm669, %v3790, 0
        %v3838 = vsel %vm669, %v3791, 0
        %v3841 = vsel %vm669, %v3792, 0
        %v3844 = vsel %vm669, %v3793, 0
        %v3847 = vsel %vm669, %v3794, 0
        %v3850 = vsel %vm688, %v3823, 0
        %v3853 = vsel %vm688, %v3824, 0
        %v3856 = vsel %vm688, %v3825, 0
        %v3859 = vsel %vm688, %v3826, 0
        %3861 = vmatprep.subr.bf16.mxu0 %v3820
        %3862 = vmatpush1.bf16.msra.mxu0 %v3819
        %3863 = vmatprep.subr.bf16.mxu0 %v3853
        %3864 = vmatpush1.bf16.msra.mxu0 %v3850
        %3865 = vmatprep.subr.bf16.mxu0 0
        %3866 = vmatpush1.bf16.msra.mxu0 0
        %3867 = vmatprep.subr.bf16.mxu0 0
        %3868 = vmatpush1.bf16.msra.mxu0 0
        %3869 = vmatprep.subr.bf16.mxu0 0
        %3870 = vmatpush1.bf16.msra.mxu0 0
        %3871 = vmatprep.subr.bf16.mxu0 0
        %3872 = vmatpush1.bf16.msra.mxu0 0
        %3873 = vmatprep.subr.bf16.mxu0 0
        %3874 = vmatpush1.bf16.msra.mxu0 0
        %3875 = vmatprep.subr.bf16.mxu0 0
        %3876 = vmatpush1.bf16.msra.mxu0 0
        %3877 = vmatprep.subr.bf16.mxu0 0
        %3878 = vmatpush1.bf16.msra.mxu0 0
        %3879 = vmatprep.subr.bf16.mxu0 0
        %3880 = vmatpush1.bf16.msra.mxu0 0
        %3881 = vmatprep.subr.bf16.mxu0 0
        %3882 = vmatpush1.bf16.msra.mxu0 0
        %3883 = vmatprep.subr.bf16.mxu0 0
        %3884 = vmatpush1.bf16.msra.mxu0 0
        %3885 = vmatprep.subr.bf16.mxu0 0
        %3886 = vmatpush1.bf16.msra.mxu0 0
        %3887 = vmatprep.subr.bf16.mxu0 0
        %3888 = vmatpush1.bf16.msra.mxu0 0
        %3889 = vmatprep.subr.bf16.mxu0 0
        %3890 = vmatpush1.bf16.msra.mxu0 0
        %3891 = vmatprep.subr.bf16.mxu0 0
        %3892 = vmatpush1.bf16.msra.mxu0 0
        %3893 = vmatprep.mubr.bf16.mxu0 0
        %3894 = vmatmul.mubr.bf16.gmra.mrb[0].mxu0 %v3832
        %v3895 = vpop.f32.mrb[0].mxu0
        %v3896 = vadd.f32 0.0, %v3895
        %v3897 = vpop.f32.mrb[0].mxu0
        %v3898 = vadd.f32 0.0, %v3897
        %v3899 = vpop.f32.mrb[0].mxu0
        %v3900 = vadd.f32 0.0, %v3899
        %v3901 = vpop.f32.mrb[0].mxu0
        %v3902 = vadd.f32 0.0, %v3901
        %3903 = vmatprep.mubr.bf16.mxu0 0
        %3904 = vmatmul.mubr.bf16.gmra.mrb[0].mxu0 %v3835
        %v3905 = vpop.f32.mrb[0].mxu0
        %v3906 = vadd.f32 0.0, %v3905
        %v3907 = vpop.f32.mrb[0].mxu0
        %v3908 = vadd.f32 0.0, %v3907
        %v3909 = vpop.f32.mrb[0].mxu0
        %v3910 = vadd.f32 0.0, %v3909
        %v3911 = vpop.f32.mrb[0].mxu0
        %v3912 = vadd.f32 0.0, %v3911
        %3913 = vmatprep.mubr.bf16.mxu0 0
        %3914 = vmatmul.mubr.bf16.gmra.mrb[0].mxu0 %v3838
        %v3915 = vpop.f32.mrb[0].mxu0
        %v3916 = vadd.f32 0.0, %v3915
        %v3917 = vpop.f32.mrb[0].mxu0
        %v3918 = vadd.f32 0.0, %v3917
        %v3919 = vpop.f32.mrb[0].mxu0
        %v3920 = vadd.f32 0.0, %v3919
        %v3921 = vpop.f32.mrb[0].mxu0
        %v3922 = vadd.f32 0.0, %v3921
        %3923 = vmatprep.mubr.bf16.mxu0 0
        %3924 = vmatmul.mubr.bf16.gmra.mrb[0].mxu0 %v3841
        %v3925 = vpop.f32.mrb[0].mxu0
        %v3926 = vadd.f32 0.0, %v3925
        %v3927 = vpop.f32.mrb[0].mxu0
        %v3928 = vadd.f32 0.0, %v3927
        %v3929 = vpop.f32.mrb[0].mxu0
        %v3930 = vadd.f32 0.0, %v3929
        %v3931 = vpop.f32.mrb[0].mxu0
        %v3932 = vadd.f32 0.0, %v3931
        %3933 = vmatprep.mubr.bf16.mxu0 0
        %3934 = vmatmul.mubr.bf16.gmra.mrb[0].mxu0 %v3844
        %v3935 = vpop.f32.mrb[0].mxu0
        %v3936 = vadd.f32 0.0, %v3935
        %v3937 = vpop.f32.mrb[0].mxu0
        %v3938 = vadd.f32 0.0, %v3937
        %v3939 = vpop.f32.mrb[0].mxu0
        %v3940 = vadd.f32 0.0, %v3939
        %v3941 = vpop.f32.mrb[0].mxu0
        %v3942 = vadd.f32 0.0, %v3941
        %3943 = vmatprep.mubr.bf16.mxu0 0
        %3944 = vmatmul.mubr.bf16.gmra.mrb[0].mxu0 %v3847
        %v3945 = vpop.f32.mrb[0].mxu0
        %v3946 = vadd.f32 0.0, %v3945
        %v3947 = vpop.f32.mrb[0].mxu0
        %v3948 = vadd.f32 0.0, %v3947
        %v3949 = vpop.f32.mrb[0].mxu0
        %v3950 = vadd.f32 0.0, %v3949
        %v3951 = vpop.f32.mrb[0].mxu0
        %v3952 = vadd.f32 0.0, %v3951
        %3953 = vdwg.mxu0
        %3954 = vmatprep.subr.bf16.mxu0 %v3822
        %3955 = vmatpush1.bf16.msra.mxu0 %v3821
        %3956 = vmatprep.subr.bf16.mxu0 %v3859
        %3957 = vmatpush1.bf16.msra.mxu0 %v3856
        %3958 = vmatprep.subr.bf16.mxu0 0
        %3959 = vmatpush1.bf16.msra.mxu0 0
        %3960 = vmatprep.subr.bf16.mxu0 0
        %3961 = vmatpush1.bf16.msra.mxu0 0
        %3962 = vmatprep.subr.bf16.mxu0 0
        %3963 = vmatpush1.bf16.msra.mxu0 0
        %3964 = vmatprep.subr.bf16.mxu0 0
        %3965 = vmatpush1.bf16.msra.mxu0 0
        %3966 = vmatprep.subr.bf16.mxu0 0
        %3967 = vmatpush1.bf16.msra.mxu0 0
        %3968 = vmatprep.subr.bf16.mxu0 0
        %3969 = vmatpush1.bf16.msra.mxu0 0
        %3970 = vmatprep.subr.bf16.mxu0 0
        %3971 = vmatpush1.bf16.msra.mxu0 0
        %3972 = vmatprep.subr.bf16.mxu0 0
        %3973 = vmatpush1.bf16.msra.mxu0 0
        %3974 = vmatprep.subr.bf16.mxu0 0
        %3975 = vmatpush1.bf16.msra.mxu0 0
        %3976 = vmatprep.subr.bf16.mxu0 0
        %3977 = vmatpush1.bf16.msra.mxu0 0
        %3978 = vmatprep.subr.bf16.mxu0 0
        %3979 = vmatpush1.bf16.msra.mxu0 0
        %3980 = vmatprep.subr.bf16.mxu0 0
        %3981 = vmatpush1.bf16.msra.mxu0 0
        %3982 = vmatprep.subr.bf16.mxu0 0
        %3983 = vmatpush1.bf16.msra.mxu0 0
        %3984 = vmatprep.subr.bf16.mxu0 0
        %3985 = vmatpush1.bf16.msra.mxu0 0
        %3986 = vmatprep.mubr.bf16.mxu0 0
        %3987 = vmatmul.mubr.bf16.gmra.mrb[0].mxu0 %v3832
        %v3988 = vpop.f32.mrb[0].mxu0
        %v3989 = vadd.f32 0.0, %v3988
        %v3990 = vpop.f32.mrb[0].mxu0
        %v3991 = vadd.f32 0.0, %v3990
        %v3992 = vpop.f32.mrb[0].mxu0
        %v3993 = vadd.f32 0.0, %v3992
        %v3994 = vpop.f32.mrb[0].mxu0
        %v3995 = vadd.f32 0.0, %v3994
        %3996 = vmatprep.mubr.bf16.mxu0 0
        %3997 = vmatmul.mubr.bf16.gmra.mrb[0].mxu0 %v3835
        %v3998 = vpop.f32.mrb[0].mxu0
        %v3999 = vadd.f32 0.0, %v3998
        %v4000 = vpop.f32.mrb[0].mxu0
        %v4001 = vadd.f32 0.0, %v4000
        %v4002 = vpop.f32.mrb[0].mxu0
        %v4003 = vadd.f32 0.0, %v4002
        %v4004 = vpop.f32.mrb[0].mxu0
        %v4005 = vadd.f32 0.0, %v4004
        %4006 = vmatprep.mubr.bf16.mxu0 0
        %4007 = vmatmul.mubr.bf16.gmra.mrb[0].mxu0 %v3838
        %v4008 = vpop.f32.mrb[0].mxu0
        %v4009 = vadd.f32 0.0, %v4008
        %v4010 = vpop.f32.mrb[0].mxu0
        %v4011 = vadd.f32 0.0, %v4010
        %v4012 = vpop.f32.mrb[0].mxu0
        %v4013 = vadd.f32 0.0, %v4012
        %v4014 = vpop.f32.mrb[0].mxu0
        %v4015 = vadd.f32 0.0, %v4014
        %4016 = vmatprep.mubr.bf16.mxu0 0
        %4017 = vmatmul.mubr.bf16.gmra.mrb[0].mxu0 %v3841
        %v4018 = vpop.f32.mrb[0].mxu0
        %v4019 = vadd.f32 0.0, %v4018
        %v4020 = vpop.f32.mrb[0].mxu0
        %v4021 = vadd.f32 0.0, %v4020
        %v4022 = vpop.f32.mrb[0].mxu0
        %v4023 = vadd.f32 0.0, %v4022
        %v4024 = vpop.f32.mrb[0].mxu0
        %v4025 = vadd.f32 0.0, %v4024
        %4026 = vmatprep.mubr.bf16.mxu0 0
        %4027 = vmatmul.mubr.bf16.gmra.mrb[0].mxu0 %v3844
        %v4028 = vpop.f32.mrb[0].mxu0
        %v4029 = vadd.f32 0.0, %v4028
        %v4030 = vpop.f32.mrb[0].mxu0
        %v4031 = vadd.f32 0.0, %v4030
        %v4032 = vpop.f32.mrb[0].mxu0
        %v4033 = vadd.f32 0.0, %v4032
        %v4034 = vpop.f32.mrb[0].mxu0
        %v4035 = vadd.f32 0.0, %v4034
        %4036 = vmatprep.mubr.bf16.mxu0 0
        %4037 = vmatmul.mubr.bf16.gmra.mrb[0].mxu0 %v3847
        %v4038 = vpop.f32.mrb[0].mxu0
        %v4039 = vadd.f32 0.0, %v4038
        %v4040 = vpop.f32.mrb[0].mxu0
        %v4041 = vadd.f32 0.0, %v4040
        %v4042 = vpop.f32.mrb[0].mxu0
        %v4043 = vadd.f32 0.0, %v4042
        %v4044 = vpop.f32.mrb[0].mxu0
        %v4045 = vadd.f32 0.0, %v4044
        %4046 = vdwg.mxu0
        %s4047 = scalar_lea.vmem %s546, 240 [#allocation6]
        %v4048 = vld [vmem:[%s4047] sm:$0xf]
        %v4049 = vld [vmem:[%s4047 + $0x4] sm:$0xf]
        %v4050 = vld [vmem:[%s4047 + $0x8] sm:$0xf]
        %v4051 = vld [vmem:[%s4047 + $0xc] sm:$0xf]
        %v4052 = vld [vmem:[%s4047 + $0x10] sm:$0xf]
        %v4053 = vld [vmem:[%s4047 + $0x14] sm:$0xf]
        %v4054 = vld [vmem:[%s4047 + $0x18] sm:$0xf]
        %v4055 = vld [vmem:[%s4047 + $0x1c] sm:$0xf]
        %v4056 = vld [vmem:[%s4047 + $0x20] sm:$0xf]
        %v4057 = vld [vmem:[%s4047 + $0x24] sm:$0xf]
        %v4058 = vld [vmem:[%s4047 + $0x28] sm:$0xf]
        %v4059 = vld [vmem:[%s4047 + $0x2c] sm:$0xf]
        %v4072 = vunpack.c.l.b16 %v4048
        %v4073 = vunpack.c.l.b16 %v4049
        %v4074 = vunpack.c.l.b16 %v4050
        %v4075 = vunpack.c.l.b16 %v4051
        %v4076 = vunpack.c.l.b16 %v4052
        %v4077 = vunpack.c.l.b16 %v4053
        %v4078 = vunpack.c.l.b16 %v4054
        %v4079 = vunpack.c.l.b16 %v4055
        %v4080 = vunpack.c.l.b16 %v4056
        %v4081 = vunpack.c.l.b16 %v4057
        %v4082 = vunpack.c.l.b16 %v4058
        %v4083 = vunpack.c.l.b16 %v4059
        %v4084 = vpack.c.b16 %v4073, %v4072
        %v4085 = vpack.c.b16 %v4075, %v4074
        %v4086 = vpack.c.b16 %v4077, %v4076
        %v4087 = vpack.c.b16 %v4079, %v4078
        %v4088 = vpack.c.b16 %v4081, %v4080
        %v4089 = vpack.c.b16 %v4083, %v4082
        %v4091 = vsel %vm669, %v4084, 0
        %v4094 = vsel %vm669, %v4085, 0
        %v4097 = vsel %vm669, %v4086, 0
        %v4100 = vsel %vm669, %v4087, 0
        %v4103 = vsel %vm669, %v4088, 0
        %v4106 = vsel %vm669, %v4089, 0
        %4108 = vmatprep.subr.bf16.mxu0 %v3820
        %4109 = vmatpush1.bf16.msra.mxu0 %v3819
        %4110 = vmatprep.subr.bf16.mxu0 %v3853
        %4111 = vmatpush1.bf16.msra.mxu0 %v3850
        %4112 = vmatprep.subr.bf16.mxu0 0
        %4113 = vmatpush1.bf16.msra.mxu0 0
        %4114 = vmatprep.subr.bf16.mxu0 0
        %4115 = vmatpush1.bf16.msra.mxu0 0
        %4116 = vmatprep.subr.bf16.mxu0 0
        %4117 = vmatpush1.bf16.msra.mxu0 0
        %4118 = vmatprep.subr.bf16.mxu0 0
        %4119 = vmatpush1.bf16.msra.mxu0 0
        %4120 = vmatprep.subr.bf16.mxu0 0
        %4121 = vmatpush1.bf16.msra.mxu0 0
        %4122 = vmatprep.subr.bf16.mxu0 0
        %4123 = vmatpush1.bf16.msra.mxu0 0
        %4124 = vmatprep.subr.bf16.mxu0 0
        %4125 = vmatpush1.bf16.msra.mxu0 0
        %4126 = vmatprep.subr.bf16.mxu0 0
        %4127 = vmatpush1.bf16.msra.mxu0 0
        %4128 = vmatprep.subr.bf16.mxu0 0
        %4129 = vmatpush1.bf16.msra.mxu0 0
        %4130 = vmatprep.subr.bf16.mxu0 0
        %4131 = vmatpush1.bf16.msra.mxu0 0
        %4132 = vmatprep.subr.bf16.mxu0 0
        %4133 = vmatpush1.bf16.msra.mxu0 0
        %4134 = vmatprep.subr.bf16.mxu0 0
        %4135 = vmatpush1.bf16.msra.mxu0 0
        %4136 = vmatprep.subr.bf16.mxu0 0
        %4137 = vmatpush1.bf16.msra.mxu0 0
        %4138 = vmatprep.subr.bf16.mxu0 0
        %4139 = vmatpush1.bf16.msra.mxu0 0
        %4140 = vmatprep.mubr.bf16.mxu0 0
        %4141 = vmatmul.mubr.bf16.gmra.mrb[0].mxu0 %v4091
        %v4142 = vpop.f32.mrb[0].mxu0
        %v4143 = vadd.f32 0.0, %v4142
        %v4144 = vpop.f32.mrb[0].mxu0
        %v4145 = vadd.f32 0.0, %v4144
        %v4146 = vpop.f32.mrb[0].mxu0
        %v4147 = vadd.f32 0.0, %v4146
        %v4148 = vpop.f32.mrb[0].mxu0
        %v4149 = vadd.f32 0.0, %v4148
        %4150 = vmatprep.mubr.bf16.mxu0 0
        %4151 = vmatmul.mubr.bf16.gmra.mrb[0].mxu0 %v4094
        %v4152 = vpop.f32.mrb[0].mxu0
        %v4153 = vadd.f32 0.0, %v4152
        %v4154 = vpop.f32.mrb[0].mxu0
        %v4155 = vadd.f32 0.0, %v4154
        %v4156 = vpop.f32.mrb[0].mxu0
        %v4157 = vadd.f32 0.0, %v4156
        %v4158 = vpop.f32.mrb[0].mxu0
        %v4159 = vadd.f32 0.0, %v4158
        %4160 = vmatprep.mubr.bf16.mxu0 0
        %4161 = vmatmul.mubr.bf16.gmra.mrb[0].mxu0 %v4097
        %v4162 = vpop.f32.mrb[0].mxu0
        %v4163 = vadd.f32 0.0, %v4162
        %v4164 = vpop.f32.mrb[0].mxu0
        %v4165 = vadd.f32 0.0, %v4164
        %v4166 = vpop.f32.mrb[0].mxu0
        %v4167 = vadd.f32 0.0, %v4166
        %v4168 = vpop.f32.mrb[0].mxu0
        %v4169 = vadd.f32 0.0, %v4168
        %4170 = vmatprep.mubr.bf16.mxu0 0
        %4171 = vmatmul.mubr.bf16.gmra.mrb[0].mxu0 %v4100
        %v4172 = vpop.f32.mrb[0].mxu0
        %v4173 = vadd.f32 0.0, %v4172
        %v4174 = vpop.f32.mrb[0].mxu0
        %v4175 = vadd.f32 0.0, %v4174
        %v4176 = vpop.f32.mrb[0].mxu0
        %v4177 = vadd.f32 0.0, %v4176
        %v4178 = vpop.f32.mrb[0].mxu0
        %v4179 = vadd.f32 0.0, %v4178
        %4180 = vmatprep.mubr.bf16.mxu0 0
        %4181 = vmatmul.mubr.bf16.gmra.mrb[0].mxu0 %v4103
        %v4182 = vpop.f32.mrb[0].mxu0
        %v4183 = vadd.f32 0.0, %v4182
        %v4184 = vpop.f32.mrb[0].mxu0
        %v4185 = vadd.f32 0.0, %v4184
        %v4186 = vpop.f32.mrb[0].mxu0
        %v4187 = vadd.f32 0.0, %v4186
        %v4188 = vpop.f32.mrb[0].mxu0
        %v4189 = vadd.f32 0.0, %v4188
        %4190 = vmatprep.mubr.bf16.mxu0 0
        %4191 = vmatmul.mubr.bf16.gmra.mrb[0].mxu0 %v4106
        %v4192 = vpop.f32.mrb[0].mxu0
        %v4193 = vadd.f32 0.0, %v4192
        %v4194 = vpop.f32.mrb[0].mxu0
        %v4195 = vadd.f32 0.0, %v4194
        %v4196 = vpop.f32.mrb[0].mxu0
        %v4197 = vadd.f32 0.0, %v4196
        %v4198 = vpop.f32.mrb[0].mxu0
        %v4199 = vadd.f32 0.0, %v4198
        %4200 = vdwg.mxu0
        %4201 = vmatprep.subr.bf16.mxu0 %v3822
        %4202 = vmatpush1.bf16.msra.mxu0 %v3821
        %4203 = vmatprep.subr.bf16.mxu0 %v3859
        %4204 = vmatpush1.bf16.msra.mxu0 %v3856
        %4205 = vmatprep.subr.bf16.mxu0 0
        %4206 = vmatpush1.bf16.msra.mxu0 0
        %4207 = vmatprep.subr.bf16.mxu0 0
        %4208 = vmatpush1.bf16.msra.mxu0 0
        %4209 = vmatprep.subr.bf16.mxu0 0
        %4210 = vmatpush1.bf16.msra.mxu0 0
        %4211 = vmatprep.subr.bf16.mxu0 0
        %4212 = vmatpush1.bf16.msra.mxu0 0
        %4213 = vmatprep.subr.bf16.mxu0 0
        %4214 = vmatpush1.bf16.msra.mxu0 0
        %4215 = vmatprep.subr.bf16.mxu0 0
        %4216 = vmatpush1.bf16.msra.mxu0 0
        %4217 = vmatprep.subr.bf16.mxu0 0
        %4218 = vmatpush1.bf16.msra.mxu0 0
        %4219 = vmatprep.subr.bf16.mxu0 0
        %4220 = vmatpush1.bf16.msra.mxu0 0
        %4221 = vmatprep.subr.bf16.mxu0 0
        %4222 = vmatpush1.bf16.msra.mxu0 0
        %4223 = vmatprep.subr.bf16.mxu0 0
        %4224 = vmatpush1.bf16.msra.mxu0 0
        %4225 = vmatprep.subr.bf16.mxu0 0
        %4226 = vmatpush1.bf16.msra.mxu0 0
        %4227 = vmatprep.subr.bf16.mxu0 0
        %4228 = vmatpush1.bf16.msra.mxu0 0
        %4229 = vmatprep.subr.bf16.mxu0 0
        %4230 = vmatpush1.bf16.msra.mxu0 0
        %4231 = vmatprep.subr.bf16.mxu0 0
        %4232 = vmatpush1.bf16.msra.mxu0 0
        %4233 = vmatprep.mubr.bf16.mxu0 0
        %4234 = vmatmul.mubr.bf16.gmra.mrb[0].mxu0 %v4091
        %v4235 = vpop.f32.mrb[0].mxu0
        %v4236 = vadd.f32 0.0, %v4235
        %v4237 = vpop.f32.mrb[0].mxu0
        %v4238 = vadd.f32 0.0, %v4237
        %v4239 = vpop.f32.mrb[0].mxu0
        %v4240 = vadd.f32 0.0, %v4239
        %v4241 = vpop.f32.mrb[0].mxu0
        %v4242 = vadd.f32 0.0, %v4241
        %4243 = vmatprep.mubr.bf16.mxu0 0
        %4244 = vmatmul.mubr.bf16.gmra.mrb[0].mxu0 %v4094
        %v4245 = vpop.f32.mrb[0].mxu0
        %v4246 = vadd.f32 0.0, %v4245
        %v4247 = vpop.f32.mrb[0].mxu0
        %v4248 = vadd.f32 0.0, %v4247
        %v4249 = vpop.f32.mrb[0].mxu0
        %v4250 = vadd.f32 0.0, %v4249
        %v4251 = vpop.f32.mrb[0].mxu0
        %v4252 = vadd.f32 0.0, %v4251
        %4253 = vmatprep.mubr.bf16.mxu0 0
        %4254 = vmatmul.mubr.bf16.gmra.mrb[0].mxu0 %v4097
        %v4255 = vpop.f32.mrb[0].mxu0
        %v4256 = vadd.f32 0.0, %v4255
        %v4257 = vpop.f32.mrb[0].mxu0
        %v4258 = vadd.f32 0.0, %v4257
        %v4259 = vpop.f32.mrb[0].mxu0
        %v4260 = vadd.f32 0.0, %v4259
        %v4261 = vpop.f32.mrb[0].mxu0
        %v4262 = vadd.f32 0.0, %v4261
        %4263 = vmatprep.mubr.bf16.mxu0 0
        %4264 = vmatmul.mubr.bf16.gmra.mrb[0].mxu0 %v4100
        %v4265 = vpop.f32.mrb[0].mxu0
        %v4266 = vadd.f32 0.0, %v4265
        %v4267 = vpop.f32.mrb[0].mxu0
        %v4268 = vadd.f32 0.0, %v4267
        %v4269 = vpop.f32.mrb[0].mxu0
        %v4270 = vadd.f32 0.0, %v4269
        %v4271 = vpop.f32.mrb[0].mxu0
        %v4272 = vadd.f32 0.0, %v4271
        %4273 = vmatprep.mubr.bf16.mxu0 0
        %4274 = vmatmul.mubr.bf16.gmra.mrb[0].mxu0 %v4103
        %v4275 = vpop.f32.mrb[0].mxu0
        %v4276 = vadd.f32 0.0, %v4275
        %v4277 = vpop.f32.mrb[0].mxu0
        %v4278 = vadd.f32 0.0, %v4277
        %v4279 = vpop.f32.mrb[0].mxu0
        %v4280 = vadd.f32 0.0, %v4279
        %v4281 = vpop.f32.mrb[0].mxu0
        %v4282 = vadd.f32 0.0, %v4281
        %4283 = vmatprep.mubr.bf16.mxu0 0
        %4284 = vmatmul.mubr.bf16.gmra.mrb[0].mxu0 %v4106
        %v4285 = vpop.f32.mrb[0].mxu0
        %v4286 = vadd.f32 0.0, %v4285
        %v4287 = vpop.f32.mrb[0].mxu0
        %v4288 = vadd.f32 0.0, %v4287
        %v4289 = vpop.f32.mrb[0].mxu0
        %v4290 = vadd.f32 0.0, %v4289
        %v4291 = vpop.f32.mrb[0].mxu0
        %v4292 = vadd.f32 0.0, %v4291
        %4293 = vdwg.mxu0
        %v4294 = vld [vmem:[#allocation2] sm:$0xff]
        %v4295 = vld [vmem:[#allocation2 + $0x8] sm:$0xff]
        %v4296 = vld [vmem:[#allocation2 + $0x10] sm:$0xff]
        %v4297 = vld [vmem:[#allocation2 + $0x18] sm:$0xff]
        %v4298 = vld [vmem:[#allocation2 + $0x20] sm:$0xff]
        %v4299 = vld [vmem:[#allocation2 + $0x28] sm:$0xff]
        %v4300 = vld [vmem:[#allocation2 + $0x30] sm:$0xff]
        %v4301 = vld [vmem:[#allocation2 + $0x38] sm:$0xff]
        %v4302 = vld [vmem:[#allocation2 + $0x40] sm:$0xff]
        %v4303 = vld [vmem:[#allocation2 + $0x48] sm:$0xff]
        %v4304 = vld [vmem:[#allocation2 + $0x50] sm:$0xff]
        %v4305 = vld [vmem:[#allocation2 + $0x58] sm:$0xff]
        %v4306 = vld [vmem:[#allocation2 + $0x60] sm:$0xff]
        %v4307 = vld [vmem:[#allocation2 + $0x68] sm:$0xff]
        %v4308 = vld [vmem:[#allocation2 + $0x70] sm:$0xff]
        %v4309 = vld [vmem:[#allocation2 + $0x78] sm:$0xff]
        %v4310 = vld [vmem:[#allocation2 + $0x80] sm:$0xff]
        %v4311 = vld [vmem:[#allocation2 + $0x88] sm:$0xff]
        %v4312 = vld [vmem:[#allocation2 + $0x90] sm:$0xff]
        %v4313 = vld [vmem:[#allocation2 + $0x98] sm:$0xff]
        %v4314 = vld [vmem:[#allocation2 + $0xa0] sm:$0xff]
        %v4315 = vld [vmem:[#allocation2 + $0xa8] sm:$0xff]
        %v4316 = vld [vmem:[#allocation2 + $0xb0] sm:$0xff]
        %v4317 = vld [vmem:[#allocation2 + $0xb8] sm:$0xff]
        %v4318 = vld [vmem:[#allocation2 + $0xc0] sm:$0xff]
        %v4319 = vld [vmem:[#allocation2 + $0xc8] sm:$0xff]
        %v4320 = vld [vmem:[#allocation2 + $0xd0] sm:$0xff]
        %v4321 = vld [vmem:[#allocation2 + $0xd8] sm:$0xff]
        %v4322 = vld [vmem:[#allocation2 + $0xe0] sm:$0xff]
        %v4323 = vld [vmem:[#allocation2 + $0xe8] sm:$0xff]
        %v4324 = vld [vmem:[#allocation2 + $0xf0] sm:$0xff]
        %v4325 = vld [vmem:[#allocation2 + $0xf8] sm:$0xff]
        %v4326 = vld [vmem:[#allocation2 + $0x100] sm:$0xff]
        %v4327 = vld [vmem:[#allocation2 + $0x108] sm:$0xff]
        %v4328 = vld [vmem:[#allocation2 + $0x110] sm:$0xff]
        %v4329 = vld [vmem:[#allocation2 + $0x118] sm:$0xff]
        %v4330 = vld [vmem:[#allocation2 + $0x120] sm:$0xff]
        %v4331 = vld [vmem:[#allocation2 + $0x128] sm:$0xff]
        %v4332 = vld [vmem:[#allocation2 + $0x130] sm:$0xff]
        %v4333 = vld [vmem:[#allocation2 + $0x138] sm:$0xff]
        %v4334 = vld [vmem:[#allocation2 + $0x140] sm:$0xff]
        %v4335 = vld [vmem:[#allocation2 + $0x148] sm:$0xff]
        %v4336 = vld [vmem:[#allocation2 + $0x150] sm:$0xff]
        %v4337 = vld [vmem:[#allocation2 + $0x158] sm:$0xff]
        %v4338 = vld [vmem:[#allocation2 + $0x160] sm:$0xff]
        %v4339 = vld [vmem:[#allocation2 + $0x168] sm:$0xff]
        %v4340 = vld [vmem:[#allocation2 + $0x170] sm:$0xff]
        %v4341 = vld [vmem:[#allocation2 + $0x178] sm:$0xff]
        %v4342 = vadd.f32 %v4294, %v3896
        %v4343 = vadd.f32 %v4295, %v3898
        %v4344 = vadd.f32 %v4296, %v3989
        %v4345 = vadd.f32 %v4297, %v3991
        %v4346 = vadd.f32 %v4298, %v3900
        %v4347 = vadd.f32 %v4299, %v3902
        %v4348 = vadd.f32 %v4300, %v3993
        %v4349 = vadd.f32 %v4301, %v3995
        %v4350 = vadd.f32 %v4302, %v3906
        %v4351 = vadd.f32 %v4303, %v3908
        %v4352 = vadd.f32 %v4304, %v3999
        %v4353 = vadd.f32 %v4305, %v4001
        %v4354 = vadd.f32 %v4306, %v3910
        %v4355 = vadd.f32 %v4307, %v3912
        %v4356 = vadd.f32 %v4308, %v4003
        %v4357 = vadd.f32 %v4309, %v4005
        %v4358 = vadd.f32 %v4310, %v3916
        %v4359 = vadd.f32 %v4311, %v3918
        %v4360 = vadd.f32 %v4312, %v4009
        %v4361 = vadd.f32 %v4313, %v4011
        %v4362 = vadd.f32 %v4314, %v3920
        %v4363 = vadd.f32 %v4315, %v3922
        %v4364 = vadd.f32 %v4316, %v4013
        %v4365 = vadd.f32 %v4317, %v4015
        %v4366 = vadd.f32 %v4318, %v3926
        %v4367 = vadd.f32 %v4319, %v3928
        %v4368 = vadd.f32 %v4320, %v4019
        %v4369 = vadd.f32 %v4321, %v4021
        %v4370 = vadd.f32 %v4322, %v3930
        %v4371 = vadd.f32 %v4323, %v3932
        %v4372 = vadd.f32 %v4324, %v4023
        %v4373 = vadd.f32 %v4325, %v4025
        %v4374 = vadd.f32 %v4326, %v3936
        %v4375 = vadd.f32 %v4327, %v3938
        %v4376 = vadd.f32 %v4328, %v4029
        %v4377 = vadd.f32 %v4329, %v4031
        %v4378 = vadd.f32 %v4330, %v3940
        %v4379 = vadd.f32 %v4331, %v3942
        %v4380 = vadd.f32 %v4332, %v4033
        %v4381 = vadd.f32 %v4333, %v4035
        %v4382 = vadd.f32 %v4334, %v3946
        %v4383 = vadd.f32 %v4335, %v3948
        %v4384 = vadd.f32 %v4336, %v4039
        %v4385 = vadd.f32 %v4337, %v4041
        %v4386 = vadd.f32 %v4338, %v3950
        %v4387 = vadd.f32 %v4339, %v3952
        %v4388 = vadd.f32 %v4340, %v4043
        %v4389 = vadd.f32 %v4341, %v4045
        %4390 = vst [vmem:[#allocation2] sm:$0xff] %v4342
        %4391 = vst [vmem:[#allocation2 + $0x8] sm:$0xff] %v4343
        %4392 = vst [vmem:[#allocation2 + $0x10] sm:$0xff] %v4344
        %4393 = vst [vmem:[#allocation2 + $0x18] sm:$0xff] %v4345
        %4394 = vst [vmem:[#allocation2 + $0x20] sm:$0xff] %v4346
        %4395 = vst [vmem:[#allocation2 + $0x28] sm:$0xff] %v4347
        %4396 = vst [vmem:[#allocation2 + $0x30] sm:$0xff] %v4348
        %4397 = vst [vmem:[#allocation2 + $0x38] sm:$0xff] %v4349
        %4398 = vst [vmem:[#allocation2 + $0x40] sm:$0xff] %v4350
        %4399 = vst [vmem:[#allocation2 + $0x48] sm:$0xff] %v4351
        %4400 = vst [vmem:[#allocation2 + $0x50] sm:$0xff] %v4352
        %4401 = vst [vmem:[#allocation2 + $0x58] sm:$0xff] %v4353
        %4402 = vst [vmem:[#allocation2 + $0x60] sm:$0xff] %v4354
        %4403 = vst [vmem:[#allocation2 + $0x68] sm:$0xff] %v4355
        %4404 = vst [vmem:[#allocation2 + $0x70] sm:$0xff] %v4356
        %4405 = vst [vmem:[#allocation2 + $0x78] sm:$0xff] %v4357
        %4406 = vst [vmem:[#allocation2 + $0x80] sm:$0xff] %v4358
        %4407 = vst [vmem:[#allocation2 + $0x88] sm:$0xff] %v4359
        %4408 = vst [vmem:[#allocation2 + $0x90] sm:$0xff] %v4360
        %4409 = vst [vmem:[#allocation2 + $0x98] sm:$0xff] %v4361
        %4410 = vst [vmem:[#allocation2 + $0xa0] sm:$0xff] %v4362
        %4411 = vst [vmem:[#allocation2 + $0xa8] sm:$0xff] %v4363
        %4412 = vst [vmem:[#allocation2 + $0xb0] sm:$0xff] %v4364
        %4413 = vst [vmem:[#allocation2 + $0xb8] sm:$0xff] %v4365
        %4414 = vst [vmem:[#allocation2 + $0xc0] sm:$0xff] %v4366
        %4415 = vst [vmem:[#allocation2 + $0xc8] sm:$0xff] %v4367
        %4416 = vst [vmem:[#allocation2 + $0xd0] sm:$0xff] %v4368
        %4417 = vst [vmem:[#allocation2 + $0xd8] sm:$0xff] %v4369
        %4418 = vst [vmem:[#allocation2 + $0xe0] sm:$0xff] %v4370
        %4419 = vst [vmem:[#allocation2 + $0xe8] sm:$0xff] %v4371
        %4420 = vst [vmem:[#allocation2 + $0xf0] sm:$0xff] %v4372
        %4421 = vst [vmem:[#allocation2 + $0xf8] sm:$0xff] %v4373
        %4422 = vst [vmem:[#allocation2 + $0x100] sm:$0xff] %v4374
        %4423 = vst [vmem:[#allocation2 + $0x108] sm:$0xff] %v4375
        %4424 = vst [vmem:[#allocation2 + $0x110] sm:$0xff] %v4376
        %4425 = vst [vmem:[#allocation2 + $0x118] sm:$0xff] %v4377
        %4426 = vst [vmem:[#allocation2 + $0x120] sm:$0xff] %v4378
        %4427 = vst [vmem:[#allocation2 + $0x128] sm:$0xff] %v4379
        %4428 = vst [vmem:[#allocation2 + $0x130] sm:$0xff] %v4380
        %4429 = vst [vmem:[#allocation2 + $0x138] sm:$0xff] %v4381
        %4430 = vst [vmem:[#allocation2 + $0x140] sm:$0xff] %v4382
        %4431 = vst [vmem:[#allocation2 + $0x148] sm:$0xff] %v4383
        %4432 = vst [vmem:[#allocation2 + $0x150] sm:$0xff] %v4384
        %4433 = vst [vmem:[#allocation2 + $0x158] sm:$0xff] %v4385
        %4434 = vst [vmem:[#allocation2 + $0x160] sm:$0xff] %v4386
        %4435 = vst [vmem:[#allocation2 + $0x168] sm:$0xff] %v4387
        %4436 = vst [vmem:[#allocation2 + $0x170] sm:$0xff] %v4388
        %4437 = vst [vmem:[#allocation2 + $0x178] sm:$0xff] %v4389
        %v4438 = vld [vmem:[#allocation3] sm:$0xff]
        %v4439 = vld [vmem:[#allocation3 + $0x8] sm:$0xff]
        %v4440 = vld [vmem:[#allocation3 + $0x10] sm:$0xff]
        %v4441 = vld [vmem:[#allocation3 + $0x18] sm:$0xff]
        %v4442 = vld [vmem:[#allocation3 + $0x20] sm:$0xff]
        %v4443 = vld [vmem:[#allocation3 + $0x28] sm:$0xff]
        %v4444 = vld [vmem:[#allocation3 + $0x30] sm:$0xff]
        %v4445 = vld [vmem:[#allocation3 + $0x38] sm:$0xff]
        %v4446 = vld [vmem:[#allocation3 + $0x40] sm:$0xff]
        %v4447 = vld [vmem:[#allocation3 + $0x48] sm:$0xff]
        %v4448 = vld [vmem:[#allocation3 + $0x50] sm:$0xff]
        %v4449 = vld [vmem:[#allocation3 + $0x58] sm:$0xff]
        %v4450 = vld [vmem:[#allocation3 + $0x60] sm:$0xff]
        %v4451 = vld [vmem:[#allocation3 + $0x68] sm:$0xff]
        %v4452 = vld [vmem:[#allocation3 + $0x70] sm:$0xff]
        %v4453 = vld [vmem:[#allocation3 + $0x78] sm:$0xff]
        %v4454 = vld [vmem:[#allocation3 + $0x80] sm:$0xff]
        %v4455 = vld [vmem:[#allocation3 + $0x88] sm:$0xff]
        %v4456 = vld [vmem:[#allocation3 + $0x90] sm:$0xff]
        %v4457 = vld [vmem:[#allocation3 + $0x98] sm:$0xff]
        %v4458 = vld [vmem:[#allocation3 + $0xa0] sm:$0xff]
        %v4459 = vld [vmem:[#allocation3 + $0xa8] sm:$0xff]
        %v4460 = vld [vmem:[#allocation3 + $0xb0] sm:$0xff]
        %v4461 = vld [vmem:[#allocation3 + $0xb8] sm:$0xff]
        %v4462 = vld [vmem:[#allocation3 + $0xc0] sm:$0xff]
        %v4463 = vld [vmem:[#allocation3 + $0xc8] sm:$0xff]
        %v4464 = vld [vmem:[#allocation3 + $0xd0] sm:$0xff]
        %v4465 = vld [vmem:[#allocation3 + $0xd8] sm:$0xff]
        %v4466 = vld [vmem:[#allocation3 + $0xe0] sm:$0xff]
        %v4467 = vld [vmem:[#allocation3 + $0xe8] sm:$0xff]
        %v4468 = vld [vmem:[#allocation3 + $0xf0] sm:$0xff]
        %v4469 = vld [vmem:[#allocation3 + $0xf8] sm:$0xff]
        %v4470 = vld [vmem:[#allocation3 + $0x100] sm:$0xff]
        %v4471 = vld [vmem:[#allocation3 + $0x108] sm:$0xff]
        %v4472 = vld [vmem:[#allocation3 + $0x110] sm:$0xff]
        %v4473 = vld [vmem:[#allocation3 + $0x118] sm:$0xff]
        %v4474 = vld [vmem:[#allocation3 + $0x120] sm:$0xff]
        %v4475 = vld [vmem:[#allocation3 + $0x128] sm:$0xff]
        %v4476 = vld [vmem:[#allocation3 + $0x130] sm:$0xff]
        %v4477 = vld [vmem:[#allocation3 + $0x138] sm:$0xff]
        %v4478 = vld [vmem:[#allocation3 + $0x140] sm:$0xff]
        %v4479 = vld [vmem:[#allocation3 + $0x148] sm:$0xff]
        %v4480 = vld [vmem:[#allocation3 + $0x150] sm:$0xff]
        %v4481 = vld [vmem:[#allocation3 + $0x158] sm:$0xff]
        %v4482 = vld [vmem:[#allocation3 + $0x160] sm:$0xff]
        %v4483 = vld [vmem:[#allocation3 + $0x168] sm:$0xff]
        %v4484 = vld [vmem:[#allocation3 + $0x170] sm:$0xff]
        %v4485 = vld [vmem:[#allocation3 + $0x178] sm:$0xff]
        %v4486 = vadd.f32 %v4438, %v4143
        %v4487 = vadd.f32 %v4439, %v4145
        %v4488 = vadd.f32 %v4440, %v4236
        %v4489 = vadd.f32 %v4441, %v4238
        %v4490 = vadd.f32 %v4442, %v4147
        %v4491 = vadd.f32 %v4443, %v4149
        %v4492 = vadd.f32 %v4444, %v4240
        %v4493 = vadd.f32 %v4445, %v4242
        %v4494 = vadd.f32 %v4446, %v4153
        %v4495 = vadd.f32 %v4447, %v4155
        %v4496 = vadd.f32 %v4448, %v4246
        %v4497 = vadd.f32 %v4449, %v4248
        %v4498 = vadd.f32 %v4450, %v4157
        %v4499 = vadd.f32 %v4451, %v4159
        %v4500 = vadd.f32 %v4452, %v4250
        %v4501 = vadd.f32 %v4453, %v4252
        %v4502 = vadd.f32 %v4454, %v4163
        %v4503 = vadd.f32 %v4455, %v4165
        %v4504 = vadd.f32 %v4456, %v4256
        %v4505 = vadd.f32 %v4457, %v4258
        %v4506 = vadd.f32 %v4458, %v4167
        %v4507 = vadd.f32 %v4459, %v4169
        %v4508 = vadd.f32 %v4460, %v4260
        %v4509 = vadd.f32 %v4461, %v4262
        %v4510 = vadd.f32 %v4462, %v4173
        %v4511 = vadd.f32 %v4463, %v4175
        %v4512 = vadd.f32 %v4464, %v4266
        %v4513 = vadd.f32 %v4465, %v4268
        %v4514 = vadd.f32 %v4466, %v4177
        %v4515 = vadd.f32 %v4467, %v4179
        %v4516 = vadd.f32 %v4468, %v4270
        %v4517 = vadd.f32 %v4469, %v4272
        %v4518 = vadd.f32 %v4470, %v4183
        %v4519 = vadd.f32 %v4471, %v4185
        %v4520 = vadd.f32 %v4472, %v4276
        %v4521 = vadd.f32 %v4473, %v4278
        %v4522 = vadd.f32 %v4474, %v4187
        %v4523 = vadd.f32 %v4475, %v4189
        %v4524 = vadd.f32 %v4476, %v4280
        %v4525 = vadd.f32 %v4477, %v4282
        %v4526 = vadd.f32 %v4478, %v4193
        %v4527 = vadd.f32 %v4479, %v4195
        %v4528 = vadd.f32 %v4480, %v4286
        %v4529 = vadd.f32 %v4481, %v4288
        %v4530 = vadd.f32 %v4482, %v4197
        %v4531 = vadd.f32 %v4483, %v4199
        %v4532 = vadd.f32 %v4484, %v4290
        %v4533 = vadd.f32 %v4485, %v4292
        %4534 = vst [vmem:[#allocation3] sm:$0xff] %v4486
        %4535 = vst [vmem:[#allocation3 + $0x8] sm:$0xff] %v4487
        %4536 = vst [vmem:[#allocation3 + $0x10] sm:$0xff] %v4488
        %4537 = vst [vmem:[#allocation3 + $0x18] sm:$0xff] %v4489
        %4538 = vst [vmem:[#allocation3 + $0x20] sm:$0xff] %v4490
        %4539 = vst [vmem:[#allocation3 + $0x28] sm:$0xff] %v4491
        %4540 = vst [vmem:[#allocation3 + $0x30] sm:$0xff] %v4492
        %4541 = vst [vmem:[#allocation3 + $0x38] sm:$0xff] %v4493
        %4542 = vst [vmem:[#allocation3 + $0x40] sm:$0xff] %v4494
        %4543 = vst [vmem:[#allocation3 + $0x48] sm:$0xff] %v4495
        %4544 = vst [vmem:[#allocation3 + $0x50] sm:$0xff] %v4496
        %4545 = vst [vmem:[#allocation3 + $0x58] sm:$0xff] %v4497
        %4546 = vst [vmem:[#allocation3 + $0x60] sm:$0xff] %v4498
        %4547 = vst [vmem:[#allocation3 + $0x68] sm:$0xff] %v4499
        %4548 = vst [vmem:[#allocation3 + $0x70] sm:$0xff] %v4500
        %4549 = vst [vmem:[#allocation3 + $0x78] sm:$0xff] %v4501
        %4550 = vst [vmem:[#allocation3 + $0x80] sm:$0xff] %v4502
        %4551 = vst [vmem:[#allocation3 + $0x88] sm:$0xff] %v4503
        %4552 = vst [vmem:[#allocation3 + $0x90] sm:$0xff] %v4504
        %4553 = vst [vmem:[#allocation3 + $0x98] sm:$0xff] %v4505
        %4554 = vst [vmem:[#allocation3 + $0xa0] sm:$0xff] %v4506
        %4555 = vst [vmem:[#allocation3 + $0xa8] sm:$0xff] %v4507
        %4556 = vst [vmem:[#allocation3 + $0xb0] sm:$0xff] %v4508
        %4557 = vst [vmem:[#allocation3 + $0xb8] sm:$0xff] %v4509
        %4558 = vst [vmem:[#allocation3 + $0xc0] sm:$0xff] %v4510
        %4559 = vst [vmem:[#allocation3 + $0xc8] sm:$0xff] %v4511
        %4560 = vst [vmem:[#allocation3 + $0xd0] sm:$0xff] %v4512
        %4561 = vst [vmem:[#allocation3 + $0xd8] sm:$0xff] %v4513
        %4562 = vst [vmem:[#allocation3 + $0xe0] sm:$0xff] %v4514
        %4563 = vst [vmem:[#allocation3 + $0xe8] sm:$0xff] %v4515
        %4564 = vst [vmem:[#allocation3 + $0xf0] sm:$0xff] %v4516
        %4565 = vst [vmem:[#allocation3 + $0xf8] sm:$0xff] %v4517
        %4566 = vst [vmem:[#allocation3 + $0x100] sm:$0xff] %v4518
        %4567 = vst [vmem:[#allocation3 + $0x108] sm:$0xff] %v4519
        %4568 = vst [vmem:[#allocation3 + $0x110] sm:$0xff] %v4520
        %4569 = vst [vmem:[#allocation3 + $0x118] sm:$0xff] %v4521
        %4570 = vst [vmem:[#allocation3 + $0x120] sm:$0xff] %v4522
        %4571 = vst [vmem:[#allocation3 + $0x128] sm:$0xff] %v4523
        %4572 = vst [vmem:[#allocation3 + $0x130] sm:$0xff] %v4524
        %4573 = vst [vmem:[#allocation3 + $0x138] sm:$0xff] %v4525
        %4574 = vst [vmem:[#allocation3 + $0x140] sm:$0xff] %v4526
        %4575 = vst [vmem:[#allocation3 + $0x148] sm:$0xff] %v4527
        %4576 = vst [vmem:[#allocation3 + $0x150] sm:$0xff] %v4528
        %4577 = vst [vmem:[#allocation3 + $0x158] sm:$0xff] %v4529
        %4578 = vst [vmem:[#allocation3 + $0x160] sm:$0xff] %v4530
        %4579 = vst [vmem:[#allocation3 + $0x168] sm:$0xff] %v4531
        %4580 = vst [vmem:[#allocation3 + $0x170] sm:$0xff] %v4532
        %4581 = vst [vmem:[#allocation3 + $0x178] sm:$0xff] %v4533
        %v4582 = vld [vmem:[#allocation2] sm:$0xff]
        %v4583 = vld [vmem:[#allocation2 + $0x8] sm:$0xff]
        %v4584 = vld [vmem:[#allocation2 + $0x10] sm:$0xff]
        %v4585 = vld [vmem:[#allocation2 + $0x18] sm:$0xff]
        %v4586 = vld [vmem:[#allocation2 + $0x20] sm:$0xff]
        %v4587 = vld [vmem:[#allocation2 + $0x28] sm:$0xff]
        %v4588 = vld [vmem:[#allocation2 + $0x30] sm:$0xff]
        %v4589 = vld [vmem:[#allocation2 + $0x38] sm:$0xff]
        %v4590 = vld [vmem:[#allocation2 + $0x40] sm:$0xff]
        %v4591 = vld [vmem:[#allocation2 + $0x48] sm:$0xff]
        %v4592 = vld [vmem:[#allocation2 + $0x50] sm:$0xff]
        %v4593 = vld [vmem:[#allocation2 + $0x58] sm:$0xff]
        %v4594 = vld [vmem:[#allocation2 + $0x60] sm:$0xff]
        %v4595 = vld [vmem:[#allocation2 + $0x68] sm:$0xff]
        %v4596 = vld [vmem:[#allocation2 + $0x70] sm:$0xff]
        %v4597 = vld [vmem:[#allocation2 + $0x78] sm:$0xff]
        %v4598 = vld [vmem:[#allocation2 + $0x80] sm:$0xff]
        %v4599 = vld [vmem:[#allocation2 + $0x88] sm:$0xff]
        %v4600 = vld [vmem:[#allocation2 + $0x90] sm:$0xff]
        %v4601 = vld [vmem:[#allocation2 + $0x98] sm:$0xff]
        %v4602 = vld [vmem:[#allocation2 + $0xa0] sm:$0xff]
        %v4603 = vld [vmem:[#allocation2 + $0xa8] sm:$0xff]
        %v4604 = vld [vmem:[#allocation2 + $0xb0] sm:$0xff]
        %v4605 = vld [vmem:[#allocation2 + $0xb8] sm:$0xff]
        %v4606 = vld [vmem:[#allocation2 + $0xc0] sm:$0xff]
        %v4607 = vld [vmem:[#allocation2 + $0xc8] sm:$0xff]
        %v4608 = vld [vmem:[#allocation2 + $0xd0] sm:$0xff]
        %v4609 = vld [vmem:[#allocation2 + $0xd8] sm:$0xff]
        %v4610 = vld [vmem:[#allocation2 + $0xe0] sm:$0xff]
        %v4611 = vld [vmem:[#allocation2 + $0xe8] sm:$0xff]
        %v4612 = vld [vmem:[#allocation2 + $0xf0] sm:$0xff]
        %v4613 = vld [vmem:[#allocation2 + $0xf8] sm:$0xff]
        %v4614 = vld [vmem:[#allocation2 + $0x100] sm:$0xff]
        %v4615 = vld [vmem:[#allocation2 + $0x108] sm:$0xff]
        %v4616 = vld [vmem:[#allocation2 + $0x110] sm:$0xff]
        %v4617 = vld [vmem:[#allocation2 + $0x118] sm:$0xff]
        %v4618 = vld [vmem:[#allocation2 + $0x120] sm:$0xff]
        %v4619 = vld [vmem:[#allocation2 + $0x128] sm:$0xff]
        %v4620 = vld [vmem:[#allocation2 + $0x130] sm:$0xff]
        %v4621 = vld [vmem:[#allocation2 + $0x138] sm:$0xff]
        %v4622 = vld [vmem:[#allocation2 + $0x140] sm:$0xff]
        %v4623 = vld [vmem:[#allocation2 + $0x148] sm:$0xff]
        %v4624 = vld [vmem:[#allocation2 + $0x150] sm:$0xff]
        %v4625 = vld [vmem:[#allocation2 + $0x158] sm:$0xff]
        %v4626 = vld [vmem:[#allocation2 + $0x160] sm:$0xff]
        %v4627 = vld [vmem:[#allocation2 + $0x168] sm:$0xff]
        %v4628 = vld [vmem:[#allocation2 + $0x170] sm:$0xff]
        %v4629 = vld [vmem:[#allocation2 + $0x178] sm:$0xff]
        %v4630 = vld [vmem:[#allocation3] sm:$0xff]
        %v4631 = vld [vmem:[#allocation3 + $0x8] sm:$0xff]
        %v4632 = vld [vmem:[#allocation3 + $0x10] sm:$0xff]
        %v4633 = vld [vmem:[#allocation3 + $0x18] sm:$0xff]
        %v4634 = vld [vmem:[#allocation3 + $0x20] sm:$0xff]
        %v4635 = vld [vmem:[#allocation3 + $0x28] sm:$0xff]
        %v4636 = vld [vmem:[#allocation3 + $0x30] sm:$0xff]
        %v4637 = vld [vmem:[#allocation3 + $0x38] sm:$0xff]
        %v4638 = vld [vmem:[#allocation3 + $0x40] sm:$0xff]
        %v4639 = vld [vmem:[#allocation3 + $0x48] sm:$0xff]
        %v4640 = vld [vmem:[#allocation3 + $0x50] sm:$0xff]
        %v4641 = vld [vmem:[#allocation3 + $0x58] sm:$0xff]
        %v4642 = vld [vmem:[#allocation3 + $0x60] sm:$0xff]
        %v4643 = vld [vmem:[#allocation3 + $0x68] sm:$0xff]
        %v4644 = vld [vmem:[#allocation3 + $0x70] sm:$0xff]
        %v4645 = vld [vmem:[#allocation3 + $0x78] sm:$0xff]
        %v4646 = vld [vmem:[#allocation3 + $0x80] sm:$0xff]
        %v4647 = vld [vmem:[#allocation3 + $0x88] sm:$0xff]
        %v4648 = vld [vmem:[#allocation3 + $0x90] sm:$0xff]
        %v4649 = vld [vmem:[#allocation3 + $0x98] sm:$0xff]
        %v4650 = vld [vmem:[#allocation3 + $0xa0] sm:$0xff]
        %v4651 = vld [vmem:[#allocation3 + $0xa8] sm:$0xff]
        %v4652 = vld [vmem:[#allocation3 + $0xb0] sm:$0xff]
        %v4653 = vld [vmem:[#allocation3 + $0xb8] sm:$0xff]
        %v4654 = vld [vmem:[#allocation3 + $0xc0] sm:$0xff]
        %v4655 = vld [vmem:[#allocation3 + $0xc8] sm:$0xff]
        %v4656 = vld [vmem:[#allocation3 + $0xd0] sm:$0xff]
        %v4657 = vld [vmem:[#allocation3 + $0xd8] sm:$0xff]
        %v4658 = vld [vmem:[#allocation3 + $0xe0] sm:$0xff]
        %v4659 = vld [vmem:[#allocation3 + $0xe8] sm:$0xff]
        %v4660 = vld [vmem:[#allocation3 + $0xf0] sm:$0xff]
        %v4661 = vld [vmem:[#allocation3 + $0xf8] sm:$0xff]
        %v4662 = vld [vmem:[#allocation3 + $0x100] sm:$0xff]
        %v4663 = vld [vmem:[#allocation3 + $0x108] sm:$0xff]
        %v4664 = vld [vmem:[#allocation3 + $0x110] sm:$0xff]
        %v4665 = vld [vmem:[#allocation3 + $0x118] sm:$0xff]
        %v4666 = vld [vmem:[#allocation3 + $0x120] sm:$0xff]
        %v4667 = vld [vmem:[#allocation3 + $0x128] sm:$0xff]
        %v4668 = vld [vmem:[#allocation3 + $0x130] sm:$0xff]
        %v4669 = vld [vmem:[#allocation3 + $0x138] sm:$0xff]
        %v4670 = vld [vmem:[#allocation3 + $0x140] sm:$0xff]
        %v4671 = vld [vmem:[#allocation3 + $0x148] sm:$0xff]
        %v4672 = vld [vmem:[#allocation3 + $0x150] sm:$0xff]
        %v4673 = vld [vmem:[#allocation3 + $0x158] sm:$0xff]
        %v4674 = vld [vmem:[#allocation3 + $0x160] sm:$0xff]
        %v4675 = vld [vmem:[#allocation3 + $0x168] sm:$0xff]
        %v4676 = vld [vmem:[#allocation3 + $0x170] sm:$0xff]
        %v4677 = vld [vmem:[#allocation3 + $0x178] sm:$0xff]
        %v4678 = vmax.f32 %v4582, %v4630
        %v4679 = vmax.f32 %v4583, %v4631
        %v4680 = vmax.f32 %v4584, %v4632
        %v4681 = vmax.f32 %v4585, %v4633
        %v4682 = vmax.f32 %v4586, %v4634
        %v4683 = vmax.f32 %v4587, %v4635
        %v4684 = vmax.f32 %v4588, %v4636
        %v4685 = vmax.f32 %v4589, %v4637
        %v4686 = vmax.f32 %v4590, %v4638
        %v4687 = vmax.f32 %v4591, %v4639
        %v4688 = vmax.f32 %v4592, %v4640
        %v4689 = vmax.f32 %v4593, %v4641
        %v4690 = vmax.f32 %v4594, %v4642
        %v4691 = vmax.f32 %v4595, %v4643
        %v4692 = vmax.f32 %v4596, %v4644
        %v4693 = vmax.f32 %v4597, %v4645
        %v4694 = vmax.f32 %v4598, %v4646
        %v4695 = vmax.f32 %v4599, %v4647
        %v4696 = vmax.f32 %v4600, %v4648
        %v4697 = vmax.f32 %v4601, %v4649
        %v4698 = vmax.f32 %v4602, %v4650
        %v4699 = vmax.f32 %v4603, %v4651
        %v4700 = vmax.f32 %v4604, %v4652
        %v4701 = vmax.f32 %v4605, %v4653
        %v4702 = vmax.f32 %v4606, %v4654
        %v4703 = vmax.f32 %v4607, %v4655
        %v4704 = vmax.f32 %v4608, %v4656
        %v4705 = vmax.f32 %v4609, %v4657
        %v4706 = vmax.f32 %v4610, %v4658
        %v4707 = vmax.f32 %v4611, %v4659
        %v4708 = vmax.f32 %v4612, %v4660
        %v4709 = vmax.f32 %v4613, %v4661
        %v4710 = vmax.f32 %v4614, %v4662
        %v4711 = vmax.f32 %v4615, %v4663
        %v4712 = vmax.f32 %v4616, %v4664
        %v4713 = vmax.f32 %v4617, %v4665
        %v4714 = vmax.f32 %v4618, %v4666
        %v4715 = vmax.f32 %v4619, %v4667
        %v4716 = vmax.f32 %v4620, %v4668
        %v4717 = vmax.f32 %v4621, %v4669
        %v4718 = vmax.f32 %v4622, %v4670
        %v4719 = vmax.f32 %v4623, %v4671
        %v4720 = vmax.f32 %v4624, %v4672
        %v4721 = vmax.f32 %v4625, %v4673
        %v4722 = vmax.f32 %v4626, %v4674
        %v4723 = vmax.f32 %v4627, %v4675
        %v4724 = vmax.f32 %v4628, %v4676
        %v4725 = vmax.f32 %v4629, %v4677
        %v4726 = vmax.f32 %v4678, %v4680
        %v4727 = vmax.f32 %v4679, %v4681
        %v4728 = vmax.f32 %v4682, %v4684
        %v4729 = vmax.f32 %v4683, %v4685
        %v4730 = vmax.f32 %v4686, %v4688
        %v4731 = vmax.f32 %v4687, %v4689
        %v4732 = vmax.f32 %v4690, %v4692
        %v4733 = vmax.f32 %v4691, %v4693
        %v4734 = vmax.f32 %v4694, %v4696
        %v4735 = vmax.f32 %v4695, %v4697
        %v4736 = vmax.f32 %v4698, %v4700
        %v4737 = vmax.f32 %v4699, %v4701
        %v4738 = vmax.f32 %v4702, %v4704
        %v4739 = vmax.f32 %v4703, %v4705
        %v4740 = vmax.f32 %v4706, %v4708
        %v4741 = vmax.f32 %v4707, %v4709
        %v4742 = vmax.f32 %v4710, %v4712
        %v4743 = vmax.f32 %v4711, %v4713
        %v4744 = vmax.f32 %v4714, %v4716
        %v4745 = vmax.f32 %v4715, %v4717
        %v4746 = vmax.f32 %v4718, %v4720
        %v4747 = vmax.f32 %v4719, %v4721
        %v4748 = vmax.f32 %v4722, %v4724
        %v4749 = vmax.f32 %v4723, %v4725
        %v4750 = vld [vmem:[%s2] sm:$0x3]
        %v4752 = vlaneseq
        %v4753 = vshrl.u32 %v4752, 7
        %v4754 = vsub.s32 0, %v4753
        %v4755 = vrot.slane %v4750, %v4754
        %v4756 = vlaneseq
        %v4757 = vshrl.u32 %v4756, 7
        %v4758 = vsub.s32 1, %v4757
        %v4759 = vrot.slane %v4750, %v4758
        %v4762 = vadd.f32 %v4726, %v4755
        %v4763 = vadd.f32 %v4727, %v4759
        %v4764 = vadd.f32 %v4728, %v4755
        %v4765 = vadd.f32 %v4729, %v4759
        %v4766 = vadd.f32 %v4730, %v4755
        %v4767 = vadd.f32 %v4731, %v4759
        %v4768 = vadd.f32 %v4732, %v4755
        %v4769 = vadd.f32 %v4733, %v4759
        %v4770 = vadd.f32 %v4734, %v4755
        %v4771 = vadd.f32 %v4735, %v4759
        %v4772 = vadd.f32 %v4736, %v4755
        %v4773 = vadd.f32 %v4737, %v4759
        %v4774 = vadd.f32 %v4738, %v4755
        %v4775 = vadd.f32 %v4739, %v4759
        %v4776 = vadd.f32 %v4740, %v4755
        %v4777 = vadd.f32 %v4741, %v4759
        %v4778 = vadd.f32 %v4742, %v4755
        %v4779 = vadd.f32 %v4743, %v4759
        %v4780 = vadd.f32 %v4744, %v4755
        %v4781 = vadd.f32 %v4745, %v4759
        %v4782 = vadd.f32 %v4746, %v4755
        %v4783 = vadd.f32 %v4747, %v4759
        %v4784 = vadd.f32 %v4748, %v4755
        %v4785 = vadd.f32 %v4749, %v4759
        %v4786 = vmax.f32 %v4762, 0.0
        %v4787 = vmax.f32 %v4763, 0.0
        %v4788 = vmax.f32 %v4764, 0.0
        %v4789 = vmax.f32 %v4765, 0.0
        %v4790 = vmax.f32 %v4766, 0.0
        %v4791 = vmax.f32 %v4767, 0.0
        %v4792 = vmax.f32 %v4768, 0.0
        %v4793 = vmax.f32 %v4769, 0.0
        %v4794 = vmax.f32 %v4770, 0.0
        %v4795 = vmax.f32 %v4771, 0.0
        %v4796 = vmax.f32 %v4772, 0.0
        %v4797 = vmax.f32 %v4773, 0.0
        %v4798 = vmax.f32 %v4774, 0.0
        %v4799 = vmax.f32 %v4775, 0.0
        %v4800 = vmax.f32 %v4776, 0.0
        %v4801 = vmax.f32 %v4777, 0.0
        %v4802 = vmax.f32 %v4778, 0.0
        %v4803 = vmax.f32 %v4779, 0.0
        %v4804 = vmax.f32 %v4780, 0.0
        %v4805 = vmax.f32 %v4781, 0.0
        %v4806 = vmax.f32 %v4782, 0.0
        %v4807 = vmax.f32 %v4783, 0.0
        %v4808 = vmax.f32 %v4784, 0.0
        %v4809 = vmax.f32 %v4785, 0.0
        %v4810 = vpack.c.bf16 %v4788, %v4786
        %v4811 = vpack.c.bf16 %v4789, %v4787
        %v4812 = vpack.c.bf16 %v4792, %v4790
        %v4813 = vpack.c.bf16 %v4793, %v4791
        %v4814 = vpack.c.bf16 %v4796, %v4794
        %v4815 = vpack.c.bf16 %v4797, %v4795
        %v4816 = vpack.c.bf16 %v4800, %v4798
        %v4817 = vpack.c.bf16 %v4801, %v4799
        %v4818 = vpack.c.bf16 %v4804, %v4802
        %v4819 = vpack.c.bf16 %v4805, %v4803
        %v4820 = vpack.c.bf16 %v4808, %v4806
        %v4821 = vpack.c.bf16 %v4809, %v4807
        %v4822 = vld [vmem:[%s3] sm:$0xf]
        %v4823 = vld [vmem:[%s3 + $0x4] sm:$0xf]
        %v4824 = vld [vmem:[%s3 + $0x8] sm:$0xf]
        %v4825 = vld [vmem:[%s3 + $0xc] sm:$0xf]
        %v4826 = vld [vmem:[%s3 + $0x10] sm:$0xf]
        %v4827 = vld [vmem:[%s3 + $0x14] sm:$0xf]
        %v4828 = vld [vmem:[%s3 + $0x18] sm:$0xf]
        %v4829 = vld [vmem:[%s3 + $0x1c] sm:$0xf]
        %v4830 = vld [vmem:[%s3 + $0x20] sm:$0xf]
        %v4831 = vld [vmem:[%s3 + $0x24] sm:$0xf]
        %v4832 = vld [vmem:[%s3 + $0x28] sm:$0xf]
        %v4833 = vld [vmem:[%s3 + $0x2c] sm:$0xf]
        %v4834 = vld [vmem:[%s3 + $0x30] sm:$0xf]
        %v4835 = vld [vmem:[%s3 + $0x34] sm:$0xf]
        %v4836 = vld [vmem:[%s3 + $0x38] sm:$0xf]
        %v4837 = vld [vmem:[%s3 + $0x3c] sm:$0xf]
        %v4838 = vld [vmem:[%s3 + $0x40] sm:$0xf]
        %v4839 = vld [vmem:[%s3 + $0x44] sm:$0xf]
        %v4840 = vld [vmem:[%s3 + $0x48] sm:$0xf]
        %v4841 = vld [vmem:[%s3 + $0x4c] sm:$0xf]
        %v4842 = vld [vmem:[%s3 + $0x50] sm:$0xf]
        %v4843 = vld [vmem:[%s3 + $0x54] sm:$0xf]
        %v4844 = vld [vmem:[%s3 + $0x58] sm:$0xf]
        %v4845 = vld [vmem:[%s3 + $0x5c] sm:$0xf]
        %v4870 = vunpack.c.l.b16 %v4822
        %v4871 = vunpack.c.l.b16 %v4823
        %v4872 = vunpack.c.l.b16 %v4824
        %v4873 = vunpack.c.l.b16 %v4825
        %v4874 = vunpack.c.l.b16 %v4826
        %v4875 = vunpack.c.l.b16 %v4827
        %v4876 = vunpack.c.l.b16 %v4828
        %v4877 = vunpack.c.l.b16 %v4829
        %v4878 = vunpack.c.l.b16 %v4830
        %v4879 = vunpack.c.l.b16 %v4831
        %v4880 = vunpack.c.l.b16 %v4832
        %v4881 = vunpack.c.l.b16 %v4833
        %v4882 = vunpack.c.l.b16 %v4834
        %v4883 = vunpack.c.l.b16 %v4835
        %v4884 = vunpack.c.l.b16 %v4836
        %v4885 = vunpack.c.l.b16 %v4837
        %v4886 = vunpack.c.l.b16 %v4838
        %v4887 = vunpack.c.l.b16 %v4839
        %v4888 = vunpack.c.l.b16 %v4840
        %v4889 = vunpack.c.l.b16 %v4841
        %v4890 = vunpack.c.l.b16 %v4842
        %v4891 = vunpack.c.l.b16 %v4843
        %v4892 = vunpack.c.l.b16 %v4844
        %v4893 = vunpack.c.l.b16 %v4845
        %v4894 = vpack.c.b16 %v4871, %v4870
        %v4895 = vpack.c.b16 %v4873, %v4872
        %v4896 = vpack.c.b16 %v4875, %v4874
        %v4897 = vpack.c.b16 %v4877, %v4876
        %v4898 = vpack.c.b16 %v4879, %v4878
        %v4899 = vpack.c.b16 %v4881, %v4880
        %v4900 = vpack.c.b16 %v4883, %v4882
        %v4901 = vpack.c.b16 %v4885, %v4884
        %v4902 = vpack.c.b16 %v4887, %v4886
        %v4903 = vpack.c.b16 %v4889, %v4888
        %v4904 = vpack.c.b16 %v4891, %v4890
        %v4905 = vpack.c.b16 %v4893, %v4892
        %vm4906 = vcmask 785408
        %v4908 = vsel %vm4906, %v4894, 0
        %v4911 = vsel %vm4906, %v4895, 0
        %v4914 = vsel %vm4906, %v4896, 0
        %v4917 = vsel %vm4906, %v4897, 0
        %v4920 = vsel %vm4906, %v4898, 0
        %v4923 = vsel %vm4906, %v4899, 0
        %v4926 = vsel %vm4906, %v4900, 0
        %v4929 = vsel %vm4906, %v4901, 0
        %v4932 = vsel %vm4906, %v4902, 0
        %v4935 = vsel %vm4906, %v4903, 0
        %v4938 = vsel %vm4906, %v4904, 0
        %v4941 = vsel %vm4906, %v4905, 0
        %4943 = vmatprep.subr.bf16.mxu0 %v4811
        %4944 = vmatpush1.bf16.msra.mxu0 %v4810
        %4945 = vmatprep.subr.bf16.mxu0 %v4813
        %4946 = vmatpush1.bf16.msra.mxu0 %v4812
        %4947 = vmatprep.subr.bf16.mxu0 %v4815
        %4948 = vmatpush1.bf16.msra.mxu0 %v4814
        %4949 = vmatprep.subr.bf16.mxu0 %v4817
        %4950 = vmatpush1.bf16.msra.mxu0 %v4816
        %4951 = vmatprep.subr.bf16.mxu0 %v4819
        %4952 = vmatpush1.bf16.msra.mxu0 %v4818
        %4953 = vmatprep.subr.bf16.mxu0 %v4821
        %4954 = vmatpush1.bf16.msra.mxu0 %v4820
        %4955 = vmatprep.subr.bf16.mxu0 0
        %4956 = vmatpush1.bf16.msra.mxu0 0
        %4957 = vmatprep.subr.bf16.mxu0 0
        %4958 = vmatpush1.bf16.msra.mxu0 0
        %4959 = vmatprep.subr.bf16.mxu0 0
        %4960 = vmatpush1.bf16.msra.mxu0 0
        %4961 = vmatprep.subr.bf16.mxu0 0
        %4962 = vmatpush1.bf16.msra.mxu0 0
        %4963 = vmatprep.subr.bf16.mxu0 0
        %4964 = vmatpush1.bf16.msra.mxu0 0
        %4965 = vmatprep.subr.bf16.mxu0 0
        %4966 = vmatpush1.bf16.msra.mxu0 0
        %4967 = vmatprep.subr.bf16.mxu0 0
        %4968 = vmatpush1.bf16.msra.mxu0 0
        %4969 = vmatprep.subr.bf16.mxu0 0
        %4970 = vmatpush1.bf16.msra.mxu0 0
        %4971 = vmatprep.subr.bf16.mxu0 0
        %4972 = vmatpush1.bf16.msra.mxu0 0
        %4973 = vmatprep.subr.bf16.mxu0 0
        %4974 = vmatpush1.bf16.msra.mxu0 0
        %4975 = vmatprep.mubr.bf16.mxu0 0
        %4976 = vmatmul.mubr.bf16.gmra.mrb[0].mxu0 %v4908
        %v4977 = vpop.f32.mrb[0].mxu0
        %v4978 = vadd.f32 0.0, %v4977
        %v4979 = vpop.f32.mrb[0].mxu0
        %v4980 = vadd.f32 0.0, %v4979
        %v4981 = vpop.f32.mrb[0].mxu0
        %v4982 = vadd.f32 0.0, %v4981
        %v4983 = vpop.f32.mrb[0].mxu0
        %v4984 = vadd.f32 0.0, %v4983
        %4985 = vmatprep.mubr.bf16.mxu0 0
        %4986 = vmatmul.mubr.bf16.gmra.mrb[0].mxu0 %v4911
        %v4987 = vpop.f32.mrb[0].mxu0
        %v4988 = vadd.f32 0.0, %v4987
        %v4989 = vpop.f32.mrb[0].mxu0
        %v4990 = vadd.f32 0.0, %v4989
        %v4991 = vpop.f32.mrb[0].mxu0
        %v4992 = vadd.f32 0.0, %v4991
        %v4993 = vpop.f32.mrb[0].mxu0
        %v4994 = vadd.f32 0.0, %v4993
        %4995 = vmatprep.mubr.bf16.mxu0 0
        %4996 = vmatmul.mubr.bf16.gmra.mrb[0].mxu0 %v4914
        %v4997 = vpop.f32.mrb[0].mxu0
        %v4998 = vadd.f32 0.0, %v4997
        %v4999 = vpop.f32.mrb[0].mxu0
        %v5000 = vadd.f32 0.0, %v4999
        %v5001 = vpop.f32.mrb[0].mxu0
        %v5002 = vadd.f32 0.0, %v5001
        %v5003 = vpop.f32.mrb[0].mxu0
        %v5004 = vadd.f32 0.0, %v5003
        %5005 = vmatprep.mubr.bf16.mxu0 0
        %5006 = vmatmul.mubr.bf16.gmra.mrb[0].mxu0 %v4917
        %v5007 = vpop.f32.mrb[0].mxu0
        %v5008 = vadd.f32 0.0, %v5007
        %v5009 = vpop.f32.mrb[0].mxu0
        %v5010 = vadd.f32 0.0, %v5009
        %v5011 = vpop.f32.mrb[0].mxu0
        %v5012 = vadd.f32 0.0, %v5011
        %v5013 = vpop.f32.mrb[0].mxu0
        %v5014 = vadd.f32 0.0, %v5013
        %5015 = vmatprep.mubr.bf16.mxu0 0
        %5016 = vmatmul.mubr.bf16.gmra.mrb[0].mxu0 %v4920
        %v5017 = vpop.f32.mrb[0].mxu0
        %v5018 = vadd.f32 0.0, %v5017
        %v5019 = vpop.f32.mrb[0].mxu0
        %v5020 = vadd.f32 0.0, %v5019
        %v5021 = vpop.f32.mrb[0].mxu0
        %v5022 = vadd.f32 0.0, %v5021
        %v5023 = vpop.f32.mrb[0].mxu0
        %v5024 = vadd.f32 0.0, %v5023
        %5025 = vmatprep.mubr.bf16.mxu0 0
        %5026 = vmatmul.mubr.bf16.gmra.mrb[0].mxu0 %v4923
        %v5027 = vpop.f32.mrb[0].mxu0
        %v5028 = vadd.f32 0.0, %v5027
        %v5029 = vpop.f32.mrb[0].mxu0
        %v5030 = vadd.f32 0.0, %v5029
        %v5031 = vpop.f32.mrb[0].mxu0
        %v5032 = vadd.f32 0.0, %v5031
        %v5033 = vpop.f32.mrb[0].mxu0
        %v5034 = vadd.f32 0.0, %v5033
        %5035 = vmatprep.mubr.bf16.mxu0 0
        %5036 = vmatmul.mubr.bf16.gmra.mrb[0].mxu0 %v4926
        %v5037 = vpop.f32.mrb[0].mxu0
        %v5038 = vadd.f32 0.0, %v5037
        %v5039 = vpop.f32.mrb[0].mxu0
        %v5040 = vadd.f32 0.0, %v5039
        %v5041 = vpop.f32.mrb[0].mxu0
        %v5042 = vadd.f32 0.0, %v5041
        %v5043 = vpop.f32.mrb[0].mxu0
        %v5044 = vadd.f32 0.0, %v5043
        %5045 = vmatprep.mubr.bf16.mxu0 0
        %5046 = vmatmul.mubr.bf16.gmra.mrb[0].mxu0 %v4929
        %v5047 = vpop.f32.mrb[0].mxu0
        %v5048 = vadd.f32 0.0, %v5047
        %v5049 = vpop.f32.mrb[0].mxu0
        %v5050 = vadd.f32 0.0, %v5049
        %v5051 = vpop.f32.mrb[0].mxu0
        %v5052 = vadd.f32 0.0, %v5051
        %v5053 = vpop.f32.mrb[0].mxu0
        %v5054 = vadd.f32 0.0, %v5053
        %5055 = vmatprep.mubr.bf16.mxu0 0
        %5056 = vmatmul.mubr.bf16.gmra.mrb[0].mxu0 %v4932
        %v5057 = vpop.f32.mrb[0].mxu0
        %v5058 = vadd.f32 0.0, %v5057
        %v5059 = vpop.f32.mrb[0].mxu0
        %v5060 = vadd.f32 0.0, %v5059
        %v5061 = vpop.f32.mrb[0].mxu0
        %v5062 = vadd.f32 0.0, %v5061
        %v5063 = vpop.f32.mrb[0].mxu0
        %v5064 = vadd.f32 0.0, %v5063
        %5065 = vmatprep.mubr.bf16.mxu0 0
        %5066 = vmatmul.mubr.bf16.gmra.mrb[0].mxu0 %v4935
        %v5067 = vpop.f32.mrb[0].mxu0
        %v5068 = vadd.f32 0.0, %v5067
        %v5069 = vpop.f32.mrb[0].mxu0
        %v5070 = vadd.f32 0.0, %v5069
        %v5071 = vpop.f32.mrb[0].mxu0
        %v5072 = vadd.f32 0.0, %v5071
        %v5073 = vpop.f32.mrb[0].mxu0
        %v5074 = vadd.f32 0.0, %v5073
        %5075 = vmatprep.mubr.bf16.mxu0 0
        %5076 = vmatmul.mubr.bf16.gmra.mrb[0].mxu0 %v4938
        %v5077 = vpop.f32.mrb[0].mxu0
        %v5078 = vadd.f32 0.0, %v5077
        %v5079 = vpop.f32.mrb[0].mxu0
        %v5080 = vadd.f32 0.0, %v5079
        %v5081 = vpop.f32.mrb[0].mxu0
        %v5082 = vadd.f32 0.0, %v5081
        %v5083 = vpop.f32.mrb[0].mxu0
        %v5084 = vadd.f32 0.0, %v5083
        %5085 = vmatprep.mubr.bf16.mxu0 0
        %5086 = vmatmul.mubr.bf16.gmra.mrb[0].mxu0 %v4941
        %v5087 = vpop.f32.mrb[0].mxu0
        %v5088 = vadd.f32 0.0, %v5087
        %v5089 = vpop.f32.mrb[0].mxu0
        %v5090 = vadd.f32 0.0, %v5089
        %v5091 = vpop.f32.mrb[0].mxu0
        %v5092 = vadd.f32 0.0, %v5091
        %v5093 = vpop.f32.mrb[0].mxu0
        %v5094 = vadd.f32 0.0, %v5093
        %5095 = vdwg.mxu0
        %v5096 = vpack.c.bf16 %v4982, %v4978
        %v5097 = vpack.c.bf16 %v4984, %v4980
        %v5098 = vpack.c.bf16 %v4992, %v4988
        %v5099 = vpack.c.bf16 %v4994, %v4990
        %v5100 = vpack.c.bf16 %v5002, %v4998
        %v5101 = vpack.c.bf16 %v5004, %v5000
        %v5102 = vpack.c.bf16 %v5012, %v5008
        %v5103 = vpack.c.bf16 %v5014, %v5010
        %v5104 = vpack.c.bf16 %v5022, %v5018
        %v5105 = vpack.c.bf16 %v5024, %v5020
        %v5106 = vpack.c.bf16 %v5032, %v5028
        %v5107 = vpack.c.bf16 %v5034, %v5030
        %v5108 = vpack.c.bf16 %v5042, %v5038
        %v5109 = vpack.c.bf16 %v5044, %v5040
        %v5110 = vpack.c.bf16 %v5052, %v5048
        %v5111 = vpack.c.bf16 %v5054, %v5050
        %v5112 = vpack.c.bf16 %v5062, %v5058
        %v5113 = vpack.c.bf16 %v5064, %v5060
        %v5114 = vpack.c.bf16 %v5072, %v5068
        %v5115 = vpack.c.bf16 %v5074, %v5070
        %v5116 = vpack.c.bf16 %v5082, %v5078
        %v5117 = vpack.c.bf16 %v5084, %v5080
        %v5118 = vpack.c.bf16 %v5092, %v5088
        %v5119 = vpack.c.bf16 %v5094, %v5090
        %5120 = vst [vmem:[#allocation5] sm:$0xff] %v5096
        %5121 = vst [vmem:[#allocation5 + $0x8] sm:$0xff] %v5097
        %5122 = vst [vmem:[#allocation5 + $0x10] sm:$0xff] %v5098
        %5123 = vst [vmem:[#allocation5 + $0x18] sm:$0xff] %v5099
        %5124 = vst [vmem:[#allocation5 + $0x20] sm:$0xff] %v5100
        %5125 = vst [vmem:[#allocation5 + $0x28] sm:$0xff] %v5101
        %5126 = vst [vmem:[#allocation5 + $0x30] sm:$0xff] %v5102
        %5127 = vst [vmem:[#allocation5 + $0x38] sm:$0xff] %v5103
        %5128 = vst [vmem:[#allocation5 + $0x40] sm:$0xff] %v5104
        %5129 = vst [vmem:[#allocation5 + $0x48] sm:$0xff] %v5105
        %5130 = vst [vmem:[#allocation5 + $0x50] sm:$0xff] %v5106
        %5131 = vst [vmem:[#allocation5 + $0x58] sm:$0xff] %v5107
        %5132 = vst [vmem:[#allocation5 + $0x60] sm:$0xff] %v5108
        %5133 = vst [vmem:[#allocation5 + $0x68] sm:$0xff] %v5109
        %5134 = vst [vmem:[#allocation5 + $0x70] sm:$0xff] %v5110
        %5135 = vst [vmem:[#allocation5 + $0x78] sm:$0xff] %v5111
        %5136 = vst [vmem:[#allocation5 + $0x80] sm:$0xff] %v5112
        %5137 = vst [vmem:[#allocation5 + $0x88] sm:$0xff] %v5113
        %5138 = vst [vmem:[#allocation5 + $0x90] sm:$0xff] %v5114
        %5139 = vst [vmem:[#allocation5 + $0x98] sm:$0xff] %v5115
        %5140 = vst [vmem:[#allocation5 + $0xa0] sm:$0xff] %v5116
        %5141 = vst [vmem:[#allocation5 + $0xa8] sm:$0xff] %v5117
        %5142 = vst [vmem:[#allocation5 + $0xb0] sm:$0xff] %v5118
        %5143 = vst [vmem:[#allocation5 + $0xb8] sm:$0xff] %v5119
        %v5144 = vld [vmem:[#allocation5] sm:$0xff]
        %v5145 = vld [vmem:[#allocation5 + $0x8] sm:$0xff]
        %v5146 = vld [vmem:[#allocation5 + $0x10] sm:$0xff]
        %v5147 = vld [vmem:[#allocation5 + $0x18] sm:$0xff]
        %v5148 = vld [vmem:[#allocation5 + $0x20] sm:$0xff]
        %v5149 = vld [vmem:[#allocation5 + $0x28] sm:$0xff]
        %v5150 = vld [vmem:[#allocation5 + $0x30] sm:$0xff]
        %v5151 = vld [vmem:[#allocation5 + $0x38] sm:$0xff]
        %v5152 = vld [vmem:[%s4] sm:$0xff]
        %v5153 = vld [vmem:[%s4 + $0x8] sm:$0xff]
        %v5154 = vld [vmem:[%s4 + $0x10] sm:$0xff]
        %v5155 = vld [vmem:[%s4 + $0x18] sm:$0xff]
        %v5156 = vld [vmem:[%s4 + $0x20] sm:$0xff]
        %v5157 = vld [vmem:[%s4 + $0x28] sm:$0xff]
        %v5158 = vld [vmem:[%s4 + $0x30] sm:$0xff]
        %v5159 = vld [vmem:[%s4 + $0x38] sm:$0xff]
        %v5160 = vld [vmem:[%s4 + $0x40] sm:$0xff]
        %v5161 = vld [vmem:[%s4 + $0x48] sm:$0xff]
        %v5162 = vld [vmem:[%s4 + $0x50] sm:$0xff]
        %v5163 = vld [vmem:[%s4 + $0x58] sm:$0xff]
        %v5164 = vld [vmem:[%s4 + $0x60] sm:$0xff]
        %v5165 = vld [vmem:[%s4 + $0x68] sm:$0xff]
        %v5166 = vld [vmem:[%s4 + $0x70] sm:$0xff]
        %v5167 = vld [vmem:[%s4 + $0x78] sm:$0xff]
        %v5168 = vld [vmem:[%s4 + $0x80] sm:$0xff]
        %v5169 = vld [vmem:[%s4 + $0x88] sm:$0xff]
        %v5170 = vld [vmem:[%s4 + $0x90] sm:$0xff]
        %v5171 = vld [vmem:[%s4 + $0x98] sm:$0xff]
        %v5172 = vld [vmem:[%s4 + $0xa0] sm:$0xff]
        %v5173 = vld [vmem:[%s4 + $0xa8] sm:$0xff]
        %v5174 = vld [vmem:[%s4 + $0xb0] sm:$0xff]
        %v5175 = vld [vmem:[%s4 + $0xb8] sm:$0xff]
        %v5176 = vld [vmem:[%s4 + $0xc0] sm:$0xff]
        %v5177 = vld [vmem:[%s4 + $0xc8] sm:$0xff]
        %v5178 = vld [vmem:[%s4 + $0xd0] sm:$0xff]
        %v5179 = vld [vmem:[%s4 + $0xd8] sm:$0xff]
        %v5180 = vld [vmem:[%s4 + $0xe0] sm:$0xff]
        %v5181 = vld [vmem:[%s4 + $0xe8] sm:$0xff]
        %v5182 = vld [vmem:[%s4 + $0xf0] sm:$0xff]
        %v5183 = vld [vmem:[%s4 + $0xf8] sm:$0xff]
        %v5184 = vld [vmem:[%s4 + $0x100] sm:$0xff]
        %v5185 = vld [vmem:[%s4 + $0x108] sm:$0xff]
        %v5186 = vld [vmem:[%s4 + $0x110] sm:$0xff]
        %v5187 = vld [vmem:[%s4 + $0x118] sm:$0xff]
        %v5188 = vld [vmem:[%s4 + $0x120] sm:$0xff]
        %v5189 = vld [vmem:[%s4 + $0x128] sm:$0xff]
        %v5190 = vld [vmem:[%s4 + $0x130] sm:$0xff]
        %v5191 = vld [vmem:[%s4 + $0x138] sm:$0xff]
        %v5192 = vld [vmem:[%s4 + $0x140] sm:$0xff]
        %v5193 = vld [vmem:[%s4 + $0x148] sm:$0xff]
        %v5194 = vld [vmem:[%s4 + $0x150] sm:$0xff]
        %v5195 = vld [vmem:[%s4 + $0x158] sm:$0xff]
        %v5196 = vld [vmem:[%s4 + $0x160] sm:$0xff]
        %v5197 = vld [vmem:[%s4 + $0x168] sm:$0xff]
        %v5198 = vld [vmem:[%s4 + $0x170] sm:$0xff]
        %v5199 = vld [vmem:[%s4 + $0x178] sm:$0xff]
        %v5200 = vld [vmem:[%s4 + $0x180] sm:$0xff]
        %v5201 = vld [vmem:[%s4 + $0x188] sm:$0xff]
        %v5202 = vld [vmem:[%s4 + $0x190] sm:$0xff]
        %v5203 = vld [vmem:[%s4 + $0x198] sm:$0xff]
        %v5204 = vld [vmem:[%s4 + $0x1a0] sm:$0xff]
        %v5205 = vld [vmem:[%s4 + $0x1a8] sm:$0xff]
        %v5206 = vld [vmem:[%s4 + $0x1b0] sm:$0xff]
        %v5207 = vld [vmem:[%s4 + $0x1b8] sm:$0xff]
        %v5208 = vld [vmem:[%s4 + $0x1c0] sm:$0xff]
        %v5209 = vld [vmem:[%s4 + $0x1c8] sm:$0xff]
        %v5210 = vld [vmem:[%s4 + $0x1d0] sm:$0xff]
        %v5211 = vld [vmem:[%s4 + $0x1d8] sm:$0xff]
        %v5212 = vld [vmem:[%s4 + $0x1e0] sm:$0xff]
        %v5213 = vld [vmem:[%s4 + $0x1e8] sm:$0xff]
        %v5214 = vld [vmem:[%s4 + $0x1f0] sm:$0xff]
        %v5215 = vld [vmem:[%s4 + $0x1f8] sm:$0xff]
        %v5280 = vunpack.c.l.b16 %v5152
        %v5281 = vunpack.c.h.b16 %v5152
        %v5282 = vunpack.c.l.b16 %v5153
        %v5283 = vunpack.c.h.b16 %v5153
        %v5284 = vunpack.c.l.b16 %v5154
        %v5285 = vunpack.c.h.b16 %v5154
        %v5286 = vunpack.c.l.b16 %v5155
        %v5287 = vunpack.c.h.b16 %v5155
        %v5288 = vunpack.c.l.b16 %v5156
        %v5289 = vunpack.c.h.b16 %v5156
        %v5290 = vunpack.c.l.b16 %v5157
        %v5291 = vunpack.c.h.b16 %v5157
        %v5292 = vunpack.c.l.b16 %v5158
        %v5293 = vunpack.c.h.b16 %v5158
        %v5294 = vunpack.c.l.b16 %v5159
        %v5295 = vunpack.c.h.b16 %v5159
        %v5296 = vunpack.c.l.b16 %v5160
        %v5297 = vunpack.c.h.b16 %v5160
        %v5298 = vunpack.c.l.b16 %v5161
        %v5299 = vunpack.c.h.b16 %v5161
        %v5300 = vunpack.c.l.b16 %v5162
        %v5301 = vunpack.c.h.b16 %v5162
        %v5302 = vunpack.c.l.b16 %v5163
        %v5303 = vunpack.c.h.b16 %v5163
        %v5304 = vunpack.c.l.b16 %v5164
        %v5305 = vunpack.c.h.b16 %v5164
        %v5306 = vunpack.c.l.b16 %v5165
        %v5307 = vunpack.c.h.b16 %v5165
        %v5308 = vunpack.c.l.b16 %v5166
        %v5309 = vunpack.c.h.b16 %v5166
        %v5310 = vunpack.c.l.b16 %v5167
        %v5311 = vunpack.c.h.b16 %v5167
        %v5312 = vunpack.c.l.b16 %v5168
        %v5313 = vunpack.c.h.b16 %v5168
        %v5314 = vunpack.c.l.b16 %v5169
        %v5315 = vunpack.c.h.b16 %v5169
        %v5316 = vunpack.c.l.b16 %v5170
        %v5317 = vunpack.c.h.b16 %v5170
        %v5318 = vunpack.c.l.b16 %v5171
        %v5319 = vunpack.c.h.b16 %v5171
        %v5320 = vunpack.c.l.b16 %v5172
        %v5321 = vunpack.c.h.b16 %v5172
        %v5322 = vunpack.c.l.b16 %v5173
        %v5323 = vunpack.c.h.b16 %v5173
        %v5324 = vunpack.c.l.b16 %v5174
        %v5325 = vunpack.c.h.b16 %v5174
        %v5326 = vunpack.c.l.b16 %v5175
        %v5327 = vunpack.c.h.b16 %v5175
        %v5328 = vunpack.c.l.b16 %v5176
        %v5329 = vunpack.c.h.b16 %v5176
        %v5330 = vunpack.c.l.b16 %v5177
        %v5331 = vunpack.c.h.b16 %v5177
        %v5332 = vunpack.c.l.b16 %v5178
        %v5333 = vunpack.c.h.b16 %v5178
        %v5334 = vunpack.c.l.b16 %v5179
        %v5335 = vunpack.c.h.b16 %v5179
        %v5336 = vunpack.c.l.b16 %v5180
        %v5337 = vunpack.c.h.b16 %v5180
        %v5338 = vunpack.c.l.b16 %v5181
        %v5339 = vunpack.c.h.b16 %v5181
        %v5340 = vunpack.c.l.b16 %v5182
        %v5341 = vunpack.c.h.b16 %v5182
        %v5342 = vunpack.c.l.b16 %v5183
        %v5343 = vunpack.c.h.b16 %v5183
        %v5344 = vunpack.c.l.b16 %v5184
        %v5345 = vunpack.c.h.b16 %v5184
        %v5346 = vunpack.c.l.b16 %v5185
        %v5347 = vunpack.c.h.b16 %v5185
        %v5348 = vunpack.c.l.b16 %v5186
        %v5349 = vunpack.c.h.b16 %v5186
        %v5350 = vunpack.c.l.b16 %v5187
        %v5351 = vunpack.c.h.b16 %v5187
        %v5352 = vunpack.c.l.b16 %v5188
        %v5353 = vunpack.c.h.b16 %v5188
        %v5354 = vunpack.c.l.b16 %v5189
        %v5355 = vunpack.c.h.b16 %v5189
        %v5356 = vunpack.c.l.b16 %v5190
        %v5357 = vunpack.c.h.b16 %v5190
        %v5358 = vunpack.c.l.b16 %v5191
        %v5359 = vunpack.c.h.b16 %v5191
        %v5360 = vunpack.c.l.b16 %v5192
        %v5361 = vunpack.c.h.b16 %v5192
        %v5362 = vunpack.c.l.b16 %v5193
        %v5363 = vunpack.c.h.b16 %v5193
        %v5364 = vunpack.c.l.b16 %v5194
        %v5365 = vunpack.c.h.b16 %v5194
        %v5366 = vunpack.c.l.b16 %v5195
        %v5367 = vunpack.c.h.b16 %v5195
        %v5368 = vunpack.c.l.b16 %v5196
        %v5369 = vunpack.c.h.b16 %v5196
        %v5370 = vunpack.c.l.b16 %v5197
        %v5371 = vunpack.c.h.b16 %v5197
        %v5372 = vunpack.c.l.b16 %v5198
        %v5373 = vunpack.c.h.b16 %v5198
        %v5374 = vunpack.c.l.b16 %v5199
        %v5375 = vunpack.c.h.b16 %v5199
        %v5376 = vunpack.c.l.b16 %v5200
        %v5377 = vunpack.c.h.b16 %v5200
        %v5378 = vunpack.c.l.b16 %v5201
        %v5379 = vunpack.c.h.b16 %v5201
        %v5380 = vunpack.c.l.b16 %v5202
        %v5381 = vunpack.c.h.b16 %v5202
        %v5382 = vunpack.c.l.b16 %v5203
        %v5383 = vunpack.c.h.b16 %v5203
        %v5384 = vunpack.c.l.b16 %v5204
        %v5385 = vunpack.c.h.b16 %v5204
        %v5386 = vunpack.c.l.b16 %v5205
        %v5387 = vunpack.c.h.b16 %v5205
        %v5388 = vunpack.c.l.b16 %v5206
        %v5389 = vunpack.c.h.b16 %v5206
        %v5390 = vunpack.c.l.b16 %v5207
        %v5391 = vunpack.c.h.b16 %v5207
        %v5392 = vunpack.c.l.b16 %v5208
        %v5393 = vunpack.c.h.b16 %v5208
        %v5394 = vunpack.c.l.b16 %v5209
        %v5395 = vunpack.c.h.b16 %v5209
        %v5396 = vunpack.c.l.b16 %v5210
        %v5397 = vunpack.c.h.b16 %v5210
        %v5398 = vunpack.c.l.b16 %v5211
        %v5399 = vunpack.c.h.b16 %v5211
        %v5400 = vunpack.c.l.b16 %v5212
        %v5401 = vunpack.c.h.b16 %v5212
        %v5402 = vunpack.c.l.b16 %v5213
        %v5403 = vunpack.c.h.b16 %v5213
        %v5404 = vunpack.c.l.b16 %v5214
        %v5405 = vunpack.c.h.b16 %v5214
        %v5406 = vunpack.c.l.b16 %v5215
        %v5407 = vunpack.c.h.b16 %v5215
        %v5408 = vpack.c.b16 %v5284, %v5280
        %v5409 = vpack.c.b16 %v5285, %v5281
        %v5410 = vpack.c.b16 %v5286, %v5282
        %v5411 = vpack.c.b16 %v5287, %v5283
        %v5412 = vpack.c.b16 %v5292, %v5288
        %v5413 = vpack.c.b16 %v5293, %v5289
        %v5414 = vpack.c.b16 %v5294, %v5290
        %v5415 = vpack.c.b16 %v5295, %v5291
        %v5416 = vpack.c.b16 %v5300, %v5296
        %v5417 = vpack.c.b16 %v5301, %v5297
        %v5418 = vpack.c.b16 %v5302, %v5298
        %v5419 = vpack.c.b16 %v5303, %v5299
        %v5420 = vpack.c.b16 %v5308, %v5304
        %v5421 = vpack.c.b16 %v5309, %v5305
        %v5422 = vpack.c.b16 %v5310, %v5306
        %v5423 = vpack.c.b16 %v5311, %v5307
        %v5424 = vpack.c.b16 %v5316, %v5312
        %v5425 = vpack.c.b16 %v5317, %v5313
        %v5426 = vpack.c.b16 %v5318, %v5314
        %v5427 = vpack.c.b16 %v5319, %v5315
        %v5428 = vpack.c.b16 %v5324, %v5320
        %v5429 = vpack.c.b16 %v5325, %v5321
        %v5430 = vpack.c.b16 %v5326, %v5322
        %v5431 = vpack.c.b16 %v5327, %v5323
        %v5432 = vpack.c.b16 %v5332, %v5328
        %v5433 = vpack.c.b16 %v5333, %v5329
        %v5434 = vpack.c.b16 %v5334, %v5330
        %v5435 = vpack.c.b16 %v5335, %v5331
        %v5436 = vpack.c.b16 %v5340, %v5336
        %v5437 = vpack.c.b16 %v5341, %v5337
        %v5438 = vpack.c.b16 %v5342, %v5338
        %v5439 = vpack.c.b16 %v5343, %v5339
        %v5440 = vpack.c.b16 %v5348, %v5344
        %v5441 = vpack.c.b16 %v5349, %v5345
        %v5442 = vpack.c.b16 %v5350, %v5346
        %v5443 = vpack.c.b16 %v5351, %v5347
        %v5444 = vpack.c.b16 %v5356, %v5352
        %v5445 = vpack.c.b16 %v5357, %v5353
        %v5446 = vpack.c.b16 %v5358, %v5354
        %v5447 = vpack.c.b16 %v5359, %v5355
        %v5448 = vpack.c.b16 %v5364, %v5360
        %v5449 = vpack.c.b16 %v5365, %v5361
        %v5450 = vpack.c.b16 %v5366, %v5362
        %v5451 = vpack.c.b16 %v5367, %v5363
        %v5452 = vpack.c.b16 %v5372, %v5368
        %v5453 = vpack.c.b16 %v5373, %v5369
        %v5454 = vpack.c.b16 %v5374, %v5370
        %v5455 = vpack.c.b16 %v5375, %v5371
        %v5456 = vpack.c.b16 %v5380, %v5376
        %v5457 = vpack.c.b16 %v5381, %v5377
        %v5458 = vpack.c.b16 %v5382, %v5378
        %v5459 = vpack.c.b16 %v5383, %v5379
        %v5460 = vpack.c.b16 %v5388, %v5384
        %v5461 = vpack.c.b16 %v5389, %v5385
        %v5462 = vpack.c.b16 %v5390, %v5386
        %v5463 = vpack.c.b16 %v5391, %v5387
        %v5464 = vpack.c.b16 %v5396, %v5392
        %v5465 = vpack.c.b16 %v5397, %v5393
        %v5466 = vpack.c.b16 %v5398, %v5394
        %v5467 = vpack.c.b16 %v5399, %v5395
        %v5468 = vpack.c.b16 %v5404, %v5400
        %v5469 = vpack.c.b16 %v5405, %v5401
        %v5470 = vpack.c.b16 %v5406, %v5402
        %v5471 = vpack.c.b16 %v5407, %v5403
        %5536 = vmatprep.subr.bf16.mxu0 %v5409
        %5537 = vmatpush1.bf16.msra.mxu0 %v5408
        %5538 = vmatprep.subr.bf16.mxu0 %v5413
        %5539 = vmatpush1.bf16.msra.mxu0 %v5412
        %5540 = vmatprep.subr.bf16.mxu0 %v5417
        %5541 = vmatpush1.bf16.msra.mxu0 %v5416
        %5542 = vmatprep.subr.bf16.mxu0 %v5421
        %5543 = vmatpush1.bf16.msra.mxu0 %v5420
        %5544 = vmatprep.subr.bf16.mxu0 %v5425
        %5545 = vmatpush1.bf16.msra.mxu0 %v5424
        %5546 = vmatprep.subr.bf16.mxu0 %v5429
        %5547 = vmatpush1.bf16.msra.mxu0 %v5428
        %5548 = vmatprep.subr.bf16.mxu0 %v5433
        %5549 = vmatpush1.bf16.msra.mxu0 %v5432
        %5550 = vmatprep.subr.bf16.mxu0 %v5437
        %5551 = vmatpush1.bf16.msra.mxu0 %v5436
        %5552 = vmatprep.subr.bf16.mxu0 %v5441
        %5553 = vmatpush1.bf16.msra.mxu0 %v5440
        %5554 = vmatprep.subr.bf16.mxu0 %v5445
        %5555 = vmatpush1.bf16.msra.mxu0 %v5444
        %5556 = vmatprep.subr.bf16.mxu0 %v5449
        %5557 = vmatpush1.bf16.msra.mxu0 %v5448
        %5558 = vmatprep.subr.bf16.mxu0 %v5453
        %5559 = vmatpush1.bf16.msra.mxu0 %v5452
        %5560 = vmatprep.subr.bf16.mxu0 %v5457
        %5561 = vmatpush1.bf16.msra.mxu0 %v5456
        %5562 = vmatprep.subr.bf16.mxu0 %v5461
        %5563 = vmatpush1.bf16.msra.mxu0 %v5460
        %5564 = vmatprep.subr.bf16.mxu0 %v5465
        %5565 = vmatpush1.bf16.msra.mxu0 %v5464
        %5566 = vmatprep.subr.bf16.mxu0 %v5469
        %5567 = vmatpush1.bf16.msra.mxu0 %v5468
        %5568 = vmatprep.mubr.bf16.mxu0 %v5145
        %5569 = vmatmul.mubr.bf16.gmra.mrb[0].mxu0 %v5144
        %v5570 = vpop.f32.mrb[0].mxu0
        %v5571 = vadd.f32 0.0, %v5570
        %v5572 = vpop.f32.mrb[0].mxu0
        %v5573 = vadd.f32 0.0, %v5572
        %v5574 = vpop.f32.mrb[0].mxu0
        %v5575 = vadd.f32 0.0, %v5574
        %v5576 = vpop.f32.mrb[0].mxu0
        %v5577 = vadd.f32 0.0, %v5576
        %5578 = vmatprep.mubr.bf16.mxu0 %v5147
        %5579 = vmatmul.mubr.bf16.gmra.mrb[0].mxu0 %v5146
        %v5580 = vpop.f32.mrb[0].mxu0
        %v5581 = vadd.f32 0.0, %v5580
        %v5582 = vpop.f32.mrb[0].mxu0
        %v5583 = vadd.f32 0.0, %v5582
        %v5584 = vpop.f32.mrb[0].mxu0
        %v5585 = vadd.f32 0.0, %v5584
        %v5586 = vpop.f32.mrb[0].mxu0
        %v5587 = vadd.f32 0.0, %v5586
        %5588 = vmatprep.mubr.bf16.mxu0 %v5149
        %5589 = vmatmul.mubr.bf16.gmra.mrb[0].mxu0 %v5148
        %v5590 = vpop.f32.mrb[0].mxu0
        %v5591 = vadd.f32 0.0, %v5590
        %v5592 = vpop.f32.mrb[0].mxu0
        %v5593 = vadd.f32 0.0, %v5592
        %v5594 = vpop.f32.mrb[0].mxu0
        %v5595 = vadd.f32 0.0, %v5594
        %v5596 = vpop.f32.mrb[0].mxu0
        %v5597 = vadd.f32 0.0, %v5596
        %5598 = vmatprep.mubr.bf16.mxu0 %v5151
        %5599 = vmatmul.mubr.bf16.gmra.mrb[0].mxu0 %v5150
        %v5600 = vpop.f32.mrb[0].mxu0
        %v5601 = vadd.f32 0.0, %v5600
        %v5602 = vpop.f32.mrb[0].mxu0
        %v5603 = vadd.f32 0.0, %v5602
        %v5604 = vpop.f32.mrb[0].mxu0
        %v5605 = vadd.f32 0.0, %v5604
        %v5606 = vpop.f32.mrb[0].mxu0
        %v5607 = vadd.f32 0.0, %v5606
        %5608 = vdwg.mxu0
        %5609 = vmatprep.subr.bf16.mxu0 %v5411
        %5610 = vmatpush1.bf16.msra.mxu0 %v5410
        %5611 = vmatprep.subr.bf16.mxu0 %v5415
        %5612 = vmatpush1.bf16.msra.mxu0 %v5414
        %5613 = vmatprep.subr.bf16.mxu0 %v5419
        %5614 = vmatpush1.bf16.msra.mxu0 %v5418
        %5615 = vmatprep.subr.bf16.mxu0 %v5423
        %5616 = vmatpush1.bf16.msra.mxu0 %v5422
        %5617 = vmatprep.subr.bf16.mxu0 %v5427
        %5618 = vmatpush1.bf16.msra.mxu0 %v5426
        %5619 = vmatprep.subr.bf16.mxu0 %v5431
        %5620 = vmatpush1.bf16.msra.mxu0 %v5430
        %5621 = vmatprep.subr.bf16.mxu0 %v5435
        %5622 = vmatpush1.bf16.msra.mxu0 %v5434
        %5623 = vmatprep.subr.bf16.mxu0 %v5439
        %5624 = vmatpush1.bf16.msra.mxu0 %v5438
        %5625 = vmatprep.subr.bf16.mxu0 %v5443
        %5626 = vmatpush1.bf16.msra.mxu0 %v5442
        %5627 = vmatprep.subr.bf16.mxu0 %v5447
        %5628 = vmatpush1.bf16.msra.mxu0 %v5446
        %5629 = vmatprep.subr.bf16.mxu0 %v5451
        %5630 = vmatpush1.bf16.msra.mxu0 %v5450
        %5631 = vmatprep.subr.bf16.mxu0 %v5455
        %5632 = vmatpush1.bf16.msra.mxu0 %v5454
        %5633 = vmatprep.subr.bf16.mxu0 %v5459
        %5634 = vmatpush1.bf16.msra.mxu0 %v5458
        %5635 = vmatprep.subr.bf16.mxu0 %v5463
        %5636 = vmatpush1.bf16.msra.mxu0 %v5462
        %5637 = vmatprep.subr.bf16.mxu0 %v5467
        %5638 = vmatpush1.bf16.msra.mxu0 %v5466
        %5639 = vmatprep.subr.bf16.mxu0 %v5471
        %5640 = vmatpush1.bf16.msra.mxu0 %v5470
        %5641 = vmatprep.mubr.bf16.mxu0 %v5145
        %5642 = vmatmul.mubr.bf16.gmra.mrb[0].mxu0 %v5144
        %v5643 = vpop.f32.mrb[0].mxu0
        %v5644 = vadd.f32 0.0, %v5643
        %v5645 = vpop.f32.mrb[0].mxu0
        %v5646 = vadd.f32 0.0, %v5645
        %v5647 = vpop.f32.mrb[0].mxu0
        %v5648 = vadd.f32 0.0, %v5647
        %v5649 = vpop.f32.mrb[0].mxu0
        %v5650 = vadd.f32 0.0, %v5649
        %5651 = vmatprep.mubr.bf16.mxu0 %v5147
        %5652 = vmatmul.mubr.bf16.gmra.mrb[0].mxu0 %v5146
        %v5653 = vpop.f32.mrb[0].mxu0
        %v5654 = vadd.f32 0.0, %v5653
        %v5655 = vpop.f32.mrb[0].mxu0
        %v5656 = vadd.f32 0.0, %v5655
        %v5657 = vpop.f32.mrb[0].mxu0
        %v5658 = vadd.f32 0.0, %v5657
        %v5659 = vpop.f32.mrb[0].mxu0
        %v5660 = vadd.f32 0.0, %v5659
        %5661 = vmatprep.mubr.bf16.mxu0 %v5149
        %5662 = vmatmul.mubr.bf16.gmra.mrb[0].mxu0 %v5148
        %v5663 = vpop.f32.mrb[0].mxu0
        %v5664 = vadd.f32 0.0, %v5663
        %v5665 = vpop.f32.mrb[0].mxu0
        %v5666 = vadd.f32 0.0, %v5665
        %v5667 = vpop.f32.mrb[0].mxu0
        %v5668 = vadd.f32 0.0, %v5667
        %v5669 = vpop.f32.mrb[0].mxu0
        %v5670 = vadd.f32 0.0, %v5669
        %5671 = vmatprep.mubr.bf16.mxu0 %v5151
        %5672 = vmatmul.mubr.bf16.gmra.mrb[0].mxu0 %v5150
        %v5673 = vpop.f32.mrb[0].mxu0
        %v5674 = vadd.f32 0.0, %v5673
        %v5675 = vpop.f32.mrb[0].mxu0
        %v5676 = vadd.f32 0.0, %v5675
        %v5677 = vpop.f32.mrb[0].mxu0
        %v5678 = vadd.f32 0.0, %v5677
        %v5679 = vpop.f32.mrb[0].mxu0
        %v5680 = vadd.f32 0.0, %v5679
        %5681 = vdwg.mxu0
        %5682 = vst [vmem:[#allocation4] sm:$0xff] %v5571
        %5683 = vst [vmem:[#allocation4 + $0x8] sm:$0xff] %v5573
        %5684 = vst [vmem:[#allocation4 + $0x10] sm:$0xff] %v5644
        %5685 = vst [vmem:[#allocation4 + $0x18] sm:$0xff] %v5646
        %5686 = vst [vmem:[#allocation4 + $0x20] sm:$0xff] %v5575
        %5687 = vst [vmem:[#allocation4 + $0x28] sm:$0xff] %v5577
        %5688 = vst [vmem:[#allocation4 + $0x30] sm:$0xff] %v5648
        %5689 = vst [vmem:[#allocation4 + $0x38] sm:$0xff] %v5650
        %5690 = vst [vmem:[#allocation4 + $0x40] sm:$0xff] %v5581
        %5691 = vst [vmem:[#allocation4 + $0x48] sm:$0xff] %v5583
        %5692 = vst [vmem:[#allocation4 + $0x50] sm:$0xff] %v5654
        %5693 = vst [vmem:[#allocation4 + $0x58] sm:$0xff] %v5656
        %5694 = vst [vmem:[#allocation4 + $0x60] sm:$0xff] %v5585
        %5695 = vst [vmem:[#allocation4 + $0x68] sm:$0xff] %v5587
        %5696 = vst [vmem:[#allocation4 + $0x70] sm:$0xff] %v5658
        %5697 = vst [vmem:[#allocation4 + $0x78] sm:$0xff] %v5660
        %5698 = vst [vmem:[#allocation4 + $0x80] sm:$0xff] %v5591
        %5699 = vst [vmem:[#allocation4 + $0x88] sm:$0xff] %v5593
        %5700 = vst [vmem:[#allocation4 + $0x90] sm:$0xff] %v5664
        %5701 = vst [vmem:[#allocation4 + $0x98] sm:$0xff] %v5666
        %5702 = vst [vmem:[#allocation4 + $0xa0] sm:$0xff] %v5595
        %5703 = vst [vmem:[#allocation4 + $0xa8] sm:$0xff] %v5597
        %5704 = vst [vmem:[#allocation4 + $0xb0] sm:$0xff] %v5668
        %5705 = vst [vmem:[#allocation4 + $0xb8] sm:$0xff] %v5670
        %5706 = vst [vmem:[#allocation4 + $0xc0] sm:$0xff] %v5601
        %5707 = vst [vmem:[#allocation4 + $0xc8] sm:$0xff] %v5603
        %5708 = vst [vmem:[#allocation4 + $0xd0] sm:$0xff] %v5674
        %5709 = vst [vmem:[#allocation4 + $0xd8] sm:$0xff] %v5676
        %5710 = vst [vmem:[#allocation4 + $0xe0] sm:$0xff] %v5605
        %5711 = vst [vmem:[#allocation4 + $0xe8] sm:$0xff] %v5607
        %5712 = vst [vmem:[#allocation4 + $0xf0] sm:$0xff] %v5678
        %5713 = vst [vmem:[#allocation4 + $0xf8] sm:$0xff] %v5680
        %v5714 = vld [vmem:[#allocation5 + $0x20] sm:$0xff]
        %v5715 = vld [vmem:[#allocation5 + $0x28] sm:$0xff]
        %v5716 = vld [vmem:[#allocation5 + $0x30] sm:$0xff]
        %v5717 = vld [vmem:[#allocation5 + $0x38] sm:$0xff]
        %v5718 = vld [vmem:[#allocation5 + $0x40] sm:$0xff]
        %v5719 = vld [vmem:[#allocation5 + $0x48] sm:$0xff]
        %v5720 = vld [vmem:[#allocation5 + $0x50] sm:$0xff]
        %v5721 = vld [vmem:[#allocation5 + $0x58] sm:$0xff]
        %s5722 = scalar_lea.vmem %s4, 512
        %v5723 = vld [vmem:[%s5722] sm:$0xff]
        %v5724 = vld [vmem:[%s5722 + $0x8] sm:$0xff]
        %v5725 = vld [vmem:[%s5722 + $0x10] sm:$0xff]
        %v5726 = vld [vmem:[%s5722 + $0x18] sm:$0xff]
        %v5727 = vld [vmem:[%s5722 + $0x20] sm:$0xff]
        %v5728 = vld [vmem:[%s5722 + $0x28] sm:$0xff]
        %v5729 = vld [vmem:[%s5722 + $0x30] sm:$0xff]
        %v5730 = vld [vmem:[%s5722 + $0x38] sm:$0xff]
        %v5731 = vld [vmem:[%s5722 + $0x40] sm:$0xff]
        %v5732 = vld [vmem:[%s5722 + $0x48] sm:$0xff]
        %v5733 = vld [vmem:[%s5722 + $0x50] sm:$0xff]
        %v5734 = vld [vmem:[%s5722 + $0x58] sm:$0xff]
        %v5735 = vld [vmem:[%s5722 + $0x60] sm:$0xff]
        %v5736 = vld [vmem:[%s5722 + $0x68] sm:$0xff]
        %v5737 = vld [vmem:[%s5722 + $0x70] sm:$0xff]
        %v5738 = vld [vmem:[%s5722 + $0x78] sm:$0xff]
        %v5739 = vld [vmem:[%s5722 + $0x80] sm:$0xff]
        %v5740 = vld [vmem:[%s5722 + $0x88] sm:$0xff]
        %v5741 = vld [vmem:[%s5722 + $0x90] sm:$0xff]
        %v5742 = vld [vmem:[%s5722 + $0x98] sm:$0xff]
        %v5743 = vld [vmem:[%s5722 + $0xa0] sm:$0xff]
        %v5744 = vld [vmem:[%s5722 + $0xa8] sm:$0xff]
        %v5745 = vld [vmem:[%s5722 + $0xb0] sm:$0xff]
        %v5746 = vld [vmem:[%s5722 + $0xb8] sm:$0xff]
        %v5747 = vld [vmem:[%s5722 + $0xc0] sm:$0xff]
        %v5748 = vld [vmem:[%s5722 + $0xc8] sm:$0xff]
        %v5749 = vld [vmem:[%s5722 + $0xd0] sm:$0xff]
        %v5750 = vld [vmem:[%s5722 + $0xd8] sm:$0xff]
        %v5751 = vld [vmem:[%s5722 + $0xe0] sm:$0xff]
        %v5752 = vld [vmem:[%s5722 + $0xe8] sm:$0xff]
        %v5753 = vld [vmem:[%s5722 + $0xf0] sm:$0xff]
        %v5754 = vld [vmem:[%s5722 + $0xf8] sm:$0xff]
        %v5755 = vld [vmem:[%s5722 + $0x100] sm:$0xff]
        %v5756 = vld [vmem:[%s5722 + $0x108] sm:$0xff]
        %v5757 = vld [vmem:[%s5722 + $0x110] sm:$0xff]
        %v5758 = vld [vmem:[%s5722 + $0x118] sm:$0xff]
        %v5759 = vld [vmem:[%s5722 + $0x120] sm:$0xff]
        %v5760 = vld [vmem:[%s5722 + $0x128] sm:$0xff]
        %v5761 = vld [vmem:[%s5722 + $0x130] sm:$0xff]
        %v5762 = vld [vmem:[%s5722 + $0x138] sm:$0xff]
        %v5763 = vld [vmem:[%s5722 + $0x140] sm:$0xff]
        %v5764 = vld [vmem:[%s5722 + $0x148] sm:$0xff]
        %v5765 = vld [vmem:[%s5722 + $0x150] sm:$0xff]
        %v5766 = vld [vmem:[%s5722 + $0x158] sm:$0xff]
        %v5767 = vld [vmem:[%s5722 + $0x160] sm:$0xff]
        %v5768 = vld [vmem:[%s5722 + $0x168] sm:$0xff]
        %v5769 = vld [vmem:[%s5722 + $0x170] sm:$0xff]
        %v5770 = vld [vmem:[%s5722 + $0x178] sm:$0xff]
        %v5771 = vld [vmem:[%s5722 + $0x180] sm:$0xff]
        %v5772 = vld [vmem:[%s5722 + $0x188] sm:$0xff]
        %v5773 = vld [vmem:[%s5722 + $0x190] sm:$0xff]
        %v5774 = vld [vmem:[%s5722 + $0x198] sm:$0xff]
        %v5775 = vld [vmem:[%s5722 + $0x1a0] sm:$0xff]
        %v5776 = vld [vmem:[%s5722 + $0x1a8] sm:$0xff]
        %v5777 = vld [vmem:[%s5722 + $0x1b0] sm:$0xff]
        %v5778 = vld [vmem:[%s5722 + $0x1b8] sm:$0xff]
        %v5779 = vld [vmem:[%s5722 + $0x1c0] sm:$0xff]
        %v5780 = vld [vmem:[%s5722 + $0x1c8] sm:$0xff]
        %v5781 = vld [vmem:[%s5722 + $0x1d0] sm:$0xff]
        %v5782 = vld [vmem:[%s5722 + $0x1d8] sm:$0xff]
        %v5783 = vld [vmem:[%s5722 + $0x1e0] sm:$0xff]
        %v5784 = vld [vmem:[%s5722 + $0x1e8] sm:$0xff]
        %v5785 = vld [vmem:[%s5722 + $0x1f0] sm:$0xff]
        %v5786 = vld [vmem:[%s5722 + $0x1f8] sm:$0xff]
        %v5851 = vunpack.c.l.b16 %v5723
        %v5852 = vunpack.c.h.b16 %v5723
        %v5853 = vunpack.c.l.b16 %v5724
        %v5854 = vunpack.c.h.b16 %v5724
        %v5855 = vunpack.c.l.b16 %v5725
        %v5856 = vunpack.c.h.b16 %v5725
        %v5857 = vunpack.c.l.b16 %v5726
        %v5858 = vunpack.c.h.b16 %v5726
        %v5859 = vunpack.c.l.b16 %v5727
        %v5860 = vunpack.c.h.b16 %v5727
        %v5861 = vunpack.c.l.b16 %v5728
        %v5862 = vunpack.c.h.b16 %v5728
        %v5863 = vunpack.c.l.b16 %v5729
        %v5864 = vunpack.c.h.b16 %v5729
        %v5865 = vunpack.c.l.b16 %v5730
        %v5866 = vunpack.c.h.b16 %v5730
        %v5867 = vunpack.c.l.b16 %v5731
        %v5868 = vunpack.c.h.b16 %v5731
        %v5869 = vunpack.c.l.b16 %v5732
        %v5870 = vunpack.c.h.b16 %v5732
        %v5871 = vunpack.c.l.b16 %v5733
        %v5872 = vunpack.c.h.b16 %v5733
        %v5873 = vunpack.c.l.b16 %v5734
        %v5874 = vunpack.c.h.b16 %v5734
        %v5875 = vunpack.c.l.b16 %v5735
        %v5876 = vunpack.c.h.b16 %v5735
        %v5877 = vunpack.c.l.b16 %v5736
        %v5878 = vunpack.c.h.b16 %v5736
        %v5879 = vunpack.c.l.b16 %v5737
        %v5880 = vunpack.c.h.b16 %v5737
        %v5881 = vunpack.c.l.b16 %v5738
        %v5882 = vunpack.c.h.b16 %v5738
        %v5883 = vunpack.c.l.b16 %v5739
        %v5884 = vunpack.c.h.b16 %v5739
        %v5885 = vunpack.c.l.b16 %v5740
        %v5886 = vunpack.c.h.b16 %v5740
        %v5887 = vunpack.c.l.b16 %v5741
        %v5888 = vunpack.c.h.b16 %v5741
        %v5889 = vunpack.c.l.b16 %v5742
        %v5890 = vunpack.c.h.b16 %v5742
        %v5891 = vunpack.c.l.b16 %v5743
        %v5892 = vunpack.c.h.b16 %v5743
        %v5893 = vunpack.c.l.b16 %v5744
        %v5894 = vunpack.c.h.b16 %v5744
        %v5895 = vunpack.c.l.b16 %v5745
        %v5896 = vunpack.c.h.b16 %v5745
        %v5897 = vunpack.c.l.b16 %v5746
        %v5898 = vunpack.c.h.b16 %v5746
        %v5899 = vunpack.c.l.b16 %v5747
        %v5900 = vunpack.c.h.b16 %v5747
        %v5901 = vunpack.c.l.b16 %v5748
        %v5902 = vunpack.c.h.b16 %v5748
        %v5903 = vunpack.c.l.b16 %v5749
        %v5904 = vunpack.c.h.b16 %v5749
        %v5905 = vunpack.c.l.b16 %v5750
        %v5906 = vunpack.c.h.b16 %v5750
        %v5907 = vunpack.c.l.b16 %v5751
        %v5908 = vunpack.c.h.b16 %v5751
        %v5909 = vunpack.c.l.b16 %v5752
        %v5910 = vunpack.c.h.b16 %v5752
        %v5911 = vunpack.c.l.b16 %v5753
        %v5912 = vunpack.c.h.b16 %v5753
        %v5913 = vunpack.c.l.b16 %v5754
        %v5914 = vunpack.c.h.b16 %v5754
        %v5915 = vunpack.c.l.b16 %v5755
        %v5916 = vunpack.c.h.b16 %v5755
        %v5917 = vunpack.c.l.b16 %v5756
        %v5918 = vunpack.c.h.b16 %v5756
        %v5919 = vunpack.c.l.b16 %v5757
        %v5920 = vunpack.c.h.b16 %v5757
        %v5921 = vunpack.c.l.b16 %v5758
        %v5922 = vunpack.c.h.b16 %v5758
        %v5923 = vunpack.c.l.b16 %v5759
        %v5924 = vunpack.c.h.b16 %v5759
        %v5925 = vunpack.c.l.b16 %v5760
        %v5926 = vunpack.c.h.b16 %v5760
        %v5927 = vunpack.c.l.b16 %v5761
        %v5928 = vunpack.c.h.b16 %v5761
        %v5929 = vunpack.c.l.b16 %v5762
        %v5930 = vunpack.c.h.b16 %v5762
        %v5931 = vunpack.c.l.b16 %v5763
        %v5932 = vunpack.c.h.b16 %v5763
        %v5933 = vunpack.c.l.b16 %v5764
        %v5934 = vunpack.c.h.b16 %v5764
        %v5935 = vunpack.c.l.b16 %v5765
        %v5936 = vunpack.c.h.b16 %v5765
        %v5937 = vunpack.c.l.b16 %v5766
        %v5938 = vunpack.c.h.b16 %v5766
        %v5939 = vunpack.c.l.b16 %v5767
        %v5940 = vunpack.c.h.b16 %v5767
        %v5941 = vunpack.c.l.b16 %v5768
        %v5942 = vunpack.c.h.b16 %v5768
        %v5943 = vunpack.c.l.b16 %v5769
        %v5944 = vunpack.c.h.b16 %v5769
        %v5945 = vunpack.c.l.b16 %v5770
        %v5946 = vunpack.c.h.b16 %v5770
        %v5947 = vunpack.c.l.b16 %v5771
        %v5948 = vunpack.c.h.b16 %v5771
        %v5949 = vunpack.c.l.b16 %v5772
        %v5950 = vunpack.c.h.b16 %v5772
        %v5951 = vunpack.c.l.b16 %v5773
        %v5952 = vunpack.c.h.b16 %v5773
        %v5953 = vunpack.c.l.b16 %v5774
        %v5954 = vunpack.c.h.b16 %v5774
        %v5955 = vunpack.c.l.b16 %v5775
        %v5956 = vunpack.c.h.b16 %v5775
        %v5957 = vunpack.c.l.b16 %v5776
        %v5958 = vunpack.c.h.b16 %v5776
        %v5959 = vunpack.c.l.b16 %v5777
        %v5960 = vunpack.c.h.b16 %v5777
        %v5961 = vunpack.c.l.b16 %v5778
        %v5962 = vunpack.c.h.b16 %v5778
        %v5963 = vunpack.c.l.b16 %v5779
        %v5964 = vunpack.c.h.b16 %v5779
        %v5965 = vunpack.c.l.b16 %v5780
        %v5966 = vunpack.c.h.b16 %v5780
        %v5967 = vunpack.c.l.b16 %v5781
        %v5968 = vunpack.c.h.b16 %v5781
        %v5969 = vunpack.c.l.b16 %v5782
        %v5970 = vunpack.c.h.b16 %v5782
        %v5971 = vunpack.c.l.b16 %v5783
        %v5972 = vunpack.c.h.b16 %v5783
        %v5973 = vunpack.c.l.b16 %v5784
        %v5974 = vunpack.c.h.b16 %v5784
        %v5975 = vunpack.c.l.b16 %v5785
        %v5976 = vunpack.c.h.b16 %v5785
        %v5977 = vunpack.c.l.b16 %v5786
        %v5978 = vunpack.c.h.b16 %v5786
        %v5979 = vpack.c.b16 %v5855, %v5851
        %v5980 = vpack.c.b16 %v5856, %v5852
        %v5981 = vpack.c.b16 %v5857, %v5853
        %v5982 = vpack.c.b16 %v5858, %v5854
        %v5983 = vpack.c.b16 %v5863, %v5859
        %v5984 = vpack.c.b16 %v5864, %v5860
        %v5985 = vpack.c.b16 %v5865, %v5861
        %v5986 = vpack.c.b16 %v5866, %v5862
        %v5987 = vpack.c.b16 %v5871, %v5867
        %v5988 = vpack.c.b16 %v5872, %v5868
        %v5989 = vpack.c.b16 %v5873, %v5869
        %v5990 = vpack.c.b16 %v5874, %v5870
        %v5991 = vpack.c.b16 %v5879, %v5875
        %v5992 = vpack.c.b16 %v5880, %v5876
        %v5993 = vpack.c.b16 %v5881, %v5877
        %v5994 = vpack.c.b16 %v5882, %v5878
        %v5995 = vpack.c.b16 %v5887, %v5883
        %v5996 = vpack.c.b16 %v5888, %v5884
        %v5997 = vpack.c.b16 %v5889, %v5885
        %v5998 = vpack.c.b16 %v5890, %v5886
        %v5999 = vpack.c.b16 %v5895, %v5891
        %v6000 = vpack.c.b16 %v5896, %v5892
        %v6001 = vpack.c.b16 %v5897, %v5893
        %v6002 = vpack.c.b16 %v5898, %v5894
        %v6003 = vpack.c.b16 %v5903, %v5899
        %v6004 = vpack.c.b16 %v5904, %v5900
        %v6005 = vpack.c.b16 %v5905, %v5901
        %v6006 = vpack.c.b16 %v5906, %v5902
        %v6007 = vpack.c.b16 %v5911, %v5907
        %v6008 = vpack.c.b16 %v5912, %v5908
        %v6009 = vpack.c.b16 %v5913, %v5909
        %v6010 = vpack.c.b16 %v5914, %v5910
        %v6011 = vpack.c.b16 %v5919, %v5915
        %v6012 = vpack.c.b16 %v5920, %v5916
        %v6013 = vpack.c.b16 %v5921, %v5917
        %v6014 = vpack.c.b16 %v5922, %v5918
        %v6015 = vpack.c.b16 %v5927, %v5923
        %v6016 = vpack.c.b16 %v5928, %v5924
        %v6017 = vpack.c.b16 %v5929, %v5925
        %v6018 = vpack.c.b16 %v5930, %v5926
        %v6019 = vpack.c.b16 %v5935, %v5931
        %v6020 = vpack.c.b16 %v5936, %v5932
        %v6021 = vpack.c.b16 %v5937, %v5933
        %v6022 = vpack.c.b16 %v5938, %v5934
        %v6023 = vpack.c.b16 %v5943, %v5939
        %v6024 = vpack.c.b16 %v5944, %v5940
        %v6025 = vpack.c.b16 %v5945, %v5941
        %v6026 = vpack.c.b16 %v5946, %v5942
        %v6027 = vpack.c.b16 %v5951, %v5947
        %v6028 = vpack.c.b16 %v5952, %v5948
        %v6029 = vpack.c.b16 %v5953, %v5949
        %v6030 = vpack.c.b16 %v5954, %v5950
        %v6031 = vpack.c.b16 %v5959, %v5955
        %v6032 = vpack.c.b16 %v5960, %v5956
        %v6033 = vpack.c.b16 %v5961, %v5957
        %v6034 = vpack.c.b16 %v5962, %v5958
        %v6035 = vpack.c.b16 %v5967, %v5963
        %v6036 = vpack.c.b16 %v5968, %v5964
        %v6037 = vpack.c.b16 %v5969, %v5965
        %v6038 = vpack.c.b16 %v5970, %v5966
        %v6039 = vpack.c.b16 %v5975, %v5971
        %v6040 = vpack.c.b16 %v5976, %v5972
        %v6041 = vpack.c.b16 %v5977, %v5973
        %v6042 = vpack.c.b16 %v5978, %v5974
        %6107 = vmatprep.subr.bf16.mxu0 %v5980
        %6108 = vmatpush1.bf16.msra.mxu0 %v5979
        %6109 = vmatprep.subr.bf16.mxu0 %v5984
        %6110 = vmatpush1.bf16.msra.mxu0 %v5983
        %6111 = vmatprep.subr.bf16.mxu0 %v5988
        %6112 = vmatpush1.bf16.msra.mxu0 %v5987
        %6113 = vmatprep.subr.bf16.mxu0 %v5992
        %6114 = vmatpush1.bf16.msra.mxu0 %v5991
        %6115 = vmatprep.subr.bf16.mxu0 %v5996
        %6116 = vmatpush1.bf16.msra.mxu0 %v5995
        %6117 = vmatprep.subr.bf16.mxu0 %v6000
        %6118 = vmatpush1.bf16.msra.mxu0 %v5999
        %6119 = vmatprep.subr.bf16.mxu0 %v6004
        %6120 = vmatpush1.bf16.msra.mxu0 %v6003
        %6121 = vmatprep.subr.bf16.mxu0 %v6008
        %6122 = vmatpush1.bf16.msra.mxu0 %v6007
        %6123 = vmatprep.subr.bf16.mxu0 %v6012
        %6124 = vmatpush1.bf16.msra.mxu0 %v6011
        %6125 = vmatprep.subr.bf16.mxu0 %v6016
        %6126 = vmatpush1.bf16.msra.mxu0 %v6015
        %6127 = vmatprep.subr.bf16.mxu0 %v6020
        %6128 = vmatpush1.bf16.msra.mxu0 %v6019
        %6129 = vmatprep.subr.bf16.mxu0 %v6024
        %6130 = vmatpush1.bf16.msra.mxu0 %v6023
        %6131 = vmatprep.subr.bf16.mxu0 %v6028
        %6132 = vmatpush1.bf16.msra.mxu0 %v6027
        %6133 = vmatprep.subr.bf16.mxu0 %v6032
        %6134 = vmatpush1.bf16.msra.mxu0 %v6031
        %6135 = vmatprep.subr.bf16.mxu0 %v6036
        %6136 = vmatpush1.bf16.msra.mxu0 %v6035
        %6137 = vmatprep.subr.bf16.mxu0 %v6040
        %6138 = vmatpush1.bf16.msra.mxu0 %v6039
        %6139 = vmatprep.mubr.bf16.mxu0 %v5715
        %6140 = vmatmul.mubr.bf16.gmra.mrb[0].mxu0 %v5714
        %v6141 = vpop.f32.mrb[0].mxu0
        %v6142 = vadd.f32 0.0, %v6141
        %v6143 = vpop.f32.mrb[0].mxu0
        %v6144 = vadd.f32 0.0, %v6143
        %v6145 = vpop.f32.mrb[0].mxu0
        %v6146 = vadd.f32 0.0, %v6145
        %v6147 = vpop.f32.mrb[0].mxu0
        %v6148 = vadd.f32 0.0, %v6147
        %6149 = vmatprep.mubr.bf16.mxu0 %v5717
        %6150 = vmatmul.mubr.bf16.gmra.mrb[0].mxu0 %v5716
        %v6151 = vpop.f32.mrb[0].mxu0
        %v6152 = vadd.f32 0.0, %v6151
        %v6153 = vpop.f32.mrb[0].mxu0
        %v6154 = vadd.f32 0.0, %v6153
        %v6155 = vpop.f32.mrb[0].mxu0
        %v6156 = vadd.f32 0.0, %v6155
        %v6157 = vpop.f32.mrb[0].mxu0
        %v6158 = vadd.f32 0.0, %v6157
        %6159 = vmatprep.mubr.bf16.mxu0 %v5719
        %6160 = vmatmul.mubr.bf16.gmra.mrb[0].mxu0 %v5718
        %v6161 = vpop.f32.mrb[0].mxu0
        %v6162 = vadd.f32 0.0, %v6161
        %v6163 = vpop.f32.mrb[0].mxu0
        %v6164 = vadd.f32 0.0, %v6163
        %v6165 = vpop.f32.mrb[0].mxu0
        %v6166 = vadd.f32 0.0, %v6165
        %v6167 = vpop.f32.mrb[0].mxu0
        %v6168 = vadd.f32 0.0, %v6167
        %6169 = vmatprep.mubr.bf16.mxu0 %v5721
        %6170 = vmatmul.mubr.bf16.gmra.mrb[0].mxu0 %v5720
        %v6171 = vpop.f32.mrb[0].mxu0
        %v6172 = vadd.f32 0.0, %v6171
        %v6173 = vpop.f32.mrb[0].mxu0
        %v6174 = vadd.f32 0.0, %v6173
        %v6175 = vpop.f32.mrb[0].mxu0
        %v6176 = vadd.f32 0.0, %v6175
        %v6177 = vpop.f32.mrb[0].mxu0
        %v6178 = vadd.f32 0.0, %v6177
        %6179 = vdwg.mxu0
        %6180 = vmatprep.subr.bf16.mxu0 %v5982
        %6181 = vmatpush1.bf16.msra.mxu0 %v5981
        %6182 = vmatprep.subr.bf16.mxu0 %v5986
        %6183 = vmatpush1.bf16.msra.mxu0 %v5985
        %6184 = vmatprep.subr.bf16.mxu0 %v5990
        %6185 = vmatpush1.bf16.msra.mxu0 %v5989
        %6186 = vmatprep.subr.bf16.mxu0 %v5994
        %6187 = vmatpush1.bf16.msra.mxu0 %v5993
        %6188 = vmatprep.subr.bf16.mxu0 %v5998
        %6189 = vmatpush1.bf16.msra.mxu0 %v5997
        %6190 = vmatprep.subr.bf16.mxu0 %v6002
        %6191 = vmatpush1.bf16.msra.mxu0 %v6001
        %6192 = vmatprep.subr.bf16.mxu0 %v6006
        %6193 = vmatpush1.bf16.msra.mxu0 %v6005
        %6194 = vmatprep.subr.bf16.mxu0 %v6010
        %6195 = vmatpush1.bf16.msra.mxu0 %v6009
        %6196 = vmatprep.subr.bf16.mxu0 %v6014
        %6197 = vmatpush1.bf16.msra.mxu0 %v6013
        %6198 = vmatprep.subr.bf16.mxu0 %v6018
        %6199 = vmatpush1.bf16.msra.mxu0 %v6017
        %6200 = vmatprep.subr.bf16.mxu0 %v6022
        %6201 = vmatpush1.bf16.msra.mxu0 %v6021
        %6202 = vmatprep.subr.bf16.mxu0 %v6026
        %6203 = vmatpush1.bf16.msra.mxu0 %v6025
        %6204 = vmatprep.subr.bf16.mxu0 %v6030
        %6205 = vmatpush1.bf16.msra.mxu0 %v6029
        %6206 = vmatprep.subr.bf16.mxu0 %v6034
        %6207 = vmatpush1.bf16.msra.mxu0 %v6033
        %6208 = vmatprep.subr.bf16.mxu0 %v6038
        %6209 = vmatpush1.bf16.msra.mxu0 %v6037
        %6210 = vmatprep.subr.bf16.mxu0 %v6042
        %6211 = vmatpush1.bf16.msra.mxu0 %v6041
        %6212 = vmatprep.mubr.bf16.mxu0 %v5715
        %6213 = vmatmul.mubr.bf16.gmra.mrb[0].mxu0 %v5714
        %v6214 = vpop.f32.mrb[0].mxu0
        %v6215 = vadd.f32 0.0, %v6214
        %v6216 = vpop.f32.mrb[0].mxu0
        %v6217 = vadd.f32 0.0, %v6216
        %v6218 = vpop.f32.mrb[0].mxu0
        %v6219 = vadd.f32 0.0, %v6218
        %v6220 = vpop.f32.mrb[0].mxu0
        %v6221 = vadd.f32 0.0, %v6220
        %6222 = vmatprep.mubr.bf16.mxu0 %v5717
        %6223 = vmatmul.mubr.bf16.gmra.mrb[0].mxu0 %v5716
        %v6224 = vpop.f32.mrb[0].mxu0
        %v6225 = vadd.f32 0.0, %v6224
        %v6226 = vpop.f32.mrb[0].mxu0
        %v6227 = vadd.f32 0.0, %v6226
        %v6228 = vpop.f32.mrb[0].mxu0
        %v6229 = vadd.f32 0.0, %v6228
        %v6230 = vpop.f32.mrb[0].mxu0
        %v6231 = vadd.f32 0.0, %v6230
        %6232 = vmatprep.mubr.bf16.mxu0 %v5719
        %6233 = vmatmul.mubr.bf16.gmra.mrb[0].mxu0 %v5718
        %v6234 = vpop.f32.mrb[0].mxu0
        %v6235 = vadd.f32 0.0, %v6234
        %v6236 = vpop.f32.mrb[0].mxu0
        %v6237 = vadd.f32 0.0, %v6236
        %v6238 = vpop.f32.mrb[0].mxu0
        %v6239 = vadd.f32 0.0, %v6238
        %v6240 = vpop.f32.mrb[0].mxu0
        %v6241 = vadd.f32 0.0, %v6240
        %6242 = vmatprep.mubr.bf16.mxu0 %v5721
        %6243 = vmatmul.mubr.bf16.gmra.mrb[0].mxu0 %v5720
        %v6244 = vpop.f32.mrb[0].mxu0
        %v6245 = vadd.f32 0.0, %v6244
        %v6246 = vpop.f32.mrb[0].mxu0
        %v6247 = vadd.f32 0.0, %v6246
        %v6248 = vpop.f32.mrb[0].mxu0
        %v6249 = vadd.f32 0.0, %v6248
        %v6250 = vpop.f32.mrb[0].mxu0
        %v6251 = vadd.f32 0.0, %v6250
        %6252 = vdwg.mxu0
        %v6253 = vld [vmem:[#allocation4] sm:$0xff]
        %v6254 = vld [vmem:[#allocation4 + $0x8] sm:$0xff]
        %v6255 = vld [vmem:[#allocation4 + $0x10] sm:$0xff]
        %v6256 = vld [vmem:[#allocation4 + $0x18] sm:$0xff]
        %v6257 = vld [vmem:[#allocation4 + $0x20] sm:$0xff]
        %v6258 = vld [vmem:[#allocation4 + $0x28] sm:$0xff]
        %v6259 = vld [vmem:[#allocation4 + $0x30] sm:$0xff]
        %v6260 = vld [vmem:[#allocation4 + $0x38] sm:$0xff]
        %v6261 = vld [vmem:[#allocation4 + $0x40] sm:$0xff]
        %v6262 = vld [vmem:[#allocation4 + $0x48] sm:$0xff]
        %v6263 = vld [vmem:[#allocation4 + $0x50] sm:$0xff]
        %v6264 = vld [vmem:[#allocation4 + $0x58] sm:$0xff]
        %v6265 = vld [vmem:[#allocation4 + $0x60] sm:$0xff]
        %v6266 = vld [vmem:[#allocation4 + $0x68] sm:$0xff]
        %v6267 = vld [vmem:[#allocation4 + $0x70] sm:$0xff]
        %v6268 = vld [vmem:[#allocation4 + $0x78] sm:$0xff]
        %v6269 = vld [vmem:[#allocation4 + $0x80] sm:$0xff]
        %v6270 = vld [vmem:[#allocation4 + $0x88] sm:$0xff]
        %v6271 = vld [vmem:[#allocation4 + $0x90] sm:$0xff]
        %v6272 = vld [vmem:[#allocation4 + $0x98] sm:$0xff]
        %v6273 = vld [vmem:[#allocation4 + $0xa0] sm:$0xff]
        %v6274 = vld [vmem:[#allocation4 + $0xa8] sm:$0xff]
        %v6275 = vld [vmem:[#allocation4 + $0xb0] sm:$0xff]
        %v6276 = vld [vmem:[#allocation4 + $0xb8] sm:$0xff]
        %v6277 = vld [vmem:[#allocation4 + $0xc0] sm:$0xff]
        %v6278 = vld [vmem:[#allocation4 + $0xc8] sm:$0xff]
        %v6279 = vld [vmem:[#allocation4 + $0xd0] sm:$0xff]
        %v6280 = vld [vmem:[#allocation4 + $0xd8] sm:$0xff]
        %v6281 = vld [vmem:[#allocation4 + $0xe0] sm:$0xff]
        %v6282 = vld [vmem:[#allocation4 + $0xe8] sm:$0xff]
        %v6283 = vld [vmem:[#allocation4 + $0xf0] sm:$0xff]
        %v6284 = vld [vmem:[#allocation4 + $0xf8] sm:$0xff]
        %v6285 = vadd.f32 %v6253, %v6142
        %v6286 = vadd.f32 %v6254, %v6144
        %v6287 = vadd.f32 %v6255, %v6215
        %v6288 = vadd.f32 %v6256, %v6217
        %v6289 = vadd.f32 %v6257, %v6146
        %v6290 = vadd.f32 %v6258, %v6148
        %v6291 = vadd.f32 %v6259, %v6219
        %v6292 = vadd.f32 %v6260, %v6221
        %v6293 = vadd.f32 %v6261, %v6152
        %v6294 = vadd.f32 %v6262, %v6154
        %v6295 = vadd.f32 %v6263, %v6225
        %v6296 = vadd.f32 %v6264, %v6227
        %v6297 = vadd.f32 %v6265, %v6156
        %v6298 = vadd.f32 %v6266, %v6158
        %v6299 = vadd.f32 %v6267, %v6229
        %v6300 = vadd.f32 %v6268, %v6231
        %v6301 = vadd.f32 %v6269, %v6162
        %v6302 = vadd.f32 %v6270, %v6164
        %v6303 = vadd.f32 %v6271, %v6235
        %v6304 = vadd.f32 %v6272, %v6237
        %v6305 = vadd.f32 %v6273, %v6166
        %v6306 = vadd.f32 %v6274, %v6168
        %v6307 = vadd.f32 %v6275, %v6239
        %v6308 = vadd.f32 %v6276, %v6241
        %v6309 = vadd.f32 %v6277, %v6172
        %v6310 = vadd.f32 %v6278, %v6174
        %v6311 = vadd.f32 %v6279, %v6245
        %v6312 = vadd.f32 %v6280, %v6247
        %v6313 = vadd.f32 %v6281, %v6176
        %v6314 = vadd.f32 %v6282, %v6178
        %v6315 = vadd.f32 %v6283, %v6249
        %v6316 = vadd.f32 %v6284, %v6251
        %6317 = vst [vmem:[#allocation4] sm:$0xff] %v6285
        %6318 = vst [vmem:[#allocation4 + $0x8] sm:$0xff] %v6286
        %6319 = vst [vmem:[#allocation4 + $0x10] sm:$0xff] %v6287
        %6320 = vst [vmem:[#allocation4 + $0x18] sm:$0xff] %v6288
        %6321 = vst [vmem:[#allocation4 + $0x20] sm:$0xff] %v6289
        %6322 = vst [vmem:[#allocation4 + $0x28] sm:$0xff] %v6290
        %6323 = vst [vmem:[#allocation4 + $0x30] sm:$0xff] %v6291
        %6324 = vst [vmem:[#allocation4 + $0x38] sm:$0xff] %v6292
        %6325 = vst [vmem:[#allocation4 + $0x40] sm:$0xff] %v6293
        %6326 = vst [vmem:[#allocation4 + $0x48] sm:$0xff] %v6294
        %6327 = vst [vmem:[#allocation4 + $0x50] sm:$0xff] %v6295
        %6328 = vst [vmem:[#allocation4 + $0x58] sm:$0xff] %v6296
        %6329 = vst [vmem:[#allocation4 + $0x60] sm:$0xff] %v6297
        %6330 = vst [vmem:[#allocation4 + $0x68] sm:$0xff] %v6298
        %6331 = vst [vmem:[#allocation4 + $0x70] sm:$0xff] %v6299
        %6332 = vst [vmem:[#allocation4 + $0x78] sm:$0xff] %v6300
        %6333 = vst [vmem:[#allocation4 + $0x80] sm:$0xff] %v6301
        %6334 = vst [vmem:[#allocation4 + $0x88] sm:$0xff] %v6302
        %6335 = vst [vmem:[#allocation4 + $0x90] sm:$0xff] %v6303
        %6336 = vst [vmem:[#allocation4 + $0x98] sm:$0xff] %v6304
        %6337 = vst [vmem:[#allocation4 + $0xa0] sm:$0xff] %v6305
        %6338 = vst [vmem:[#allocation4 + $0xa8] sm:$0xff] %v6306
        %6339 = vst [vmem:[#allocation4 + $0xb0] sm:$0xff] %v6307
        %6340 = vst [vmem:[#allocation4 + $0xb8] sm:$0xff] %v6308
        %6341 = vst [vmem:[#allocation4 + $0xc0] sm:$0xff] %v6309
        %6342 = vst [vmem:[#allocation4 + $0xc8] sm:$0xff] %v6310
        %6343 = vst [vmem:[#allocation4 + $0xd0] sm:$0xff] %v6311
        %6344 = vst [vmem:[#allocation4 + $0xd8] sm:$0xff] %v6312
        %6345 = vst [vmem:[#allocation4 + $0xe0] sm:$0xff] %v6313
        %6346 = vst [vmem:[#allocation4 + $0xe8] sm:$0xff] %v6314
        %6347 = vst [vmem:[#allocation4 + $0xf0] sm:$0xff] %v6315
        %6348 = vst [vmem:[#allocation4 + $0xf8] sm:$0xff] %v6316
        %v6349 = vld [vmem:[#allocation5 + $0x40] sm:$0xff]
        %v6350 = vld [vmem:[#allocation5 + $0x48] sm:$0xff]
        %v6351 = vld [vmem:[#allocation5 + $0x50] sm:$0xff]
        %v6352 = vld [vmem:[#allocation5 + $0x58] sm:$0xff]
        %v6353 = vld [vmem:[#allocation5 + $0x60] sm:$0xff]
        %v6354 = vld [vmem:[#allocation5 + $0x68] sm:$0xff]
        %v6355 = vld [vmem:[#allocation5 + $0x70] sm:$0xff]
        %v6356 = vld [vmem:[#allocation5 + $0x78] sm:$0xff]
        %s6357 = scalar_lea.vmem %s4, 1024
        %v6358 = vld [vmem:[%s6357] sm:$0xff]
        %v6359 = vld [vmem:[%s6357 + $0x8] sm:$0xff]
        %v6360 = vld [vmem:[%s6357 + $0x10] sm:$0xff]
        %v6361 = vld [vmem:[%s6357 + $0x18] sm:$0xff]
        %v6362 = vld [vmem:[%s6357 + $0x20] sm:$0xff]
        %v6363 = vld [vmem:[%s6357 + $0x28] sm:$0xff]
        %v6364 = vld [vmem:[%s6357 + $0x30] sm:$0xff]
        %v6365 = vld [vmem:[%s6357 + $0x38] sm:$0xff]
        %v6366 = vld [vmem:[%s6357 + $0x40] sm:$0xff]
        %v6367 = vld [vmem:[%s6357 + $0x48] sm:$0xff]
        %v6368 = vld [vmem:[%s6357 + $0x50] sm:$0xff]
        %v6369 = vld [vmem:[%s6357 + $0x58] sm:$0xff]
        %v6370 = vld [vmem:[%s6357 + $0x60] sm:$0xff]
        %v6371 = vld [vmem:[%s6357 + $0x68] sm:$0xff]
        %v6372 = vld [vmem:[%s6357 + $0x70] sm:$0xff]
        %v6373 = vld [vmem:[%s6357 + $0x78] sm:$0xff]
        %v6374 = vld [vmem:[%s6357 + $0x80] sm:$0xff]
        %v6375 = vld [vmem:[%s6357 + $0x88] sm:$0xff]
        %v6376 = vld [vmem:[%s6357 + $0x90] sm:$0xff]
        %v6377 = vld [vmem:[%s6357 + $0x98] sm:$0xff]
        %v6378 = vld [vmem:[%s6357 + $0xa0] sm:$0xff]
        %v6379 = vld [vmem:[%s6357 + $0xa8] sm:$0xff]
        %v6380 = vld [vmem:[%s6357 + $0xb0] sm:$0xff]
        %v6381 = vld [vmem:[%s6357 + $0xb8] sm:$0xff]
        %v6382 = vld [vmem:[%s6357 + $0xc0] sm:$0xff]
        %v6383 = vld [vmem:[%s6357 + $0xc8] sm:$0xff]
        %v6384 = vld [vmem:[%s6357 + $0xd0] sm:$0xff]
        %v6385 = vld [vmem:[%s6357 + $0xd8] sm:$0xff]
        %v6386 = vld [vmem:[%s6357 + $0xe0] sm:$0xff]
        %v6387 = vld [vmem:[%s6357 + $0xe8] sm:$0xff]
        %v6388 = vld [vmem:[%s6357 + $0xf0] sm:$0xff]
        %v6389 = vld [vmem:[%s6357 + $0xf8] sm:$0xff]
        %v6390 = vld [vmem:[%s6357 + $0x100] sm:$0xff]
        %v6391 = vld [vmem:[%s6357 + $0x108] sm:$0xff]
        %v6392 = vld [vmem:[%s6357 + $0x110] sm:$0xff]
        %v6393 = vld [vmem:[%s6357 + $0x118] sm:$0xff]
        %v6394 = vld [vmem:[%s6357 + $0x120] sm:$0xff]
        %v6395 = vld [vmem:[%s6357 + $0x128] sm:$0xff]
        %v6396 = vld [vmem:[%s6357 + $0x130] sm:$0xff]
        %v6397 = vld [vmem:[%s6357 + $0x138] sm:$0xff]
        %v6398 = vld [vmem:[%s6357 + $0x140] sm:$0xff]
        %v6399 = vld [vmem:[%s6357 + $0x148] sm:$0xff]
        %v6400 = vld [vmem:[%s6357 + $0x150] sm:$0xff]
        %v6401 = vld [vmem:[%s6357 + $0x158] sm:$0xff]
        %v6402 = vld [vmem:[%s6357 + $0x160] sm:$0xff]
        %v6403 = vld [vmem:[%s6357 + $0x168] sm:$0xff]
        %v6404 = vld [vmem:[%s6357 + $0x170] sm:$0xff]
        %v6405 = vld [vmem:[%s6357 + $0x178] sm:$0xff]
        %v6406 = vld [vmem:[%s6357 + $0x180] sm:$0xff]
        %v6407 = vld [vmem:[%s6357 + $0x188] sm:$0xff]
        %v6408 = vld [vmem:[%s6357 + $0x190] sm:$0xff]
        %v6409 = vld [vmem:[%s6357 + $0x198] sm:$0xff]
        %v6410 = vld [vmem:[%s6357 + $0x1a0] sm:$0xff]
        %v6411 = vld [vmem:[%s6357 + $0x1a8] sm:$0xff]
        %v6412 = vld [vmem:[%s6357 + $0x1b0] sm:$0xff]
        %v6413 = vld [vmem:[%s6357 + $0x1b8] sm:$0xff]
        %v6414 = vld [vmem:[%s6357 + $0x1c0] sm:$0xff]
        %v6415 = vld [vmem:[%s6357 + $0x1c8] sm:$0xff]
        %v6416 = vld [vmem:[%s6357 + $0x1d0] sm:$0xff]
        %v6417 = vld [vmem:[%s6357 + $0x1d8] sm:$0xff]
        %v6418 = vld [vmem:[%s6357 + $0x1e0] sm:$0xff]
        %v6419 = vld [vmem:[%s6357 + $0x1e8] sm:$0xff]
        %v6420 = vld [vmem:[%s6357 + $0x1f0] sm:$0xff]
        %v6421 = vld [vmem:[%s6357 + $0x1f8] sm:$0xff]
        %v6486 = vunpack.c.l.b16 %v6358
        %v6487 = vunpack.c.h.b16 %v6358
        %v6488 = vunpack.c.l.b16 %v6359
        %v6489 = vunpack.c.h.b16 %v6359
        %v6490 = vunpack.c.l.b16 %v6360
        %v6491 = vunpack.c.h.b16 %v6360
        %v6492 = vunpack.c.l.b16 %v6361
        %v6493 = vunpack.c.h.b16 %v6361
        %v6494 = vunpack.c.l.b16 %v6362
        %v6495 = vunpack.c.h.b16 %v6362
        %v6496 = vunpack.c.l.b16 %v6363
        %v6497 = vunpack.c.h.b16 %v6363
        %v6498 = vunpack.c.l.b16 %v6364
        %v6499 = vunpack.c.h.b16 %v6364
        %v6500 = vunpack.c.l.b16 %v6365
        %v6501 = vunpack.c.h.b16 %v6365
        %v6502 = vunpack.c.l.b16 %v6366
        %v6503 = vunpack.c.h.b16 %v6366
        %v6504 = vunpack.c.l.b16 %v6367
        %v6505 = vunpack.c.h.b16 %v6367
        %v6506 = vunpack.c.l.b16 %v6368
        %v6507 = vunpack.c.h.b16 %v6368
        %v6508 = vunpack.c.l.b16 %v6369
        %v6509 = vunpack.c.h.b16 %v6369
        %v6510 = vunpack.c.l.b16 %v6370
        %v6511 = vunpack.c.h.b16 %v6370
        %v6512 = vunpack.c.l.b16 %v6371
        %v6513 = vunpack.c.h.b16 %v6371
        %v6514 = vunpack.c.l.b16 %v6372
        %v6515 = vunpack.c.h.b16 %v6372
        %v6516 = vunpack.c.l.b16 %v6373
        %v6517 = vunpack.c.h.b16 %v6373
        %v6518 = vunpack.c.l.b16 %v6374
        %v6519 = vunpack.c.h.b16 %v6374
        %v6520 = vunpack.c.l.b16 %v6375
        %v6521 = vunpack.c.h.b16 %v6375
        %v6522 = vunpack.c.l.b16 %v6376
        %v6523 = vunpack.c.h.b16 %v6376
        %v6524 = vunpack.c.l.b16 %v6377
        %v6525 = vunpack.c.h.b16 %v6377
        %v6526 = vunpack.c.l.b16 %v6378
        %v6527 = vunpack.c.h.b16 %v6378
        %v6528 = vunpack.c.l.b16 %v6379
        %v6529 = vunpack.c.h.b16 %v6379
        %v6530 = vunpack.c.l.b16 %v6380
        %v6531 = vunpack.c.h.b16 %v6380
        %v6532 = vunpack.c.l.b16 %v6381
        %v6533 = vunpack.c.h.b16 %v6381
        %v6534 = vunpack.c.l.b16 %v6382
        %v6535 = vunpack.c.h.b16 %v6382
        %v6536 = vunpack.c.l.b16 %v6383
        %v6537 = vunpack.c.h.b16 %v6383
        %v6538 = vunpack.c.l.b16 %v6384
        %v6539 = vunpack.c.h.b16 %v6384
        %v6540 = vunpack.c.l.b16 %v6385
        %v6541 = vunpack.c.h.b16 %v6385
        %v6542 = vunpack.c.l.b16 %v6386
        %v6543 = vunpack.c.h.b16 %v6386
        %v6544 = vunpack.c.l.b16 %v6387
        %v6545 = vunpack.c.h.b16 %v6387
        %v6546 = vunpack.c.l.b16 %v6388
        %v6547 = vunpack.c.h.b16 %v6388
        %v6548 = vunpack.c.l.b16 %v6389
        %v6549 = vunpack.c.h.b16 %v6389
        %v6550 = vunpack.c.l.b16 %v6390
        %v6551 = vunpack.c.h.b16 %v6390
        %v6552 = vunpack.c.l.b16 %v6391
        %v6553 = vunpack.c.h.b16 %v6391
        %v6554 = vunpack.c.l.b16 %v6392
        %v6555 = vunpack.c.h.b16 %v6392
        %v6556 = vunpack.c.l.b16 %v6393
        %v6557 = vunpack.c.h.b16 %v6393
        %v6558 = vunpack.c.l.b16 %v6394
        %v6559 = vunpack.c.h.b16 %v6394
        %v6560 = vunpack.c.l.b16 %v6395
        %v6561 = vunpack.c.h.b16 %v6395
        %v6562 = vunpack.c.l.b16 %v6396
        %v6563 = vunpack.c.h.b16 %v6396
        %v6564 = vunpack.c.l.b16 %v6397
        %v6565 = vunpack.c.h.b16 %v6397
        %v6566 = vunpack.c.l.b16 %v6398
        %v6567 = vunpack.c.h.b16 %v6398
        %v6568 = vunpack.c.l.b16 %v6399
        %v6569 = vunpack.c.h.b16 %v6399
        %v6570 = vunpack.c.l.b16 %v6400
        %v6571 = vunpack.c.h.b16 %v6400
        %v6572 = vunpack.c.l.b16 %v6401
        %v6573 = vunpack.c.h.b16 %v6401
        %v6574 = vunpack.c.l.b16 %v6402
        %v6575 = vunpack.c.h.b16 %v6402
        %v6576 = vunpack.c.l.b16 %v6403
        %v6577 = vunpack.c.h.b16 %v6403
        %v6578 = vunpack.c.l.b16 %v6404
        %v6579 = vunpack.c.h.b16 %v6404
        %v6580 = vunpack.c.l.b16 %v6405
        %v6581 = vunpack.c.h.b16 %v6405
        %v6582 = vunpack.c.l.b16 %v6406
        %v6583 = vunpack.c.h.b16 %v6406
        %v6584 = vunpack.c.l.b16 %v6407
        %v6585 = vunpack.c.h.b16 %v6407
        %v6586 = vunpack.c.l.b16 %v6408
        %v6587 = vunpack.c.h.b16 %v6408
        %v6588 = vunpack.c.l.b16 %v6409
        %v6589 = vunpack.c.h.b16 %v6409
        %v6590 = vunpack.c.l.b16 %v6410
        %v6591 = vunpack.c.h.b16 %v6410
        %v6592 = vunpack.c.l.b16 %v6411
        %v6593 = vunpack.c.h.b16 %v6411
        %v6594 = vunpack.c.l.b16 %v6412
        %v6595 = vunpack.c.h.b16 %v6412
        %v6596 = vunpack.c.l.b16 %v6413
        %v6597 = vunpack.c.h.b16 %v6413
        %v6598 = vunpack.c.l.b16 %v6414
        %v6599 = vunpack.c.h.b16 %v6414
        %v6600 = vunpack.c.l.b16 %v6415
        %v6601 = vunpack.c.h.b16 %v6415
        %v6602 = vunpack.c.l.b16 %v6416
        %v6603 = vunpack.c.h.b16 %v6416
        %v6604 = vunpack.c.l.b16 %v6417
        %v6605 = vunpack.c.h.b16 %v6417
        %v6606 = vunpack.c.l.b16 %v6418
        %v6607 = vunpack.c.h.b16 %v6418
        %v6608 = vunpack.c.l.b16 %v6419
        %v6609 = vunpack.c.h.b16 %v6419
        %v6610 = vunpack.c.l.b16 %v6420
        %v6611 = vunpack.c.h.b16 %v6420
        %v6612 = vunpack.c.l.b16 %v6421
        %v6613 = vunpack.c.h.b16 %v6421
        %v6614 = vpack.c.b16 %v6490, %v6486
        %v6615 = vpack.c.b16 %v6491, %v6487
        %v6616 = vpack.c.b16 %v6492, %v6488
        %v6617 = vpack.c.b16 %v6493, %v6489
        %v6618 = vpack.c.b16 %v6498, %v6494
        %v6619 = vpack.c.b16 %v6499, %v6495
        %v6620 = vpack.c.b16 %v6500, %v6496
        %v6621 = vpack.c.b16 %v6501, %v6497
        %v6622 = vpack.c.b16 %v6506, %v6502
        %v6623 = vpack.c.b16 %v6507, %v6503
        %v6624 = vpack.c.b16 %v6508, %v6504
        %v6625 = vpack.c.b16 %v6509, %v6505
        %v6626 = vpack.c.b16 %v6514, %v6510
        %v6627 = vpack.c.b16 %v6515, %v6511
        %v6628 = vpack.c.b16 %v6516, %v6512
        %v6629 = vpack.c.b16 %v6517, %v6513
        %v6630 = vpack.c.b16 %v6522, %v6518
        %v6631 = vpack.c.b16 %v6523, %v6519
        %v6632 = vpack.c.b16 %v6524, %v6520
        %v6633 = vpack.c.b16 %v6525, %v6521
        %v6634 = vpack.c.b16 %v6530, %v6526
        %v6635 = vpack.c.b16 %v6531, %v6527
        %v6636 = vpack.c.b16 %v6532, %v6528
        %v6637 = vpack.c.b16 %v6533, %v6529
        %v6638 = vpack.c.b16 %v6538, %v6534
        %v6639 = vpack.c.b16 %v6539, %v6535
        %v6640 = vpack.c.b16 %v6540, %v6536
        %v6641 = vpack.c.b16 %v6541, %v6537
        %v6642 = vpack.c.b16 %v6546, %v6542
        %v6643 = vpack.c.b16 %v6547, %v6543
        %v6644 = vpack.c.b16 %v6548, %v6544
        %v6645 = vpack.c.b16 %v6549, %v6545
        %v6646 = vpack.c.b16 %v6554, %v6550
        %v6647 = vpack.c.b16 %v6555, %v6551
        %v6648 = vpack.c.b16 %v6556, %v6552
        %v6649 = vpack.c.b16 %v6557, %v6553
        %v6650 = vpack.c.b16 %v6562, %v6558
        %v6651 = vpack.c.b16 %v6563, %v6559
        %v6652 = vpack.c.b16 %v6564, %v6560
        %v6653 = vpack.c.b16 %v6565, %v6561
        %v6654 = vpack.c.b16 %v6570, %v6566
        %v6655 = vpack.c.b16 %v6571, %v6567
        %v6656 = vpack.c.b16 %v6572, %v6568
        %v6657 = vpack.c.b16 %v6573, %v6569
        %v6658 = vpack.c.b16 %v6578, %v6574
        %v6659 = vpack.c.b16 %v6579, %v6575
        %v6660 = vpack.c.b16 %v6580, %v6576
        %v6661 = vpack.c.b16 %v6581, %v6577
        %v6662 = vpack.c.b16 %v6586, %v6582
        %v6663 = vpack.c.b16 %v6587, %v6583
        %v6664 = vpack.c.b16 %v6588, %v6584
        %v6665 = vpack.c.b16 %v6589, %v6585
        %v6666 = vpack.c.b16 %v6594, %v6590
        %v6667 = vpack.c.b16 %v6595, %v6591
        %v6668 = vpack.c.b16 %v6596, %v6592
        %v6669 = vpack.c.b16 %v6597, %v6593
        %v6670 = vpack.c.b16 %v6602, %v6598
        %v6671 = vpack.c.b16 %v6603, %v6599
        %v6672 = vpack.c.b16 %v6604, %v6600
        %v6673 = vpack.c.b16 %v6605, %v6601
        %v6674 = vpack.c.b16 %v6610, %v6606
        %v6675 = vpack.c.b16 %v6611, %v6607
        %v6676 = vpack.c.b16 %v6612, %v6608
        %v6677 = vpack.c.b16 %v6613, %v6609
        %6742 = vmatprep.subr.bf16.mxu0 %v6615
        %6743 = vmatpush1.bf16.msra.mxu0 %v6614
        %6744 = vmatprep.subr.bf16.mxu0 %v6619
        %6745 = vmatpush1.bf16.msra.mxu0 %v6618
        %6746 = vmatprep.subr.bf16.mxu0 %v6623
        %6747 = vmatpush1.bf16.msra.mxu0 %v6622
        %6748 = vmatprep.subr.bf16.mxu0 %v6627
        %6749 = vmatpush1.bf16.msra.mxu0 %v6626
        %6750 = vmatprep.subr.bf16.mxu0 %v6631
        %6751 = vmatpush1.bf16.msra.mxu0 %v6630
        %6752 = vmatprep.subr.bf16.mxu0 %v6635
        %6753 = vmatpush1.bf16.msra.mxu0 %v6634
        %6754 = vmatprep.subr.bf16.mxu0 %v6639
        %6755 = vmatpush1.bf16.msra.mxu0 %v6638
        %6756 = vmatprep.subr.bf16.mxu0 %v6643
        %6757 = vmatpush1.bf16.msra.mxu0 %v6642
        %6758 = vmatprep.subr.bf16.mxu0 %v6647
        %6759 = vmatpush1.bf16.msra.mxu0 %v6646
        %6760 = vmatprep.subr.bf16.mxu0 %v6651
        %6761 = vmatpush1.bf16.msra.mxu0 %v6650
        %6762 = vmatprep.subr.bf16.mxu0 %v6655
        %6763 = vmatpush1.bf16.msra.mxu0 %v6654
        %6764 = vmatprep.subr.bf16.mxu0 %v6659
        %6765 = vmatpush1.bf16.msra.mxu0 %v6658
        %6766 = vmatprep.subr.bf16.mxu0 %v6663
        %6767 = vmatpush1.bf16.msra.mxu0 %v6662
        %6768 = vmatprep.subr.bf16.mxu0 %v6667
        %6769 = vmatpush1.bf16.msra.mxu0 %v6666
        %6770 = vmatprep.subr.bf16.mxu0 %v6671
        %6771 = vmatpush1.bf16.msra.mxu0 %v6670
        %6772 = vmatprep.subr.bf16.mxu0 %v6675
        %6773 = vmatpush1.bf16.msra.mxu0 %v6674
        %6774 = vmatprep.mubr.bf16.mxu0 %v6350
        %6775 = vmatmul.mubr.bf16.gmra.mrb[0].mxu0 %v6349
        %v6776 = vpop.f32.mrb[0].mxu0
        %v6777 = vadd.f32 0.0, %v6776
        %v6778 = vpop.f32.mrb[0].mxu0
        %v6779 = vadd.f32 0.0, %v6778
        %v6780 = vpop.f32.mrb[0].mxu0
        %v6781 = vadd.f32 0.0, %v6780
        %v6782 = vpop.f32.mrb[0].mxu0
        %v6783 = vadd.f32 0.0, %v6782
        %6784 = vmatprep.mubr.bf16.mxu0 %v6352
        %6785 = vmatmul.mubr.bf16.gmra.mrb[0].mxu0 %v6351
        %v6786 = vpop.f32.mrb[0].mxu0
        %v6787 = vadd.f32 0.0, %v6786
        %v6788 = vpop.f32.mrb[0].mxu0
        %v6789 = vadd.f32 0.0, %v6788
        %v6790 = vpop.f32.mrb[0].mxu0
        %v6791 = vadd.f32 0.0, %v6790
        %v6792 = vpop.f32.mrb[0].mxu0
        %v6793 = vadd.f32 0.0, %v6792
        %6794 = vmatprep.mubr.bf16.mxu0 %v6354
        %6795 = vmatmul.mubr.bf16.gmra.mrb[0].mxu0 %v6353
        %v6796 = vpop.f32.mrb[0].mxu0
        %v6797 = vadd.f32 0.0, %v6796
        %v6798 = vpop.f32.mrb[0].mxu0
        %v6799 = vadd.f32 0.0, %v6798
        %v6800 = vpop.f32.mrb[0].mxu0
        %v6801 = vadd.f32 0.0, %v6800
        %v6802 = vpop.f32.mrb[0].mxu0
        %v6803 = vadd.f32 0.0, %v6802
        %6804 = vmatprep.mubr.bf16.mxu0 %v6356
        %6805 = vmatmul.mubr.bf16.gmra.mrb[0].mxu0 %v6355
        %v6806 = vpop.f32.mrb[0].mxu0
        %v6807 = vadd.f32 0.0, %v6806
        %v6808 = vpop.f32.mrb[0].mxu0
        %v6809 = vadd.f32 0.0, %v6808
        %v6810 = vpop.f32.mrb[0].mxu0
        %v6811 = vadd.f32 0.0, %v6810
        %v6812 = vpop.f32.mrb[0].mxu0
        %v6813 = vadd.f32 0.0, %v6812
        %6814 = vdwg.mxu0
        %6815 = vmatprep.subr.bf16.mxu0 %v6617
        %6816 = vmatpush1.bf16.msra.mxu0 %v6616
        %6817 = vmatprep.subr.bf16.mxu0 %v6621
        %6818 = vmatpush1.bf16.msra.mxu0 %v6620
        %6819 = vmatprep.subr.bf16.mxu0 %v6625
        %6820 = vmatpush1.bf16.msra.mxu0 %v6624
        %6821 = vmatprep.subr.bf16.mxu0 %v6629
        %6822 = vmatpush1.bf16.msra.mxu0 %v6628
        %6823 = vmatprep.subr.bf16.mxu0 %v6633
        %6824 = vmatpush1.bf16.msra.mxu0 %v6632
        %6825 = vmatprep.subr.bf16.mxu0 %v6637
        %6826 = vmatpush1.bf16.msra.mxu0 %v6636
        %6827 = vmatprep.subr.bf16.mxu0 %v6641
        %6828 = vmatpush1.bf16.msra.mxu0 %v6640
        %6829 = vmatprep.subr.bf16.mxu0 %v6645
        %6830 = vmatpush1.bf16.msra.mxu0 %v6644
        %6831 = vmatprep.subr.bf16.mxu0 %v6649
        %6832 = vmatpush1.bf16.msra.mxu0 %v6648
        %6833 = vmatprep.subr.bf16.mxu0 %v6653
        %6834 = vmatpush1.bf16.msra.mxu0 %v6652
        %6835 = vmatprep.subr.bf16.mxu0 %v6657
        %6836 = vmatpush1.bf16.msra.mxu0 %v6656
        %6837 = vmatprep.subr.bf16.mxu0 %v6661
        %6838 = vmatpush1.bf16.msra.mxu0 %v6660
        %6839 = vmatprep.subr.bf16.mxu0 %v6665
        %6840 = vmatpush1.bf16.msra.mxu0 %v6664
        %6841 = vmatprep.subr.bf16.mxu0 %v6669
        %6842 = vmatpush1.bf16.msra.mxu0 %v6668
        %6843 = vmatprep.subr.bf16.mxu0 %v6673
        %6844 = vmatpush1.bf16.msra.mxu0 %v6672
        %6845 = vmatprep.subr.bf16.mxu0 %v6677
        %6846 = vmatpush1.bf16.msra.mxu0 %v6676
        %6847 = vmatprep.mubr.bf16.mxu0 %v6350
        %6848 = vmatmul.mubr.bf16.gmra.mrb[0].mxu0 %v6349
        %v6849 = vpop.f32.mrb[0].mxu0
        %v6850 = vadd.f32 0.0, %v6849
        %v6851 = vpop.f32.mrb[0].mxu0
        %v6852 = vadd.f32 0.0, %v6851
        %v6853 = vpop.f32.mrb[0].mxu0
        %v6854 = vadd.f32 0.0, %v6853
        %v6855 = vpop.f32.mrb[0].mxu0
        %v6856 = vadd.f32 0.0, %v6855
        %6857 = vmatprep.mubr.bf16.mxu0 %v6352
        %6858 = vmatmul.mubr.bf16.gmra.mrb[0].mxu0 %v6351
        %v6859 = vpop.f32.mrb[0].mxu0
        %v6860 = vadd.f32 0.0, %v6859
        %v6861 = vpop.f32.mrb[0].mxu0
        %v6862 = vadd.f32 0.0, %v6861
        %v6863 = vpop.f32.mrb[0].mxu0
        %v6864 = vadd.f32 0.0, %v6863
        %v6865 = vpop.f32.mrb[0].mxu0
        %v6866 = vadd.f32 0.0, %v6865
        %6867 = vmatprep.mubr.bf16.mxu0 %v6354
        %6868 = vmatmul.mubr.bf16.gmra.mrb[0].mxu0 %v6353
        %v6869 = vpop.f32.mrb[0].mxu0
        %v6870 = vadd.f32 0.0, %v6869
        %v6871 = vpop.f32.mrb[0].mxu0
        %v6872 = vadd.f32 0.0, %v6871
        %v6873 = vpop.f32.mrb[0].mxu0
        %v6874 = vadd.f32 0.0, %v6873
        %v6875 = vpop.f32.mrb[0].mxu0
        %v6876 = vadd.f32 0.0, %v6875
        %6877 = vmatprep.mubr.bf16.mxu0 %v6356
        %6878 = vmatmul.mubr.bf16.gmra.mrb[0].mxu0 %v6355
        %v6879 = vpop.f32.mrb[0].mxu0
        %v6880 = vadd.f32 0.0, %v6879
        %v6881 = vpop.f32.mrb[0].mxu0
        %v6882 = vadd.f32 0.0, %v6881
        %v6883 = vpop.f32.mrb[0].mxu0
        %v6884 = vadd.f32 0.0, %v6883
        %v6885 = vpop.f32.mrb[0].mxu0
        %v6886 = vadd.f32 0.0, %v6885
        %6887 = vdwg.mxu0
        %v6888 = vld [vmem:[#allocation4] sm:$0xff]
        %v6889 = vld [vmem:[#allocation4 + $0x8] sm:$0xff]
        %v6890 = vld [vmem:[#allocation4 + $0x10] sm:$0xff]
        %v6891 = vld [vmem:[#allocation4 + $0x18] sm:$0xff]
        %v6892 = vld [vmem:[#allocation4 + $0x20] sm:$0xff]
        %v6893 = vld [vmem:[#allocation4 + $0x28] sm:$0xff]
        %v6894 = vld [vmem:[#allocation4 + $0x30] sm:$0xff]
        %v6895 = vld [vmem:[#allocation4 + $0x38] sm:$0xff]
        %v6896 = vld [vmem:[#allocation4 + $0x40] sm:$0xff]
        %v6897 = vld [vmem:[#allocation4 + $0x48] sm:$0xff]
        %v6898 = vld [vmem:[#allocation4 + $0x50] sm:$0xff]
        %v6899 = vld [vmem:[#allocation4 + $0x58] sm:$0xff]
        %v6900 = vld [vmem:[#allocation4 + $0x60] sm:$0xff]
        %v6901 = vld [vmem:[#allocation4 + $0x68] sm:$0xff]
        %v6902 = vld [vmem:[#allocation4 + $0x70] sm:$0xff]
        %v6903 = vld [vmem:[#allocation4 + $0x78] sm:$0xff]
        %v6904 = vld [vmem:[#allocation4 + $0x80] sm:$0xff]
        %v6905 = vld [vmem:[#allocation4 + $0x88] sm:$0xff]
        %v6906 = vld [vmem:[#allocation4 + $0x90] sm:$0xff]
        %v6907 = vld [vmem:[#allocation4 + $0x98] sm:$0xff]
        %v6908 = vld [vmem:[#allocation4 + $0xa0] sm:$0xff]
        %v6909 = vld [vmem:[#allocation4 + $0xa8] sm:$0xff]
        %v6910 = vld [vmem:[#allocation4 + $0xb0] sm:$0xff]
        %v6911 = vld [vmem:[#allocation4 + $0xb8] sm:$0xff]
        %v6912 = vld [vmem:[#allocation4 + $0xc0] sm:$0xff]
        %v6913 = vld [vmem:[#allocation4 + $0xc8] sm:$0xff]
        %v6914 = vld [vmem:[#allocation4 + $0xd0] sm:$0xff]
        %v6915 = vld [vmem:[#allocation4 + $0xd8] sm:$0xff]
        %v6916 = vld [vmem:[#allocation4 + $0xe0] sm:$0xff]
        %v6917 = vld [vmem:[#allocation4 + $0xe8] sm:$0xff]
        %v6918 = vld [vmem:[#allocation4 + $0xf0] sm:$0xff]
        %v6919 = vld [vmem:[#allocation4 + $0xf8] sm:$0xff]
        %v6920 = vadd.f32 %v6888, %v6777
        %v6921 = vadd.f32 %v6889, %v6779
        %v6922 = vadd.f32 %v6890, %v6850
        %v6923 = vadd.f32 %v6891, %v6852
        %v6924 = vadd.f32 %v6892, %v6781
        %v6925 = vadd.f32 %v6893, %v6783
        %v6926 = vadd.f32 %v6894, %v6854
        %v6927 = vadd.f32 %v6895, %v6856
        %v6928 = vadd.f32 %v6896, %v6787
        %v6929 = vadd.f32 %v6897, %v6789
        %v6930 = vadd.f32 %v6898, %v6860
        %v6931 = vadd.f32 %v6899, %v6862
        %v6932 = vadd.f32 %v6900, %v6791
        %v6933 = vadd.f32 %v6901, %v6793
        %v6934 = vadd.f32 %v6902, %v6864
        %v6935 = vadd.f32 %v6903, %v6866
        %v6936 = vadd.f32 %v6904, %v6797
        %v6937 = vadd.f32 %v6905, %v6799
        %v6938 = vadd.f32 %v6906, %v6870
        %v6939 = vadd.f32 %v6907, %v6872
        %v6940 = vadd.f32 %v6908, %v6801
        %v6941 = vadd.f32 %v6909, %v6803
        %v6942 = vadd.f32 %v6910, %v6874
        %v6943 = vadd.f32 %v6911, %v6876
        %v6944 = vadd.f32 %v6912, %v6807
        %v6945 = vadd.f32 %v6913, %v6809
        %v6946 = vadd.f32 %v6914, %v6880
        %v6947 = vadd.f32 %v6915, %v6882
        %v6948 = vadd.f32 %v6916, %v6811
        %v6949 = vadd.f32 %v6917, %v6813
        %v6950 = vadd.f32 %v6918, %v6884
        %v6951 = vadd.f32 %v6919, %v6886
        %6952 = vst [vmem:[#allocation4] sm:$0xff] %v6920
        %6953 = vst [vmem:[#allocation4 + $0x8] sm:$0xff] %v6921
        %6954 = vst [vmem:[#allocation4 + $0x10] sm:$0xff] %v6922
        %6955 = vst [vmem:[#allocation4 + $0x18] sm:$0xff] %v6923
        %6956 = vst [vmem:[#allocation4 + $0x20] sm:$0xff] %v6924
        %6957 = vst [vmem:[#allocation4 + $0x28] sm:$0xff] %v6925
        %6958 = vst [vmem:[#allocation4 + $0x30] sm:$0xff] %v6926
        %6959 = vst [vmem:[#allocation4 + $0x38] sm:$0xff] %v6927
        %6960 = vst [vmem:[#allocation4 + $0x40] sm:$0xff] %v6928
        %6961 = vst [vmem:[#allocation4 + $0x48] sm:$0xff] %v6929
        %6962 = vst [vmem:[#allocation4 + $0x50] sm:$0xff] %v6930
        %6963 = vst [vmem:[#allocation4 + $0x58] sm:$0xff] %v6931
        %6964 = vst [vmem:[#allocation4 + $0x60] sm:$0xff] %v6932
        %6965 = vst [vmem:[#allocation4 + $0x68] sm:$0xff] %v6933
        %6966 = vst [vmem:[#allocation4 + $0x70] sm:$0xff] %v6934
        %6967 = vst [vmem:[#allocation4 + $0x78] sm:$0xff] %v6935
        %6968 = vst [vmem:[#allocation4 + $0x80] sm:$0xff] %v6936
        %6969 = vst [vmem:[#allocation4 + $0x88] sm:$0xff] %v6937
        %6970 = vst [vmem:[#allocation4 + $0x90] sm:$0xff] %v6938
        %6971 = vst [vmem:[#allocation4 + $0x98] sm:$0xff] %v6939
        %6972 = vst [vmem:[#allocation4 + $0xa0] sm:$0xff] %v6940
        %6973 = vst [vmem:[#allocation4 + $0xa8] sm:$0xff] %v6941
        %6974 = vst [vmem:[#allocation4 + $0xb0] sm:$0xff] %v6942
        %6975 = vst [vmem:[#allocation4 + $0xb8] sm:$0xff] %v6943
        %6976 = vst [vmem:[#allocation4 + $0xc0] sm:$0xff] %v6944
        %6977 = vst [vmem:[#allocation4 + $0xc8] sm:$0xff] %v6945
        %6978 = vst [vmem:[#allocation4 + $0xd0] sm:$0xff] %v6946
        %6979 = vst [vmem:[#allocation4 + $0xd8] sm:$0xff] %v6947
        %6980 = vst [vmem:[#allocation4 + $0xe0] sm:$0xff] %v6948
        %6981 = vst [vmem:[#allocation4 + $0xe8] sm:$0xff] %v6949
        %6982 = vst [vmem:[#allocation4 + $0xf0] sm:$0xff] %v6950
        %6983 = vst [vmem:[#allocation4 + $0xf8] sm:$0xff] %v6951
        %v6984 = vld [vmem:[#allocation5 + $0x60] sm:$0xff]
        %v6985 = vld [vmem:[#allocation5 + $0x68] sm:$0xff]
        %v6986 = vld [vmem:[#allocation5 + $0x70] sm:$0xff]
        %v6987 = vld [vmem:[#allocation5 + $0x78] sm:$0xff]
        %v6988 = vld [vmem:[#allocation5 + $0x80] sm:$0xff]
        %v6989 = vld [vmem:[#allocation5 + $0x88] sm:$0xff]
        %v6990 = vld [vmem:[#allocation5 + $0x90] sm:$0xff]
        %v6991 = vld [vmem:[#allocation5 + $0x98] sm:$0xff]
        %s6992 = scalar_lea.vmem %s4, 1536
        %v6993 = vld [vmem:[%s6992] sm:$0xff]
        %v6994 = vld [vmem:[%s6992 + $0x8] sm:$0xff]
        %v6995 = vld [vmem:[%s6992 + $0x10] sm:$0xff]
        %v6996 = vld [vmem:[%s6992 + $0x18] sm:$0xff]
        %v6997 = vld [vmem:[%s6992 + $0x20] sm:$0xff]
        %v6998 = vld [vmem:[%s6992 + $0x28] sm:$0xff]
        %v6999 = vld [vmem:[%s6992 + $0x30] sm:$0xff]
        %v7000 = vld [vmem:[%s6992 + $0x38] sm:$0xff]
        %v7001 = vld [vmem:[%s6992 + $0x40] sm:$0xff]
        %v7002 = vld [vmem:[%s6992 + $0x48] sm:$0xff]
        %v7003 = vld [vmem:[%s6992 + $0x50] sm:$0xff]
        %v7004 = vld [vmem:[%s6992 + $0x58] sm:$0xff]
        %v7005 = vld [vmem:[%s6992 + $0x60] sm:$0xff]
        %v7006 = vld [vmem:[%s6992 + $0x68] sm:$0xff]
        %v7007 = vld [vmem:[%s6992 + $0x70] sm:$0xff]
        %v7008 = vld [vmem:[%s6992 + $0x78] sm:$0xff]
        %v7009 = vld [vmem:[%s6992 + $0x80] sm:$0xff]
        %v7010 = vld [vmem:[%s6992 + $0x88] sm:$0xff]
        %v7011 = vld [vmem:[%s6992 + $0x90] sm:$0xff]
        %v7012 = vld [vmem:[%s6992 + $0x98] sm:$0xff]
        %v7013 = vld [vmem:[%s6992 + $0xa0] sm:$0xff]
        %v7014 = vld [vmem:[%s6992 + $0xa8] sm:$0xff]
        %v7015 = vld [vmem:[%s6992 + $0xb0] sm:$0xff]
        %v7016 = vld [vmem:[%s6992 + $0xb8] sm:$0xff]
        %v7017 = vld [vmem:[%s6992 + $0xc0] sm:$0xff]
        %v7018 = vld [vmem:[%s6992 + $0xc8] sm:$0xff]
        %v7019 = vld [vmem:[%s6992 + $0xd0] sm:$0xff]
        %v7020 = vld [vmem:[%s6992 + $0xd8] sm:$0xff]
        %v7021 = vld [vmem:[%s6992 + $0xe0] sm:$0xff]
        %v7022 = vld [vmem:[%s6992 + $0xe8] sm:$0xff]
        %v7023 = vld [vmem:[%s6992 + $0xf0] sm:$0xff]
        %v7024 = vld [vmem:[%s6992 + $0xf8] sm:$0xff]
        %v7025 = vld [vmem:[%s6992 + $0x100] sm:$0xff]
        %v7026 = vld [vmem:[%s6992 + $0x108] sm:$0xff]
        %v7027 = vld [vmem:[%s6992 + $0x110] sm:$0xff]
        %v7028 = vld [vmem:[%s6992 + $0x118] sm:$0xff]
        %v7029 = vld [vmem:[%s6992 + $0x120] sm:$0xff]
        %v7030 = vld [vmem:[%s6992 + $0x128] sm:$0xff]
        %v7031 = vld [vmem:[%s6992 + $0x130] sm:$0xff]
        %v7032 = vld [vmem:[%s6992 + $0x138] sm:$0xff]
        %v7033 = vld [vmem:[%s6992 + $0x140] sm:$0xff]
        %v7034 = vld [vmem:[%s6992 + $0x148] sm:$0xff]
        %v7035 = vld [vmem:[%s6992 + $0x150] sm:$0xff]
        %v7036 = vld [vmem:[%s6992 + $0x158] sm:$0xff]
        %v7037 = vld [vmem:[%s6992 + $0x160] sm:$0xff]
        %v7038 = vld [vmem:[%s6992 + $0x168] sm:$0xff]
        %v7039 = vld [vmem:[%s6992 + $0x170] sm:$0xff]
        %v7040 = vld [vmem:[%s6992 + $0x178] sm:$0xff]
        %v7041 = vld [vmem:[%s6992 + $0x180] sm:$0xff]
        %v7042 = vld [vmem:[%s6992 + $0x188] sm:$0xff]
        %v7043 = vld [vmem:[%s6992 + $0x190] sm:$0xff]
        %v7044 = vld [vmem:[%s6992 + $0x198] sm:$0xff]
        %v7045 = vld [vmem:[%s6992 + $0x1a0] sm:$0xff]
        %v7046 = vld [vmem:[%s6992 + $0x1a8] sm:$0xff]
        %v7047 = vld [vmem:[%s6992 + $0x1b0] sm:$0xff]
        %v7048 = vld [vmem:[%s6992 + $0x1b8] sm:$0xff]
        %v7049 = vld [vmem:[%s6992 + $0x1c0] sm:$0xff]
        %v7050 = vld [vmem:[%s6992 + $0x1c8] sm:$0xff]
        %v7051 = vld [vmem:[%s6992 + $0x1d0] sm:$0xff]
        %v7052 = vld [vmem:[%s6992 + $0x1d8] sm:$0xff]
        %v7053 = vld [vmem:[%s6992 + $0x1e0] sm:$0xff]
        %v7054 = vld [vmem:[%s6992 + $0x1e8] sm:$0xff]
        %v7055 = vld [vmem:[%s6992 + $0x1f0] sm:$0xff]
        %v7056 = vld [vmem:[%s6992 + $0x1f8] sm:$0xff]
        %v7121 = vunpack.c.l.b16 %v6993
        %v7122 = vunpack.c.h.b16 %v6993
        %v7123 = vunpack.c.l.b16 %v6994
        %v7124 = vunpack.c.h.b16 %v6994
        %v7125 = vunpack.c.l.b16 %v6995
        %v7126 = vunpack.c.h.b16 %v6995
        %v7127 = vunpack.c.l.b16 %v6996
        %v7128 = vunpack.c.h.b16 %v6996
        %v7129 = vunpack.c.l.b16 %v6997
        %v7130 = vunpack.c.h.b16 %v6997
        %v7131 = vunpack.c.l.b16 %v6998
        %v7132 = vunpack.c.h.b16 %v6998
        %v7133 = vunpack.c.l.b16 %v6999
        %v7134 = vunpack.c.h.b16 %v6999
        %v7135 = vunpack.c.l.b16 %v7000
        %v7136 = vunpack.c.h.b16 %v7000
        %v7137 = vunpack.c.l.b16 %v7001
        %v7138 = vunpack.c.h.b16 %v7001
        %v7139 = vunpack.c.l.b16 %v7002
        %v7140 = vunpack.c.h.b16 %v7002
        %v7141 = vunpack.c.l.b16 %v7003
        %v7142 = vunpack.c.h.b16 %v7003
        %v7143 = vunpack.c.l.b16 %v7004
        %v7144 = vunpack.c.h.b16 %v7004
        %v7145 = vunpack.c.l.b16 %v7005
        %v7146 = vunpack.c.h.b16 %v7005
        %v7147 = vunpack.c.l.b16 %v7006
        %v7148 = vunpack.c.h.b16 %v7006
        %v7149 = vunpack.c.l.b16 %v7007
        %v7150 = vunpack.c.h.b16 %v7007
        %v7151 = vunpack.c.l.b16 %v7008
        %v7152 = vunpack.c.h.b16 %v7008
        %v7153 = vunpack.c.l.b16 %v7009
        %v7154 = vunpack.c.h.b16 %v7009
        %v7155 = vunpack.c.l.b16 %v7010
        %v7156 = vunpack.c.h.b16 %v7010
        %v7157 = vunpack.c.l.b16 %v7011
        %v7158 = vunpack.c.h.b16 %v7011
        %v7159 = vunpack.c.l.b16 %v7012
        %v7160 = vunpack.c.h.b16 %v7012
        %v7161 = vunpack.c.l.b16 %v7013
        %v7162 = vunpack.c.h.b16 %v7013
        %v7163 = vunpack.c.l.b16 %v7014
        %v7164 = vunpack.c.h.b16 %v7014
        %v7165 = vunpack.c.l.b16 %v7015
        %v7166 = vunpack.c.h.b16 %v7015
        %v7167 = vunpack.c.l.b16 %v7016
        %v7168 = vunpack.c.h.b16 %v7016
        %v7169 = vunpack.c.l.b16 %v7017
        %v7170 = vunpack.c.h.b16 %v7017
        %v7171 = vunpack.c.l.b16 %v7018
        %v7172 = vunpack.c.h.b16 %v7018
        %v7173 = vunpack.c.l.b16 %v7019
        %v7174 = vunpack.c.h.b16 %v7019
        %v7175 = vunpack.c.l.b16 %v7020
        %v7176 = vunpack.c.h.b16 %v7020
        %v7177 = vunpack.c.l.b16 %v7021
        %v7178 = vunpack.c.h.b16 %v7021
        %v7179 = vunpack.c.l.b16 %v7022
        %v7180 = vunpack.c.h.b16 %v7022
        %v7181 = vunpack.c.l.b16 %v7023
        %v7182 = vunpack.c.h.b16 %v7023
        %v7183 = vunpack.c.l.b16 %v7024
        %v7184 = vunpack.c.h.b16 %v7024
        %v7185 = vunpack.c.l.b16 %v7025
        %v7186 = vunpack.c.h.b16 %v7025
        %v7187 = vunpack.c.l.b16 %v7026
        %v7188 = vunpack.c.h.b16 %v7026
        %v7189 = vunpack.c.l.b16 %v7027
        %v7190 = vunpack.c.h.b16 %v7027
        %v7191 = vunpack.c.l.b16 %v7028
        %v7192 = vunpack.c.h.b16 %v7028
        %v7193 = vunpack.c.l.b16 %v7029
        %v7194 = vunpack.c.h.b16 %v7029
        %v7195 = vunpack.c.l.b16 %v7030
        %v7196 = vunpack.c.h.b16 %v7030
        %v7197 = vunpack.c.l.b16 %v7031
        %v7198 = vunpack.c.h.b16 %v7031
        %v7199 = vunpack.c.l.b16 %v7032
        %v7200 = vunpack.c.h.b16 %v7032
        %v7201 = vunpack.c.l.b16 %v7033
        %v7202 = vunpack.c.h.b16 %v7033
        %v7203 = vunpack.c.l.b16 %v7034
        %v7204 = vunpack.c.h.b16 %v7034
        %v7205 = vunpack.c.l.b16 %v7035
        %v7206 = vunpack.c.h.b16 %v7035
        %v7207 = vunpack.c.l.b16 %v7036
        %v7208 = vunpack.c.h.b16 %v7036
        %v7209 = vunpack.c.l.b16 %v7037
        %v7210 = vunpack.c.h.b16 %v7037
        %v7211 = vunpack.c.l.b16 %v7038
        %v7212 = vunpack.c.h.b16 %v7038
        %v7213 = vunpack.c.l.b16 %v7039
        %v7214 = vunpack.c.h.b16 %v7039
        %v7215 = vunpack.c.l.b16 %v7040
        %v7216 = vunpack.c.h.b16 %v7040
        %v7217 = vunpack.c.l.b16 %v7041
        %v7218 = vunpack.c.h.b16 %v7041
        %v7219 = vunpack.c.l.b16 %v7042
        %v7220 = vunpack.c.h.b16 %v7042
        %v7221 = vunpack.c.l.b16 %v7043
        %v7222 = vunpack.c.h.b16 %v7043
        %v7223 = vunpack.c.l.b16 %v7044
        %v7224 = vunpack.c.h.b16 %v7044
        %v7225 = vunpack.c.l.b16 %v7045
        %v7226 = vunpack.c.h.b16 %v7045
        %v7227 = vunpack.c.l.b16 %v7046
        %v7228 = vunpack.c.h.b16 %v7046
        %v7229 = vunpack.c.l.b16 %v7047
        %v7230 = vunpack.c.h.b16 %v7047
        %v7231 = vunpack.c.l.b16 %v7048
        %v7232 = vunpack.c.h.b16 %v7048
        %v7233 = vunpack.c.l.b16 %v7049
        %v7234 = vunpack.c.h.b16 %v7049
        %v7235 = vunpack.c.l.b16 %v7050
        %v7236 = vunpack.c.h.b16 %v7050
        %v7237 = vunpack.c.l.b16 %v7051
        %v7238 = vunpack.c.h.b16 %v7051
        %v7239 = vunpack.c.l.b16 %v7052
        %v7240 = vunpack.c.h.b16 %v7052
        %v7241 = vunpack.c.l.b16 %v7053
        %v7242 = vunpack.c.h.b16 %v7053
        %v7243 = vunpack.c.l.b16 %v7054
        %v7244 = vunpack.c.h.b16 %v7054
        %v7245 = vunpack.c.l.b16 %v7055
        %v7246 = vunpack.c.h.b16 %v7055
        %v7247 = vunpack.c.l.b16 %v7056
        %v7248 = vunpack.c.h.b16 %v7056
        %v7249 = vpack.c.b16 %v7125, %v7121
        %v7250 = vpack.c.b16 %v7126, %v7122
        %v7251 = vpack.c.b16 %v7127, %v7123
        %v7252 = vpack.c.b16 %v7128, %v7124
        %v7253 = vpack.c.b16 %v7133, %v7129
        %v7254 = vpack.c.b16 %v7134, %v7130
        %v7255 = vpack.c.b16 %v7135, %v7131
        %v7256 = vpack.c.b16 %v7136, %v7132
        %v7257 = vpack.c.b16 %v7141, %v7137
        %v7258 = vpack.c.b16 %v7142, %v7138
        %v7259 = vpack.c.b16 %v7143, %v7139
        %v7260 = vpack.c.b16 %v7144, %v7140
        %v7261 = vpack.c.b16 %v7149, %v7145
        %v7262 = vpack.c.b16 %v7150, %v7146
        %v7263 = vpack.c.b16 %v7151, %v7147
        %v7264 = vpack.c.b16 %v7152, %v7148
        %v7265 = vpack.c.b16 %v7157, %v7153
        %v7266 = vpack.c.b16 %v7158, %v7154
        %v7267 = vpack.c.b16 %v7159, %v7155
        %v7268 = vpack.c.b16 %v7160, %v7156
        %v7269 = vpack.c.b16 %v7165, %v7161
        %v7270 = vpack.c.b16 %v7166, %v7162
        %v7271 = vpack.c.b16 %v7167, %v7163
        %v7272 = vpack.c.b16 %v7168, %v7164
        %v7273 = vpack.c.b16 %v7173, %v7169
        %v7274 = vpack.c.b16 %v7174, %v7170
        %v7275 = vpack.c.b16 %v7175, %v7171
        %v7276 = vpack.c.b16 %v7176, %v7172
        %v7277 = vpack.c.b16 %v7181, %v7177
        %v7278 = vpack.c.b16 %v7182, %v7178
        %v7279 = vpack.c.b16 %v7183, %v7179
        %v7280 = vpack.c.b16 %v7184, %v7180
        %v7281 = vpack.c.b16 %v7189, %v7185
        %v7282 = vpack.c.b16 %v7190, %v7186
        %v7283 = vpack.c.b16 %v7191, %v7187
        %v7284 = vpack.c.b16 %v7192, %v7188
        %v7285 = vpack.c.b16 %v7197, %v7193
        %v7286 = vpack.c.b16 %v7198, %v7194
        %v7287 = vpack.c.b16 %v7199, %v7195
        %v7288 = vpack.c.b16 %v7200, %v7196
        %v7289 = vpack.c.b16 %v7205, %v7201
        %v7290 = vpack.c.b16 %v7206, %v7202
        %v7291 = vpack.c.b16 %v7207, %v7203
        %v7292 = vpack.c.b16 %v7208, %v7204
        %v7293 = vpack.c.b16 %v7213, %v7209
        %v7294 = vpack.c.b16 %v7214, %v7210
        %v7295 = vpack.c.b16 %v7215, %v7211
        %v7296 = vpack.c.b16 %v7216, %v7212
        %v7297 = vpack.c.b16 %v7221, %v7217
        %v7298 = vpack.c.b16 %v7222, %v7218
        %v7299 = vpack.c.b16 %v7223, %v7219
        %v7300 = vpack.c.b16 %v7224, %v7220
        %v7301 = vpack.c.b16 %v7229, %v7225
        %v7302 = vpack.c.b16 %v7230, %v7226
        %v7303 = vpack.c.b16 %v7231, %v7227
        %v7304 = vpack.c.b16 %v7232, %v7228
        %v7305 = vpack.c.b16 %v7237, %v7233
        %v7306 = vpack.c.b16 %v7238, %v7234
        %v7307 = vpack.c.b16 %v7239, %v7235
        %v7308 = vpack.c.b16 %v7240, %v7236
        %v7309 = vpack.c.b16 %v7245, %v7241
        %v7310 = vpack.c.b16 %v7246, %v7242
        %v7311 = vpack.c.b16 %v7247, %v7243
        %v7312 = vpack.c.b16 %v7248, %v7244
        %7377 = vmatprep.subr.bf16.mxu0 %v7250
        %7378 = vmatpush1.bf16.msra.mxu0 %v7249
        %7379 = vmatprep.subr.bf16.mxu0 %v7254
        %7380 = vmatpush1.bf16.msra.mxu0 %v7253
        %7381 = vmatprep.subr.bf16.mxu0 %v7258
        %7382 = vmatpush1.bf16.msra.mxu0 %v7257
        %7383 = vmatprep.subr.bf16.mxu0 %v7262
        %7384 = vmatpush1.bf16.msra.mxu0 %v7261
        %7385 = vmatprep.subr.bf16.mxu0 %v7266
        %7386 = vmatpush1.bf16.msra.mxu0 %v7265
        %7387 = vmatprep.subr.bf16.mxu0 %v7270
        %7388 = vmatpush1.bf16.msra.mxu0 %v7269
        %7389 = vmatprep.subr.bf16.mxu0 %v7274
        %7390 = vmatpush1.bf16.msra.mxu0 %v7273
        %7391 = vmatprep.subr.bf16.mxu0 %v7278
        %7392 = vmatpush1.bf16.msra.mxu0 %v7277
        %7393 = vmatprep.subr.bf16.mxu0 %v7282
        %7394 = vmatpush1.bf16.msra.mxu0 %v7281
        %7395 = vmatprep.subr.bf16.mxu0 %v7286
        %7396 = vmatpush1.bf16.msra.mxu0 %v7285
        %7397 = vmatprep.subr.bf16.mxu0 %v7290
        %7398 = vmatpush1.bf16.msra.mxu0 %v7289
        %7399 = vmatprep.subr.bf16.mxu0 %v7294
        %7400 = vmatpush1.bf16.msra.mxu0 %v7293
        %7401 = vmatprep.subr.bf16.mxu0 %v7298
        %7402 = vmatpush1.bf16.msra.mxu0 %v7297
        %7403 = vmatprep.subr.bf16.mxu0 %v7302
        %7404 = vmatpush1.bf16.msra.mxu0 %v7301
        %7405 = vmatprep.subr.bf16.mxu0 %v7306
        %7406 = vmatpush1.bf16.msra.mxu0 %v7305
        %7407 = vmatprep.subr.bf16.mxu0 %v7310
        %7408 = vmatpush1.bf16.msra.mxu0 %v7309
        %7409 = vmatprep.mubr.bf16.mxu0 %v6985
        %7410 = vmatmul.mubr.bf16.gmra.mrb[0].mxu0 %v6984
        %v7411 = vpop.f32.mrb[0].mxu0
        %v7412 = vadd.f32 0.0, %v7411
        %v7413 = vpop.f32.mrb[0].mxu0
        %v7414 = vadd.f32 0.0, %v7413
        %v7415 = vpop.f32.mrb[0].mxu0
        %v7416 = vadd.f32 0.0, %v7415
        %v7417 = vpop.f32.mrb[0].mxu0
        %v7418 = vadd.f32 0.0, %v7417
        %7419 = vmatprep.mubr.bf16.mxu0 %v6987
        %7420 = vmatmul.mubr.bf16.gmra.mrb[0].mxu0 %v6986
        %v7421 = vpop.f32.mrb[0].mxu0
        %v7422 = vadd.f32 0.0, %v7421
        %v7423 = vpop.f32.mrb[0].mxu0
        %v7424 = vadd.f32 0.0, %v7423
        %v7425 = vpop.f32.mrb[0].mxu0
        %v7426 = vadd.f32 0.0, %v7425
        %v7427 = vpop.f32.mrb[0].mxu0
        %v7428 = vadd.f32 0.0, %v7427
        %7429 = vmatprep.mubr.bf16.mxu0 %v6989
        %7430 = vmatmul.mubr.bf16.gmra.mrb[0].mxu0 %v6988
        %v7431 = vpop.f32.mrb[0].mxu0
        %v7432 = vadd.f32 0.0, %v7431
        %v7433 = vpop.f32.mrb[0].mxu0
        %v7434 = vadd.f32 0.0, %v7433
        %v7435 = vpop.f32.mrb[0].mxu0
        %v7436 = vadd.f32 0.0, %v7435
        %v7437 = vpop.f32.mrb[0].mxu0
        %v7438 = vadd.f32 0.0, %v7437
        %7439 = vmatprep.mubr.bf16.mxu0 %v6991
        %7440 = vmatmul.mubr.bf16.gmra.mrb[0].mxu0 %v6990
        %v7441 = vpop.f32.mrb[0].mxu0
        %v7442 = vadd.f32 0.0, %v7441
        %v7443 = vpop.f32.mrb[0].mxu0
        %v7444 = vadd.f32 0.0, %v7443
        %v7445 = vpop.f32.mrb[0].mxu0
        %v7446 = vadd.f32 0.0, %v7445
        %v7447 = vpop.f32.mrb[0].mxu0
        %v7448 = vadd.f32 0.0, %v7447
        %7449 = vdwg.mxu0
        %7450 = vmatprep.subr.bf16.mxu0 %v7252
        %7451 = vmatpush1.bf16.msra.mxu0 %v7251
        %7452 = vmatprep.subr.bf16.mxu0 %v7256
        %7453 = vmatpush1.bf16.msra.mxu0 %v7255
        %7454 = vmatprep.subr.bf16.mxu0 %v7260
        %7455 = vmatpush1.bf16.msra.mxu0 %v7259
        %7456 = vmatprep.subr.bf16.mxu0 %v7264
        %7457 = vmatpush1.bf16.msra.mxu0 %v7263
        %7458 = vmatprep.subr.bf16.mxu0 %v7268
        %7459 = vmatpush1.bf16.msra.mxu0 %v7267
        %7460 = vmatprep.subr.bf16.mxu0 %v7272
        %7461 = vmatpush1.bf16.msra.mxu0 %v7271
        %7462 = vmatprep.subr.bf16.mxu0 %v7276
        %7463 = vmatpush1.bf16.msra.mxu0 %v7275
        %7464 = vmatprep.subr.bf16.mxu0 %v7280
        %7465 = vmatpush1.bf16.msra.mxu0 %v7279
        %7466 = vmatprep.subr.bf16.mxu0 %v7284
        %7467 = vmatpush1.bf16.msra.mxu0 %v7283
        %7468 = vmatprep.subr.bf16.mxu0 %v7288
        %7469 = vmatpush1.bf16.msra.mxu0 %v7287
        %7470 = vmatprep.subr.bf16.mxu0 %v7292
        %7471 = vmatpush1.bf16.msra.mxu0 %v7291
        %7472 = vmatprep.subr.bf16.mxu0 %v7296
        %7473 = vmatpush1.bf16.msra.mxu0 %v7295
        %7474 = vmatprep.subr.bf16.mxu0 %v7300
        %7475 = vmatpush1.bf16.msra.mxu0 %v7299
        %7476 = vmatprep.subr.bf16.mxu0 %v7304
        %7477 = vmatpush1.bf16.msra.mxu0 %v7303
        %7478 = vmatprep.subr.bf16.mxu0 %v7308
        %7479 = vmatpush1.bf16.msra.mxu0 %v7307
        %7480 = vmatprep.subr.bf16.mxu0 %v7312
        %7481 = vmatpush1.bf16.msra.mxu0 %v7311
        %7482 = vmatprep.mubr.bf16.mxu0 %v6985
        %7483 = vmatmul.mubr.bf16.gmra.mrb[0].mxu0 %v6984
        %v7484 = vpop.f32.mrb[0].mxu0
        %v7485 = vadd.f32 0.0, %v7484
        %v7486 = vpop.f32.mrb[0].mxu0
        %v7487 = vadd.f32 0.0, %v7486
        %v7488 = vpop.f32.mrb[0].mxu0
        %v7489 = vadd.f32 0.0, %v7488
        %v7490 = vpop.f32.mrb[0].mxu0
        %v7491 = vadd.f32 0.0, %v7490
        %7492 = vmatprep.mubr.bf16.mxu0 %v6987
        %7493 = vmatmul.mubr.bf16.gmra.mrb[0].mxu0 %v6986
        %v7494 = vpop.f32.mrb[0].mxu0
        %v7495 = vadd.f32 0.0, %v7494
        %v7496 = vpop.f32.mrb[0].mxu0
        %v7497 = vadd.f32 0.0, %v7496
        %v7498 = vpop.f32.mrb[0].mxu0
        %v7499 = vadd.f32 0.0, %v7498
        %v7500 = vpop.f32.mrb[0].mxu0
        %v7501 = vadd.f32 0.0, %v7500
        %7502 = vmatprep.mubr.bf16.mxu0 %v6989
        %7503 = vmatmul.mubr.bf16.gmra.mrb[0].mxu0 %v6988
        %v7504 = vpop.f32.mrb[0].mxu0
        %v7505 = vadd.f32 0.0, %v7504
        %v7506 = vpop.f32.mrb[0].mxu0
        %v7507 = vadd.f32 0.0, %v7506
        %v7508 = vpop.f32.mrb[0].mxu0
        %v7509 = vadd.f32 0.0, %v7508
        %v7510 = vpop.f32.mrb[0].mxu0
        %v7511 = vadd.f32 0.0, %v7510
        %7512 = vmatprep.mubr.bf16.mxu0 %v6991
        %7513 = vmatmul.mubr.bf16.gmra.mrb[0].mxu0 %v6990
        %v7514 = vpop.f32.mrb[0].mxu0
        %v7515 = vadd.f32 0.0, %v7514
        %v7516 = vpop.f32.mrb[0].mxu0
        %v7517 = vadd.f32 0.0, %v7516
        %v7518 = vpop.f32.mrb[0].mxu0
        %v7519 = vadd.f32 0.0, %v7518
        %v7520 = vpop.f32.mrb[0].mxu0
        %v7521 = vadd.f32 0.0, %v7520
        %7522 = vdwg.mxu0
        %v7523 = vld [vmem:[#allocation4] sm:$0xff]
        %v7524 = vld [vmem:[#allocation4 + $0x8] sm:$0xff]
        %v7525 = vld [vmem:[#allocation4 + $0x10] sm:$0xff]
        %v7526 = vld [vmem:[#allocation4 + $0x18] sm:$0xff]
        %v7527 = vld [vmem:[#allocation4 + $0x20] sm:$0xff]
        %v7528 = vld [vmem:[#allocation4 + $0x28] sm:$0xff]
        %v7529 = vld [vmem:[#allocation4 + $0x30] sm:$0xff]
        %v7530 = vld [vmem:[#allocation4 + $0x38] sm:$0xff]
        %v7531 = vld [vmem:[#allocation4 + $0x40] sm:$0xff]
        %v7532 = vld [vmem:[#allocation4 + $0x48] sm:$0xff]
        %v7533 = vld [vmem:[#allocation4 + $0x50] sm:$0xff]
        %v7534 = vld [vmem:[#allocation4 + $0x58] sm:$0xff]
        %v7535 = vld [vmem:[#allocation4 + $0x60] sm:$0xff]
        %v7536 = vld [vmem:[#allocation4 + $0x68] sm:$0xff]
        %v7537 = vld [vmem:[#allocation4 + $0x70] sm:$0xff]
        %v7538 = vld [vmem:[#allocation4 + $0x78] sm:$0xff]
        %v7539 = vld [vmem:[#allocation4 + $0x80] sm:$0xff]
        %v7540 = vld [vmem:[#allocation4 + $0x88] sm:$0xff]
        %v7541 = vld [vmem:[#allocation4 + $0x90] sm:$0xff]
        %v7542 = vld [vmem:[#allocation4 + $0x98] sm:$0xff]
        %v7543 = vld [vmem:[#allocation4 + $0xa0] sm:$0xff]
        %v7544 = vld [vmem:[#allocation4 + $0xa8] sm:$0xff]
        %v7545 = vld [vmem:[#allocation4 + $0xb0] sm:$0xff]
        %v7546 = vld [vmem:[#allocation4 + $0xb8] sm:$0xff]
        %v7547 = vld [vmem:[#allocation4 + $0xc0] sm:$0xff]
        %v7548 = vld [vmem:[#allocation4 + $0xc8] sm:$0xff]
        %v7549 = vld [vmem:[#allocation4 + $0xd0] sm:$0xff]
        %v7550 = vld [vmem:[#allocation4 + $0xd8] sm:$0xff]
        %v7551 = vld [vmem:[#allocation4 + $0xe0] sm:$0xff]
        %v7552 = vld [vmem:[#allocation4 + $0xe8] sm:$0xff]
        %v7553 = vld [vmem:[#allocation4 + $0xf0] sm:$0xff]
        %v7554 = vld [vmem:[#allocation4 + $0xf8] sm:$0xff]
        %v7555 = vadd.f32 %v7523, %v7412
        %v7556 = vadd.f32 %v7524, %v7414
        %v7557 = vadd.f32 %v7525, %v7485
        %v7558 = vadd.f32 %v7526, %v7487
        %v7559 = vadd.f32 %v7527, %v7416
        %v7560 = vadd.f32 %v7528, %v7418
        %v7561 = vadd.f32 %v7529, %v7489
        %v7562 = vadd.f32 %v7530, %v7491
        %v7563 = vadd.f32 %v7531, %v7422
        %v7564 = vadd.f32 %v7532, %v7424
        %v7565 = vadd.f32 %v7533, %v7495
        %v7566 = vadd.f32 %v7534, %v7497
        %v7567 = vadd.f32 %v7535, %v7426
        %v7568 = vadd.f32 %v7536, %v7428
        %v7569 = vadd.f32 %v7537, %v7499
        %v7570 = vadd.f32 %v7538, %v7501
        %v7571 = vadd.f32 %v7539, %v7432
        %v7572 = vadd.f32 %v7540, %v7434
        %v7573 = vadd.f32 %v7541, %v7505
        %v7574 = vadd.f32 %v7542, %v7507
        %v7575 = vadd.f32 %v7543, %v7436
        %v7576 = vadd.f32 %v7544, %v7438
        %v7577 = vadd.f32 %v7545, %v7509
        %v7578 = vadd.f32 %v7546, %v7511
        %v7579 = vadd.f32 %v7547, %v7442
        %v7580 = vadd.f32 %v7548, %v7444
        %v7581 = vadd.f32 %v7549, %v7515
        %v7582 = vadd.f32 %v7550, %v7517
        %v7583 = vadd.f32 %v7551, %v7446
        %v7584 = vadd.f32 %v7552, %v7448
        %v7585 = vadd.f32 %v7553, %v7519
        %v7586 = vadd.f32 %v7554, %v7521
        %7587 = vst [vmem:[#allocation4] sm:$0xff] %v7555
        %7588 = vst [vmem:[#allocation4 + $0x8] sm:$0xff] %v7556
        %7589 = vst [vmem:[#allocation4 + $0x10] sm:$0xff] %v7557
        %7590 = vst [vmem:[#allocation4 + $0x18] sm:$0xff] %v7558
        %7591 = vst [vmem:[#allocation4 + $0x20] sm:$0xff] %v7559
        %7592 = vst [vmem:[#allocation4 + $0x28] sm:$0xff] %v7560
        %7593 = vst [vmem:[#allocation4 + $0x30] sm:$0xff] %v7561
        %7594 = vst [vmem:[#allocation4 + $0x38] sm:$0xff] %v7562
        %7595 = vst [vmem:[#allocation4 + $0x40] sm:$0xff] %v7563
        %7596 = vst [vmem:[#allocation4 + $0x48] sm:$0xff] %v7564
        %7597 = vst [vmem:[#allocation4 + $0x50] sm:$0xff] %v7565
        %7598 = vst [vmem:[#allocation4 + $0x58] sm:$0xff] %v7566
        %7599 = vst [vmem:[#allocation4 + $0x60] sm:$0xff] %v7567
        %7600 = vst [vmem:[#allocation4 + $0x68] sm:$0xff] %v7568
        %7601 = vst [vmem:[#allocation4 + $0x70] sm:$0xff] %v7569
        %7602 = vst [vmem:[#allocation4 + $0x78] sm:$0xff] %v7570
        %7603 = vst [vmem:[#allocation4 + $0x80] sm:$0xff] %v7571
        %7604 = vst [vmem:[#allocation4 + $0x88] sm:$0xff] %v7572
        %7605 = vst [vmem:[#allocation4 + $0x90] sm:$0xff] %v7573
        %7606 = vst [vmem:[#allocation4 + $0x98] sm:$0xff] %v7574
        %7607 = vst [vmem:[#allocation4 + $0xa0] sm:$0xff] %v7575
        %7608 = vst [vmem:[#allocation4 + $0xa8] sm:$0xff] %v7576
        %7609 = vst [vmem:[#allocation4 + $0xb0] sm:$0xff] %v7577
        %7610 = vst [vmem:[#allocation4 + $0xb8] sm:$0xff] %v7578
        %7611 = vst [vmem:[#allocation4 + $0xc0] sm:$0xff] %v7579
        %7612 = vst [vmem:[#allocation4 + $0xc8] sm:$0xff] %v7580
        %7613 = vst [vmem:[#allocation4 + $0xd0] sm:$0xff] %v7581
        %7614 = vst [vmem:[#allocation4 + $0xd8] sm:$0xff] %v7582
        %7615 = vst [vmem:[#allocation4 + $0xe0] sm:$0xff] %v7583
        %7616 = vst [vmem:[#allocation4 + $0xe8] sm:$0xff] %v7584
        %7617 = vst [vmem:[#allocation4 + $0xf0] sm:$0xff] %v7585
        %7618 = vst [vmem:[#allocation4 + $0xf8] sm:$0xff] %v7586
        %v7619 = vld [vmem:[#allocation5 + $0x80] sm:$0xff]
        %v7620 = vld [vmem:[#allocation5 + $0x88] sm:$0xff]
        %v7621 = vld [vmem:[#allocation5 + $0x90] sm:$0xff]
        %v7622 = vld [vmem:[#allocation5 + $0x98] sm:$0xff]
        %v7623 = vld [vmem:[#allocation5 + $0xa0] sm:$0xff]
        %v7624 = vld [vmem:[#allocation5 + $0xa8] sm:$0xff]
        %v7625 = vld [vmem:[#allocation5 + $0xb0] sm:$0xff]
        %v7626 = vld [vmem:[#allocation5 + $0xb8] sm:$0xff]
        %s7627 = scalar_lea.vmem %s4, 2048
        %v7628 = vld [vmem:[%s7627] sm:$0xff]
        %v7629 = vld [vmem:[%s7627 + $0x8] sm:$0xff]
        %v7630 = vld [vmem:[%s7627 + $0x10] sm:$0xff]
        %v7631 = vld [vmem:[%s7627 + $0x18] sm:$0xff]
        %v7632 = vld [vmem:[%s7627 + $0x20] sm:$0xff]
        %v7633 = vld [vmem:[%s7627 + $0x28] sm:$0xff]
        %v7634 = vld [vmem:[%s7627 + $0x30] sm:$0xff]
        %v7635 = vld [vmem:[%s7627 + $0x38] sm:$0xff]
        %v7636 = vld [vmem:[%s7627 + $0x40] sm:$0xff]
        %v7637 = vld [vmem:[%s7627 + $0x48] sm:$0xff]
        %v7638 = vld [vmem:[%s7627 + $0x50] sm:$0xff]
        %v7639 = vld [vmem:[%s7627 + $0x58] sm:$0xff]
        %v7640 = vld [vmem:[%s7627 + $0x60] sm:$0xff]
        %v7641 = vld [vmem:[%s7627 + $0x68] sm:$0xff]
        %v7642 = vld [vmem:[%s7627 + $0x70] sm:$0xff]
        %v7643 = vld [vmem:[%s7627 + $0x78] sm:$0xff]
        %v7644 = vld [vmem:[%s7627 + $0x80] sm:$0xff]
        %v7645 = vld [vmem:[%s7627 + $0x88] sm:$0xff]
        %v7646 = vld [vmem:[%s7627 + $0x90] sm:$0xff]
        %v7647 = vld [vmem:[%s7627 + $0x98] sm:$0xff]
        %v7648 = vld [vmem:[%s7627 + $0xa0] sm:$0xff]
        %v7649 = vld [vmem:[%s7627 + $0xa8] sm:$0xff]
        %v7650 = vld [vmem:[%s7627 + $0xb0] sm:$0xff]
        %v7651 = vld [vmem:[%s7627 + $0xb8] sm:$0xff]
        %v7652 = vld [vmem:[%s7627 + $0xc0] sm:$0xff]
        %v7653 = vld [vmem:[%s7627 + $0xc8] sm:$0xff]
        %v7654 = vld [vmem:[%s7627 + $0xd0] sm:$0xff]
        %v7655 = vld [vmem:[%s7627 + $0xd8] sm:$0xff]
        %v7656 = vld [vmem:[%s7627 + $0xe0] sm:$0xff]
        %v7657 = vld [vmem:[%s7627 + $0xe8] sm:$0xff]
        %v7658 = vld [vmem:[%s7627 + $0xf0] sm:$0xff]
        %v7659 = vld [vmem:[%s7627 + $0xf8] sm:$0xff]
        %v7660 = vld [vmem:[%s7627 + $0x100] sm:$0xff]
        %v7661 = vld [vmem:[%s7627 + $0x108] sm:$0xff]
        %v7662 = vld [vmem:[%s7627 + $0x110] sm:$0xff]
        %v7663 = vld [vmem:[%s7627 + $0x118] sm:$0xff]
        %v7664 = vld [vmem:[%s7627 + $0x120] sm:$0xff]
        %v7665 = vld [vmem:[%s7627 + $0x128] sm:$0xff]
        %v7666 = vld [vmem:[%s7627 + $0x130] sm:$0xff]
        %v7667 = vld [vmem:[%s7627 + $0x138] sm:$0xff]
        %v7668 = vld [vmem:[%s7627 + $0x140] sm:$0xff]
        %v7669 = vld [vmem:[%s7627 + $0x148] sm:$0xff]
        %v7670 = vld [vmem:[%s7627 + $0x150] sm:$0xff]
        %v7671 = vld [vmem:[%s7627 + $0x158] sm:$0xff]
        %v7672 = vld [vmem:[%s7627 + $0x160] sm:$0xff]
        %v7673 = vld [vmem:[%s7627 + $0x168] sm:$0xff]
        %v7674 = vld [vmem:[%s7627 + $0x170] sm:$0xff]
        %v7675 = vld [vmem:[%s7627 + $0x178] sm:$0xff]
        %v7676 = vld [vmem:[%s7627 + $0x180] sm:$0xff]
        %v7677 = vld [vmem:[%s7627 + $0x188] sm:$0xff]
        %v7678 = vld [vmem:[%s7627 + $0x190] sm:$0xff]
        %v7679 = vld [vmem:[%s7627 + $0x198] sm:$0xff]
        %v7680 = vld [vmem:[%s7627 + $0x1a0] sm:$0xff]
        %v7681 = vld [vmem:[%s7627 + $0x1a8] sm:$0xff]
        %v7682 = vld [vmem:[%s7627 + $0x1b0] sm:$0xff]
        %v7683 = vld [vmem:[%s7627 + $0x1b8] sm:$0xff]
        %v7684 = vld [vmem:[%s7627 + $0x1c0] sm:$0xff]
        %v7685 = vld [vmem:[%s7627 + $0x1c8] sm:$0xff]
        %v7686 = vld [vmem:[%s7627 + $0x1d0] sm:$0xff]
        %v7687 = vld [vmem:[%s7627 + $0x1d8] sm:$0xff]
        %v7688 = vld [vmem:[%s7627 + $0x1e0] sm:$0xff]
        %v7689 = vld [vmem:[%s7627 + $0x1e8] sm:$0xff]
        %v7690 = vld [vmem:[%s7627 + $0x1f0] sm:$0xff]
        %v7691 = vld [vmem:[%s7627 + $0x1f8] sm:$0xff]
        %v7756 = vunpack.c.l.b16 %v7628
        %v7757 = vunpack.c.h.b16 %v7628
        %v7758 = vunpack.c.l.b16 %v7629
        %v7759 = vunpack.c.h.b16 %v7629
        %v7760 = vunpack.c.l.b16 %v7630
        %v7761 = vunpack.c.h.b16 %v7630
        %v7762 = vunpack.c.l.b16 %v7631
        %v7763 = vunpack.c.h.b16 %v7631
        %v7764 = vunpack.c.l.b16 %v7632
        %v7765 = vunpack.c.h.b16 %v7632
        %v7766 = vunpack.c.l.b16 %v7633
        %v7767 = vunpack.c.h.b16 %v7633
        %v7768 = vunpack.c.l.b16 %v7634
        %v7769 = vunpack.c.h.b16 %v7634
        %v7770 = vunpack.c.l.b16 %v7635
        %v7771 = vunpack.c.h.b16 %v7635
        %v7772 = vunpack.c.l.b16 %v7636
        %v7773 = vunpack.c.h.b16 %v7636
        %v7774 = vunpack.c.l.b16 %v7637
        %v7775 = vunpack.c.h.b16 %v7637
        %v7776 = vunpack.c.l.b16 %v7638
        %v7777 = vunpack.c.h.b16 %v7638
        %v7778 = vunpack.c.l.b16 %v7639
        %v7779 = vunpack.c.h.b16 %v7639
        %v7780 = vunpack.c.l.b16 %v7640
        %v7781 = vunpack.c.h.b16 %v7640
        %v7782 = vunpack.c.l.b16 %v7641
        %v7783 = vunpack.c.h.b16 %v7641
        %v7784 = vunpack.c.l.b16 %v7642
        %v7785 = vunpack.c.h.b16 %v7642
        %v7786 = vunpack.c.l.b16 %v7643
        %v7787 = vunpack.c.h.b16 %v7643
        %v7788 = vunpack.c.l.b16 %v7644
        %v7789 = vunpack.c.h.b16 %v7644
        %v7790 = vunpack.c.l.b16 %v7645
        %v7791 = vunpack.c.h.b16 %v7645
        %v7792 = vunpack.c.l.b16 %v7646
        %v7793 = vunpack.c.h.b16 %v7646
        %v7794 = vunpack.c.l.b16 %v7647
        %v7795 = vunpack.c.h.b16 %v7647
        %v7796 = vunpack.c.l.b16 %v7648
        %v7797 = vunpack.c.h.b16 %v7648
        %v7798 = vunpack.c.l.b16 %v7649
        %v7799 = vunpack.c.h.b16 %v7649
        %v7800 = vunpack.c.l.b16 %v7650
        %v7801 = vunpack.c.h.b16 %v7650
        %v7802 = vunpack.c.l.b16 %v7651
        %v7803 = vunpack.c.h.b16 %v7651
        %v7804 = vunpack.c.l.b16 %v7652
        %v7805 = vunpack.c.h.b16 %v7652
        %v7806 = vunpack.c.l.b16 %v7653
        %v7807 = vunpack.c.h.b16 %v7653
        %v7808 = vunpack.c.l.b16 %v7654
        %v7809 = vunpack.c.h.b16 %v7654
        %v7810 = vunpack.c.l.b16 %v7655
        %v7811 = vunpack.c.h.b16 %v7655
        %v7812 = vunpack.c.l.b16 %v7656
        %v7813 = vunpack.c.h.b16 %v7656
        %v7814 = vunpack.c.l.b16 %v7657
        %v7815 = vunpack.c.h.b16 %v7657
        %v7816 = vunpack.c.l.b16 %v7658
        %v7817 = vunpack.c.h.b16 %v7658
        %v7818 = vunpack.c.l.b16 %v7659
        %v7819 = vunpack.c.h.b16 %v7659
        %v7820 = vunpack.c.l.b16 %v7660
        %v7821 = vunpack.c.h.b16 %v7660
        %v7822 = vunpack.c.l.b16 %v7661
        %v7823 = vunpack.c.h.b16 %v7661
        %v7824 = vunpack.c.l.b16 %v7662
        %v7825 = vunpack.c.h.b16 %v7662
        %v7826 = vunpack.c.l.b16 %v7663
        %v7827 = vunpack.c.h.b16 %v7663
        %v7828 = vunpack.c.l.b16 %v7664
        %v7829 = vunpack.c.h.b16 %v7664
        %v7830 = vunpack.c.l.b16 %v7665
        %v7831 = vunpack.c.h.b16 %v7665
        %v7832 = vunpack.c.l.b16 %v7666
        %v7833 = vunpack.c.h.b16 %v7666
        %v7834 = vunpack.c.l.b16 %v7667
        %v7835 = vunpack.c.h.b16 %v7667
        %v7836 = vunpack.c.l.b16 %v7668
        %v7837 = vunpack.c.h.b16 %v7668
        %v7838 = vunpack.c.l.b16 %v7669
        %v7839 = vunpack.c.h.b16 %v7669
        %v7840 = vunpack.c.l.b16 %v7670
        %v7841 = vunpack.c.h.b16 %v7670
        %v7842 = vunpack.c.l.b16 %v7671
        %v7843 = vunpack.c.h.b16 %v7671
        %v7844 = vunpack.c.l.b16 %v7672
        %v7845 = vunpack.c.h.b16 %v7672
        %v7846 = vunpack.c.l.b16 %v7673
        %v7847 = vunpack.c.h.b16 %v7673
        %v7848 = vunpack.c.l.b16 %v7674
        %v7849 = vunpack.c.h.b16 %v7674
        %v7850 = vunpack.c.l.b16 %v7675
        %v7851 = vunpack.c.h.b16 %v7675
        %v7852 = vunpack.c.l.b16 %v7676
        %v7853 = vunpack.c.h.b16 %v7676
        %v7854 = vunpack.c.l.b16 %v7677
        %v7855 = vunpack.c.h.b16 %v7677
        %v7856 = vunpack.c.l.b16 %v7678
        %v7857 = vunpack.c.h.b16 %v7678
        %v7858 = vunpack.c.l.b16 %v7679
        %v7859 = vunpack.c.h.b16 %v7679
        %v7860 = vunpack.c.l.b16 %v7680
        %v7861 = vunpack.c.h.b16 %v7680
        %v7862 = vunpack.c.l.b16 %v7681
        %v7863 = vunpack.c.h.b16 %v7681
        %v7864 = vunpack.c.l.b16 %v7682
        %v7865 = vunpack.c.h.b16 %v7682
        %v7866 = vunpack.c.l.b16 %v7683
        %v7867 = vunpack.c.h.b16 %v7683
        %v7868 = vunpack.c.l.b16 %v7684
        %v7869 = vunpack.c.h.b16 %v7684
        %v7870 = vunpack.c.l.b16 %v7685
        %v7871 = vunpack.c.h.b16 %v7685
        %v7872 = vunpack.c.l.b16 %v7686
        %v7873 = vunpack.c.h.b16 %v7686
        %v7874 = vunpack.c.l.b16 %v7687
        %v7875 = vunpack.c.h.b16 %v7687
        %v7876 = vunpack.c.l.b16 %v7688
        %v7877 = vunpack.c.h.b16 %v7688
        %v7878 = vunpack.c.l.b16 %v7689
        %v7879 = vunpack.c.h.b16 %v7689
        %v7880 = vunpack.c.l.b16 %v7690
        %v7881 = vunpack.c.h.b16 %v7690
        %v7882 = vunpack.c.l.b16 %v7691
        %v7883 = vunpack.c.h.b16 %v7691
        %v7884 = vpack.c.b16 %v7760, %v7756
        %v7885 = vpack.c.b16 %v7761, %v7757
        %v7886 = vpack.c.b16 %v7762, %v7758
        %v7887 = vpack.c.b16 %v7763, %v7759
        %v7888 = vpack.c.b16 %v7768, %v7764
        %v7889 = vpack.c.b16 %v7769, %v7765
        %v7890 = vpack.c.b16 %v7770, %v7766
        %v7891 = vpack.c.b16 %v7771, %v7767
        %v7892 = vpack.c.b16 %v7776, %v7772
        %v7893 = vpack.c.b16 %v7777, %v7773
        %v7894 = vpack.c.b16 %v7778, %v7774
        %v7895 = vpack.c.b16 %v7779, %v7775
        %v7896 = vpack.c.b16 %v7784, %v7780
        %v7897 = vpack.c.b16 %v7785, %v7781
        %v7898 = vpack.c.b16 %v7786, %v7782
        %v7899 = vpack.c.b16 %v7787, %v7783
        %v7900 = vpack.c.b16 %v7792, %v7788
        %v7901 = vpack.c.b16 %v7793, %v7789
        %v7902 = vpack.c.b16 %v7794, %v7790
        %v7903 = vpack.c.b16 %v7795, %v7791
        %v7904 = vpack.c.b16 %v7800, %v7796
        %v7905 = vpack.c.b16 %v7801, %v7797
        %v7906 = vpack.c.b16 %v7802, %v7798
        %v7907 = vpack.c.b16 %v7803, %v7799
        %v7908 = vpack.c.b16 %v7808, %v7804
        %v7909 = vpack.c.b16 %v7809, %v7805
        %v7910 = vpack.c.b16 %v7810, %v7806
        %v7911 = vpack.c.b16 %v7811, %v7807
        %v7912 = vpack.c.b16 %v7816, %v7812
        %v7913 = vpack.c.b16 %v7817, %v7813
        %v7914 = vpack.c.b16 %v7818, %v7814
        %v7915 = vpack.c.b16 %v7819, %v7815
        %v7916 = vpack.c.b16 %v7824, %v7820
        %v7917 = vpack.c.b16 %v7825, %v7821
        %v7918 = vpack.c.b16 %v7826, %v7822
        %v7919 = vpack.c.b16 %v7827, %v7823
        %v7920 = vpack.c.b16 %v7832, %v7828
        %v7921 = vpack.c.b16 %v7833, %v7829
        %v7922 = vpack.c.b16 %v7834, %v7830
        %v7923 = vpack.c.b16 %v7835, %v7831
        %v7924 = vpack.c.b16 %v7840, %v7836
        %v7925 = vpack.c.b16 %v7841, %v7837
        %v7926 = vpack.c.b16 %v7842, %v7838
        %v7927 = vpack.c.b16 %v7843, %v7839
        %v7928 = vpack.c.b16 %v7848, %v7844
        %v7929 = vpack.c.b16 %v7849, %v7845
        %v7930 = vpack.c.b16 %v7850, %v7846
        %v7931 = vpack.c.b16 %v7851, %v7847
        %v7932 = vpack.c.b16 %v7856, %v7852
        %v7933 = vpack.c.b16 %v7857, %v7853
        %v7934 = vpack.c.b16 %v7858, %v7854
        %v7935 = vpack.c.b16 %v7859, %v7855
        %v7936 = vpack.c.b16 %v7864, %v7860
        %v7937 = vpack.c.b16 %v7865, %v7861
        %v7938 = vpack.c.b16 %v7866, %v7862
        %v7939 = vpack.c.b16 %v7867, %v7863
        %v7940 = vpack.c.b16 %v7872, %v7868
        %v7941 = vpack.c.b16 %v7873, %v7869
        %v7942 = vpack.c.b16 %v7874, %v7870
        %v7943 = vpack.c.b16 %v7875, %v7871
        %v7944 = vpack.c.b16 %v7880, %v7876
        %v7945 = vpack.c.b16 %v7881, %v7877
        %v7946 = vpack.c.b16 %v7882, %v7878
        %v7947 = vpack.c.b16 %v7883, %v7879
        %8012 = vmatprep.subr.bf16.mxu0 %v7885
        %8013 = vmatpush1.bf16.msra.mxu0 %v7884
        %8014 = vmatprep.subr.bf16.mxu0 %v7889
        %8015 = vmatpush1.bf16.msra.mxu0 %v7888
        %8016 = vmatprep.subr.bf16.mxu0 %v7893
        %8017 = vmatpush1.bf16.msra.mxu0 %v7892
        %8018 = vmatprep.subr.bf16.mxu0 %v7897
        %8019 = vmatpush1.bf16.msra.mxu0 %v7896
        %8020 = vmatprep.subr.bf16.mxu0 %v7901
        %8021 = vmatpush1.bf16.msra.mxu0 %v7900
        %8022 = vmatprep.subr.bf16.mxu0 %v7905
        %8023 = vmatpush1.bf16.msra.mxu0 %v7904
        %8024 = vmatprep.subr.bf16.mxu0 %v7909
        %8025 = vmatpush1.bf16.msra.mxu0 %v7908
        %8026 = vmatprep.subr.bf16.mxu0 %v7913
        %8027 = vmatpush1.bf16.msra.mxu0 %v7912
        %8028 = vmatprep.subr.bf16.mxu0 %v7917
        %8029 = vmatpush1.bf16.msra.mxu0 %v7916
        %8030 = vmatprep.subr.bf16.mxu0 %v7921
        %8031 = vmatpush1.bf16.msra.mxu0 %v7920
        %8032 = vmatprep.subr.bf16.mxu0 %v7925
        %8033 = vmatpush1.bf16.msra.mxu0 %v7924
        %8034 = vmatprep.subr.bf16.mxu0 %v7929
        %8035 = vmatpush1.bf16.msra.mxu0 %v7928
        %8036 = vmatprep.subr.bf16.mxu0 %v7933
        %8037 = vmatpush1.bf16.msra.mxu0 %v7932
        %8038 = vmatprep.subr.bf16.mxu0 %v7937
        %8039 = vmatpush1.bf16.msra.mxu0 %v7936
        %8040 = vmatprep.subr.bf16.mxu0 %v7941
        %8041 = vmatpush1.bf16.msra.mxu0 %v7940
        %8042 = vmatprep.subr.bf16.mxu0 %v7945
        %8043 = vmatpush1.bf16.msra.mxu0 %v7944
        %8044 = vmatprep.mubr.bf16.mxu0 %v7620
        %8045 = vmatmul.mubr.bf16.gmra.mrb[0].mxu0 %v7619
        %v8046 = vpop.f32.mrb[0].mxu0
        %v8047 = vadd.f32 0.0, %v8046
        %v8048 = vpop.f32.mrb[0].mxu0
        %v8049 = vadd.f32 0.0, %v8048
        %v8050 = vpop.f32.mrb[0].mxu0
        %v8051 = vadd.f32 0.0, %v8050
        %v8052 = vpop.f32.mrb[0].mxu0
        %v8053 = vadd.f32 0.0, %v8052
        %8054 = vmatprep.mubr.bf16.mxu0 %v7622
        %8055 = vmatmul.mubr.bf16.gmra.mrb[0].mxu0 %v7621
        %v8056 = vpop.f32.mrb[0].mxu0
        %v8057 = vadd.f32 0.0, %v8056
        %v8058 = vpop.f32.mrb[0].mxu0
        %v8059 = vadd.f32 0.0, %v8058
        %v8060 = vpop.f32.mrb[0].mxu0
        %v8061 = vadd.f32 0.0, %v8060
        %v8062 = vpop.f32.mrb[0].mxu0
        %v8063 = vadd.f32 0.0, %v8062
        %8064 = vmatprep.mubr.bf16.mxu0 %v7624
        %8065 = vmatmul.mubr.bf16.gmra.mrb[0].mxu0 %v7623
        %v8066 = vpop.f32.mrb[0].mxu0
        %v8067 = vadd.f32 0.0, %v8066
        %v8068 = vpop.f32.mrb[0].mxu0
        %v8069 = vadd.f32 0.0, %v8068
        %v8070 = vpop.f32.mrb[0].mxu0
        %v8071 = vadd.f32 0.0, %v8070
        %v8072 = vpop.f32.mrb[0].mxu0
        %v8073 = vadd.f32 0.0, %v8072
        %8074 = vmatprep.mubr.bf16.mxu0 %v7626
        %8075 = vmatmul.mubr.bf16.gmra.mrb[0].mxu0 %v7625
        %v8076 = vpop.f32.mrb[0].mxu0
        %v8077 = vadd.f32 0.0, %v8076
        %v8078 = vpop.f32.mrb[0].mxu0
        %v8079 = vadd.f32 0.0, %v8078
        %v8080 = vpop.f32.mrb[0].mxu0
        %v8081 = vadd.f32 0.0, %v8080
        %v8082 = vpop.f32.mrb[0].mxu0
        %v8083 = vadd.f32 0.0, %v8082
        %8084 = vdwg.mxu0
        %8085 = vmatprep.subr.bf16.mxu0 %v7887
        %8086 = vmatpush1.bf16.msra.mxu0 %v7886
        %8087 = vmatprep.subr.bf16.mxu0 %v7891
        %8088 = vmatpush1.bf16.msra.mxu0 %v7890
        %8089 = vmatprep.subr.bf16.mxu0 %v7895
        %8090 = vmatpush1.bf16.msra.mxu0 %v7894
        %8091 = vmatprep.subr.bf16.mxu0 %v7899
        %8092 = vmatpush1.bf16.msra.mxu0 %v7898
        %8093 = vmatprep.subr.bf16.mxu0 %v7903
        %8094 = vmatpush1.bf16.msra.mxu0 %v7902
        %8095 = vmatprep.subr.bf16.mxu0 %v7907
        %8096 = vmatpush1.bf16.msra.mxu0 %v7906
        %8097 = vmatprep.subr.bf16.mxu0 %v7911
        %8098 = vmatpush1.bf16.msra.mxu0 %v7910
        %8099 = vmatprep.subr.bf16.mxu0 %v7915
        %8100 = vmatpush1.bf16.msra.mxu0 %v7914
        %8101 = vmatprep.subr.bf16.mxu0 %v7919
        %8102 = vmatpush1.bf16.msra.mxu0 %v7918
        %8103 = vmatprep.subr.bf16.mxu0 %v7923
        %8104 = vmatpush1.bf16.msra.mxu0 %v7922
        %8105 = vmatprep.subr.bf16.mxu0 %v7927
        %8106 = vmatpush1.bf16.msra.mxu0 %v7926
        %8107 = vmatprep.subr.bf16.mxu0 %v7931
        %8108 = vmatpush1.bf16.msra.mxu0 %v7930
        %8109 = vmatprep.subr.bf16.mxu0 %v7935
        %8110 = vmatpush1.bf16.msra.mxu0 %v7934
        %8111 = vmatprep.subr.bf16.mxu0 %v7939
        %8112 = vmatpush1.bf16.msra.mxu0 %v7938
        %8113 = vmatprep.subr.bf16.mxu0 %v7943
        %8114 = vmatpush1.bf16.msra.mxu0 %v7942
        %8115 = vmatprep.subr.bf16.mxu0 %v7947
        %8116 = vmatpush1.bf16.msra.mxu0 %v7946
        %8117 = vmatprep.mubr.bf16.mxu0 %v7620
        %8118 = vmatmul.mubr.bf16.gmra.mrb[0].mxu0 %v7619
        %v8119 = vpop.f32.mrb[0].mxu0
        %v8120 = vadd.f32 0.0, %v8119
        %v8121 = vpop.f32.mrb[0].mxu0
        %v8122 = vadd.f32 0.0, %v8121
        %v8123 = vpop.f32.mrb[0].mxu0
        %v8124 = vadd.f32 0.0, %v8123
        %v8125 = vpop.f32.mrb[0].mxu0
        %v8126 = vadd.f32 0.0, %v8125
        %8127 = vmatprep.mubr.bf16.mxu0 %v7622
        %8128 = vmatmul.mubr.bf16.gmra.mrb[0].mxu0 %v7621
        %v8129 = vpop.f32.mrb[0].mxu0
        %v8130 = vadd.f32 0.0, %v8129
        %v8131 = vpop.f32.mrb[0].mxu0
        %v8132 = vadd.f32 0.0, %v8131
        %v8133 = vpop.f32.mrb[0].mxu0
        %v8134 = vadd.f32 0.0, %v8133
        %v8135 = vpop.f32.mrb[0].mxu0
        %v8136 = vadd.f32 0.0, %v8135
        %8137 = vmatprep.mubr.bf16.mxu0 %v7624
        %8138 = vmatmul.mubr.bf16.gmra.mrb[0].mxu0 %v7623
        %v8139 = vpop.f32.mrb[0].mxu0
        %v8140 = vadd.f32 0.0, %v8139
        %v8141 = vpop.f32.mrb[0].mxu0
        %v8142 = vadd.f32 0.0, %v8141
        %v8143 = vpop.f32.mrb[0].mxu0
        %v8144 = vadd.f32 0.0, %v8143
        %v8145 = vpop.f32.mrb[0].mxu0
        %v8146 = vadd.f32 0.0, %v8145
        %8147 = vmatprep.mubr.bf16.mxu0 %v7626
        %8148 = vmatmul.mubr.bf16.gmra.mrb[0].mxu0 %v7625
        %v8149 = vpop.f32.mrb[0].mxu0
        %v8150 = vadd.f32 0.0, %v8149
        %v8151 = vpop.f32.mrb[0].mxu0
        %v8152 = vadd.f32 0.0, %v8151
        %v8153 = vpop.f32.mrb[0].mxu0
        %v8154 = vadd.f32 0.0, %v8153
        %v8155 = vpop.f32.mrb[0].mxu0
        %v8156 = vadd.f32 0.0, %v8155
        %8157 = vdwg.mxu0
        %v8158 = vld [vmem:[#allocation4] sm:$0xff]
        %v8159 = vld [vmem:[#allocation4 + $0x8] sm:$0xff]
        %v8160 = vld [vmem:[#allocation4 + $0x10] sm:$0xff]
        %v8161 = vld [vmem:[#allocation4 + $0x18] sm:$0xff]
        %v8162 = vld [vmem:[#allocation4 + $0x20] sm:$0xff]
        %v8163 = vld [vmem:[#allocation4 + $0x28] sm:$0xff]
        %v8164 = vld [vmem:[#allocation4 + $0x30] sm:$0xff]
        %v8165 = vld [vmem:[#allocation4 + $0x38] sm:$0xff]
        %v8166 = vld [vmem:[#allocation4 + $0x40] sm:$0xff]
        %v8167 = vld [vmem:[#allocation4 + $0x48] sm:$0xff]
        %v8168 = vld [vmem:[#allocation4 + $0x50] sm:$0xff]
        %v8169 = vld [vmem:[#allocation4 + $0x58] sm:$0xff]
        %v8170 = vld [vmem:[#allocation4 + $0x60] sm:$0xff]
        %v8171 = vld [vmem:[#allocation4 + $0x68] sm:$0xff]
        %v8172 = vld [vmem:[#allocation4 + $0x70] sm:$0xff]
        %v8173 = vld [vmem:[#allocation4 + $0x78] sm:$0xff]
        %v8174 = vld [vmem:[#allocation4 + $0x80] sm:$0xff]
        %v8175 = vld [vmem:[#allocation4 + $0x88] sm:$0xff]
        %v8176 = vld [vmem:[#allocation4 + $0x90] sm:$0xff]
        %v8177 = vld [vmem:[#allocation4 + $0x98] sm:$0xff]
        %v8178 = vld [vmem:[#allocation4 + $0xa0] sm:$0xff]
        %v8179 = vld [vmem:[#allocation4 + $0xa8] sm:$0xff]
        %v8180 = vld [vmem:[#allocation4 + $0xb0] sm:$0xff]
        %v8181 = vld [vmem:[#allocation4 + $0xb8] sm:$0xff]
        %v8182 = vld [vmem:[#allocation4 + $0xc0] sm:$0xff]
        %v8183 = vld [vmem:[#allocation4 + $0xc8] sm:$0xff]
        %v8184 = vld [vmem:[#allocation4 + $0xd0] sm:$0xff]
        %v8185 = vld [vmem:[#allocation4 + $0xd8] sm:$0xff]
        %v8186 = vld [vmem:[#allocation4 + $0xe0] sm:$0xff]
        %v8187 = vld [vmem:[#allocation4 + $0xe8] sm:$0xff]
        %v8188 = vld [vmem:[#allocation4 + $0xf0] sm:$0xff]
        %v8189 = vld [vmem:[#allocation4 + $0xf8] sm:$0xff]
        %v8190 = vadd.f32 %v8158, %v8047
        %v8191 = vadd.f32 %v8159, %v8049
        %v8192 = vadd.f32 %v8160, %v8120
        %v8193 = vadd.f32 %v8161, %v8122
        %v8194 = vadd.f32 %v8162, %v8051
        %v8195 = vadd.f32 %v8163, %v8053
        %v8196 = vadd.f32 %v8164, %v8124
        %v8197 = vadd.f32 %v8165, %v8126
        %v8198 = vadd.f32 %v8166, %v8057
        %v8199 = vadd.f32 %v8167, %v8059
        %v8200 = vadd.f32 %v8168, %v8130
        %v8201 = vadd.f32 %v8169, %v8132
        %v8202 = vadd.f32 %v8170, %v8061
        %v8203 = vadd.f32 %v8171, %v8063
        %v8204 = vadd.f32 %v8172, %v8134
        %v8205 = vadd.f32 %v8173, %v8136
        %v8206 = vadd.f32 %v8174, %v8067
        %v8207 = vadd.f32 %v8175, %v8069
        %v8208 = vadd.f32 %v8176, %v8140
        %v8209 = vadd.f32 %v8177, %v8142
        %v8210 = vadd.f32 %v8178, %v8071
        %v8211 = vadd.f32 %v8179, %v8073
        %v8212 = vadd.f32 %v8180, %v8144
        %v8213 = vadd.f32 %v8181, %v8146
        %v8214 = vadd.f32 %v8182, %v8077
        %v8215 = vadd.f32 %v8183, %v8079
        %v8216 = vadd.f32 %v8184, %v8150
        %v8217 = vadd.f32 %v8185, %v8152
        %v8218 = vadd.f32 %v8186, %v8081
        %v8219 = vadd.f32 %v8187, %v8083
        %v8220 = vadd.f32 %v8188, %v8154
        %v8221 = vadd.f32 %v8189, %v8156
        %8222 = vst [vmem:[#allocation4] sm:$0xff] %v8190
        %8223 = vst [vmem:[#allocation4 + $0x8] sm:$0xff] %v8191
        %8224 = vst [vmem:[#allocation4 + $0x10] sm:$0xff] %v8192
        %8225 = vst [vmem:[#allocation4 + $0x18] sm:$0xff] %v8193
        %8226 = vst [vmem:[#allocation4 + $0x20] sm:$0xff] %v8194
        %8227 = vst [vmem:[#allocation4 + $0x28] sm:$0xff] %v8195
        %8228 = vst [vmem:[#allocation4 + $0x30] sm:$0xff] %v8196
        %8229 = vst [vmem:[#allocation4 + $0x38] sm:$0xff] %v8197
        %8230 = vst [vmem:[#allocation4 + $0x40] sm:$0xff] %v8198
        %8231 = vst [vmem:[#allocation4 + $0x48] sm:$0xff] %v8199
        %8232 = vst [vmem:[#allocation4 + $0x50] sm:$0xff] %v8200
        %8233 = vst [vmem:[#allocation4 + $0x58] sm:$0xff] %v8201
        %8234 = vst [vmem:[#allocation4 + $0x60] sm:$0xff] %v8202
        %8235 = vst [vmem:[#allocation4 + $0x68] sm:$0xff] %v8203
        %8236 = vst [vmem:[#allocation4 + $0x70] sm:$0xff] %v8204
        %8237 = vst [vmem:[#allocation4 + $0x78] sm:$0xff] %v8205
        %8238 = vst [vmem:[#allocation4 + $0x80] sm:$0xff] %v8206
        %8239 = vst [vmem:[#allocation4 + $0x88] sm:$0xff] %v8207
        %8240 = vst [vmem:[#allocation4 + $0x90] sm:$0xff] %v8208
        %8241 = vst [vmem:[#allocation4 + $0x98] sm:$0xff] %v8209
        %8242 = vst [vmem:[#allocation4 + $0xa0] sm:$0xff] %v8210
        %8243 = vst [vmem:[#allocation4 + $0xa8] sm:$0xff] %v8211
        %8244 = vst [vmem:[#allocation4 + $0xb0] sm:$0xff] %v8212
        %8245 = vst [vmem:[#allocation4 + $0xb8] sm:$0xff] %v8213
        %8246 = vst [vmem:[#allocation4 + $0xc0] sm:$0xff] %v8214
        %8247 = vst [vmem:[#allocation4 + $0xc8] sm:$0xff] %v8215
        %8248 = vst [vmem:[#allocation4 + $0xd0] sm:$0xff] %v8216
        %8249 = vst [vmem:[#allocation4 + $0xd8] sm:$0xff] %v8217
        %8250 = vst [vmem:[#allocation4 + $0xe0] sm:$0xff] %v8218
        %8251 = vst [vmem:[#allocation4 + $0xe8] sm:$0xff] %v8219
        %8252 = vst [vmem:[#allocation4 + $0xf0] sm:$0xff] %v8220
        %8253 = vst [vmem:[#allocation4 + $0xf8] sm:$0xff] %v8221
        %v8254 = vld [vmem:[#allocation4] sm:$0xff]
        %v8255 = vld [vmem:[#allocation4 + $0x8] sm:$0xff]
        %v8256 = vld [vmem:[#allocation4 + $0x10] sm:$0xff]
        %v8257 = vld [vmem:[#allocation4 + $0x18] sm:$0xff]
        %v8258 = vld [vmem:[#allocation4 + $0x20] sm:$0xff]
        %v8259 = vld [vmem:[#allocation4 + $0x28] sm:$0xff]
        %v8260 = vld [vmem:[#allocation4 + $0x30] sm:$0xff]
        %v8261 = vld [vmem:[#allocation4 + $0x38] sm:$0xff]
        %v8262 = vld [vmem:[#allocation4 + $0x40] sm:$0xff]
        %v8263 = vld [vmem:[#allocation4 + $0x48] sm:$0xff]
        %v8264 = vld [vmem:[#allocation4 + $0x50] sm:$0xff]
        %v8265 = vld [vmem:[#allocation4 + $0x58] sm:$0xff]
        %v8266 = vld [vmem:[#allocation4 + $0x60] sm:$0xff]
        %v8267 = vld [vmem:[#allocation4 + $0x68] sm:$0xff]
        %v8268 = vld [vmem:[#allocation4 + $0x70] sm:$0xff]
        %v8269 = vld [vmem:[#allocation4 + $0x78] sm:$0xff]
        %v8270 = vld [vmem:[#allocation4 + $0x80] sm:$0xff]
        %v8271 = vld [vmem:[#allocation4 + $0x88] sm:$0xff]
        %v8272 = vld [vmem:[#allocation4 + $0x90] sm:$0xff]
        %v8273 = vld [vmem:[#allocation4 + $0x98] sm:$0xff]
        %v8274 = vld [vmem:[#allocation4 + $0xa0] sm:$0xff]
        %v8275 = vld [vmem:[#allocation4 + $0xa8] sm:$0xff]
        %v8276 = vld [vmem:[#allocation4 + $0xb0] sm:$0xff]
        %v8277 = vld [vmem:[#allocation4 + $0xb8] sm:$0xff]
        %v8278 = vld [vmem:[#allocation4 + $0xc0] sm:$0xff]
        %v8279 = vld [vmem:[#allocation4 + $0xc8] sm:$0xff]
        %v8280 = vld [vmem:[#allocation4 + $0xd0] sm:$0xff]
        %v8281 = vld [vmem:[#allocation4 + $0xd8] sm:$0xff]
        %v8282 = vld [vmem:[#allocation4 + $0xe0] sm:$0xff]
        %v8283 = vld [vmem:[#allocation4 + $0xe8] sm:$0xff]
        %v8284 = vld [vmem:[#allocation4 + $0xf0] sm:$0xff]
        %v8285 = vld [vmem:[#allocation4 + $0xf8] sm:$0xff]
        %v8286 = vmax.f32 %v8254, %v8270
        %v8287 = vmax.f32 %v8255, %v8271
        %v8288 = vmax.f32 %v8256, %v8272
        %v8289 = vmax.f32 %v8257, %v8273
        %v8290 = vmax.f32 %v8258, %v8274
        %v8291 = vmax.f32 %v8259, %v8275
        %v8292 = vmax.f32 %v8260, %v8276
        %v8293 = vmax.f32 %v8261, %v8277
        %v8294 = vmax.f32 %v8262, %v8278
        %v8295 = vmax.f32 %v8263, %v8279
        %v8296 = vmax.f32 %v8264, %v8280
        %v8297 = vmax.f32 %v8265, %v8281
        %v8298 = vmax.f32 %v8266, %v8282
        %v8299 = vmax.f32 %v8267, %v8283
        %v8300 = vmax.f32 %v8268, %v8284
        %v8301 = vmax.f32 %v8269, %v8285
        %v8302 = vmax.f32 %v8286, %v8288
        %v8303 = vmax.f32 %v8287, %v8289
        %v8304 = vmax.f32 %v8290, %v8292
        %v8305 = vmax.f32 %v8291, %v8293
        %v8306 = vmax.f32 %v8294, %v8296
        %v8307 = vmax.f32 %v8295, %v8297
        %v8308 = vmax.f32 %v8298, %v8300
        %v8309 = vmax.f32 %v8299, %v8301
        %v8310 = vld [vmem:[%s5] sm:$0x3]
        %v8312 = vlaneseq
        %v8313 = vshrl.u32 %v8312, 7
        %v8314 = vsub.s32 0, %v8313
        %v8315 = vrot.slane %v8310, %v8314
        %v8316 = vlaneseq
        %v8317 = vshrl.u32 %v8316, 7
        %v8318 = vsub.s32 1, %v8317
        %v8319 = vrot.slane %v8310, %v8318
        %v8322 = vadd.f32 %v8302, %v8315
        %v8323 = vadd.f32 %v8303, %v8319
        %v8324 = vadd.f32 %v8304, %v8315
        %v8325 = vadd.f32 %v8305, %v8319
        %v8326 = vadd.f32 %v8306, %v8315
        %v8327 = vadd.f32 %v8307, %v8319
        %v8328 = vadd.f32 %v8308, %v8315
        %v8329 = vadd.f32 %v8309, %v8319
        %v8330 = vmax.f32 %v8322, 0.0
        %v8331 = vmax.f32 %v8323, 0.0
        %v8332 = vmax.f32 %v8324, 0.0
        %v8333 = vmax.f32 %v8325, 0.0
        %v8334 = vmax.f32 %v8326, 0.0
        %v8335 = vmax.f32 %v8327, 0.0
        %v8336 = vmax.f32 %v8328, 0.0
        %v8337 = vmax.f32 %v8329, 0.0
        %v8338 = vpack.c.bf16 %v8332, %v8330
        %v8339 = vpack.c.bf16 %v8333, %v8331
        %v8340 = vpack.c.bf16 %v8336, %v8334
        %v8341 = vpack.c.bf16 %v8337, %v8335
        %v8346 = vunpack.c.l.b16 %v8338
        %v8347 = vunpack.c.l.b16 %v8339
        %v8348 = vunpack.c.h.b16 %v8338
        %v8349 = vunpack.c.h.b16 %v8339
        %v8350 = vunpack.c.l.b16 %v8340
        %v8351 = vunpack.c.l.b16 %v8341
        %v8352 = vunpack.c.h.b16 %v8340
        %v8353 = vunpack.c.h.b16 %v8341
        %v8354 = vpack.c.b16 %v8347, %v8346
        %v8355 = vpack.c.b16 %v8349, %v8348
        %v8356 = vpack.c.b16 %v8351, %v8350
        %v8357 = vpack.c.b16 %v8353, %v8352
        %8362 = vst [vmem:[%s580] sm:$0xff] %v8354
        %8363 = vst [vmem:[%s580 + $0x8] sm:$0xff] %v8355
        %8364 = vst [vmem:[%s580 + $0x10] sm:$0xff] %v8356
        %8365 = vst [vmem:[%s580 + $0x18] sm:$0xff] %v8357
        %s8366 = smul.u32 4, %s17
        %p8367 = scmp.lt.s32.totalorder %s8366, 7
        %s8368 = scalar_select %p8367, %s8366, 7
        %s8369 = smul.addr %s8368, 2
        %s8370 = smul.addr %s8369, 4
        %s8371 = scalar_lea.vmem %s6, %s8370
        // Predicated region
        $region86: #{attention_forward.2} parent=80 // pred_check
          %p8372 = pneg %p166
        $region87: #{attention_forward.2} parent=80 // pred_check_branch
          %8374 = sbr.rel (%p8372) target = $region89
        $region88: #{attention_forward.2} parent=80 // pred_region
          %s8375 = smul.u32 4, %s17
        $region89: #{attention_forward.2} parent=80 // pred_fallthru
          _
      $region81: #{attention_forward.2} parent=5 // pred_fallthru
        _
      %p8376 = scmp.le.s32.totalorder 2, %s12
      // Predicated region
      $region90: #{attention_forward.2} parent=5 // pred_check
        %p8377 = pneg %p8376
      $region91: #{attention_forward.2} parent=5 // pred_check_branch
        %8379 = sbr.rel (%p8377) target = $region93
      $region92: #{attention_forward.2} parent=5 // pred_region
        %s8380 = ssub.s32 %s12, 2
        // Predicated region
        $region94: #{attention_forward.2} parent=92 // pred_check
          %p8381 = pneg %p172
        $region95: #{attention_forward.2} parent=92 // pred_check_branch
          %8383 = sbr.rel (%p8381) target = $region97
        $region96: #{attention_forward.2} parent=92 // pred_region
          %s8384 = smul.u32 4, %s18
          %p8385 = scmp.lt.s32.totalorder %s8384, 7
          %s8386 = scalar_select %p8385, %s8384, 7
          %s8387 = smul.addr %s8386, 2
          %s8388 = smul.addr %s8387, 4
          %s8389 = scalar_lea.vmem %s6, %s8388
        $region97: #{attention_forward.2} parent=92 // pred_fallthru
          _
      $region93: #{attention_forward.2} parent=5 // pred_fallthru
        _
    $region6: #{attention_forward.2} parent=1 // loop_footer
      %s16 = sadd.s32 1, %s12
    $region7: #{attention_forward.2} parent=1 // loop_footer_branch
      %11 = sbr.rel target = $region3
    $region8: #{attention_forward.2} parent=1 // loop_exit
      _

// kernel: attention_forward.3
$region0: #{attention_forward.3}
  #allocation0 [shape = 'u32[]', space=smem, size = 0x4, offset = 0x4, fixed_abs, tag = 'smem constant byte address 0x4 - core index']
  #allocation1 [shape = 'u32[144,128]{1,0:T(1,128)}', space=vmem, size = 0x12000, scoped, tag = 'internal scratch']
  #allocation2 [shape = 'f32[1,1]{1,0:T(1,128)S(1)}', space=vmem, size = 0x200, scoped, tag = 'scoped memory for attention_forward.3']
  #allocation3 [shape = 'f32[1,1]{1,0:T(1,128)S(1)}', space=vmem, size = 0x200, scoped, tag = 'scoped memory for attention_forward.3']
  %s0 = inlined_call_operand.vmem [shape: bf16[16,1024], index: 0, kind: input, shape index: {}]
  %s1 = inlined_call_operand.vmem [shape: bf16[1024,500], index: 1, kind: input, shape index: {}]
  %s2 = inlined_call_operand.vmem [shape: f32[1,500], index: 2, kind: input, shape index: {}]
  %s3 = inlined_call_operand.vmem [shape: bf16[500,128], index: 3, kind: input, shape index: {}]
  %s4 = inlined_call_operand.vmem [shape: f32[1,128], index: 4, kind: input, shape index: {}]
  %s5 = inlined_call_operand.vmem [shape: f32[1,128], index: 5, kind: input, shape index: {}]
  %s6 = inlined_call_operand.<no memory space> [shape: f32[1,1], index: 6, kind: input, shape index: {}]
  %s7 = inlined_call_operand.vmem [shape: f32[1,500], index: 7, kind: input, shape index: {}]
  %s8 = inlined_call_operand.<no memory space> [shape: f32[1,1], index: 8, kind: input, shape index: {}]
  %s9 = inlined_call_operand.hbm [shape: f32[1,1], index: 9, kind: output, shape index: {0}]
  %s10 = inlined_call_operand.vmem [shape: f32[16,1], index: 10, kind: output, shape index: {1}]
  %11 = xla_tuple %s9, %s10
  %s12 = sld [smem:[#allocation0]]
  $region54: #{attention_forward.3} parent=0
    _
  %s14 = ssub.s32 1, %s12
  %s15 = scalar_select 0, %s14, %s12
  %v16 = vstv %s6
  %17 = vst [vmem:[#allocation2] sm:$0x1] %v16
  %v18 = vstv %s8
  %19 = vst [vmem:[#allocation3] sm:$0x1] %v18
  $region1: #{attention_forward.3} parent=0
    #allocation4 [shape = 'u8[512]{0}', space=vmem, size = 0x400, scoped, tag = 'output window, operand 0, single buffered']
    #allocation5 [shape = 's32[1]{0}', space=sflag, size = 0x4, scoped, tag = 'scoped memory for attention_forward.3']
    %20 = vsyncpa [#allocation5], 0
    // Predicated region
    $region2: #{attention_forward.3} parent=1 // pred_check
      _
    $region3: #{attention_forward.3} parent=1 // pred_check_branch
      %22 = sbr.rel (0) target = $region5
    $region4: #{attention_forward.3} parent=1 // pred_region
      _
    $region5: #{attention_forward.3} parent=1 // pred_fallthru
      _
    // Predicated region
    $region6: #{attention_forward.3} parent=1 // pred_check
      _
    $region7: #{attention_forward.3} parent=1 // pred_check_branch
      %24 = sbr.rel (0) target = $region9
    $region8: #{attention_forward.3} parent=1 // pred_region
      _
    $region9: #{attention_forward.3} parent=1 // pred_fallthru
      _
    // Predicated region
    $region10: #{attention_forward.3} parent=1 // pred_check
      _
    $region11: #{attention_forward.3} parent=1 // pred_check_branch
      %26 = sbr.rel (0) target = $region13
    $region12: #{attention_forward.3} parent=1 // pred_region
      _
    $region13: #{attention_forward.3} parent=1 // pred_fallthru
      _
    // Predicated region
    $region14: #{attention_forward.3} parent=1 // pred_check
      _
    $region15: #{attention_forward.3} parent=1 // pred_check_branch
      %28 = sbr.rel (0) target = $region17
    $region16: #{attention_forward.3} parent=1 // pred_region
      _
    $region17: #{attention_forward.3} parent=1 // pred_fallthru
      _
    // Predicated region
    $region18: #{attention_forward.3} parent=1 // pred_check
      _
    $region19: #{attention_forward.3} parent=1 // pred_check_branch
      %30 = sbr.rel (0) target = $region21
    $region20: #{attention_forward.3} parent=1 // pred_region
      _
    $region21: #{attention_forward.3} parent=1 // pred_fallthru
      _
    // Predicated region
    $region22: #{attention_forward.3} parent=1 // pred_check
      _
    $region23: #{attention_forward.3} parent=1 // pred_check_branch
      %32 = sbr.rel (0) target = $region25
    $region24: #{attention_forward.3} parent=1 // pred_region
      _
    $region25: #{attention_forward.3} parent=1 // pred_fallthru
      _
    // Predicated region
    $region26: #{attention_forward.3} parent=1 // pred_check
      _
    $region27: #{attention_forward.3} parent=1 // pred_check_branch
      %34 = sbr.rel (0) target = $region29
    $region28: #{attention_forward.3} parent=1 // pred_region
      _
    $region29: #{attention_forward.3} parent=1 // pred_fallthru
      _
    // Predicated region
    $region30: #{attention_forward.3} parent=1 // pred_check
      _
    $region31: #{attention_forward.3} parent=1 // pred_check_branch
      %36 = sbr.rel (0) target = $region33
    $region32: #{attention_forward.3} parent=1 // pred_region
      _
    $region33: #{attention_forward.3} parent=1 // pred_fallthru
      _
    // Predicated region
    $region34: #{attention_forward.3} parent=1 // pred_check
      _
    $region35: #{attention_forward.3} parent=1 // pred_check_branch
      %38 = sbr.rel (0) target = $region37
    $region36: #{attention_forward.3} parent=1 // pred_region
      _
    $region37: #{attention_forward.3} parent=1 // pred_fallthru
      _
    %v40 = vld [vmem:[%s0] sm:$0xff]
    %v41 = vld [vmem:[%s0 + $0x8] sm:$0xff]
    %v42 = vld [vmem:[%s0 + $0x10] sm:$0xff]
    %v43 = vld [vmem:[%s0 + $0x18] sm:$0xff]
    %v44 = vld [vmem:[%s0 + $0x20] sm:$0xff]
    %v45 = vld [vmem:[%s0 + $0x28] sm:$0xff]
    %v46 = vld [vmem:[%s0 + $0x30] sm:$0xff]
    %v47 = vld [vmem:[%s0 + $0x38] sm:$0xff]
    %v48 = vld [vmem:[%s1] sm:$0xff]
    %v49 = vld [vmem:[%s1 + $0x8] sm:$0xff]
    %v50 = vld [vmem:[%s1 + $0x10] sm:$0xff]
    %v51 = vld [vmem:[%s1 + $0x18] sm:$0xff]
    %v52 = vld [vmem:[%s1 + $0x20] sm:$0xff]
    %v53 = vld [vmem:[%s1 + $0x28] sm:$0xff]
    %v54 = vld [vmem:[%s1 + $0x30] sm:$0xff]
    %v55 = vld [vmem:[%s1 + $0x38] sm:$0xff]
    %v56 = vld [vmem:[%s1 + $0x40] sm:$0xff]
    %v57 = vld [vmem:[%s1 + $0x48] sm:$0xff]
    %v58 = vld [vmem:[%s1 + $0x50] sm:$0xff]
    %v59 = vld [vmem:[%s1 + $0x58] sm:$0xff]
    %v60 = vld [vmem:[%s1 + $0x60] sm:$0xff]
    %v61 = vld [vmem:[%s1 + $0x68] sm:$0xff]
    %v62 = vld [vmem:[%s1 + $0x70] sm:$0xff]
    %v63 = vld [vmem:[%s1 + $0x78] sm:$0xff]
    %v64 = vld [vmem:[%s1 + $0x80] sm:$0xff]
    %v65 = vld [vmem:[%s1 + $0x88] sm:$0xff]
    %v66 = vld [vmem:[%s1 + $0x90] sm:$0xff]
    %v67 = vld [vmem:[%s1 + $0x98] sm:$0xff]
    %v68 = vld [vmem:[%s1 + $0xa0] sm:$0xff]
    %v69 = vld [vmem:[%s1 + $0xa8] sm:$0xff]
    %v70 = vld [vmem:[%s1 + $0xb0] sm:$0xff]
    %v71 = vld [vmem:[%s1 + $0xb8] sm:$0xff]
    %v72 = vld [vmem:[%s1 + $0xc0] sm:$0xff]
    %v73 = vld [vmem:[%s1 + $0xc8] sm:$0xff]
    %v74 = vld [vmem:[%s1 + $0xd0] sm:$0xff]
    %v75 = vld [vmem:[%s1 + $0xd8] sm:$0xff]
    %v76 = vld [vmem:[%s1 + $0xe0] sm:$0xff]
    %v77 = vld [vmem:[%s1 + $0xe8] sm:$0xff]
    %v78 = vld [vmem:[%s1 + $0xf0] sm:$0xff]
    %v79 = vld [vmem:[%s1 + $0xf8] sm:$0xff]
    %v80 = vld [vmem:[%s1 + $0x100] sm:$0xff]
    %v81 = vld [vmem:[%s1 + $0x108] sm:$0xff]
    %v82 = vld [vmem:[%s1 + $0x110] sm:$0xff]
    %v83 = vld [vmem:[%s1 + $0x118] sm:$0xff]
    %v84 = vld [vmem:[%s1 + $0x120] sm:$0xff]
    %v85 = vld [vmem:[%s1 + $0x128] sm:$0xff]
    %v86 = vld [vmem:[%s1 + $0x130] sm:$0xff]
    %v87 = vld [vmem:[%s1 + $0x138] sm:$0xff]
    %v88 = vld [vmem:[%s1 + $0x140] sm:$0xff]
    %v89 = vld [vmem:[%s1 + $0x148] sm:$0xff]
    %v90 = vld [vmem:[%s1 + $0x150] sm:$0xff]
    %v91 = vld [vmem:[%s1 + $0x158] sm:$0xff]
    %v92 = vld [vmem:[%s1 + $0x160] sm:$0xff]
    %v93 = vld [vmem:[%s1 + $0x168] sm:$0xff]
    %v94 = vld [vmem:[%s1 + $0x170] sm:$0xff]
    %v95 = vld [vmem:[%s1 + $0x178] sm:$0xff]
    %v96 = vld [vmem:[%s1 + $0x180] sm:$0xff]
    %v97 = vld [vmem:[%s1 + $0x188] sm:$0xff]
    %v98 = vld [vmem:[%s1 + $0x190] sm:$0xff]
    %v99 = vld [vmem:[%s1 + $0x198] sm:$0xff]
    %v100 = vld [vmem:[%s1 + $0x1a0] sm:$0xff]
    %v101 = vld [vmem:[%s1 + $0x1a8] sm:$0xff]
    %v102 = vld [vmem:[%s1 + $0x1b0] sm:$0xff]
    %v103 = vld [vmem:[%s1 + $0x1b8] sm:$0xff]
    %v104 = vld [vmem:[%s1 + $0x1c0] sm:$0xff]
    %v105 = vld [vmem:[%s1 + $0x1c8] sm:$0xff]
    %v106 = vld [vmem:[%s1 + $0x1d0] sm:$0xff]
    %v107 = vld [vmem:[%s1 + $0x1d8] sm:$0xff]
    %v108 = vld [vmem:[%s1 + $0x1e0] sm:$0xff]
    %v109 = vld [vmem:[%s1 + $0x1e8] sm:$0xff]
    %v110 = vld [vmem:[%s1 + $0x1f0] sm:$0xff]
    %v111 = vld [vmem:[%s1 + $0x1f8] sm:$0xff]
    %v112 = vld [vmem:[%s1 + $0x200] sm:$0xff]
    %v113 = vld [vmem:[%s1 + $0x208] sm:$0xff]
    %v114 = vld [vmem:[%s1 + $0x210] sm:$0xff]
    %v115 = vld [vmem:[%s1 + $0x218] sm:$0xff]
    %v116 = vld [vmem:[%s1 + $0x220] sm:$0xff]
    %v117 = vld [vmem:[%s1 + $0x228] sm:$0xff]
    %v118 = vld [vmem:[%s1 + $0x230] sm:$0xff]
    %v119 = vld [vmem:[%s1 + $0x238] sm:$0xff]
    %v120 = vld [vmem:[%s1 + $0x240] sm:$0xff]
    %v121 = vld [vmem:[%s1 + $0x248] sm:$0xff]
    %v122 = vld [vmem:[%s1 + $0x250] sm:$0xff]
    %v123 = vld [vmem:[%s1 + $0x258] sm:$0xff]
    %v124 = vld [vmem:[%s1 + $0x260] sm:$0xff]
    %v125 = vld [vmem:[%s1 + $0x268] sm:$0xff]
    %v126 = vld [vmem:[%s1 + $0x270] sm:$0xff]
    %v127 = vld [vmem:[%s1 + $0x278] sm:$0xff]
    %v128 = vld [vmem:[%s1 + $0x280] sm:$0xff]
    %v129 = vld [vmem:[%s1 + $0x288] sm:$0xff]
    %v130 = vld [vmem:[%s1 + $0x290] sm:$0xff]
    %v131 = vld [vmem:[%s1 + $0x298] sm:$0xff]
    %v132 = vld [vmem:[%s1 + $0x2a0] sm:$0xff]
    %v133 = vld [vmem:[%s1 + $0x2a8] sm:$0xff]
    %v134 = vld [vmem:[%s1 + $0x2b0] sm:$0xff]
    %v135 = vld [vmem:[%s1 + $0x2b8] sm:$0xff]
    %v136 = vld [vmem:[%s1 + $0x2c0] sm:$0xff]
    %v137 = vld [vmem:[%s1 + $0x2c8] sm:$0xff]
    %v138 = vld [vmem:[%s1 + $0x2d0] sm:$0xff]
    %v139 = vld [vmem:[%s1 + $0x2d8] sm:$0xff]
    %v140 = vld [vmem:[%s1 + $0x2e0] sm:$0xff]
    %v141 = vld [vmem:[%s1 + $0x2e8] sm:$0xff]
    %v142 = vld [vmem:[%s1 + $0x2f0] sm:$0xff]
    %v143 = vld [vmem:[%s1 + $0x2f8] sm:$0xff]
    %v144 = vld [vmem:[%s1 + $0x300] sm:$0xff]
    %v145 = vld [vmem:[%s1 + $0x308] sm:$0xff]
    %v146 = vld [vmem:[%s1 + $0x310] sm:$0xff]
    %v147 = vld [vmem:[%s1 + $0x318] sm:$0xff]
    %v148 = vld [vmem:[%s1 + $0x320] sm:$0xff]
    %v149 = vld [vmem:[%s1 + $0x328] sm:$0xff]
    %v150 = vld [vmem:[%s1 + $0x330] sm:$0xff]
    %v151 = vld [vmem:[%s1 + $0x338] sm:$0xff]
    %v152 = vld [vmem:[%s1 + $0x340] sm:$0xff]
    %v153 = vld [vmem:[%s1 + $0x348] sm:$0xff]
    %v154 = vld [vmem:[%s1 + $0x350] sm:$0xff]
    %v155 = vld [vmem:[%s1 + $0x358] sm:$0xff]
    %v156 = vld [vmem:[%s1 + $0x360] sm:$0xff]
    %v157 = vld [vmem:[%s1 + $0x368] sm:$0xff]
    %v158 = vld [vmem:[%s1 + $0x370] sm:$0xff]
    %v159 = vld [vmem:[%s1 + $0x378] sm:$0xff]
    %v160 = vld [vmem:[%s1 + $0x380] sm:$0xff]
    %v161 = vld [vmem:[%s1 + $0x388] sm:$0xff]
    %v162 = vld [vmem:[%s1 + $0x390] sm:$0xff]
    %v163 = vld [vmem:[%s1 + $0x398] sm:$0xff]
    %v164 = vld [vmem:[%s1 + $0x3a0] sm:$0xff]
    %v165 = vld [vmem:[%s1 + $0x3a8] sm:$0xff]
    %v166 = vld [vmem:[%s1 + $0x3b0] sm:$0xff]
    %v167 = vld [vmem:[%s1 + $0x3b8] sm:$0xff]
    %v168 = vld [vmem:[%s1 + $0x3c0] sm:$0xff]
    %v169 = vld [vmem:[%s1 + $0x3c8] sm:$0xff]
    %v170 = vld [vmem:[%s1 + $0x3d0] sm:$0xff]
    %v171 = vld [vmem:[%s1 + $0x3d8] sm:$0xff]
    %v172 = vld [vmem:[%s1 + $0x3e0] sm:$0xff]
    %v173 = vld [vmem:[%s1 + $0x3e8] sm:$0xff]
    %v174 = vld [vmem:[%s1 + $0x3f0] sm:$0xff]
    %v175 = vld [vmem:[%s1 + $0x3f8] sm:$0xff]
    %v176 = vld [vmem:[%s1 + $0x400] sm:$0xff]
    %v177 = vld [vmem:[%s1 + $0x408] sm:$0xff]
    %v178 = vld [vmem:[%s1 + $0x410] sm:$0xff]
    %v179 = vld [vmem:[%s1 + $0x418] sm:$0xff]
    %v180 = vld [vmem:[%s1 + $0x420] sm:$0xff]
    %v181 = vld [vmem:[%s1 + $0x428] sm:$0xff]
    %v182 = vld [vmem:[%s1 + $0x430] sm:$0xff]
    %v183 = vld [vmem:[%s1 + $0x438] sm:$0xff]
    %v184 = vld [vmem:[%s1 + $0x440] sm:$0xff]
    %v185 = vld [vmem:[%s1 + $0x448] sm:$0xff]
    %v186 = vld [vmem:[%s1 + $0x450] sm:$0xff]
    %v187 = vld [vmem:[%s1 + $0x458] sm:$0xff]
    %v188 = vld [vmem:[%s1 + $0x460] sm:$0xff]
    %v189 = vld [vmem:[%s1 + $0x468] sm:$0xff]
    %v190 = vld [vmem:[%s1 + $0x470] sm:$0xff]
    %v191 = vld [vmem:[%s1 + $0x478] sm:$0xff]
    %v192 = vld [vmem:[%s1 + $0x480] sm:$0xff]
    %v193 = vld [vmem:[%s1 + $0x488] sm:$0xff]
    %v194 = vld [vmem:[%s1 + $0x490] sm:$0xff]
    %v195 = vld [vmem:[%s1 + $0x498] sm:$0xff]
    %v196 = vld [vmem:[%s1 + $0x4a0] sm:$0xff]
    %v197 = vld [vmem:[%s1 + $0x4a8] sm:$0xff]
    %v198 = vld [vmem:[%s1 + $0x4b0] sm:$0xff]
    %v199 = vld [vmem:[%s1 + $0x4b8] sm:$0xff]
    %v200 = vld [vmem:[%s1 + $0x4c0] sm:$0xff]
    %v201 = vld [vmem:[%s1 + $0x4c8] sm:$0xff]
    %v202 = vld [vmem:[%s1 + $0x4d0] sm:$0xff]
    %v203 = vld [vmem:[%s1 + $0x4d8] sm:$0xff]
    %v204 = vld [vmem:[%s1 + $0x4e0] sm:$0xff]
    %v205 = vld [vmem:[%s1 + $0x4e8] sm:$0xff]
    %v206 = vld [vmem:[%s1 + $0x4f0] sm:$0xff]
    %v207 = vld [vmem:[%s1 + $0x4f8] sm:$0xff]
    %v208 = vld [vmem:[%s1 + $0x500] sm:$0xff]
    %v209 = vld [vmem:[%s1 + $0x508] sm:$0xff]
    %v210 = vld [vmem:[%s1 + $0x510] sm:$0xff]
    %v211 = vld [vmem:[%s1 + $0x518] sm:$0xff]
    %v212 = vld [vmem:[%s1 + $0x520] sm:$0xff]
    %v213 = vld [vmem:[%s1 + $0x528] sm:$0xff]
    %v214 = vld [vmem:[%s1 + $0x530] sm:$0xff]
    %v215 = vld [vmem:[%s1 + $0x538] sm:$0xff]
    %v216 = vld [vmem:[%s1 + $0x540] sm:$0xff]
    %v217 = vld [vmem:[%s1 + $0x548] sm:$0xff]
    %v218 = vld [vmem:[%s1 + $0x550] sm:$0xff]
    %v219 = vld [vmem:[%s1 + $0x558] sm:$0xff]
    %v220 = vld [vmem:[%s1 + $0x560] sm:$0xff]
    %v221 = vld [vmem:[%s1 + $0x568] sm:$0xff]
    %v222 = vld [vmem:[%s1 + $0x570] sm:$0xff]
    %v223 = vld [vmem:[%s1 + $0x578] sm:$0xff]
    %v224 = vld [vmem:[%s1 + $0x580] sm:$0xff]
    %v225 = vld [vmem:[%s1 + $0x588] sm:$0xff]
    %v226 = vld [vmem:[%s1 + $0x590] sm:$0xff]
    %v227 = vld [vmem:[%s1 + $0x598] sm:$0xff]
    %v228 = vld [vmem:[%s1 + $0x5a0] sm:$0xff]
    %v229 = vld [vmem:[%s1 + $0x5a8] sm:$0xff]
    %v230 = vld [vmem:[%s1 + $0x5b0] sm:$0xff]
    %v231 = vld [vmem:[%s1 + $0x5b8] sm:$0xff]
    %v232 = vld [vmem:[%s1 + $0x5c0] sm:$0xff]
    %v233 = vld [vmem:[%s1 + $0x5c8] sm:$0xff]
    %v234 = vld [vmem:[%s1 + $0x5d0] sm:$0xff]
    %v235 = vld [vmem:[%s1 + $0x5d8] sm:$0xff]
    %v236 = vld [vmem:[%s1 + $0x5e0] sm:$0xff]
    %v237 = vld [vmem:[%s1 + $0x5e8] sm:$0xff]
    %v238 = vld [vmem:[%s1 + $0x5f0] sm:$0xff]
    %v239 = vld [vmem:[%s1 + $0x5f8] sm:$0xff]
    %v240 = vld [vmem:[%s1 + $0x600] sm:$0xff]
    %v241 = vld [vmem:[%s1 + $0x608] sm:$0xff]
    %v242 = vld [vmem:[%s1 + $0x610] sm:$0xff]
    %v243 = vld [vmem:[%s1 + $0x618] sm:$0xff]
    %v244 = vld [vmem:[%s1 + $0x620] sm:$0xff]
    %v245 = vld [vmem:[%s1 + $0x628] sm:$0xff]
    %v246 = vld [vmem:[%s1 + $0x630] sm:$0xff]
    %v247 = vld [vmem:[%s1 + $0x638] sm:$0xff]
    %v248 = vld [vmem:[%s1 + $0x640] sm:$0xff]
    %v249 = vld [vmem:[%s1 + $0x648] sm:$0xff]
    %v250 = vld [vmem:[%s1 + $0x650] sm:$0xff]
    %v251 = vld [vmem:[%s1 + $0x658] sm:$0xff]
    %v252 = vld [vmem:[%s1 + $0x660] sm:$0xff]
    %v253 = vld [vmem:[%s1 + $0x668] sm:$0xff]
    %v254 = vld [vmem:[%s1 + $0x670] sm:$0xff]
    %v255 = vld [vmem:[%s1 + $0x678] sm:$0xff]
    %v256 = vld [vmem:[%s1 + $0x680] sm:$0xff]
    %v257 = vld [vmem:[%s1 + $0x688] sm:$0xff]
    %v258 = vld [vmem:[%s1 + $0x690] sm:$0xff]
    %v259 = vld [vmem:[%s1 + $0x698] sm:$0xff]
    %v260 = vld [vmem:[%s1 + $0x6a0] sm:$0xff]
    %v261 = vld [vmem:[%s1 + $0x6a8] sm:$0xff]
    %v262 = vld [vmem:[%s1 + $0x6b0] sm:$0xff]
    %v263 = vld [vmem:[%s1 + $0x6b8] sm:$0xff]
    %v264 = vld [vmem:[%s1 + $0x6c0] sm:$0xff]
    %v265 = vld [vmem:[%s1 + $0x6c8] sm:$0xff]
    %v266 = vld [vmem:[%s1 + $0x6d0] sm:$0xff]
    %v267 = vld [vmem:[%s1 + $0x6d8] sm:$0xff]
    %v268 = vld [vmem:[%s1 + $0x6e0] sm:$0xff]
    %v269 = vld [vmem:[%s1 + $0x6e8] sm:$0xff]
    %v270 = vld [vmem:[%s1 + $0x6f0] sm:$0xff]
    %v271 = vld [vmem:[%s1 + $0x6f8] sm:$0xff]
    %v272 = vld [vmem:[%s1 + $0x700] sm:$0xff]
    %v273 = vld [vmem:[%s1 + $0x708] sm:$0xff]
    %v274 = vld [vmem:[%s1 + $0x710] sm:$0xff]
    %v275 = vld [vmem:[%s1 + $0x718] sm:$0xff]
    %v276 = vld [vmem:[%s1 + $0x720] sm:$0xff]
    %v277 = vld [vmem:[%s1 + $0x728] sm:$0xff]
    %v278 = vld [vmem:[%s1 + $0x730] sm:$0xff]
    %v279 = vld [vmem:[%s1 + $0x738] sm:$0xff]
    %v280 = vld [vmem:[%s1 + $0x740] sm:$0xff]
    %v281 = vld [vmem:[%s1 + $0x748] sm:$0xff]
    %v282 = vld [vmem:[%s1 + $0x750] sm:$0xff]
    %v283 = vld [vmem:[%s1 + $0x758] sm:$0xff]
    %v284 = vld [vmem:[%s1 + $0x760] sm:$0xff]
    %v285 = vld [vmem:[%s1 + $0x768] sm:$0xff]
    %v286 = vld [vmem:[%s1 + $0x770] sm:$0xff]
    %v287 = vld [vmem:[%s1 + $0x778] sm:$0xff]
    %v288 = vld [vmem:[%s1 + $0x780] sm:$0xff]
    %v289 = vld [vmem:[%s1 + $0x788] sm:$0xff]
    %v290 = vld [vmem:[%s1 + $0x790] sm:$0xff]
    %v291 = vld [vmem:[%s1 + $0x798] sm:$0xff]
    %v292 = vld [vmem:[%s1 + $0x7a0] sm:$0xff]
    %v293 = vld [vmem:[%s1 + $0x7a8] sm:$0xff]
    %v294 = vld [vmem:[%s1 + $0x7b0] sm:$0xff]
    %v295 = vld [vmem:[%s1 + $0x7b8] sm:$0xff]
    %v296 = vld [vmem:[%s1 + $0x7c0] sm:$0xff]
    %v297 = vld [vmem:[%s1 + $0x7c8] sm:$0xff]
    %v298 = vld [vmem:[%s1 + $0x7d0] sm:$0xff]
    %v299 = vld [vmem:[%s1 + $0x7d8] sm:$0xff]
    %v300 = vld [vmem:[%s1 + $0x7e0] sm:$0xff]
    %v301 = vld [vmem:[%s1 + $0x7e8] sm:$0xff]
    %v302 = vld [vmem:[%s1 + $0x7f0] sm:$0xff]
    %v303 = vld [vmem:[%s1 + $0x7f8] sm:$0xff]
    %v304 = vld [vmem:[%s2] sm:$0xf]
    %v306 = vlaneseq
    %v307 = vshrl.u32 %v306, 7
    %v308 = vsub.s32 0, %v307
    %v309 = vrot.slane %v304, %v308
    %v310 = vlaneseq
    %v311 = vshrl.u32 %v310, 7
    %v312 = vsub.s32 1, %v311
    %v313 = vrot.slane %v304, %v312
    %v314 = vlaneseq
    %v315 = vshrl.u32 %v314, 7
    %v316 = vsub.s32 2, %v315
    %v317 = vrot.slane %v304, %v316
    %v318 = vlaneseq
    %v319 = vshrl.u32 %v318, 7
    %v320 = vsub.s32 3, %v319
    %v321 = vrot.slane %v304, %v320
    %v334 = vunpack.c.l.b16 %v40
    %v335 = vunpack.c.h.b16 %v40
    %v336 = vunpack.c.l.b16 %v41
    %v337 = vunpack.c.h.b16 %v41
    %v338 = vunpack.c.l.b16 %v42
    %v339 = vunpack.c.h.b16 %v42
    %v340 = vunpack.c.l.b16 %v43
    %v341 = vunpack.c.h.b16 %v43
    %v342 = vunpack.c.l.b16 %v44
    %v343 = vunpack.c.h.b16 %v44
    %v344 = vunpack.c.l.b16 %v45
    %v345 = vunpack.c.h.b16 %v45
    %v346 = vunpack.c.l.b16 %v46
    %v347 = vunpack.c.h.b16 %v46
    %v348 = vunpack.c.l.b16 %v47
    %v349 = vunpack.c.h.b16 %v47
    %v350 = vpack.c.b16 %v342, %v334
    %v351 = vpack.c.b16 %v343, %v335
    %v352 = vpack.c.b16 %v344, %v336
    %v353 = vpack.c.b16 %v345, %v337
    %v354 = vpack.c.b16 %v346, %v338
    %v355 = vpack.c.b16 %v347, %v339
    %v356 = vpack.c.b16 %v348, %v340
    %v357 = vpack.c.b16 %v349, %v341
    %v622 = vunpack.c.l.b16 %v48
    %v623 = vunpack.c.h.b16 %v48
    %v624 = vunpack.c.l.b16 %v49
    %v625 = vunpack.c.h.b16 %v49
    %v626 = vunpack.c.l.b16 %v50
    %v627 = vunpack.c.h.b16 %v50
    %v628 = vunpack.c.l.b16 %v51
    %v629 = vunpack.c.h.b16 %v51
    %v630 = vunpack.c.l.b16 %v52
    %v631 = vunpack.c.h.b16 %v52
    %v632 = vunpack.c.l.b16 %v53
    %v633 = vunpack.c.h.b16 %v53
    %v634 = vunpack.c.l.b16 %v54
    %v635 = vunpack.c.h.b16 %v54
    %v636 = vunpack.c.l.b16 %v55
    %v637 = vunpack.c.h.b16 %v55
    %v638 = vunpack.c.l.b16 %v56
    %v639 = vunpack.c.h.b16 %v56
    %v640 = vunpack.c.l.b16 %v57
    %v641 = vunpack.c.h.b16 %v57
    %v642 = vunpack.c.l.b16 %v58
    %v643 = vunpack.c.h.b16 %v58
    %v644 = vunpack.c.l.b16 %v59
    %v645 = vunpack.c.h.b16 %v59
    %v646 = vunpack.c.l.b16 %v60
    %v647 = vunpack.c.h.b16 %v60
    %v648 = vunpack.c.l.b16 %v61
    %v649 = vunpack.c.h.b16 %v61
    %v650 = vunpack.c.l.b16 %v62
    %v651 = vunpack.c.h.b16 %v62
    %v652 = vunpack.c.l.b16 %v63
    %v653 = vunpack.c.h.b16 %v63
    %v654 = vunpack.c.l.b16 %v64
    %v655 = vunpack.c.h.b16 %v64
    %v656 = vunpack.c.l.b16 %v65
    %v657 = vunpack.c.h.b16 %v65
    %v658 = vunpack.c.l.b16 %v66
    %v659 = vunpack.c.h.b16 %v66
    %v660 = vunpack.c.l.b16 %v67
    %v661 = vunpack.c.h.b16 %v67
    %v662 = vunpack.c.l.b16 %v68
    %v663 = vunpack.c.h.b16 %v68
    %v664 = vunpack.c.l.b16 %v69
    %v665 = vunpack.c.h.b16 %v69
    %v666 = vunpack.c.l.b16 %v70
    %v667 = vunpack.c.h.b16 %v70
    %v668 = vunpack.c.l.b16 %v71
    %v669 = vunpack.c.h.b16 %v71
    %v670 = vunpack.c.l.b16 %v72
    %v671 = vunpack.c.h.b16 %v72
    %v672 = vunpack.c.l.b16 %v73
    %v673 = vunpack.c.h.b16 %v73
    %v674 = vunpack.c.l.b16 %v74
    %v675 = vunpack.c.h.b16 %v74
    %v676 = vunpack.c.l.b16 %v75
    %v677 = vunpack.c.h.b16 %v75
    %v678 = vunpack.c.l.b16 %v76
    %v679 = vunpack.c.h.b16 %v76
    %v680 = vunpack.c.l.b16 %v77
    %v681 = vunpack.c.h.b16 %v77
    %v682 = vunpack.c.l.b16 %v78
    %v683 = vunpack.c.h.b16 %v78
    %v684 = vunpack.c.l.b16 %v79
    %v685 = vunpack.c.h.b16 %v79
    %v686 = vunpack.c.l.b16 %v80
    %v687 = vunpack.c.h.b16 %v80
    %v688 = vunpack.c.l.b16 %v81
    %v689 = vunpack.c.h.b16 %v81
    %v690 = vunpack.c.l.b16 %v82
    %v691 = vunpack.c.h.b16 %v82
    %v692 = vunpack.c.l.b16 %v83
    %v693 = vunpack.c.h.b16 %v83
    %v694 = vunpack.c.l.b16 %v84
    %v695 = vunpack.c.h.b16 %v84
    %v696 = vunpack.c.l.b16 %v85
    %v697 = vunpack.c.h.b16 %v85
    %v698 = vunpack.c.l.b16 %v86
    %v699 = vunpack.c.h.b16 %v86
    %v700 = vunpack.c.l.b16 %v87
    %v701 = vunpack.c.h.b16 %v87
    %v702 = vunpack.c.l.b16 %v88
    %v703 = vunpack.c.h.b16 %v88
    %v704 = vunpack.c.l.b16 %v89
    %v705 = vunpack.c.h.b16 %v89
    %v706 = vunpack.c.l.b16 %v90
    %v707 = vunpack.c.h.b16 %v90
    %v708 = vunpack.c.l.b16 %v91
    %v709 = vunpack.c.h.b16 %v91
    %v710 = vunpack.c.l.b16 %v92
    %v711 = vunpack.c.h.b16 %v92
    %v712 = vunpack.c.l.b16 %v93
    %v713 = vunpack.c.h.b16 %v93
    %v714 = vunpack.c.l.b16 %v94
    %v715 = vunpack.c.h.b16 %v94
    %v716 = vunpack.c.l.b16 %v95
    %v717 = vunpack.c.h.b16 %v95
    %v718 = vunpack.c.l.b16 %v96
    %v719 = vunpack.c.h.b16 %v96
    %v720 = vunpack.c.l.b16 %v97
    %v721 = vunpack.c.h.b16 %v97
    %v722 = vunpack.c.l.b16 %v98
    %v723 = vunpack.c.h.b16 %v98
    %v724 = vunpack.c.l.b16 %v99
    %v725 = vunpack.c.h.b16 %v99
    %v726 = vunpack.c.l.b16 %v100
    %v727 = vunpack.c.h.b16 %v100
    %v728 = vunpack.c.l.b16 %v101
    %v729 = vunpack.c.h.b16 %v101
    %v730 = vunpack.c.l.b16 %v102
    %v731 = vunpack.c.h.b16 %v102
    %v732 = vunpack.c.l.b16 %v103
    %v733 = vunpack.c.h.b16 %v103
    %v734 = vunpack.c.l.b16 %v104
    %v735 = vunpack.c.h.b16 %v104
    %v736 = vunpack.c.l.b16 %v105
    %v737 = vunpack.c.h.b16 %v105
    %v738 = vunpack.c.l.b16 %v106
    %v739 = vunpack.c.h.b16 %v106
    %v740 = vunpack.c.l.b16 %v107
    %v741 = vunpack.c.h.b16 %v107
    %v742 = vunpack.c.l.b16 %v108
    %v743 = vunpack.c.h.b16 %v108
    %v744 = vunpack.c.l.b16 %v109
    %v745 = vunpack.c.h.b16 %v109
    %v746 = vunpack.c.l.b16 %v110
    %v747 = vunpack.c.h.b16 %v110
    %v748 = vunpack.c.l.b16 %v111
    %v749 = vunpack.c.h.b16 %v111
    %v750 = vunpack.c.l.b16 %v112
    %v751 = vunpack.c.h.b16 %v112
    %v752 = vunpack.c.l.b16 %v113
    %v753 = vunpack.c.h.b16 %v113
    %v754 = vunpack.c.l.b16 %v114
    %v755 = vunpack.c.h.b16 %v114
    %v756 = vunpack.c.l.b16 %v115
    %v757 = vunpack.c.h.b16 %v115
    %v758 = vunpack.c.l.b16 %v116
    %v759 = vunpack.c.h.b16 %v116
    %v760 = vunpack.c.l.b16 %v117
    %v761 = vunpack.c.h.b16 %v117
    %v762 = vunpack.c.l.b16 %v118
    %v763 = vunpack.c.h.b16 %v118
    %v764 = vunpack.c.l.b16 %v119
    %v765 = vunpack.c.h.b16 %v119
    %v766 = vunpack.c.l.b16 %v120
    %v767 = vunpack.c.h.b16 %v120
    %v768 = vunpack.c.l.b16 %v121
    %v769 = vunpack.c.h.b16 %v121
    %v770 = vunpack.c.l.b16 %v122
    %v771 = vunpack.c.h.b16 %v122
    %v772 = vunpack.c.l.b16 %v123
    %v773 = vunpack.c.h.b16 %v123
    %v774 = vunpack.c.l.b16 %v124
    %v775 = vunpack.c.h.b16 %v124
    %v776 = vunpack.c.l.b16 %v125
    %v777 = vunpack.c.h.b16 %v125
    %v778 = vunpack.c.l.b16 %v126
    %v779 = vunpack.c.h.b16 %v126
    %v780 = vunpack.c.l.b16 %v127
    %v781 = vunpack.c.h.b16 %v127
    %v782 = vunpack.c.l.b16 %v128
    %v783 = vunpack.c.h.b16 %v128
    %v784 = vunpack.c.l.b16 %v129
    %v785 = vunpack.c.h.b16 %v129
    %v786 = vunpack.c.l.b16 %v130
    %v787 = vunpack.c.h.b16 %v130
    %v788 = vunpack.c.l.b16 %v131
    %v789 = vunpack.c.h.b16 %v131
    %v790 = vunpack.c.l.b16 %v132
    %v791 = vunpack.c.h.b16 %v132
    %v792 = vunpack.c.l.b16 %v133
    %v793 = vunpack.c.h.b16 %v133
    %v794 = vunpack.c.l.b16 %v134
    %v795 = vunpack.c.h.b16 %v134
    %v796 = vunpack.c.l.b16 %v135
    %v797 = vunpack.c.h.b16 %v135
    %v798 = vunpack.c.l.b16 %v136
    %v799 = vunpack.c.h.b16 %v136
    %v800 = vunpack.c.l.b16 %v137
    %v801 = vunpack.c.h.b16 %v137
    %v802 = vunpack.c.l.b16 %v138
    %v803 = vunpack.c.h.b16 %v138
    %v804 = vunpack.c.l.b16 %v139
    %v805 = vunpack.c.h.b16 %v139
    %v806 = vunpack.c.l.b16 %v140
    %v807 = vunpack.c.h.b16 %v140
    %v808 = vunpack.c.l.b16 %v141
    %v809 = vunpack.c.h.b16 %v141
    %v810 = vunpack.c.l.b16 %v142
    %v811 = vunpack.c.h.b16 %v142
    %v812 = vunpack.c.l.b16 %v143
    %v813 = vunpack.c.h.b16 %v143
    %v814 = vunpack.c.l.b16 %v144
    %v815 = vunpack.c.h.b16 %v144
    %v816 = vunpack.c.l.b16 %v145
    %v817 = vunpack.c.h.b16 %v145
    %v818 = vunpack.c.l.b16 %v146
    %v819 = vunpack.c.h.b16 %v146
    %v820 = vunpack.c.l.b16 %v147
    %v821 = vunpack.c.h.b16 %v147
    %v822 = vunpack.c.l.b16 %v148
    %v823 = vunpack.c.h.b16 %v148
    %v824 = vunpack.c.l.b16 %v149
    %v825 = vunpack.c.h.b16 %v149
    %v826 = vunpack.c.l.b16 %v150
    %v827 = vunpack.c.h.b16 %v150
    %v828 = vunpack.c.l.b16 %v151
    %v829 = vunpack.c.h.b16 %v151
    %v830 = vunpack.c.l.b16 %v152
    %v831 = vunpack.c.h.b16 %v152
    %v832 = vunpack.c.l.b16 %v153
    %v833 = vunpack.c.h.b16 %v153
    %v834 = vunpack.c.l.b16 %v154
    %v835 = vunpack.c.h.b16 %v154
    %v836 = vunpack.c.l.b16 %v155
    %v837 = vunpack.c.h.b16 %v155
    %v838 = vunpack.c.l.b16 %v156
    %v839 = vunpack.c.h.b16 %v156
    %v840 = vunpack.c.l.b16 %v157
    %v841 = vunpack.c.h.b16 %v157
    %v842 = vunpack.c.l.b16 %v158
    %v843 = vunpack.c.h.b16 %v158
    %v844 = vunpack.c.l.b16 %v159
    %v845 = vunpack.c.h.b16 %v159
    %v846 = vunpack.c.l.b16 %v160
    %v847 = vunpack.c.h.b16 %v160
    %v848 = vunpack.c.l.b16 %v161
    %v849 = vunpack.c.h.b16 %v161
    %v850 = vunpack.c.l.b16 %v162
    %v851 = vunpack.c.h.b16 %v162
    %v852 = vunpack.c.l.b16 %v163
    %v853 = vunpack.c.h.b16 %v163
    %v854 = vunpack.c.l.b16 %v164
    %v855 = vunpack.c.h.b16 %v164
    %v856 = vunpack.c.l.b16 %v165
    %v857 = vunpack.c.h.b16 %v165
    %v858 = vunpack.c.l.b16 %v166
    %v859 = vunpack.c.h.b16 %v166
    %v860 = vunpack.c.l.b16 %v167
    %v861 = vunpack.c.h.b16 %v167
    %v862 = vunpack.c.l.b16 %v168
    %v863 = vunpack.c.h.b16 %v168
    %v864 = vunpack.c.l.b16 %v169
    %v865 = vunpack.c.h.b16 %v169
    %v866 = vunpack.c.l.b16 %v170
    %v867 = vunpack.c.h.b16 %v170
    %v868 = vunpack.c.l.b16 %v171
    %v869 = vunpack.c.h.b16 %v171
    %v870 = vunpack.c.l.b16 %v172
    %v871 = vunpack.c.h.b16 %v172
    %v872 = vunpack.c.l.b16 %v173
    %v873 = vunpack.c.h.b16 %v173
    %v874 = vunpack.c.l.b16 %v174
    %v875 = vunpack.c.h.b16 %v174
    %v876 = vunpack.c.l.b16 %v175
    %v877 = vunpack.c.h.b16 %v175
    %v878 = vunpack.c.l.b16 %v176
    %v879 = vunpack.c.h.b16 %v176
    %v880 = vunpack.c.l.b16 %v177
    %v881 = vunpack.c.h.b16 %v177
    %v882 = vunpack.c.l.b16 %v178
    %v883 = vunpack.c.h.b16 %v178
    %v884 = vunpack.c.l.b16 %v179
    %v885 = vunpack.c.h.b16 %v179
    %v886 = vunpack.c.l.b16 %v180
    %v887 = vunpack.c.h.b16 %v180
    %v888 = vunpack.c.l.b16 %v181
    %v889 = vunpack.c.h.b16 %v181
    %v890 = vunpack.c.l.b16 %v182
    %v891 = vunpack.c.h.b16 %v182
    %v892 = vunpack.c.l.b16 %v183
    %v893 = vunpack.c.h.b16 %v183
    %v894 = vunpack.c.l.b16 %v184
    %v895 = vunpack.c.h.b16 %v184
    %v896 = vunpack.c.l.b16 %v185
    %v897 = vunpack.c.h.b16 %v185
    %v898 = vunpack.c.l.b16 %v186
    %v899 = vunpack.c.h.b16 %v186
    %v900 = vunpack.c.l.b16 %v187
    %v901 = vunpack.c.h.b16 %v187
    %v902 = vunpack.c.l.b16 %v188
    %v903 = vunpack.c.h.b16 %v188
    %v904 = vunpack.c.l.b16 %v189
    %v905 = vunpack.c.h.b16 %v189
    %v906 = vunpack.c.l.b16 %v190
    %v907 = vunpack.c.h.b16 %v190
    %v908 = vunpack.c.l.b16 %v191
    %v909 = vunpack.c.h.b16 %v191
    %v910 = vunpack.c.l.b16 %v192
    %v911 = vunpack.c.h.b16 %v192
    %v912 = vunpack.c.l.b16 %v193
    %v913 = vunpack.c.h.b16 %v193
    %v914 = vunpack.c.l.b16 %v194
    %v915 = vunpack.c.h.b16 %v194
    %v916 = vunpack.c.l.b16 %v195
    %v917 = vunpack.c.h.b16 %v195
    %v918 = vunpack.c.l.b16 %v196
    %v919 = vunpack.c.h.b16 %v196
    %v920 = vunpack.c.l.b16 %v197
    %v921 = vunpack.c.h.b16 %v197
    %v922 = vunpack.c.l.b16 %v198
    %v923 = vunpack.c.h.b16 %v198
    %v924 = vunpack.c.l.b16 %v199
    %v925 = vunpack.c.h.b16 %v199
    %v926 = vunpack.c.l.b16 %v200
    %v927 = vunpack.c.h.b16 %v200
    %v928 = vunpack.c.l.b16 %v201
    %v929 = vunpack.c.h.b16 %v201
    %v930 = vunpack.c.l.b16 %v202
    %v931 = vunpack.c.h.b16 %v202
    %v932 = vunpack.c.l.b16 %v203
    %v933 = vunpack.c.h.b16 %v203
    %v934 = vunpack.c.l.b16 %v204
    %v935 = vunpack.c.h.b16 %v204
    %v936 = vunpack.c.l.b16 %v205
    %v937 = vunpack.c.h.b16 %v205
    %v938 = vunpack.c.l.b16 %v206
    %v939 = vunpack.c.h.b16 %v206
    %v940 = vunpack.c.l.b16 %v207
    %v941 = vunpack.c.h.b16 %v207
    %v942 = vunpack.c.l.b16 %v208
    %v943 = vunpack.c.h.b16 %v208
    %v944 = vunpack.c.l.b16 %v209
    %v945 = vunpack.c.h.b16 %v209
    %v946 = vunpack.c.l.b16 %v210
    %v947 = vunpack.c.h.b16 %v210
    %v948 = vunpack.c.l.b16 %v211
    %v949 = vunpack.c.h.b16 %v211
    %v950 = vunpack.c.l.b16 %v212
    %v951 = vunpack.c.h.b16 %v212
    %v952 = vunpack.c.l.b16 %v213
    %v953 = vunpack.c.h.b16 %v213
    %v954 = vunpack.c.l.b16 %v214
    %v955 = vunpack.c.h.b16 %v214
    %v956 = vunpack.c.l.b16 %v215
    %v957 = vunpack.c.h.b16 %v215
    %v958 = vunpack.c.l.b16 %v216
    %v959 = vunpack.c.h.b16 %v216
    %v960 = vunpack.c.l.b16 %v217
    %v961 = vunpack.c.h.b16 %v217
    %v962 = vunpack.c.l.b16 %v218
    %v963 = vunpack.c.h.b16 %v218
    %v964 = vunpack.c.l.b16 %v219
    %v965 = vunpack.c.h.b16 %v219
    %v966 = vunpack.c.l.b16 %v220
    %v967 = vunpack.c.h.b16 %v220
    %v968 = vunpack.c.l.b16 %v221
    %v969 = vunpack.c.h.b16 %v221
    %v970 = vunpack.c.l.b16 %v222
    %v971 = vunpack.c.h.b16 %v222
    %v972 = vunpack.c.l.b16 %v223
    %v973 = vunpack.c.h.b16 %v223
    %v974 = vunpack.c.l.b16 %v224
    %v975 = vunpack.c.h.b16 %v224
    %v976 = vunpack.c.l.b16 %v225
    %v977 = vunpack.c.h.b16 %v225
    %v978 = vunpack.c.l.b16 %v226
    %v979 = vunpack.c.h.b16 %v226
    %v980 = vunpack.c.l.b16 %v227
    %v981 = vunpack.c.h.b16 %v227
    %v982 = vunpack.c.l.b16 %v228
    %v983 = vunpack.c.h.b16 %v228
    %v984 = vunpack.c.l.b16 %v229
    %v985 = vunpack.c.h.b16 %v229
    %v986 = vunpack.c.l.b16 %v230
    %v987 = vunpack.c.h.b16 %v230
    %v988 = vunpack.c.l.b16 %v231
    %v989 = vunpack.c.h.b16 %v231
    %v990 = vunpack.c.l.b16 %v232
    %v991 = vunpack.c.h.b16 %v232
    %v992 = vunpack.c.l.b16 %v233
    %v993 = vunpack.c.h.b16 %v233
    %v994 = vunpack.c.l.b16 %v234
    %v995 = vunpack.c.h.b16 %v234
    %v996 = vunpack.c.l.b16 %v235
    %v997 = vunpack.c.h.b16 %v235
    %v998 = vunpack.c.l.b16 %v236
    %v999 = vunpack.c.h.b16 %v236
    %v1000 = vunpack.c.l.b16 %v237
    %v1001 = vunpack.c.h.b16 %v237
    %v1002 = vunpack.c.l.b16 %v238
    %v1003 = vunpack.c.h.b16 %v238
    %v1004 = vunpack.c.l.b16 %v239
    %v1005 = vunpack.c.h.b16 %v239
    %v1006 = vunpack.c.l.b16 %v240
    %v1007 = vunpack.c.h.b16 %v240
    %v1008 = vunpack.c.l.b16 %v241
    %v1009 = vunpack.c.h.b16 %v241
    %v1010 = vunpack.c.l.b16 %v242
    %v1011 = vunpack.c.h.b16 %v242
    %v1012 = vunpack.c.l.b16 %v243
    %v1013 = vunpack.c.h.b16 %v243
    %v1014 = vunpack.c.l.b16 %v244
    %v1015 = vunpack.c.h.b16 %v244
    %v1016 = vunpack.c.l.b16 %v245
    %v1017 = vunpack.c.h.b16 %v245
    %v1018 = vunpack.c.l.b16 %v246
    %v1019 = vunpack.c.h.b16 %v246
    %v1020 = vunpack.c.l.b16 %v247
    %v1021 = vunpack.c.h.b16 %v247
    %v1022 = vunpack.c.l.b16 %v248
    %v1023 = vunpack.c.h.b16 %v248
    %v1024 = vunpack.c.l.b16 %v249
    %v1025 = vunpack.c.h.b16 %v249
    %v1026 = vunpack.c.l.b16 %v250
    %v1027 = vunpack.c.h.b16 %v250
    %v1028 = vunpack.c.l.b16 %v251
    %v1029 = vunpack.c.h.b16 %v251
    %v1030 = vunpack.c.l.b16 %v252
    %v1031 = vunpack.c.h.b16 %v252
    %v1032 = vunpack.c.l.b16 %v253
    %v1033 = vunpack.c.h.b16 %v253
    %v1034 = vunpack.c.l.b16 %v254
    %v1035 = vunpack.c.h.b16 %v254
    %v1036 = vunpack.c.l.b16 %v255
    %v1037 = vunpack.c.h.b16 %v255
    %v1038 = vunpack.c.l.b16 %v256
    %v1039 = vunpack.c.h.b16 %v256
    %v1040 = vunpack.c.l.b16 %v257
    %v1041 = vunpack.c.h.b16 %v257
    %v1042 = vunpack.c.l.b16 %v258
    %v1043 = vunpack.c.h.b16 %v258
    %v1044 = vunpack.c.l.b16 %v259
    %v1045 = vunpack.c.h.b16 %v259
    %v1046 = vunpack.c.l.b16 %v260
    %v1047 = vunpack.c.h.b16 %v260
    %v1048 = vunpack.c.l.b16 %v261
    %v1049 = vunpack.c.h.b16 %v261
    %v1050 = vunpack.c.l.b16 %v262
    %v1051 = vunpack.c.h.b16 %v262
    %v1052 = vunpack.c.l.b16 %v263
    %v1053 = vunpack.c.h.b16 %v263
    %v1054 = vunpack.c.l.b16 %v264
    %v1055 = vunpack.c.h.b16 %v264
    %v1056 = vunpack.c.l.b16 %v265
    %v1057 = vunpack.c.h.b16 %v265
    %v1058 = vunpack.c.l.b16 %v266
    %v1059 = vunpack.c.h.b16 %v266
    %v1060 = vunpack.c.l.b16 %v267
    %v1061 = vunpack.c.h.b16 %v267
    %v1062 = vunpack.c.l.b16 %v268
    %v1063 = vunpack.c.h.b16 %v268
    %v1064 = vunpack.c.l.b16 %v269
    %v1065 = vunpack.c.h.b16 %v269
    %v1066 = vunpack.c.l.b16 %v270
    %v1067 = vunpack.c.h.b16 %v270
    %v1068 = vunpack.c.l.b16 %v271
    %v1069 = vunpack.c.h.b16 %v271
    %v1070 = vunpack.c.l.b16 %v272
    %v1071 = vunpack.c.h.b16 %v272
    %v1072 = vunpack.c.l.b16 %v273
    %v1073 = vunpack.c.h.b16 %v273
    %v1074 = vunpack.c.l.b16 %v274
    %v1075 = vunpack.c.h.b16 %v274
    %v1076 = vunpack.c.l.b16 %v275
    %v1077 = vunpack.c.h.b16 %v275
    %v1078 = vunpack.c.l.b16 %v276
    %v1079 = vunpack.c.h.b16 %v276
    %v1080 = vunpack.c.l.b16 %v277
    %v1081 = vunpack.c.h.b16 %v277
    %v1082 = vunpack.c.l.b16 %v278
    %v1083 = vunpack.c.h.b16 %v278
    %v1084 = vunpack.c.l.b16 %v279
    %v1085 = vunpack.c.h.b16 %v279
    %v1086 = vunpack.c.l.b16 %v280
    %v1087 = vunpack.c.h.b16 %v280
    %v1088 = vunpack.c.l.b16 %v281
    %v1089 = vunpack.c.h.b16 %v281
    %v1090 = vunpack.c.l.b16 %v282
    %v1091 = vunpack.c.h.b16 %v282
    %v1092 = vunpack.c.l.b16 %v283
    %v1093 = vunpack.c.h.b16 %v283
    %v1094 = vunpack.c.l.b16 %v284
    %v1095 = vunpack.c.h.b16 %v284
    %v1096 = vunpack.c.l.b16 %v285
    %v1097 = vunpack.c.h.b16 %v285
    %v1098 = vunpack.c.l.b16 %v286
    %v1099 = vunpack.c.h.b16 %v286
    %v1100 = vunpack.c.l.b16 %v287
    %v1101 = vunpack.c.h.b16 %v287
    %v1102 = vunpack.c.l.b16 %v288
    %v1103 = vunpack.c.h.b16 %v288
    %v1104 = vunpack.c.l.b16 %v289
    %v1105 = vunpack.c.h.b16 %v289
    %v1106 = vunpack.c.l.b16 %v290
    %v1107 = vunpack.c.h.b16 %v290
    %v1108 = vunpack.c.l.b16 %v291
    %v1109 = vunpack.c.h.b16 %v291
    %v1110 = vunpack.c.l.b16 %v292
    %v1111 = vunpack.c.h.b16 %v292
    %v1112 = vunpack.c.l.b16 %v293
    %v1113 = vunpack.c.h.b16 %v293
    %v1114 = vunpack.c.l.b16 %v294
    %v1115 = vunpack.c.h.b16 %v294
    %v1116 = vunpack.c.l.b16 %v295
    %v1117 = vunpack.c.h.b16 %v295
    %v1118 = vunpack.c.l.b16 %v296
    %v1119 = vunpack.c.h.b16 %v296
    %v1120 = vunpack.c.l.b16 %v297
    %v1121 = vunpack.c.h.b16 %v297
    %v1122 = vunpack.c.l.b16 %v298
    %v1123 = vunpack.c.h.b16 %v298
    %v1124 = vunpack.c.l.b16 %v299
    %v1125 = vunpack.c.h.b16 %v299
    %v1126 = vunpack.c.l.b16 %v300
    %v1127 = vunpack.c.h.b16 %v300
    %v1128 = vunpack.c.l.b16 %v301
    %v1129 = vunpack.c.h.b16 %v301
    %v1130 = vunpack.c.l.b16 %v302
    %v1131 = vunpack.c.h.b16 %v302
    %v1132 = vunpack.c.l.b16 %v303
    %v1133 = vunpack.c.h.b16 %v303
    %v1134 = vpack.c.b16 %v626, %v622
    %v1135 = vpack.c.b16 %v627, %v623
    %v1136 = vpack.c.b16 %v628, %v624
    %v1137 = vpack.c.b16 %v629, %v625
    %v1138 = vpack.c.b16 %v634, %v630
    %v1139 = vpack.c.b16 %v635, %v631
    %v1140 = vpack.c.b16 %v636, %v632
    %v1141 = vpack.c.b16 %v637, %v633
    %v1142 = vpack.c.b16 %v642, %v638
    %v1143 = vpack.c.b16 %v643, %v639
    %v1144 = vpack.c.b16 %v644, %v640
    %v1145 = vpack.c.b16 %v645, %v641
    %v1146 = vpack.c.b16 %v650, %v646
    %v1147 = vpack.c.b16 %v651, %v647
    %v1148 = vpack.c.b16 %v652, %v648
    %v1149 = vpack.c.b16 %v653, %v649
    %v1150 = vpack.c.b16 %v658, %v654
    %v1151 = vpack.c.b16 %v659, %v655
    %v1152 = vpack.c.b16 %v660, %v656
    %v1153 = vpack.c.b16 %v661, %v657
    %v1154 = vpack.c.b16 %v666, %v662
    %v1155 = vpack.c.b16 %v667, %v663
    %v1156 = vpack.c.b16 %v668, %v664
    %v1157 = vpack.c.b16 %v669, %v665
    %v1158 = vpack.c.b16 %v674, %v670
    %v1159 = vpack.c.b16 %v675, %v671
    %v1160 = vpack.c.b16 %v676, %v672
    %v1161 = vpack.c.b16 %v677, %v673
    %v1162 = vpack.c.b16 %v682, %v678
    %v1163 = vpack.c.b16 %v683, %v679
    %v1164 = vpack.c.b16 %v684, %v680
    %v1165 = vpack.c.b16 %v685, %v681
    %v1166 = vpack.c.b16 %v690, %v686
    %v1167 = vpack.c.b16 %v691, %v687
    %v1168 = vpack.c.b16 %v692, %v688
    %v1169 = vpack.c.b16 %v693, %v689
    %v1170 = vpack.c.b16 %v698, %v694
    %v1171 = vpack.c.b16 %v699, %v695
    %v1172 = vpack.c.b16 %v700, %v696
    %v1173 = vpack.c.b16 %v701, %v697
    %v1174 = vpack.c.b16 %v706, %v702
    %v1175 = vpack.c.b16 %v707, %v703
    %v1176 = vpack.c.b16 %v708, %v704
    %v1177 = vpack.c.b16 %v709, %v705
    %v1178 = vpack.c.b16 %v714, %v710
    %v1179 = vpack.c.b16 %v715, %v711
    %v1180 = vpack.c.b16 %v716, %v712
    %v1181 = vpack.c.b16 %v717, %v713
    %v1182 = vpack.c.b16 %v722, %v718
    %v1183 = vpack.c.b16 %v723, %v719
    %v1184 = vpack.c.b16 %v724, %v720
    %v1185 = vpack.c.b16 %v725, %v721
    %v1186 = vpack.c.b16 %v730, %v726
    %v1187 = vpack.c.b16 %v731, %v727
    %v1188 = vpack.c.b16 %v732, %v728
    %v1189 = vpack.c.b16 %v733, %v729
    %v1190 = vpack.c.b16 %v738, %v734
    %v1191 = vpack.c.b16 %v739, %v735
    %v1192 = vpack.c.b16 %v740, %v736
    %v1193 = vpack.c.b16 %v741, %v737
    %v1194 = vpack.c.b16 %v746, %v742
    %v1195 = vpack.c.b16 %v747, %v743
    %v1196 = vpack.c.b16 %v748, %v744
    %v1197 = vpack.c.b16 %v749, %v745
    %v1198 = vpack.c.b16 %v754, %v750
    %v1199 = vpack.c.b16 %v755, %v751
    %v1200 = vpack.c.b16 %v756, %v752
    %v1201 = vpack.c.b16 %v757, %v753
    %v1202 = vpack.c.b16 %v762, %v758
    %v1203 = vpack.c.b16 %v763, %v759
    %v1204 = vpack.c.b16 %v764, %v760
    %v1205 = vpack.c.b16 %v765, %v761
    %v1206 = vpack.c.b16 %v770, %v766
    %v1207 = vpack.c.b16 %v771, %v767
    %v1208 = vpack.c.b16 %v772, %v768
    %v1209 = vpack.c.b16 %v773, %v769
    %v1210 = vpack.c.b16 %v778, %v774
    %v1211 = vpack.c.b16 %v779, %v775
    %v1212 = vpack.c.b16 %v780, %v776
    %v1213 = vpack.c.b16 %v781, %v777
    %v1214 = vpack.c.b16 %v786, %v782
    %v1215 = vpack.c.b16 %v787, %v783
    %v1216 = vpack.c.b16 %v788, %v784
    %v1217 = vpack.c.b16 %v789, %v785
    %v1218 = vpack.c.b16 %v794, %v790
    %v1219 = vpack.c.b16 %v795, %v791
    %v1220 = vpack.c.b16 %v796, %v792
    %v1221 = vpack.c.b16 %v797, %v793
    %v1222 = vpack.c.b16 %v802, %v798
    %v1223 = vpack.c.b16 %v803, %v799
    %v1224 = vpack.c.b16 %v804, %v800
    %v1225 = vpack.c.b16 %v805, %v801
    %v1226 = vpack.c.b16 %v810, %v806
    %v1227 = vpack.c.b16 %v811, %v807
    %v1228 = vpack.c.b16 %v812, %v808
    %v1229 = vpack.c.b16 %v813, %v809
    %v1230 = vpack.c.b16 %v818, %v814
    %v1231 = vpack.c.b16 %v819, %v815
    %v1232 = vpack.c.b16 %v820, %v816
    %v1233 = vpack.c.b16 %v821, %v817
    %v1234 = vpack.c.b16 %v826, %v822
    %v1235 = vpack.c.b16 %v827, %v823
    %v1236 = vpack.c.b16 %v828, %v824
    %v1237 = vpack.c.b16 %v829, %v825
    %v1238 = vpack.c.b16 %v834, %v830
    %v1239 = vpack.c.b16 %v835, %v831
    %v1240 = vpack.c.b16 %v836, %v832
    %v1241 = vpack.c.b16 %v837, %v833
    %v1242 = vpack.c.b16 %v842, %v838
    %v1243 = vpack.c.b16 %v843, %v839
    %v1244 = vpack.c.b16 %v844, %v840
    %v1245 = vpack.c.b16 %v845, %v841
    %v1246 = vpack.c.b16 %v850, %v846
    %v1247 = vpack.c.b16 %v851, %v847
    %v1248 = vpack.c.b16 %v852, %v848
    %v1249 = vpack.c.b16 %v853, %v849
    %v1250 = vpack.c.b16 %v858, %v854
    %v1251 = vpack.c.b16 %v859, %v855
    %v1252 = vpack.c.b16 %v860, %v856
    %v1253 = vpack.c.b16 %v861, %v857
    %v1254 = vpack.c.b16 %v866, %v862
    %v1255 = vpack.c.b16 %v867, %v863
    %v1256 = vpack.c.b16 %v868, %v864
    %v1257 = vpack.c.b16 %v869, %v865
    %v1258 = vpack.c.b16 %v874, %v870
    %v1259 = vpack.c.b16 %v875, %v871
    %v1260 = vpack.c.b16 %v876, %v872
    %v1261 = vpack.c.b16 %v877, %v873
    %v1262 = vpack.c.b16 %v882, %v878
    %v1263 = vpack.c.b16 %v883, %v879
    %v1264 = vpack.c.b16 %v884, %v880
    %v1265 = vpack.c.b16 %v885, %v881
    %v1266 = vpack.c.b16 %v890, %v886
    %v1267 = vpack.c.b16 %v891, %v887
    %v1268 = vpack.c.b16 %v892, %v888
    %v1269 = vpack.c.b16 %v893, %v889
    %v1270 = vpack.c.b16 %v898, %v894
    %v1271 = vpack.c.b16 %v899, %v895
    %v1272 = vpack.c.b16 %v900, %v896
    %v1273 = vpack.c.b16 %v901, %v897
    %v1274 = vpack.c.b16 %v906, %v902
    %v1275 = vpack.c.b16 %v907, %v903
    %v1276 = vpack.c.b16 %v908, %v904
    %v1277 = vpack.c.b16 %v909, %v905
    %v1278 = vpack.c.b16 %v914, %v910
    %v1279 = vpack.c.b16 %v915, %v911
    %v1280 = vpack.c.b16 %v916, %v912
    %v1281 = vpack.c.b16 %v917, %v913
    %v1282 = vpack.c.b16 %v922, %v918
    %v1283 = vpack.c.b16 %v923, %v919
    %v1284 = vpack.c.b16 %v924, %v920
    %v1285 = vpack.c.b16 %v925, %v921
    %v1286 = vpack.c.b16 %v930, %v926
    %v1287 = vpack.c.b16 %v931, %v927
    %v1288 = vpack.c.b16 %v932, %v928
    %v1289 = vpack.c.b16 %v933, %v929
    %v1290 = vpack.c.b16 %v938, %v934
    %v1291 = vpack.c.b16 %v939, %v935
    %v1292 = vpack.c.b16 %v940, %v936
    %v1293 = vpack.c.b16 %v941, %v937
    %v1294 = vpack.c.b16 %v946, %v942
    %v1295 = vpack.c.b16 %v947, %v943
    %v1296 = vpack.c.b16 %v948, %v944
    %v1297 = vpack.c.b16 %v949, %v945
    %v1298 = vpack.c.b16 %v954, %v950
    %v1299 = vpack.c.b16 %v955, %v951
    %v1300 = vpack.c.b16 %v956, %v952
    %v1301 = vpack.c.b16 %v957, %v953
    %v1302 = vpack.c.b16 %v962, %v958
    %v1303 = vpack.c.b16 %v963, %v959
    %v1304 = vpack.c.b16 %v964, %v960
    %v1305 = vpack.c.b16 %v965, %v961
    %v1306 = vpack.c.b16 %v970, %v966
    %v1307 = vpack.c.b16 %v971, %v967
    %v1308 = vpack.c.b16 %v972, %v968
    %v1309 = vpack.c.b16 %v973, %v969
    %v1310 = vpack.c.b16 %v978, %v974
    %v1311 = vpack.c.b16 %v979, %v975
    %v1312 = vpack.c.b16 %v980, %v976
    %v1313 = vpack.c.b16 %v981, %v977
    %v1314 = vpack.c.b16 %v986, %v982
    %v1315 = vpack.c.b16 %v987, %v983
    %v1316 = vpack.c.b16 %v988, %v984
    %v1317 = vpack.c.b16 %v989, %v985
    %v1318 = vpack.c.b16 %v994, %v990
    %v1319 = vpack.c.b16 %v995, %v991
    %v1320 = vpack.c.b16 %v996, %v992
    %v1321 = vpack.c.b16 %v997, %v993
    %v1322 = vpack.c.b16 %v1002, %v998
    %v1323 = vpack.c.b16 %v1003, %v999
    %v1324 = vpack.c.b16 %v1004, %v1000
    %v1325 = vpack.c.b16 %v1005, %v1001
    %v1326 = vpack.c.b16 %v1010, %v1006
    %v1327 = vpack.c.b16 %v1011, %v1007
    %v1328 = vpack.c.b16 %v1012, %v1008
    %v1329 = vpack.c.b16 %v1013, %v1009
    %v1330 = vpack.c.b16 %v1018, %v1014
    %v1331 = vpack.c.b16 %v1019, %v1015
    %v1332 = vpack.c.b16 %v1020, %v1016
    %v1333 = vpack.c.b16 %v1021, %v1017
    %v1334 = vpack.c.b16 %v1026, %v1022
    %v1335 = vpack.c.b16 %v1027, %v1023
    %v1336 = vpack.c.b16 %v1028, %v1024
    %v1337 = vpack.c.b16 %v1029, %v1025
    %v1338 = vpack.c.b16 %v1034, %v1030
    %v1339 = vpack.c.b16 %v1035, %v1031
    %v1340 = vpack.c.b16 %v1036, %v1032
    %v1341 = vpack.c.b16 %v1037, %v1033
    %v1342 = vpack.c.b16 %v1042, %v1038
    %v1343 = vpack.c.b16 %v1043, %v1039
    %v1344 = vpack.c.b16 %v1044, %v1040
    %v1345 = vpack.c.b16 %v1045, %v1041
    %v1346 = vpack.c.b16 %v1050, %v1046
    %v1347 = vpack.c.b16 %v1051, %v1047
    %v1348 = vpack.c.b16 %v1052, %v1048
    %v1349 = vpack.c.b16 %v1053, %v1049
    %v1350 = vpack.c.b16 %v1058, %v1054
    %v1351 = vpack.c.b16 %v1059, %v1055
    %v1352 = vpack.c.b16 %v1060, %v1056
    %v1353 = vpack.c.b16 %v1061, %v1057
    %v1354 = vpack.c.b16 %v1066, %v1062
    %v1355 = vpack.c.b16 %v1067, %v1063
    %v1356 = vpack.c.b16 %v1068, %v1064
    %v1357 = vpack.c.b16 %v1069, %v1065
    %v1358 = vpack.c.b16 %v1074, %v1070
    %v1359 = vpack.c.b16 %v1075, %v1071
    %v1360 = vpack.c.b16 %v1076, %v1072
    %v1361 = vpack.c.b16 %v1077, %v1073
    %v1362 = vpack.c.b16 %v1082, %v1078
    %v1363 = vpack.c.b16 %v1083, %v1079
    %v1364 = vpack.c.b16 %v1084, %v1080
    %v1365 = vpack.c.b16 %v1085, %v1081
    %v1366 = vpack.c.b16 %v1090, %v1086
    %v1367 = vpack.c.b16 %v1091, %v1087
    %v1368 = vpack.c.b16 %v1092, %v1088
    %v1369 = vpack.c.b16 %v1093, %v1089
    %v1370 = vpack.c.b16 %v1098, %v1094
    %v1371 = vpack.c.b16 %v1099, %v1095
    %v1372 = vpack.c.b16 %v1100, %v1096
    %v1373 = vpack.c.b16 %v1101, %v1097
    %v1374 = vpack.c.b16 %v1106, %v1102
    %v1375 = vpack.c.b16 %v1107, %v1103
    %v1376 = vpack.c.b16 %v1108, %v1104
    %v1377 = vpack.c.b16 %v1109, %v1105
    %v1378 = vpack.c.b16 %v1114, %v1110
    %v1379 = vpack.c.b16 %v1115, %v1111
    %v1380 = vpack.c.b16 %v1116, %v1112
    %v1381 = vpack.c.b16 %v1117, %v1113
    %v1382 = vpack.c.b16 %v1122, %v1118
    %v1383 = vpack.c.b16 %v1123, %v1119
    %v1384 = vpack.c.b16 %v1124, %v1120
    %v1385 = vpack.c.b16 %v1125, %v1121
    %v1386 = vpack.c.b16 %v1130, %v1126
    %v1387 = vpack.c.b16 %v1131, %v1127
    %v1388 = vpack.c.b16 %v1132, %v1128
    %v1389 = vpack.c.b16 %v1133, %v1129
    %1646 = vmatprep.subr.bf16.mxu0 %v1135
    %1647 = vmatpush1.bf16.msra.mxu0 %v1134
    %1648 = vmatprep.subr.bf16.mxu0 %v1139
    %1649 = vmatpush1.bf16.msra.mxu0 %v1138
    %1650 = vmatprep.subr.bf16.mxu0 %v1143
    %1651 = vmatpush1.bf16.msra.mxu0 %v1142
    %1652 = vmatprep.subr.bf16.mxu0 %v1147
    %1653 = vmatpush1.bf16.msra.mxu0 %v1146
    %1654 = vmatprep.subr.bf16.mxu0 %v1151
    %1655 = vmatpush1.bf16.msra.mxu0 %v1150
    %1656 = vmatprep.subr.bf16.mxu0 %v1155
    %1657 = vmatpush1.bf16.msra.mxu0 %v1154
    %1658 = vmatprep.subr.bf16.mxu0 %v1159
    %1659 = vmatpush1.bf16.msra.mxu0 %v1158
    %1660 = vmatprep.subr.bf16.mxu0 %v1163
    %1661 = vmatpush1.bf16.msra.mxu0 %v1162
    %1662 = vmatprep.subr.bf16.mxu0 %v1167
    %1663 = vmatpush1.bf16.msra.mxu0 %v1166
    %1664 = vmatprep.subr.bf16.mxu0 %v1171
    %1665 = vmatpush1.bf16.msra.mxu0 %v1170
    %1666 = vmatprep.subr.bf16.mxu0 %v1175
    %1667 = vmatpush1.bf16.msra.mxu0 %v1174
    %1668 = vmatprep.subr.bf16.mxu0 %v1179
    %1669 = vmatpush1.bf16.msra.mxu0 %v1178
    %1670 = vmatprep.subr.bf16.mxu0 %v1183
    %1671 = vmatpush1.bf16.msra.mxu0 %v1182
    %1672 = vmatprep.subr.bf16.mxu0 %v1187
    %1673 = vmatpush1.bf16.msra.mxu0 %v1186
    %1674 = vmatprep.subr.bf16.mxu0 %v1191
    %1675 = vmatpush1.bf16.msra.mxu0 %v1190
    %1676 = vmatprep.subr.bf16.mxu0 %v1195
    %1677 = vmatpush1.bf16.msra.mxu0 %v1194
    %1678 = vmatprep.mubr.bf16.mxu0 %v351
    %1679 = vmatmul.mubr.bf16.gmra.mrb[0].mxu0 %v350
    %v1680 = vpop.f32.mrb[0].mxu0
    %v1681 = vadd.f32 %v309, %v1680
    %v1682 = vpop.f32.mrb[0].mxu0
    %v1683 = vadd.f32 %v313, %v1682
    %v1684 = vpop.f32.mrb[0].mxu0
    %v1685 = vadd.f32 %v309, %v1684
    %v1686 = vpop.f32.mrb[0].mxu0
    %v1687 = vadd.f32 %v313, %v1686
    %1688 = vdwg.mxu0
    %1689 = vmatprep.subr.bf16.mxu0 %v1199
    %1690 = vmatpush1.bf16.msra.mxu0 %v1198
    %1691 = vmatprep.subr.bf16.mxu0 %v1203
    %1692 = vmatpush1.bf16.msra.mxu0 %v1202
    %1693 = vmatprep.subr.bf16.mxu0 %v1207
    %1694 = vmatpush1.bf16.msra.mxu0 %v1206
    %1695 = vmatprep.subr.bf16.mxu0 %v1211
    %1696 = vmatpush1.bf16.msra.mxu0 %v1210
    %1697 = vmatprep.subr.bf16.mxu0 %v1215
    %1698 = vmatpush1.bf16.msra.mxu0 %v1214
    %1699 = vmatprep.subr.bf16.mxu0 %v1219
    %1700 = vmatpush1.bf16.msra.mxu0 %v1218
    %1701 = vmatprep.subr.bf16.mxu0 %v1223
    %1702 = vmatpush1.bf16.msra.mxu0 %v1222
    %1703 = vmatprep.subr.bf16.mxu0 %v1227
    %1704 = vmatpush1.bf16.msra.mxu0 %v1226
    %1705 = vmatprep.subr.bf16.mxu0 %v1231
    %1706 = vmatpush1.bf16.msra.mxu0 %v1230
    %1707 = vmatprep.subr.bf16.mxu0 %v1235
    %1708 = vmatpush1.bf16.msra.mxu0 %v1234
    %1709 = vmatprep.subr.bf16.mxu0 %v1239
    %1710 = vmatpush1.bf16.msra.mxu0 %v1238
    %1711 = vmatprep.subr.bf16.mxu0 %v1243
    %1712 = vmatpush1.bf16.msra.mxu0 %v1242
    %1713 = vmatprep.subr.bf16.mxu0 %v1247
    %1714 = vmatpush1.bf16.msra.mxu0 %v1246
    %1715 = vmatprep.subr.bf16.mxu0 %v1251
    %1716 = vmatpush1.bf16.msra.mxu0 %v1250
    %1717 = vmatprep.subr.bf16.mxu0 %v1255
    %1718 = vmatpush1.bf16.msra.mxu0 %v1254
    %1719 = vmatprep.subr.bf16.mxu0 %v1259
    %1720 = vmatpush1.bf16.msra.mxu0 %v1258
    %1721 = vmatprep.mubr.bf16.mxu0 %v353
    %1722 = vmatmul.mubr.bf16.gmra.mrb[0].mxu0 %v352
    %v1723 = vpop.f32.mrb[0].mxu0
    %v1724 = vadd.f32 %v1681, %v1723
    %v1725 = vpop.f32.mrb[0].mxu0
    %v1726 = vadd.f32 %v1683, %v1725
    %v1727 = vpop.f32.mrb[0].mxu0
    %v1728 = vadd.f32 %v1685, %v1727
    %v1729 = vpop.f32.mrb[0].mxu0
    %v1730 = vadd.f32 %v1687, %v1729
    %1731 = vdwg.mxu0
    %1732 = vmatprep.subr.bf16.mxu0 %v1263
    %1733 = vmatpush1.bf16.msra.mxu0 %v1262
    %1734 = vmatprep.subr.bf16.mxu0 %v1267
    %1735 = vmatpush1.bf16.msra.mxu0 %v1266
    %1736 = vmatprep.subr.bf16.mxu0 %v1271
    %1737 = vmatpush1.bf16.msra.mxu0 %v1270
    %1738 = vmatprep.subr.bf16.mxu0 %v1275
    %1739 = vmatpush1.bf16.msra.mxu0 %v1274
    %1740 = vmatprep.subr.bf16.mxu0 %v1279
    %1741 = vmatpush1.bf16.msra.mxu0 %v1278
    %1742 = vmatprep.subr.bf16.mxu0 %v1283
    %1743 = vmatpush1.bf16.msra.mxu0 %v1282
    %1744 = vmatprep.subr.bf16.mxu0 %v1287
    %1745 = vmatpush1.bf16.msra.mxu0 %v1286
    %1746 = vmatprep.subr.bf16.mxu0 %v1291
    %1747 = vmatpush1.bf16.msra.mxu0 %v1290
    %1748 = vmatprep.subr.bf16.mxu0 %v1295
    %1749 = vmatpush1.bf16.msra.mxu0 %v1294
    %1750 = vmatprep.subr.bf16.mxu0 %v1299
    %1751 = vmatpush1.bf16.msra.mxu0 %v1298
    %1752 = vmatprep.subr.bf16.mxu0 %v1303
    %1753 = vmatpush1.bf16.msra.mxu0 %v1302
    %1754 = vmatprep.subr.bf16.mxu0 %v1307
    %1755 = vmatpush1.bf16.msra.mxu0 %v1306
    %1756 = vmatprep.subr.bf16.mxu0 %v1311
    %1757 = vmatpush1.bf16.msra.mxu0 %v1310
    %1758 = vmatprep.subr.bf16.mxu0 %v1315
    %1759 = vmatpush1.bf16.msra.mxu0 %v1314
    %1760 = vmatprep.subr.bf16.mxu0 %v1319
    %1761 = vmatpush1.bf16.msra.mxu0 %v1318
    %1762 = vmatprep.subr.bf16.mxu0 %v1323
    %1763 = vmatpush1.bf16.msra.mxu0 %v1322
    %1764 = vmatprep.mubr.bf16.mxu0 %v355
    %1765 = vmatmul.mubr.bf16.gmra.mrb[0].mxu0 %v354
    %v1766 = vpop.f32.mrb[0].mxu0
    %v1767 = vadd.f32 %v1724, %v1766
    %v1768 = vpop.f32.mrb[0].mxu0
    %v1769 = vadd.f32 %v1726, %v1768
    %v1770 = vpop.f32.mrb[0].mxu0
    %v1771 = vadd.f32 %v1728, %v1770
    %v1772 = vpop.f32.mrb[0].mxu0
    %v1773 = vadd.f32 %v1730, %v1772
    %1774 = vdwg.mxu0
    %1775 = vmatprep.subr.bf16.mxu0 %v1327
    %1776 = vmatpush1.bf16.msra.mxu0 %v1326
    %1777 = vmatprep.subr.bf16.mxu0 %v1331
    %1778 = vmatpush1.bf16.msra.mxu0 %v1330
    %1779 = vmatprep.subr.bf16.mxu0 %v1335
    %1780 = vmatpush1.bf16.msra.mxu0 %v1334
    %1781 = vmatprep.subr.bf16.mxu0 %v1339
    %1782 = vmatpush1.bf16.msra.mxu0 %v1338
    %1783 = vmatprep.subr.bf16.mxu0 %v1343
    %1784 = vmatpush1.bf16.msra.mxu0 %v1342
    %1785 = vmatprep.subr.bf16.mxu0 %v1347
    %1786 = vmatpush1.bf16.msra.mxu0 %v1346
    %1787 = vmatprep.subr.bf16.mxu0 %v1351
    %1788 = vmatpush1.bf16.msra.mxu0 %v1350
    %1789 = vmatprep.subr.bf16.mxu0 %v1355
    %1790 = vmatpush1.bf16.msra.mxu0 %v1354
    %1791 = vmatprep.subr.bf16.mxu0 %v1359
    %1792 = vmatpush1.bf16.msra.mxu0 %v1358
    %1793 = vmatprep.subr.bf16.mxu0 %v1363
    %1794 = vmatpush1.bf16.msra.mxu0 %v1362
    %1795 = vmatprep.subr.bf16.mxu0 %v1367
    %1796 = vmatpush1.bf16.msra.mxu0 %v1366
    %1797 = vmatprep.subr.bf16.mxu0 %v1371
    %1798 = vmatpush1.bf16.msra.mxu0 %v1370
    %1799 = vmatprep.subr.bf16.mxu0 %v1375
    %1800 = vmatpush1.bf16.msra.mxu0 %v1374
    %1801 = vmatprep.subr.bf16.mxu0 %v1379
    %1802 = vmatpush1.bf16.msra.mxu0 %v1378
    %1803 = vmatprep.subr.bf16.mxu0 %v1383
    %1804 = vmatpush1.bf16.msra.mxu0 %v1382
    %1805 = vmatprep.subr.bf16.mxu0 %v1387
    %1806 = vmatpush1.bf16.msra.mxu0 %v1386
    %1807 = vmatprep.mubr.bf16.mxu0 %v357
    %1808 = vmatmul.mubr.bf16.gmra.mrb[0].mxu0 %v356
    %v1809 = vpop.f32.mrb[0].mxu0
    %v1810 = vadd.f32 %v1767, %v1809
    %v1811 = vpop.f32.mrb[0].mxu0
    %v1812 = vadd.f32 %v1769, %v1811
    %v1813 = vpop.f32.mrb[0].mxu0
    %v1814 = vadd.f32 %v1771, %v1813
    %v1815 = vpop.f32.mrb[0].mxu0
    %v1816 = vadd.f32 %v1773, %v1815
    %1817 = vdwg.mxu0
    %1818 = vmatprep.subr.bf16.mxu0 %v1137
    %1819 = vmatpush1.bf16.msra.mxu0 %v1136
    %1820 = vmatprep.subr.bf16.mxu0 %v1141
    %1821 = vmatpush1.bf16.msra.mxu0 %v1140
    %1822 = vmatprep.subr.bf16.mxu0 %v1145
    %1823 = vmatpush1.bf16.msra.mxu0 %v1144
    %1824 = vmatprep.subr.bf16.mxu0 %v1149
    %1825 = vmatpush1.bf16.msra.mxu0 %v1148
    %1826 = vmatprep.subr.bf16.mxu0 %v1153
    %1827 = vmatpush1.bf16.msra.mxu0 %v1152
    %1828 = vmatprep.subr.bf16.mxu0 %v1157
    %1829 = vmatpush1.bf16.msra.mxu0 %v1156
    %1830 = vmatprep.subr.bf16.mxu0 %v1161
    %1831 = vmatpush1.bf16.msra.mxu0 %v1160
    %1832 = vmatprep.subr.bf16.mxu0 %v1165
    %1833 = vmatpush1.bf16.msra.mxu0 %v1164
    %1834 = vmatprep.subr.bf16.mxu0 %v1169
    %1835 = vmatpush1.bf16.msra.mxu0 %v1168
    %1836 = vmatprep.subr.bf16.mxu0 %v1173
    %1837 = vmatpush1.bf16.msra.mxu0 %v1172
    %1838 = vmatprep.subr.bf16.mxu0 %v1177
    %1839 = vmatpush1.bf16.msra.mxu0 %v1176
    %1840 = vmatprep.subr.bf16.mxu0 %v1181
    %1841 = vmatpush1.bf16.msra.mxu0 %v1180
    %1842 = vmatprep.subr.bf16.mxu0 %v1185
    %1843 = vmatpush1.bf16.msra.mxu0 %v1184
    %1844 = vmatprep.subr.bf16.mxu0 %v1189
    %1845 = vmatpush1.bf16.msra.mxu0 %v1188
    %1846 = vmatprep.subr.bf16.mxu0 %v1193
    %1847 = vmatpush1.bf16.msra.mxu0 %v1192
    %1848 = vmatprep.subr.bf16.mxu0 %v1197
    %1849 = vmatpush1.bf16.msra.mxu0 %v1196
    %1850 = vmatprep.mubr.bf16.mxu0 %v351
    %1851 = vmatmul.mubr.bf16.gmra.mrb[0].mxu0 %v350
    %v1852 = vpop.f32.mrb[0].mxu0
    %v1853 = vadd.f32 %v317, %v1852
    %v1854 = vpop.f32.mrb[0].mxu0
    %v1855 = vadd.f32 %v321, %v1854
    %v1856 = vpop.f32.mrb[0].mxu0
    %v1857 = vadd.f32 %v317, %v1856
    %v1858 = vpop.f32.mrb[0].mxu0
    %v1859 = vadd.f32 %v321, %v1858
    %1860 = vdwg.mxu0
    %1861 = vmatprep.subr.bf16.mxu0 %v1201
    %1862 = vmatpush1.bf16.msra.mxu0 %v1200
    %1863 = vmatprep.subr.bf16.mxu0 %v1205
    %1864 = vmatpush1.bf16.msra.mxu0 %v1204
    %1865 = vmatprep.subr.bf16.mxu0 %v1209
    %1866 = vmatpush1.bf16.msra.mxu0 %v1208
    %1867 = vmatprep.subr.bf16.mxu0 %v1213
    %1868 = vmatpush1.bf16.msra.mxu0 %v1212
    %1869 = vmatprep.subr.bf16.mxu0 %v1217
    %1870 = vmatpush1.bf16.msra.mxu0 %v1216
    %1871 = vmatprep.subr.bf16.mxu0 %v1221
    %1872 = vmatpush1.bf16.msra.mxu0 %v1220
    %1873 = vmatprep.subr.bf16.mxu0 %v1225
    %1874 = vmatpush1.bf16.msra.mxu0 %v1224
    %1875 = vmatprep.subr.bf16.mxu0 %v1229
    %1876 = vmatpush1.bf16.msra.mxu0 %v1228
    %1877 = vmatprep.subr.bf16.mxu0 %v1233
    %1878 = vmatpush1.bf16.msra.mxu0 %v1232
    %1879 = vmatprep.subr.bf16.mxu0 %v1237
    %1880 = vmatpush1.bf16.msra.mxu0 %v1236
    %1881 = vmatprep.subr.bf16.mxu0 %v1241
    %1882 = vmatpush1.bf16.msra.mxu0 %v1240
    %1883 = vmatprep.subr.bf16.mxu0 %v1245
    %1884 = vmatpush1.bf16.msra.mxu0 %v1244
    %1885 = vmatprep.subr.bf16.mxu0 %v1249
    %1886 = vmatpush1.bf16.msra.mxu0 %v1248
    %1887 = vmatprep.subr.bf16.mxu0 %v1253
    %1888 = vmatpush1.bf16.msra.mxu0 %v1252
    %1889 = vmatprep.subr.bf16.mxu0 %v1257
    %1890 = vmatpush1.bf16.msra.mxu0 %v1256
    %1891 = vmatprep.subr.bf16.mxu0 %v1261
    %1892 = vmatpush1.bf16.msra.mxu0 %v1260
    %1893 = vmatprep.mubr.bf16.mxu0 %v353
    %1894 = vmatmul.mubr.bf16.gmra.mrb[0].mxu0 %v352
    %v1895 = vpop.f32.mrb[0].mxu0
    %v1896 = vadd.f32 %v1853, %v1895
    %v1897 = vpop.f32.mrb[0].mxu0
    %v1898 = vadd.f32 %v1855, %v1897
    %v1899 = vpop.f32.mrb[0].mxu0
    %v1900 = vadd.f32 %v1857, %v1899
    %v1901 = vpop.f32.mrb[0].mxu0
    %v1902 = vadd.f32 %v1859, %v1901
    %1903 = vdwg.mxu0
    %1904 = vmatprep.subr.bf16.mxu0 %v1265
    %1905 = vmatpush1.bf16.msra.mxu0 %v1264
    %1906 = vmatprep.subr.bf16.mxu0 %v1269
    %1907 = vmatpush1.bf16.msra.mxu0 %v1268
    %1908 = vmatprep.subr.bf16.mxu0 %v1273
    %1909 = vmatpush1.bf16.msra.mxu0 %v1272
    %1910 = vmatprep.subr.bf16.mxu0 %v1277
    %1911 = vmatpush1.bf16.msra.mxu0 %v1276
    %1912 = vmatprep.subr.bf16.mxu0 %v1281
    %1913 = vmatpush1.bf16.msra.mxu0 %v1280
    %1914 = vmatprep.subr.bf16.mxu0 %v1285
    %1915 = vmatpush1.bf16.msra.mxu0 %v1284
    %1916 = vmatprep.subr.bf16.mxu0 %v1289
    %1917 = vmatpush1.bf16.msra.mxu0 %v1288
    %1918 = vmatprep.subr.bf16.mxu0 %v1293
    %1919 = vmatpush1.bf16.msra.mxu0 %v1292
    %1920 = vmatprep.subr.bf16.mxu0 %v1297
    %1921 = vmatpush1.bf16.msra.mxu0 %v1296
    %1922 = vmatprep.subr.bf16.mxu0 %v1301
    %1923 = vmatpush1.bf16.msra.mxu0 %v1300
    %1924 = vmatprep.subr.bf16.mxu0 %v1305
    %1925 = vmatpush1.bf16.msra.mxu0 %v1304
    %1926 = vmatprep.subr.bf16.mxu0 %v1309
    %1927 = vmatpush1.bf16.msra.mxu0 %v1308
    %1928 = vmatprep.subr.bf16.mxu0 %v1313
    %1929 = vmatpush1.bf16.msra.mxu0 %v1312
    %1930 = vmatprep.subr.bf16.mxu0 %v1317
    %1931 = vmatpush1.bf16.msra.mxu0 %v1316
    %1932 = vmatprep.subr.bf16.mxu0 %v1321
    %1933 = vmatpush1.bf16.msra.mxu0 %v1320
    %1934 = vmatprep.subr.bf16.mxu0 %v1325
    %1935 = vmatpush1.bf16.msra.mxu0 %v1324
    %1936 = vmatprep.mubr.bf16.mxu0 %v355
    %1937 = vmatmul.mubr.bf16.gmra.mrb[0].mxu0 %v354
    %v1938 = vpop.f32.mrb[0].mxu0
    %v1939 = vadd.f32 %v1896, %v1938
    %v1940 = vpop.f32.mrb[0].mxu0
    %v1941 = vadd.f32 %v1898, %v1940
    %v1942 = vpop.f32.mrb[0].mxu0
    %v1943 = vadd.f32 %v1900, %v1942
    %v1944 = vpop.f32.mrb[0].mxu0
    %v1945 = vadd.f32 %v1902, %v1944
    %1946 = vdwg.mxu0
    %1947 = vmatprep.subr.bf16.mxu0 %v1329
    %1948 = vmatpush1.bf16.msra.mxu0 %v1328
    %1949 = vmatprep.subr.bf16.mxu0 %v1333
    %1950 = vmatpush1.bf16.msra.mxu0 %v1332
    %1951 = vmatprep.subr.bf16.mxu0 %v1337
    %1952 = vmatpush1.bf16.msra.mxu0 %v1336
    %1953 = vmatprep.subr.bf16.mxu0 %v1341
    %1954 = vmatpush1.bf16.msra.mxu0 %v1340
    %1955 = vmatprep.subr.bf16.mxu0 %v1345
    %1956 = vmatpush1.bf16.msra.mxu0 %v1344
    %1957 = vmatprep.subr.bf16.mxu0 %v1349
    %1958 = vmatpush1.bf16.msra.mxu0 %v1348
    %1959 = vmatprep.subr.bf16.mxu0 %v1353
    %1960 = vmatpush1.bf16.msra.mxu0 %v1352
    %1961 = vmatprep.subr.bf16.mxu0 %v1357
    %1962 = vmatpush1.bf16.msra.mxu0 %v1356
    %1963 = vmatprep.subr.bf16.mxu0 %v1361
    %1964 = vmatpush1.bf16.msra.mxu0 %v1360
    %1965 = vmatprep.subr.bf16.mxu0 %v1365
    %1966 = vmatpush1.bf16.msra.mxu0 %v1364
    %1967 = vmatprep.subr.bf16.mxu0 %v1369
    %1968 = vmatpush1.bf16.msra.mxu0 %v1368
    %1969 = vmatprep.subr.bf16.mxu0 %v1373
    %1970 = vmatpush1.bf16.msra.mxu0 %v1372
    %1971 = vmatprep.subr.bf16.mxu0 %v1377
    %1972 = vmatpush1.bf16.msra.mxu0 %v1376
    %1973 = vmatprep.subr.bf16.mxu0 %v1381
    %1974 = vmatpush1.bf16.msra.mxu0 %v1380
    %1975 = vmatprep.subr.bf16.mxu0 %v1385
    %1976 = vmatpush1.bf16.msra.mxu0 %v1384
    %1977 = vmatprep.subr.bf16.mxu0 %v1389
    %1978 = vmatpush1.bf16.msra.mxu0 %v1388
    %1979 = vmatprep.mubr.bf16.mxu0 %v357
    %1980 = vmatmul.mubr.bf16.gmra.mrb[0].mxu0 %v356
    %v1981 = vpop.f32.mrb[0].mxu0
    %v1982 = vadd.f32 %v1939, %v1981
    %v1983 = vpop.f32.mrb[0].mxu0
    %v1984 = vadd.f32 %v1941, %v1983
    %v1985 = vpop.f32.mrb[0].mxu0
    %v1986 = vadd.f32 %v1943, %v1985
    %v1987 = vpop.f32.mrb[0].mxu0
    %v1988 = vadd.f32 %v1945, %v1987
    %1989 = vdwg.mxu0
    %v1990 = vmax.f32 %v1810, 0.0
    %v1991 = vmax.f32 %v1812, 0.0
    %v1992 = vmax.f32 %v1982, 0.0
    %v1993 = vmax.f32 %v1984, 0.0
    %v1994 = vmax.f32 %v1814, 0.0
    %v1995 = vmax.f32 %v1816, 0.0
    %v1996 = vmax.f32 %v1986, 0.0
    %v1997 = vmax.f32 %v1988, 0.0
    %v1998 = vpack.c.bf16 %v1994, %v1990
    %v1999 = vpack.c.bf16 %v1995, %v1991
    %v2000 = vpack.c.bf16 %v1996, %v1992
    %v2001 = vpack.c.bf16 %v1997, %v1993
    %v2002 = vld [vmem:[%s3] sm:$0xf]
    %v2003 = vld [vmem:[%s3 + $0x4] sm:$0xf]
    %v2004 = vld [vmem:[%s3 + $0x8] sm:$0xf]
    %v2005 = vld [vmem:[%s3 + $0xc] sm:$0xf]
    %v2006 = vld [vmem:[%s3 + $0x10] sm:$0xf]
    %v2007 = vld [vmem:[%s3 + $0x14] sm:$0xf]
    %v2008 = vld [vmem:[%s3 + $0x18] sm:$0xf]
    %v2009 = vld [vmem:[%s3 + $0x1c] sm:$0xf]
    %v2010 = vld [vmem:[%s3 + $0x20] sm:$0xf]
    %v2011 = vld [vmem:[%s3 + $0x24] sm:$0xf]
    %v2012 = vld [vmem:[%s3 + $0x28] sm:$0xf]
    %v2013 = vld [vmem:[%s3 + $0x2c] sm:$0xf]
    %v2014 = vld [vmem:[%s3 + $0x30] sm:$0xf]
    %v2015 = vld [vmem:[%s3 + $0x34] sm:$0xf]
    %v2016 = vld [vmem:[%s3 + $0x38] sm:$0xf]
    %v2017 = vld [vmem:[%s3 + $0x3c] sm:$0xf]
    %v2018 = vld [vmem:[%s3 + $0x40] sm:$0xf]
    %v2019 = vld [vmem:[%s3 + $0x44] sm:$0xf]
    %v2020 = vld [vmem:[%s3 + $0x48] sm:$0xf]
    %v2021 = vld [vmem:[%s3 + $0x4c] sm:$0xf]
    %v2022 = vld [vmem:[%s3 + $0x50] sm:$0xf]
    %v2023 = vld [vmem:[%s3 + $0x54] sm:$0xf]
    %v2024 = vld [vmem:[%s3 + $0x58] sm:$0xf]
    %v2025 = vld [vmem:[%s3 + $0x5c] sm:$0xf]
    %v2026 = vld [vmem:[%s3 + $0x60] sm:$0xf]
    %v2027 = vld [vmem:[%s3 + $0x64] sm:$0xf]
    %v2028 = vld [vmem:[%s3 + $0x68] sm:$0xf]
    %v2029 = vld [vmem:[%s3 + $0x6c] sm:$0xf]
    %v2030 = vld [vmem:[%s3 + $0x70] sm:$0xf]
    %v2031 = vld [vmem:[%s3 + $0x74] sm:$0xf]
    %v2032 = vld [vmem:[%s3 + $0x78] sm:$0xf]
    %v2033 = vld [vmem:[%s3 + $0x7c] sm:$0xf]
    %v2034 = vld [vmem:[%s3 + $0x80] sm:$0xf]
    %v2035 = vld [vmem:[%s3 + $0x84] sm:$0xf]
    %v2036 = vld [vmem:[%s3 + $0x88] sm:$0xf]
    %v2037 = vld [vmem:[%s3 + $0x8c] sm:$0xf]
    %v2038 = vld [vmem:[%s3 + $0x90] sm:$0xf]
    %v2039 = vld [vmem:[%s3 + $0x94] sm:$0xf]
    %v2040 = vld [vmem:[%s3 + $0x98] sm:$0xf]
    %v2041 = vld [vmem:[%s3 + $0x9c] sm:$0xf]
    %v2042 = vld [vmem:[%s3 + $0xa0] sm:$0xf]
    %v2043 = vld [vmem:[%s3 + $0xa4] sm:$0xf]
    %v2044 = vld [vmem:[%s3 + $0xa8] sm:$0xf]
    %v2045 = vld [vmem:[%s3 + $0xac] sm:$0xf]
    %v2046 = vld [vmem:[%s3 + $0xb0] sm:$0xf]
    %v2047 = vld [vmem:[%s3 + $0xb4] sm:$0xf]
    %v2048 = vld [vmem:[%s3 + $0xb8] sm:$0xf]
    %v2049 = vld [vmem:[%s3 + $0xbc] sm:$0xf]
    %v2050 = vld [vmem:[%s3 + $0xc0] sm:$0xf]
    %v2051 = vld [vmem:[%s3 + $0xc4] sm:$0xf]
    %v2052 = vld [vmem:[%s3 + $0xc8] sm:$0xf]
    %v2053 = vld [vmem:[%s3 + $0xcc] sm:$0xf]
    %v2054 = vld [vmem:[%s3 + $0xd0] sm:$0xf]
    %v2055 = vld [vmem:[%s3 + $0xd4] sm:$0xf]
    %v2056 = vld [vmem:[%s3 + $0xd8] sm:$0xf]
    %v2057 = vld [vmem:[%s3 + $0xdc] sm:$0xf]
    %v2058 = vld [vmem:[%s3 + $0xe0] sm:$0xf]
    %v2059 = vld [vmem:[%s3 + $0xe4] sm:$0xf]
    %v2060 = vld [vmem:[%s3 + $0xe8] sm:$0xf]
    %v2061 = vld [vmem:[%s3 + $0xec] sm:$0xf]
    %v2062 = vld [vmem:[%s3 + $0xf0] sm:$0xf]
    %v2063 = vld [vmem:[%s3 + $0xf4] sm:$0xf]
    %v2064 = vld [vmem:[%s3 + $0xf8] sm:$0x3]
    %v2065 = vld [vmem:[%s4] sm:$0x1]
    %v2067 = vlaneseq
    %v2068 = vshrl.u32 %v2067, 7
    %v2069 = vsub.s32 0, %v2068
    %v2070 = vrot.slane %v2065, %v2069
    %v2135 = vunpack.c.l.b16 %v2002
    %v2136 = vunpack.c.l.b16 %v2003
    %v2137 = vunpack.c.l.b16 %v2004
    %v2138 = vunpack.c.l.b16 %v2005
    %v2139 = vunpack.c.l.b16 %v2006
    %v2140 = vunpack.c.l.b16 %v2007
    %v2141 = vunpack.c.l.b16 %v2008
    %v2142 = vunpack.c.l.b16 %v2009
    %v2143 = vunpack.c.l.b16 %v2010
    %v2144 = vunpack.c.l.b16 %v2011
    %v2145 = vunpack.c.l.b16 %v2012
    %v2146 = vunpack.c.l.b16 %v2013
    %v2147 = vunpack.c.l.b16 %v2014
    %v2148 = vunpack.c.l.b16 %v2015
    %v2149 = vunpack.c.l.b16 %v2016
    %v2150 = vunpack.c.l.b16 %v2017
    %v2151 = vunpack.c.l.b16 %v2018
    %v2152 = vunpack.c.l.b16 %v2019
    %v2153 = vunpack.c.l.b16 %v2020
    %v2154 = vunpack.c.l.b16 %v2021
    %v2155 = vunpack.c.l.b16 %v2022
    %v2156 = vunpack.c.l.b16 %v2023
    %v2157 = vunpack.c.l.b16 %v2024
    %v2158 = vunpack.c.l.b16 %v2025
    %v2159 = vunpack.c.l.b16 %v2026
    %v2160 = vunpack.c.l.b16 %v2027
    %v2161 = vunpack.c.l.b16 %v2028
    %v2162 = vunpack.c.l.b16 %v2029
    %v2163 = vunpack.c.l.b16 %v2030
    %v2164 = vunpack.c.l.b16 %v2031
    %v2165 = vunpack.c.l.b16 %v2032
    %v2166 = vunpack.c.l.b16 %v2033
    %v2167 = vunpack.c.l.b16 %v2034
    %v2168 = vunpack.c.l.b16 %v2035
    %v2169 = vunpack.c.l.b16 %v2036
    %v2170 = vunpack.c.l.b16 %v2037
    %v2171 = vunpack.c.l.b16 %v2038
    %v2172 = vunpack.c.l.b16 %v2039
    %v2173 = vunpack.c.l.b16 %v2040
    %v2174 = vunpack.c.l.b16 %v2041
    %v2175 = vunpack.c.l.b16 %v2042
    %v2176 = vunpack.c.l.b16 %v2043
    %v2177 = vunpack.c.l.b16 %v2044
    %v2178 = vunpack.c.l.b16 %v2045
    %v2179 = vunpack.c.l.b16 %v2046
    %v2180 = vunpack.c.l.b16 %v2047
    %v2181 = vunpack.c.l.b16 %v2048
    %v2182 = vunpack.c.l.b16 %v2049
    %v2183 = vunpack.c.l.b16 %v2050
    %v2184 = vunpack.c.l.b16 %v2051
    %v2185 = vunpack.c.l.b16 %v2052
    %v2186 = vunpack.c.l.b16 %v2053
    %v2187 = vunpack.c.l.b16 %v2054
    %v2188 = vunpack.c.l.b16 %v2055
    %v2189 = vunpack.c.l.b16 %v2056
    %v2190 = vunpack.c.l.b16 %v2057
    %v2191 = vunpack.c.l.b16 %v2058
    %v2192 = vunpack.c.l.b16 %v2059
    %v2193 = vunpack.c.l.b16 %v2060
    %v2194 = vunpack.c.l.b16 %v2061
    %v2195 = vunpack.c.l.b16 %v2062
    %v2196 = vunpack.c.l.b16 %v2063
    %v2197 = vunpack.c.l.b16 %v2064
    %v2198 = vpack.c.b16 %v2136, %v2135
    %v2199 = vpack.c.b16 %v2138, %v2137
    %v2200 = vpack.c.b16 %v2140, %v2139
    %v2201 = vpack.c.b16 %v2142, %v2141
    %v2202 = vpack.c.b16 %v2144, %v2143
    %v2203 = vpack.c.b16 %v2146, %v2145
    %v2204 = vpack.c.b16 %v2148, %v2147
    %v2205 = vpack.c.b16 %v2150, %v2149
    %v2206 = vpack.c.b16 %v2152, %v2151
    %v2207 = vpack.c.b16 %v2154, %v2153
    %v2208 = vpack.c.b16 %v2156, %v2155
    %v2209 = vpack.c.b16 %v2158, %v2157
    %v2210 = vpack.c.b16 %v2160, %v2159
    %v2211 = vpack.c.b16 %v2162, %v2161
    %v2212 = vpack.c.b16 %v2164, %v2163
    %v2213 = vpack.c.b16 %v2166, %v2165
    %v2214 = vpack.c.b16 %v2168, %v2167
    %v2215 = vpack.c.b16 %v2170, %v2169
    %v2216 = vpack.c.b16 %v2172, %v2171
    %v2217 = vpack.c.b16 %v2174, %v2173
    %v2218 = vpack.c.b16 %v2176, %v2175
    %v2219 = vpack.c.b16 %v2178, %v2177
    %v2220 = vpack.c.b16 %v2180, %v2179
    %v2221 = vpack.c.b16 %v2182, %v2181
    %v2222 = vpack.c.b16 %v2184, %v2183
    %v2223 = vpack.c.b16 %v2186, %v2185
    %v2224 = vpack.c.b16 %v2188, %v2187
    %v2225 = vpack.c.b16 %v2190, %v2189
    %v2226 = vpack.c.b16 %v2192, %v2191
    %v2227 = vpack.c.b16 %v2194, %v2193
    %v2228 = vpack.c.b16 %v2196, %v2195
    %v2229 = vpack.c.b16 %v2197, %v2197
    %vm2261 = vcmask 949248
    %v2263 = vsel %vm2261, %v2001, 0
    %vm2265 = vcmask 1041408
    %v2267 = vsel %vm2265, %v2229, 0
    %2269 = vmatprep.subr.bf16.mxu0 0
    %2270 = vmatpush1.bf16.msra.mxu0 %v2198
    %2271 = vmatprep.subr.bf16.mxu0 0
    %2272 = vmatpush1.bf16.msra.mxu0 %v2199
    %2273 = vmatprep.subr.bf16.mxu0 0
    %2274 = vmatpush1.bf16.msra.mxu0 %v2200
    %2275 = vmatprep.subr.bf16.mxu0 0
    %2276 = vmatpush1.bf16.msra.mxu0 %v2201
    %2277 = vmatprep.subr.bf16.mxu0 0
    %2278 = vmatpush1.bf16.msra.mxu0 %v2202
    %2279 = vmatprep.subr.bf16.mxu0 0
    %2280 = vmatpush1.bf16.msra.mxu0 %v2203
    %2281 = vmatprep.subr.bf16.mxu0 0
    %2282 = vmatpush1.bf16.msra.mxu0 %v2204
    %2283 = vmatprep.subr.bf16.mxu0 0
    %2284 = vmatpush1.bf16.msra.mxu0 %v2205
    %2285 = vmatprep.subr.bf16.mxu0 0
    %2286 = vmatpush1.bf16.msra.mxu0 %v2206
    %2287 = vmatprep.subr.bf16.mxu0 0
    %2288 = vmatpush1.bf16.msra.mxu0 %v2207
    %2289 = vmatprep.subr.bf16.mxu0 0
    %2290 = vmatpush1.bf16.msra.mxu0 %v2208
    %2291 = vmatprep.subr.bf16.mxu0 0
    %2292 = vmatpush1.bf16.msra.mxu0 %v2209
    %2293 = vmatprep.subr.bf16.mxu0 0
    %2294 = vmatpush1.bf16.msra.mxu0 %v2210
    %2295 = vmatprep.subr.bf16.mxu0 0
    %2296 = vmatpush1.bf16.msra.mxu0 %v2211
    %2297 = vmatprep.subr.bf16.mxu0 0
    %2298 = vmatpush1.bf16.msra.mxu0 %v2212
    %2299 = vmatprep.subr.bf16.mxu0 0
    %2300 = vmatpush1.bf16.msra.mxu0 %v2213
    %2301 = vmatprep.mubr.bf16.mxu0 %v1999
    %2302 = vmatmul.mubr.bf16.gmra.mrb[0].mxu0 %v1998
    %v2303 = vpop.f32.mrb[0].mxu0
    %v2304 = vadd.f32 %v2070, %v2303
    %v2305 = vpop.f32.mrb[0].mxu0
    %v2306 = vpop.f32.mrb[0].mxu0
    %v2307 = vadd.f32 %v2070, %v2306
    %v2308 = vpop.f32.mrb[0].mxu0
    %2309 = vdwg.mxu0
    %2310 = vmatprep.subr.bf16.mxu0 0
    %2311 = vmatpush1.bf16.msra.mxu0 %v2214
    %2312 = vmatprep.subr.bf16.mxu0 0
    %2313 = vmatpush1.bf16.msra.mxu0 %v2215
    %2314 = vmatprep.subr.bf16.mxu0 0
    %2315 = vmatpush1.bf16.msra.mxu0 %v2216
    %2316 = vmatprep.subr.bf16.mxu0 0
    %2317 = vmatpush1.bf16.msra.mxu0 %v2217
    %2318 = vmatprep.subr.bf16.mxu0 0
    %2319 = vmatpush1.bf16.msra.mxu0 %v2218
    %2320 = vmatprep.subr.bf16.mxu0 0
    %2321 = vmatpush1.bf16.msra.mxu0 %v2219
    %2322 = vmatprep.subr.bf16.mxu0 0
    %2323 = vmatpush1.bf16.msra.mxu0 %v2220
    %2324 = vmatprep.subr.bf16.mxu0 0
    %2325 = vmatpush1.bf16.msra.mxu0 %v2221
    %2326 = vmatprep.subr.bf16.mxu0 0
    %2327 = vmatpush1.bf16.msra.mxu0 %v2222
    %2328 = vmatprep.subr.bf16.mxu0 0
    %2329 = vmatpush1.bf16.msra.mxu0 %v2223
    %2330 = vmatprep.subr.bf16.mxu0 0
    %2331 = vmatpush1.bf16.msra.mxu0 %v2224
    %2332 = vmatprep.subr.bf16.mxu0 0
    %2333 = vmatpush1.bf16.msra.mxu0 %v2225
    %2334 = vmatprep.subr.bf16.mxu0 0
    %2335 = vmatpush1.bf16.msra.mxu0 %v2226
    %2336 = vmatprep.subr.bf16.mxu0 0
    %2337 = vmatpush1.bf16.msra.mxu0 %v2227
    %2338 = vmatprep.subr.bf16.mxu0 0
    %2339 = vmatpush1.bf16.msra.mxu0 %v2228
    %2340 = vmatprep.subr.bf16.mxu0 0
    %2341 = vmatpush1.bf16.msra.mxu0 %v2267
    %2342 = vmatprep.mubr.bf16.mxu0 %v2263
    %2343 = vmatmul.mubr.bf16.gmra.mrb[0].mxu0 %v2000
    %v2344 = vpop.f32.mrb[0].mxu0
    %v2345 = vadd.f32 %v2304, %v2344
    %v2346 = vpop.f32.mrb[0].mxu0
    %v2347 = vpop.f32.mrb[0].mxu0
    %v2348 = vadd.f32 %v2307, %v2347
    %v2349 = vpop.f32.mrb[0].mxu0
    %2350 = vdwg.mxu0
    %v2351 = vtanh.pop %v2345
    %v2352 = vtanh.pop %v2348
    %v2353 = vld [vmem:[%s5] sm:$0x1]
    %v2355 = vlaneseq
    %v2356 = vshrl.u32 %v2355, 7
    %v2357 = vsub.s32 0, %v2356
    %v2358 = vrot.slane %v2353, %v2357
    %v2360 = vmul.f32 %v2351, %v2358
    %v2361 = vmul.f32 %v2352, %v2358
    %2362 = vadd.xlane.f32.xlu0 %v2360
    %v2363 = vpop.xlane.xlu0 %2362
    %2364 = vadd.xlane.f32.xlu0 %v2361
    %v2365 = vpop.xlane.xlu0 %2364
    %v2366 = vld [vmem:[#allocation2] sm:$0x1]
    %v2368 = vlaneseq
    %v2369 = vshrl.u32 %v2368, 7
    %v2370 = vsub.s32 0, %v2369
    %v2371 = vrot.slane %v2366, %v2370
    %v2373 = vadd.f32 %v2363, %v2371
    %v2374 = vadd.f32 %v2365, %v2371
    %vm2375 = vcmask 7168
    %v2376 = vsel %vm2375, %v2373, -inf
    %v2377 = vsel %vm2375, %v2374, -inf
    %v2378 = vmax.f32 %v2376, %v2377
    %v2379 = vrot.slane %v2378, 4
    %v2380 = vmax.f32 %v2378, %v2379
    %v2381 = vrot.slane %v2380, 2
    %v2382 = vmax.f32 %v2380, %v2381
    %v2383 = vrot.slane %v2382, 1
    %v2384 = vmax.f32 %v2382, %v2383
    %v2385 = vsub.f32 %v2373, %v2384
    %v2386 = vsub.f32 %v2374, %v2384
    %v2387 = vmul.f32 %v2385, 1.442695
    %v2388 = vpow.pop %v2387
    %v2389 = vmul.f32 %v2386, 1.442695
    %v2390 = vpow.pop %v2389
    %v2391 = vsel %vm2375, %v2388, 0.0
    %v2392 = vsel %vm2375, %v2390, 0.0
    %v2393 = vadd.f32 %v2391, %v2392
    %v2394 = vrot.slane %v2393, 4
    %v2395 = vadd.f32 %v2393, %v2394
    %v2396 = vrot.slane %v2395, 2
    %v2397 = vadd.f32 %v2395, %v2396
    %v2398 = vrot.slane %v2397, 1
    %v2399 = vadd.f32 %v2397, %v2398
    %v2400 = vrcp.pop %v2399
    %v2401 = vmul.f32 %v2388, %v2400
    %v2402 = vmul.f32 %v2390, %v2400
    %2404 = vset.pattern.permute.xlu0 0
    %2405 = vperm.xlu0 %2404, %v2401
    %v2406 = vpop.permute.xlu0 %2405
    %2409 = vset.pattern.permute.xlu0 0
    %2410 = vperm.xlu0 %2409, %v2402
    %v2411 = vpop.permute.xlu0 %2410
    %v2413 = vmul.f32 %v2406, %v1990
    %v2414 = vmul.f32 %v2406, %v1991
    %v2415 = vmul.f32 %v2406, %v1992
    %v2416 = vmul.f32 %v2406, %v1993
    %v2417 = vmul.f32 %v2411, %v1994
    %v2418 = vmul.f32 %v2411, %v1995
    %v2419 = vmul.f32 %v2411, %v1996
    %v2420 = vmul.f32 %v2411, %v1997
    %v2421 = vadd.f32 %v2413, %v2417
    %v2422 = vrot.slane %v2421, 4
    %v2423 = vadd.f32 %v2421, %v2422
    %v2424 = vrot.slane %v2423, 2
    %v2425 = vadd.f32 %v2423, %v2424
    %v2426 = vrot.slane %v2425, 1
    %v2427 = vadd.f32 %v2425, %v2426
    %v2428 = vadd.f32 %v2414, %v2418
    %v2429 = vrot.slane %v2428, 4
    %v2430 = vadd.f32 %v2428, %v2429
    %v2431 = vrot.slane %v2430, 2
    %v2432 = vadd.f32 %v2430, %v2431
    %v2433 = vrot.slane %v2432, 1
    %v2434 = vadd.f32 %v2432, %v2433
    %v2435 = vadd.f32 %v2415, %v2419
    %v2436 = vrot.slane %v2435, 4
    %v2437 = vadd.f32 %v2435, %v2436
    %v2438 = vrot.slane %v2437, 2
    %v2439 = vadd.f32 %v2437, %v2438
    %v2440 = vrot.slane %v2439, 1
    %v2441 = vadd.f32 %v2439, %v2440
    %v2442 = vsel %vm2261, %v2416, 0.0
    %v2443 = vsel %vm2261, %v2420, 0.0
    %v2444 = vadd.f32 %v2442, %v2443
    %v2445 = vrot.slane %v2444, 4
    %v2446 = vadd.f32 %v2444, %v2445
    %v2447 = vrot.slane %v2446, 2
    %v2448 = vadd.f32 %v2446, %v2447
    %v2449 = vrot.slane %v2448, 1
    %v2450 = vadd.f32 %v2448, %v2449
    %v2451 = vld [vmem:[%s7] sm:$0xf]
    %v2453 = vlaneseq
    %v2454 = vshrl.u32 %v2453, 7
    %v2455 = vsub.s32 0, %v2454
    %v2456 = vrot.slane %v2451, %v2455
    %v2457 = vlaneseq
    %v2458 = vshrl.u32 %v2457, 7
    %v2459 = vsub.s32 1, %v2458
    %v2460 = vrot.slane %v2451, %v2459
    %v2461 = vlaneseq
    %v2462 = vshrl.u32 %v2461, 7
    %v2463 = vsub.s32 2, %v2462
    %v2464 = vrot.slane %v2451, %v2463
    %v2465 = vlaneseq
    %v2466 = vshrl.u32 %v2465, 7
    %v2467 = vsub.s32 3, %v2466
    %v2468 = vrot.slane %v2451, %v2467
    %v2473 = vmul.f32 %v2427, %v2456
    %v2474 = vmul.f32 %v2434, %v2460
    %v2475 = vmul.f32 %v2441, %v2464
    %v2476 = vmul.f32 %v2450, %v2468
    %vm2477 = vcmask 1040384
    %v2478 = vsel %vm2477, %v2473, 0.0
    %v2479 = vsel %vm2477, %v2474, 0.0
    %v2480 = vadd.f32 %v2478, %v2479
    %v2481 = vsel %vm2477, %v2475, 0.0
    %v2482 = vadd.f32 %v2480, %v2481
    %vm2483 = vcmask 942080
    %v2484 = vsel %vm2483, %v2476, 0.0
    %v2485 = vadd.f32 %v2482, %v2484
    %2486 = vadd.xlane.f32.xlu0 %v2485
    %v2487 = vpop.xlane.xlu0 %2486
    %v2488 = vld [vmem:[#allocation3] sm:$0x1]
    %v2489 = vadd.f32 %v2487, %v2488
    %v2490 = vsub.f32 0.0, %v2489
    %v2491 = vmul.f32 %v2490, 1.442695
    %v2492 = vpow.pop %v2491
    %v2493 = vadd.f32 %v2492, 1.0
    %v2494 = vrcp.pop %v2493
    %v2495 = vmul.f32 1.0, %v2494
    %vm2496 = vcmask 0
    %2497 = vst.msk [vmem:[#allocation4] sm:$0x1] %vm2496, %v2495
    %2498 = vst.msk [vmem:[%s10] sm:$0xff] %vm2375, %v2401
    %2499 = vst.msk [vmem:[%s10 + $0x8] sm:$0xff] %vm2375, %v2402
    // Predicated region
    $region38: #{attention_forward.3} parent=1 // pred_check
      _
    $region39: #{attention_forward.3} parent=1 // pred_check_branch
      %2501 = sbr.rel (0) target = $region41
    $region40: #{attention_forward.3} parent=1 // pred_region
      %s2503 = ssub.s32 16, 16
      %2504 = vsyncadd [#allocation5], %s2503
      %s2506 = sshll.u32 [#allocation4], 4
      %s2507 = int_to_ptr.vmem [resolvable:$true] %s2506
      %2509 = dma.vmem_to_hbm [thread:$0]  %s2507, 16, %s9, [#allocation5]
    $region41: #{attention_forward.3} parent=1 // pred_fallthru
      _
    // Predicated region
    $region42: #{attention_forward.3} parent=1 // pred_check
      _
    $region43: #{attention_forward.3} parent=1 // pred_check_branch
      %2511 = sbr.rel (0) target = $region45
    $region44: #{attention_forward.3} parent=1 // pred_region
      _
    $region45: #{attention_forward.3} parent=1 // pred_fallthru
      _
    // Predicated region
    $region46: #{attention_forward.3} parent=1 // pred_check
      _
    $region47: #{attention_forward.3} parent=1 // pred_check_branch
      %2513 = sbr.rel (0) target = $region49
    $region48: #{attention_forward.3} parent=1 // pred_region
      %2514 = dma.done [#allocation5], 16
    $region49: #{attention_forward.3} parent=1 // pred_fallthru
      _
    // Predicated region
    $region50: #{attention_forward.3} parent=1 // pred_check
      _
    $region51: #{attention_forward.3} parent=1 // pred_check_branch
      %2516 = sbr.rel (0) target = $region53
    $region52: #{attention_forward.3} parent=1 // pred_region
      _
    $region53: #{attention_forward.3} parent=1 // pred_fallthru
      _
    %2517 = vsyncpa [#allocation5], 1

</llo_original>
